<compile_context>
chip_gen: v7x
topology: tpu7x:2x2x1
jax: 0.10.0
libtpu: 0.0.40
codegen_flags: <defaults>
</compile_context>

<pallas_src>
import functools
import math

import jax
import jax.numpy as jnp
from jax.experimental import pallas as pl
from jax.experimental.pallas import tpu as pltpu

# ------------------------- model hyper-parameters --------------------------
SAMPLE_RATE = 16000
N_FFT = 64
HOP = 32
NUM_MELS = 16          # feature dim F
CONF_DIM = 32          # conformer_size
FF_DIM = 64            # ff_dim
NUM_HEADS = 4
NUM_LAYERS = 2
CONV_K = 7             # conv_kernel_size (odd)
VOCAB = 11             # label_target_size (10) + blank
VOCAB_PAD = 128        # lane-dense padded output width for the final layer
CHUNK_SIZE = 480       # chunk size in raw samples
LOOKAHEAD = 1          # lookahead_size (in sub-sampled conformer frames)
CARRY = 2              # carry_over_size (in chunks)
VGG_CH = 8             # channels of the VGG frontend convs

_VMEM_LIMIT = 32 * 1024 * 1024


# ------------------------------- helpers -----------------------------------
def _cparams(*sem):
    return pltpu.CompilerParams(dimension_semantics=sem,
                                vmem_limit_bytes=_VMEM_LIMIT)


def _round_up(x, m):
    return (x + m - 1) // m * m


def _row_grid(m, max_block=512):
    """Pick a row-block size (multiple of 8) and padded row count."""
    if m <= max_block:
        tm = _round_up(max(m, 1), 8)
        return tm, tm, 1
    tm = max_block
    mp = _round_up(m, tm)
    return tm, mp, mp // tm


def _pad_rows(x, mp):
    return jnp.pad(x, ((0, mp - x.shape[0]),) + ((0, 0),) * (x.ndim - 1))


def _bf16(x):
    return x.astype(jnp.bfloat16)


def _sigmoid(x):
    return 1.0 / (1.0 + jnp.exp(-x))


def _ln(x, g, b):
    mean = jnp.mean(x, axis=-1, keepdims=True)
    var = jnp.mean((x - mean) ** 2, axis=-1, keepdims=True)
    return (x - mean) * jax.lax.rsqrt(var + 1e-5) * g + b


# ===================== fused log-mel feature kernel =========================
def _logmel_kernel(fr_ref, cos_ref, sin_ref, fb_ref, o_ref):
    f = _bf16(fr_ref[...])
    re = jnp.dot(f, cos_ref[...], preferred_element_type=jnp.float32)
    im = jnp.dot(f, sin_ref[...], preferred_element_type=jnp.float32)
    power = re * re + im * im
    mel = jnp.dot(_bf16(power), fb_ref[...], preferred_element_type=jnp.float32)
    o_ref[...] = jnp.log10(jnp.maximum(mel, 1e-10))


def logmel_pallas(frames2d, dft_cos, dft_sin, mel_fb_t):
    m, n = frames2d.shape
    nb = dft_cos.shape[1]
    tm, mp, nblk = _row_grid(m)
    out = pl.pallas_call(
        _logmel_kernel,
        grid=(nblk,),
        in_specs=[
            pl.BlockSpec((tm, n), lambda i: (i, 0)),
            pl.BlockSpec((n, nb), lambda i: (0, 0)),
            pl.BlockSpec((n, nb), lambda i: (0, 0)),
            pl.BlockSpec((nb, NUM_MELS), lambda i: (0, 0)),
        ],
        out_specs=pl.BlockSpec((tm, NUM_MELS), lambda i: (i, 0)),
        out_shape=jax.ShapeDtypeStruct((mp, NUM_MELS), jnp.float32),
        compiler_params=_cparams("parallel"),
    )(_pad_rows(frames2d, mp), _bf16(dft_cos), _bf16(dft_sin), _bf16(mel_fb_t))
    return out[:m]


def _mel_filterbank(num_mels, n_freqs, sample_rate, f_min=0.0, f_max=None):
    f_max = f_max if f_max is not None else sample_rate / 2.0

    def hz_to_mel(f):
        return 2595.0 * jnp.log10(1.0 + f / 700.0)

    def mel_to_hz(mval):
        return 700.0 * (jnp.power(10.0, mval / 2595.0) - 1.0)

    freqs = jnp.linspace(0.0, sample_rate / 2.0, n_freqs)
    mel_pts = jnp.linspace(hz_to_mel(f_min), hz_to_mel(f_max), num_mels + 2)
    hz = mel_to_hz(mel_pts)
    lower, center, upper = hz[:-2], hz[1:-1], hz[2:]
    up = (freqs[None, :] - lower[:, None]) / (center - lower)[:, None]
    down = (upper[:, None] - freqs[None, :]) / (upper - center)[:, None]
    return jnp.maximum(0.0, jnp.minimum(up, down))       # [num_mels, n_freqs]


def log_mel_features(raw_audio, raw_audio_len):
    x = jnp.squeeze(raw_audio, axis=-1)                   # [B, T]
    batch, total = x.shape
    n_frames = total // HOP + 1
    tp = _round_up(total, HOP)
    pad = N_FFT // 2
    xp = jnp.pad(x, ((0, 0), (pad, pad + (tp - total))))  # center=True framing
    nblocks = (tp + 2 * pad) // HOP
    blocks = xp.reshape(batch, nblocks, HOP)
    frames = jnp.concatenate([blocks[:, :-1], blocks[:, 1:]], axis=-1)
    frames = frames[:, :n_frames]                         # [B, Tf, n_fft]

    window = 0.5 - 0.5 * jnp.cos(2.0 * jnp.pi * jnp.arange(N_FFT) / N_FFT)
    n_bins = N_FFT // 2 + 1
    n_i = jnp.arange(N_FFT)[:, None].astype(jnp.float32)
    f_i = jnp.arange(n_bins)[None, :].astype(jnp.float32)
    ang = 2.0 * jnp.pi * n_i * f_i / N_FFT
    dft_cos = jnp.cos(ang) * window[:, None]              # window folded in
    dft_sin = -jnp.sin(ang) * window[:, None]
    fb = _mel_filterbank(NUM_MELS, n_bins, SAMPLE_RATE)   # [mels, bins]

    logmel = logmel_pallas(frames.reshape(batch * n_frames, N_FFT),
                           dft_cos, dft_sin, fb.T)
    logmel = logmel.reshape(batch, n_frames, NUM_MELS)
    feat_len = raw_audio_len // HOP + 1
    return logmel, feat_len


# ====================== fused VGG frontend kernel ===========================
def _conv3x3_to_lane_mats(w):
    """torch conv weight [Co,Ci,3,3] -> 3 time-tap mats [3, Ci*F, Co*F]
    with freq ('same') padding folded into the matrices."""
    co, ci, _, _ = w.shape
    f = NUM_MELS
    fi = jnp.arange(f)[:, None]
    fo = jnp.arange(f)[None, :]
    df = fi - fo + 1
    valid = ((df >= 0) & (df <= 2)).astype(w.dtype)
    dfc = jnp.clip(df, 0, 2)
    mats = []
    for dt in range(3):
        wsel = w[:, :, dt, :]                      # [Co, Ci, 3]
        m = wsel[:, :, dfc] * valid[None, None]    # [Co, Ci, F, F]
        m = jnp.transpose(m, (1, 2, 0, 3)).reshape(ci * f, co * f)
        mats.append(m)
    return jnp.stack(mats, 0)


def _conv_t3(h, w_taps_ref, bias):
    """3-tap conv along time: h [T, Kin] f32, w_taps_ref [3, Kin, Kout] bf16."""
    t = h.shape[0]
    kin = h.shape[1]
    kout = bias.shape[-1]
    zpad = jnp.zeros((1, kin), jnp.float32)
    hp = jnp.concatenate([zpad, h, zpad], axis=0)
    acc = jnp.zeros((t, kout), jnp.float32) + bias
    for dt in range(3):
        acc = acc + jnp.dot(_bf16(hp[dt:dt + t]), w_taps_ref[dt],
                            preferred_element_type=jnp.float32)
    return acc


def _pool_t2(h):
    """Time max-pool by 2 via selection matmuls (no strided slices)."""
    t = h.shape[0]
    t2 = t // 2
    r = jax.lax.broadcasted_iota(jnp.int32, (t2, t), 0)
    c = jax.lax.broadcasted_iota(jnp.int32, (t2, t), 1)
    se = (c == 2 * r).astype(jnp.float32)
    so = (c == 2 * r + 1).astype(jnp.float32)
    return jnp.maximum(jnp.dot(se, h, preferred_element_type=jnp.float32),
                       jnp.dot(so, h, preferred_element_type=jnp.float32))


def _relu(x):
    return jnp.maximum(x, 0.0)


def _vgg_kernel(x_ref, w1_ref, b1_ref, w2_ref, b2_ref, w3_ref, b3_ref,
                w4_ref, b4_ref, lw_ref, lb_ref, o_ref):
    x = x_ref[0]                                    # [Tc, F]
    h = _relu(_conv_t3(x, w1_ref, b1_ref[...]))     # [Tc, Co*F]
    h = _pool_t2(h)
    h = _relu(_conv_t3(h, w2_ref, b2_ref[...]))
    h = _relu(_conv_t3(h, w3_ref, b3_ref[...]))
    h = _pool_t2(h)
    h = _relu(_conv_t3(h, w4_ref, b4_ref[...]))
    o_ref[0] = jnp.dot(_bf16(h), lw_ref[...],
                       preferred_element_type=jnp.float32) + lb_ref[...]


def vgg_frontend(x_chunks, p):
    """x_chunks: [Mc, Tc, F] -> [Mc, Tc//4, CONF_DIM]."""
    mc, tc, f = x_chunks.shape
    np_frames = tc // 4
    lanes = VGG_CH * f
    w1 = _bf16(_conv3x3_to_lane_mats(p["c1_w"]))
    w2 = _bf16(_conv3x3_to_lane_mats(p["c2_w"]))
    w3 = _bf16(_conv3x3_to_lane_mats(p["c3_w"]))
    w4 = _bf16(_conv3x3_to_lane_mats(p["c4_w"]))
    b1 = jnp.repeat(p["c1_b"], f).reshape(1, lanes)
    b2 = jnp.repeat(p["c2_b"], f).reshape(1, lanes)
    b3 = jnp.repeat(p["c3_b"], f).reshape(1, lanes)
    b4 = jnp.repeat(p["c4_b"], f).reshape(1, lanes)
    lw = _bf16(p["lin_w"])
    lb = p["lin_b"].reshape(1, CONF_DIM)
    const2 = lambda: pl.BlockSpec((1, lanes), lambda i: (0, 0))
    return pl.pallas_call(
        _vgg_kernel,
        grid=(mc,),
        in_specs=[
            pl.BlockSpec((1, tc, f), lambda i: (i, 0, 0)),
            pl.BlockSpec((3, f, lanes), lambda i: (0, 0, 0)), const2(),
            pl.BlockSpec((3, lanes, lanes), lambda i: (0, 0, 0)), const2(),
            pl.BlockSpec((3, lanes, lanes), lambda i: (0, 0, 0)), const2(),
            pl.BlockSpec((3, lanes, lanes), lambda i: (0, 0, 0)), const2(),
            pl.BlockSpec((lanes, CONF_DIM), lambda i: (0, 0)),
            pl.BlockSpec((1, CONF_DIM), lambda i: (0, 0)),
        ],
        out_specs=pl.BlockSpec((1, np_frames, CONF_DIM), lambda i: (i, 0, 0)),
        out_shape=jax.ShapeDtypeStruct((mc, np_frames, CONF_DIM), jnp.float32),
        compiler_params=_cparams("parallel"),
    )(x_chunks, w1, b1, w2, b2, w3, b3, w4, b4, lw, lb)


# =================== fused feed-forward (+ optional final LN) ===============
def _ff_kernel(x_ref, g_ref, b_ref, w1_ref, b1_ref, w2_ref, b2_ref,
               fg_ref, fb_ref, o_ref, *, scale, final_ln):
    x = x_ref[...]
    h = _ln(x, g_ref[...], b_ref[...])
    h = jnp.dot(_bf16(h), w1_ref[...],
                preferred_element_type=jnp.float32) + b1_ref[...]
    h = h * _sigmoid(h)                               # SiLU
    y = jnp.dot(_bf16(h), w2_ref[...],
                preferred_element_type=jnp.float32) + b2_ref[...]
    out = x + scale * y
    if final_ln:
        out = _ln(out, fg_ref[...], fb_ref[...])
    o_ref[...] = out


def ff_module(x2d, p, scale=0.5, final_gb=None):
    m, d = x2d.shape
    ff = p["w1"].shape[1]
    tm, mp, nblk = _row_grid(m)
    if final_gb is None:
        fg = jnp.ones((1, d), jnp.float32)
        fb = jnp.zeros((1, d), jnp.float32)
    else:
        fg = final_gb[0].reshape(1, d)
        fb = final_gb[1].reshape(1, d)
    kern = functools.partial(_ff_kernel, scale=scale,
                             final_ln=final_gb is not None)
    out = pl.pallas_call(
        kern,
        grid=(nblk,),
        in_specs=[
            pl.BlockSpec((tm, d), lambda i: (i, 0)),
            pl.BlockSpec((1, d), lambda i: (0, 0)),
            pl.BlockSpec((1, d), lambda i: (0, 0)),
            pl.BlockSpec((d, ff), lambda i: (0, 0)),
            pl.BlockSpec((1, ff), lambda i: (0, 0)),
            pl.BlockSpec((ff, d), lambda i: (0, 0)),
            pl.BlockSpec((1, d), lambda i: (0, 0)),
            pl.BlockSpec((1, d), lambda i: (0, 0)),
            pl.BlockSpec((1, d), lambda i: (0, 0)),
        ],
        out_specs=pl.BlockSpec((tm, d), lambda i: (i, 0)),
        out_shape=jax.ShapeDtypeStruct((mp, d), jnp.float32),
        compiler_params=_cparams("parallel"),
    )(_pad_rows(x2d, mp),
      p["ln_g"].reshape(1, d), p["ln_b"].reshape(1, d),
      _bf16(p["w1"]), p["b1"].reshape(1, ff),
      _bf16(p["w2"]), p["b2"].reshape(1, d),
      fg, fb)
    return out[:m]


# ==================== fused LN + packed projection ==========================
def _ln_proj_kernel(x_ref, g_ref, b_ref, w_ref, bias_ref, o_ref):
    h = _ln(x_ref[...], g_ref[...], b_ref[...])
    o_ref[...] = jnp.dot(_bf16(h), w_ref[...],
                         preferred_element_type=jnp.float32) + bias_ref[...]


def ln_proj(x2d, g, b, w, bias):
    m, d = x2d.shape
    n = w.shape[1]
    tm, mp, nblk = _row_grid(m)
    out = pl.pallas_call(
        _ln_proj_kernel,
        grid=(nblk,),
        in_specs=[
            pl.BlockSpec((tm, d), lambda i: (i, 0)),
            pl.BlockSpec((1, d), lambda i: (0, 0)),
            pl.BlockSpec((1, d), lambda i: (0, 0)),
            pl.BlockSpec((d, n), lambda i: (0, 0)),
            pl.BlockSpec((1, n), lambda i: (0, 0)),
        ],
        out_specs=pl.BlockSpec((tm, n), lambda i: (i, 0)),
        out_shape=jax.ShapeDtypeStruct((mp, n), jnp.float32),
        compiler_params=_cparams("parallel"),
    )(_pad_rows(x2d, mp), g.reshape(1, d), b.reshape(1, d),
      _bf16(w), bias.reshape(1, n))
    return out[:m]


# ========== fused chunked attention + out-projection + residual =============
def _mhsa_attn_kernel(q_ref, k_ref, v_ref, bias_ref, wo_ref, bo_ref,
                      xres_ref, o_ref, *, nheads, scale):
    q = q_ref[0]                 # [Ne, D]
    k = k_ref[0]                 # [Tk, D]
    v = v_ref[0]                 # [Tk, D]
    bias = bias_ref[0]           # [1, Tk]
    wo = wo_ref[...]             # [D, D] f32
    d = q.shape[-1]
    dh = d // nheads
    y = jnp.zeros((q.shape[0], d), jnp.float32)
    for hd in range(nheads):
        lo, hi = hd * dh, (hd + 1) * dh
        s = jax.lax.dot_general(_bf16(q[:, lo:hi]), _bf16(k[:, lo:hi]),
                                (((1,), (1,)), ((), ())),
                                preferred_element_type=jnp.float32)
        s = s * scale + bias
        m = jnp.max(s, axis=-1, keepdims=True)
        p = jnp.exp(s - m)
        p = p * pl.reciprocal(jnp.sum(p, axis=-1, keepdims=True), approx=True)
        att_h = jnp.dot(_bf16(p), _bf16(v[:, lo:hi]),
                        preferred_element_type=jnp.float32)
        # out-projection folded per head:  concat(att_h) @ Wo == sum_h att_h @ Wo_h
        y = y + jnp.dot(_bf16(att_h), _bf16(wo[lo:hi, :]),
                        preferred_element_type=jnp.float32)
    o_ref[0] = xres_ref[0] + y + bo_ref[...]


def mhsa_attention(q, k, v, bias, wo, bo, x_res):
    g, ne, d = q.shape
    tk = k.shape[1]
    kern = functools.partial(_mhsa_attn_kernel, nheads=NUM_HEADS,
                             scale=1.0 / math.sqrt(d // NUM_HEADS))
    return pl.pallas_call(
        kern,
        grid=(g,),
        in_specs=[
            pl.BlockSpec((1, ne, d), lambda i: (i, 0, 0)),
            pl.BlockSpec((1, tk, d), lambda i: (i, 0, 0)),
            pl.BlockSpec((1, tk, d), lambda i: (i, 0, 0)),
            pl.BlockSpec((1, 1, tk), lambda i: (i, 0, 0)),
            pl.BlockSpec((d, d), lambda i: (0, 0)),
            pl.BlockSpec((1, d), lambda i: (0, 0)),
            pl.BlockSpec((1, ne, d), lambda i: (i, 0, 0)),
        ],
        out_specs=pl.BlockSpec((1, ne, d), lambda i: (i, 0, 0)),
        out_shape=jax.ShapeDtypeStruct((g, ne, d), jnp.float32),
        compiler_params=_cparams("parallel"),
    )(q, k, v, bias, wo, bo.reshape(1, d), x_res)


# ================= fused convolution module (per chunk) =====================
def _convmod_kernel(x_ref, g_ref, b_ref, pw1w_ref, pw1b_ref, dww_ref, dwb_ref,
                    ncg_ref, ncb_ref, pw2w_ref, pw2b_ref, o_ref, *, ksize):
    x = x_ref[0]                                    # [T, D]
    t, d = x.shape
    h = _ln(x, g_ref[...], b_ref[...])
    h = jnp.dot(_bf16(h), pw1w_ref[...],
                preferred_element_type=jnp.float32) + pw1b_ref[...]
    a = h[:, :d]
    gate = h[:, d:]
    h = a * _sigmoid(gate)                          # GLU
    # depthwise conv along time ('same'); T is tiny so unrolled taps are cheap
    pad = (ksize - 1) // 2
    zp = jnp.zeros((pad, d), jnp.float32)
    hp = jnp.concatenate([zp, h, zp], axis=0)
    dw = dww_ref[...]                               # [K, D]
    acc = jnp.zeros((t, d), jnp.float32) + dwb_ref[...]
    for kk in range(ksize):
        acc = acc + hp[kk:kk + t, :] * dw[kk:kk + 1, :]
    h = _ln(acc, ncg_ref[...], ncb_ref[...])        # LayerNormNC
    h = h * _sigmoid(h)                             # SiLU
    y = jnp.dot(_bf16(h), pw2w_ref[...],
                preferred_element_type=jnp.float32) + pw2b_ref[...]
    o_ref[0] = x + y                                # residual


def conv_module(x3d, p, ksize=CONV_K):
    mc, t, d = x3d.shape
    kern = functools.partial(_convmod_kernel, ksize=ksize)
    c1 = lambda n: pl.BlockSpec((1, n), lambda i: (0, 0))
    return pl.pallas_call(
        kern,
        grid=(mc,),
        in_specs=[
            pl.BlockSpec((1, t, d), lambda i: (i, 0, 0)),
            c1(d), c1(d),
            pl.BlockSpec((d, 2 * d), lambda i: (0, 0)), c1(2 * d),
            pl.BlockSpec((ksize, d), lambda i: (0, 0)), c1(d),
            c1(d), c1(d),
            pl.BlockSpec((d, d), lambda i: (0, 0)), c1(d),
        ],
        out_specs=pl.BlockSpec((1, t, d), lambda i: (i, 0, 0)),
        out_shape=jax.ShapeDtypeStruct((mc, t, d), jnp.float32),
        compiler_params=_cparams("parallel"),
    )(x3d, p["ln_g"].reshape(1, d), p["ln_b"].reshape(1, d),
      _bf16(p["pw1_w"]), p["pw1_b"].reshape(1, 2 * d),
      p["dw_w"], p["dw_b"].reshape(1, d),
      p["nc_g"].reshape(1, d), p["nc_b"].reshape(1, d),
      _bf16(p["pw2_w"]), p["pw2_b"].reshape(1, d))


# ============== fused final linear + log_softmax (128-lane out) =============
def _final_kernel(x_ref, w_ref, b_ref, o_ref):
    logits = jnp.dot(_bf16(x_ref[...]), w_ref[...],
                     preferred_element_type=jnp.float32) + b_ref[...]
    m = jnp.max(logits, axis=-1, keepdims=True)
    z = logits - m
    lse = jnp.log(jnp.sum(jnp.exp(z), axis=-1, keepdims=True))
    o_ref[...] = z - lse


def final_linear_log_softmax(x2d, w, b):
    m, d = x2d.shape
    v = w.shape[1]
    vp = VOCAB_PAD
    wp = jnp.zeros((d, vp), w.dtype).at[:, :v].set(w)
    bp = jnp.full((1, vp), -1e30, jnp.float32).at[0, :v].set(b)
    tm, mp, nblk = _row_grid(m)
    out = pl.pallas_call(
        _final_kernel,
        grid=(nblk,),
        in_specs=[
            pl.BlockSpec((tm, d), lambda i: (i, 0)),
            pl.BlockSpec((d, vp), lambda i: (0, 0)),
            pl.BlockSpec((1, vp), lambda i: (0, 0)),
        ],
        out_specs=pl.BlockSpec((tm, vp), lambda i: (i, 0)),
        out_shape=jax.ShapeDtypeStruct((mp, vp), jnp.float32),
        compiler_params=_cparams("parallel"),
    )(_pad_rows(x2d, mp), _bf16(wp), bp)
    return out[:m, :v]


# ============================ conformer modules =============================
def mhsa_streaming(x, sub_mask, ext_mask, p, np_frames, carry):
    """Chunked self-attention: queries = current (extended) chunk, keys/values
    = carry_over previous chunks + current extended chunk.  K/V projected once
    per frame; the key window is assembled from the projected tensors."""
    b, c, ne, d = x.shape
    m = b * c * ne
    qkv = ln_proj(x.reshape(m, d), p["ln_g"], p["ln_b"], p["wqkv"], p["bqkv"])
    qkv = qkv.reshape(b, c, ne, 3 * d)
    q = qkv[..., :d]
    k_all = qkv[..., d:2 * d]
    v_all = qkv[..., 2 * d:]

    def window(t, fill):
        parts = []
        for j in range(carry, 0, -1):                  # oldest carry chunk first
            prev = jnp.concatenate(
                [jnp.full((b, j, np_frames) + t.shape[3:], fill, t.dtype),
                 t[:, :c - j, :np_frames]], axis=1)
            parts.append(prev)
        parts.append(t)
        return jnp.concatenate(parts, axis=2)

    k_win = window(k_all, 0.0)                         # [B, C, Tk, D]
    v_win = window(v_all, 0.0)
    key_mask = window(ext_mask, False)                 # [B, C, Tk]
    tk = k_win.shape[2]
    bias = jnp.where(key_mask, 0.0, -1e30).astype(jnp.float32)

    g = b * c
    out = mhsa_attention(q.reshape(g, ne, d),
                         k_win.reshape(g, tk, d),
                         v_win.reshape(g, tk, d),
                         bias.reshape(g, 1, tk),
                         p["wo"], p["bo"],
                         x.reshape(g, ne, d))
    return out.reshape(b, c, ne, d)


def conformer_block(x, sub_mask, ext_mask, p, np_frames, carry):
    b, c, ne, d = x.shape
    m = b * c * ne
    x = ff_module(x.reshape(m, d), p["ff1"], scale=0.5).reshape(b, c, ne, d)
    x = mhsa_streaming(x, sub_mask, ext_mask, p["mhsa"], np_frames, carry)
    x = conv_module(x.reshape(b * c, ne, d), p["conv"]).reshape(b, c, ne, d)
    x = ff_module(x.reshape(m, d), p["ff2"], scale=0.5,
                  final_gb=(p["final_ln_g"], p["final_ln_b"])
                  ).reshape(b, c, ne, d)
    return x


def conformer_encoder(x_chunks, mask_chunks, p):
    b, c, tc, f = x_chunks.shape
    h = vgg_frontend(x_chunks.reshape(b * c, tc, f), p["frontend"])
    np_frames, d = h.shape[1], h.shape[2]
    time_red = tc // np_frames
    sub_mask = mask_chunks[:, :, ::time_red][:, :, :np_frames]
    h = h.reshape(b, c, np_frames, d)

    # append `lookahead_size` future frames (from the next chunk) to each chunk
    la = LOOKAHEAD
    if la > 0:
        nxt = jnp.concatenate([h[:, 1:, :la],
                               jnp.zeros((b, 1, la, d), h.dtype)], axis=1)
        nxt_m = jnp.concatenate([sub_mask[:, 1:, :la],
                                 jnp.zeros((b, 1, la), bool)], axis=1)
        h = jnp.concatenate([h, nxt], axis=2)                  # [B,C,Ne,D]
        ext_mask = jnp.concatenate([sub_mask, nxt_m], axis=2)
    else:
        ext_mask = sub_mask

    for li in range(NUM_LAYERS):
        h = conformer_block(h, sub_mask, ext_mask, p["blocks"][li],
                            np_frames, CARRY)

    out = h[:, :, :np_frames].reshape(b, c * np_frames, d)    # strip lookahead
    out_mask = sub_mask.reshape(b, c * np_frames)
    return out, out_mask


# ================================ model =====================================
def prep_streaming_input(features, mask):
    b, tf, f = features.shape
    chunk_frames = int(CHUNK_SIZE) // HOP + 1               # center=True framing
    time_pad = (-tf) % chunk_frames
    features = jnp.pad(features, ((0, 0), (0, time_pad), (0, 0)))
    mask = jnp.pad(mask, ((0, 0), (0, time_pad)))
    c = (tf + time_pad) // chunk_frames
    return (features.reshape(b, c, chunk_frames, f),
            mask.reshape(b, c, chunk_frames))


def model_forward(params, raw_audio, raw_audio_len):
    feats, feat_len = log_mel_features(raw_audio, raw_audio_len)
    mask = jnp.arange(feats.shape[1])[None, :] < feat_len[:, None]
    x_chunks, mask_chunks = prep_streaming_input(feats, mask)
    conf_out, out_mask = conformer_encoder(x_chunks, mask_chunks,
                                           params["conformer"])
    # final_dropout: identity in eval
    b, t, d = conf_out.shape
    log_probs = final_linear_log_softmax(conf_out.reshape(b * t, d),
                                         params["final_w"], params["final_b"])
    log_probs = log_probs.reshape(b, t, VOCAB)
    lengths = jnp.sum(out_mask.astype(jnp.int32), axis=1)
    return log_probs, lengths


# ============================ parameter init ================================
def init_params(key):
    keys = iter(jax.random.split(key, 128))

    def w(shape, scale=0.05):
        return scale * jax.random.normal(next(keys), shape, jnp.float32)

    zeros = lambda s: jnp.zeros(s, jnp.float32)
    ones = lambda s: jnp.ones(s, jnp.float32)
    d, ff, k = CONF_DIM, FF_DIM, CONV_K

    frontend = dict(
        c1_w=w((VGG_CH, 1, 3, 3)), c1_b=zeros((VGG_CH,)),
        c2_w=w((VGG_CH, VGG_CH, 3, 3)), c2_b=zeros((VGG_CH,)),
        c3_w=w((VGG_CH, VGG_CH, 3, 3)), c3_b=zeros((VGG_CH,)),
        c4_w=w((VGG_CH, VGG_CH, 3, 3)), c4_b=zeros((VGG_CH,)),
        lin_w=w((VGG_CH * NUM_MELS, d)), lin_b=zeros((d,)),
    )

    def ff_params():
        return dict(ln_g=ones((d,)), ln_b=zeros((d,)),
                    w1=w((d, ff)), b1=zeros((ff,)),
                    w2=w((ff, d)), b2=zeros((d,)))

    def block_params():
        return dict(
            ff1=ff_params(),
            mhsa=dict(ln_g=ones((d,)), ln_b=zeros((d,)),
                      wqkv=w((d, 3 * d)), bqkv=zeros((3 * d,)),
                      wo=w((d, d)), bo=zeros((d,))),
            conv=dict(ln_g=ones((d,)), ln_b=zeros((d,)),
                      pw1_w=w((d, 2 * d)), pw1_b=zeros((2 * d,)),
                      dw_w=w((k, d)), dw_b=zeros((d,)),
                      nc_g=ones((d,)), nc_b=zeros((d,)),
                      pw2_w=w((d, d)), pw2_b=zeros((d,))),
            ff2=ff_params(),
            final_ln_g=ones((d,)), final_ln_b=zeros((d,)),
        )

    conformer = dict(frontend=frontend,
                     blocks=[block_params() for _ in range(NUM_LAYERS)])
    return dict(conformer=conformer,
                final_w=w((d, VOCAB)), final_b=zeros((VOCAB,)))


# ================================== main ====================================
if __name__ == "__main__":
    key = jax.random.PRNGKey(0)
    pkey, akey = jax.random.split(key)
    params = init_params(pkey)

    B, T = 2, 2400
    raw_audio = 0.1 * jax.random.normal(akey, (B, T, 1), jnp.float32)
    raw_audio_len = jnp.array([2400, 1800], jnp.int32)

    fwd = jax.jit(model_forward)
    log_probs, out_lens = fwd(params, raw_audio, raw_audio_len)
    jax.block_until_ready(log_probs)
    jax.block_until_ready(out_lens)

    assert log_probs.shape[0] == B and log_probs.shape[2] == VOCAB
    assert bool(jnp.all(jnp.isfinite(log_probs)))
    # log_softmax rows must sum to ~1 in prob space
    assert bool(jnp.allclose(jnp.sum(jnp.exp(log_probs), axis=-1), 1.0,
                             atol=1e-3))
    print("KERNEL_OK")
</pallas_src>

<mosaic_0001>
module attributes {stable_mosaic.version = 11 : i64} {
  func.func @_logmel_kernel(%arg0: i32, %arg1: memref<152x64xf32, #tpu.memory_space<vmem>>, %arg2: memref<64x33xbf16, #tpu.memory_space<vmem>>, %arg3: memref<64x33xbf16, #tpu.memory_space<vmem>>, %arg4: memref<33x16xbf16, #tpu.memory_space<vmem>>, %arg5: memref<152x16xf32, #tpu.memory_space<vmem>>) attributes {dimension_semantics = [#tpu.dimension_semantics<parallel>], iteration_bounds = array<i64: 1>, scalar_prefetch = 0 : i64, scratch_operands = 0 : i64, tpu.core_type = #tpu.core_type<tc>, window_params = [{transform_indices = @transform_0, window_bounds = array<i64: 152, 64>}, {pipeline_mode = #tpu.pipeline_mode<synchronous>, transform_indices = @transform_1, window_bounds = array<i64: 64, 33>}, {pipeline_mode = #tpu.pipeline_mode<synchronous>, transform_indices = @transform_2, window_bounds = array<i64: 64, 33>}, {pipeline_mode = #tpu.pipeline_mode<synchronous>, transform_indices = @transform_3, window_bounds = array<i64: 33, 16>}, {transform_indices = @transform_4, window_bounds = array<i64: 152, 16>}]} {
    %c0 = arith.constant 0 : index
    %c0_0 = arith.constant 0 : index
    %0 = vector.load %arg1[%c0, %c0_0] : memref<152x64xf32, #tpu.memory_space<vmem>>, vector<152x64xf32>
    %1 = arith.truncf %0 : vector<152x64xf32> to vector<152x64xbf16>
    %c0_1 = arith.constant 0 : index
    %c0_2 = arith.constant 0 : index
    %2 = vector.load %arg2[%c0_1, %c0_2] : memref<64x33xbf16, #tpu.memory_space<vmem>>, vector<64x33xbf16>
    %cst = arith.constant dense<0.000000e+00> : vector<152x33xf32>
    %3 = tpu.matmul %1, %2, %cst {dimension_numbers = #tpu.dot_dimension_numbers<[1], [0], [0], [1], [0, 0, 1, 1], [], []>} : vector<152x64xbf16>, vector<64x33xbf16>, vector<152x33xf32> -> vector<152x33xf32>
    %c0_3 = arith.constant 0 : index
    %c0_4 = arith.constant 0 : index
    %4 = vector.load %arg3[%c0_3, %c0_4] : memref<64x33xbf16, #tpu.memory_space<vmem>>, vector<64x33xbf16>
    %cst_5 = arith.constant dense<0.000000e+00> : vector<152x33xf32>
    %5 = tpu.matmul %1, %4, %cst_5 {dimension_numbers = #tpu.dot_dimension_numbers<[1], [0], [0], [1], [0, 0, 1, 1], [], []>} : vector<152x64xbf16>, vector<64x33xbf16>, vector<152x33xf32> -> vector<152x33xf32>
    %6 = arith.mulf %3, %3 : vector<152x33xf32>
    %7 = arith.mulf %5, %5 : vector<152x33xf32>
    %8 = arith.addf %6, %7 : vector<152x33xf32>
    %9 = arith.truncf %8 : vector<152x33xf32> to vector<152x33xbf16>
    %c0_6 = arith.constant 0 : index
    %c0_7 = arith.constant 0 : index
    %10 = vector.load %arg4[%c0_6, %c0_7] : memref<33x16xbf16, #tpu.memory_space<vmem>>, vector<33x16xbf16>
    %cst_8 = arith.constant dense<0.000000e+00> : vector<152x16xf32>
    %11 = tpu.matmul %9, %10, %cst_8 {dimension_numbers = #tpu.dot_dimension_numbers<[1], [0], [0], [1], [0, 0, 1, 1], [], []>} : vector<152x33xbf16>, vector<33x16xbf16>, vector<152x16xf32> -> vector<152x16xf32>
    %cst_9 = arith.constant 1.000000e-10 : f32
    %12 = vector.broadcast %cst_9 : f32 to vector<152x16xf32>
    %13 = arith.maximumf %11, %12 : vector<152x16xf32>
    %14 = math.log %13 : vector<152x16xf32>
    %cst_10 = arith.constant 0.434294492 : f32
    %15 = vector.broadcast %cst_10 : f32 to vector<152x16xf32>
    %16 = arith.mulf %14, %15 : vector<152x16xf32>
    %c0_11 = arith.constant 0 : index
    %c0_12 = arith.constant 0 : index
    %17 = vector.load %arg5[%c0_11, %c0_12] : memref<152x16xf32, #tpu.memory_space<vmem>>, vector<152x16xf32>
    tpu.vector_store %arg5[%c0_11, %c0_12], %16 {strides = array<i32>} : memref<152x16xf32, #tpu.memory_space<vmem>>, vector<152x16xf32>,
    return
  }
  func.func @transform_0(%arg0: i32) -> (i32, i32) {
    %c0_i32 = arith.constant 0 : i32
    %c0_i32_0 = arith.constant 0 : i32
    return %arg0, %c0_i32 : i32, i32
  }
  func.func @transform_1(%arg0: i32) -> (i32, i32) {
    %c0_i32 = arith.constant 0 : i32
    %c0_i32_0 = arith.constant 0 : i32
    %c0_i32_1 = arith.constant 0 : i32
    return %c0_i32, %c0_i32_0 : i32, i32
  }
  func.func @transform_2(%arg0: i32) -> (i32, i32) {
    %c0_i32 = arith.constant 0 : i32
    %c0_i32_0 = arith.constant 0 : i32
    %c0_i32_1 = arith.constant 0 : i32
    return %c0_i32, %c0_i32_0 : i32, i32
  }
  func.func @transform_3(%arg0: i32) -> (i32, i32) {
    %c0_i32 = arith.constant 0 : i32
    %c0_i32_0 = arith.constant 0 : i32
    %c0_i32_1 = arith.constant 0 : i32
    return %c0_i32, %c0_i32_0 : i32, i32
  }
  func.func @transform_4(%arg0: i32) -> (i32, i32) {
    %c0_i32 = arith.constant 0 : i32
    %c0_i32_0 = arith.constant 0 : i32
    return %arg0, %c0_i32 : i32, i32
  }
}

module attributes {stable_mosaic.version = 11 : i64} {
  func.func @_vgg_kernel(%arg0: i32, %arg1: memref<1x16x16xf32, #tpu.memory_space<vmem>>, %arg2: memref<3x16x128xbf16, #tpu.memory_space<vmem>>, %arg3: memref<1x128xf32, #tpu.memory_space<vmem>>, %arg4: memref<3x128x128xbf16, #tpu.memory_space<vmem>>, %arg5: memref<1x128xf32, #tpu.memory_space<vmem>>, %arg6: memref<3x128x128xbf16, #tpu.memory_space<vmem>>, %arg7: memref<1x128xf32, #tpu.memory_space<vmem>>, %arg8: memref<3x128x128xbf16, #tpu.memory_space<vmem>>, %arg9: memref<1x128xf32, #tpu.memory_space<vmem>>, %arg10: memref<128x32xbf16, #tpu.memory_space<vmem>>, %arg11: memref<1x32xf32, #tpu.memory_space<vmem>>, %arg12: memref<1x4x32xf32, #tpu.memory_space<vmem>>) attributes {dimension_semantics = [#tpu.dimension_semantics<parallel>], iteration_bounds = array<i64: 10>, scalar_prefetch = 0 : i64, scratch_operands = 0 : i64, tpu.core_type = #tpu.core_type<tc>, window_params = [{transform_indices = @transform_0, window_bounds = array<i64: 1, 16, 16>}, {pipeline_mode = #tpu.pipeline_mode<synchronous>, transform_indices = @transform_1, window_bounds = array<i64: 3, 16, 128>}, {pipeline_mode = #tpu.pipeline_mode<synchronous>, transform_indices = @transform_2, window_bounds = array<i64: 1, 128>}, {pipeline_mode = #tpu.pipeline_mode<synchronous>, transform_indices = @transform_3, window_bounds = array<i64: 3, 128, 128>}, {pipeline_mode = #tpu.pipeline_mode<synchronous>, transform_indices = @transform_4, window_bounds = array<i64: 1, 128>}, {pipeline_mode = #tpu.pipeline_mode<synchronous>, transform_indices = @transform_5, window_bounds = array<i64: 3, 128, 128>}, {pipeline_mode = #tpu.pipeline_mode<synchronous>, transform_indices = @transform_6, window_bounds = array<i64: 1, 128>}, {pipeline_mode = #tpu.pipeline_mode<synchronous>, transform_indices = @transform_7, window_bounds = array<i64: 3, 128, 128>}, {pipeline_mode = #tpu.pipeline_mode<synchronous>, transform_indices = @transform_8, window_bounds = array<i64: 1, 128>}, {pipeline_mode = #tpu.pipeline_mode<synchronous>, transform_indices = @transform_9, window_bounds = array<i64: 128, 32>}, {pipeline_mode = #tpu.pipeline_mode<synchronous>, transform_indices = @transform_10, window_bounds = array<i64: 1, 32>}, {transform_indices = @transform_11, window_bounds = array<i64: 1, 4, 32>}]} {
    %c0 = arith.constant 0 : index
    %c0_0 = arith.constant 0 : index
    %c0_1 = arith.constant 0 : index
    %0 = vector.load %arg1[%c0, %c0_0, %c0_1] : memref<1x16x16xf32, #tpu.memory_space<vmem>>, vector<1x16x16xf32>
    %1 = vector.shape_cast %0 : vector<1x16x16xf32> to vector<16x16xf32>
    %c0_2 = arith.constant 0 : index
    %c0_3 = arith.constant 0 : index
    %2 = vector.load %arg3[%c0_2, %c0_3] : memref<1x128xf32, #tpu.memory_space<vmem>>, vector<1x128xf32>
    %cst = arith.constant 0.000000e+00 : f32
    %3 = vector.broadcast %cst : f32 to vector<1x16xf32>
    %4 = tpu.concatenate %3, %1, %3 in 0 : vector<1x16xf32>, vector<16x16xf32>, vector<1x16xf32> -> vector<18x16xf32>
    %cst_4 = arith.constant 0.000000e+00 : f32
    %5 = vector.broadcast %cst_4 : f32 to vector<16x128xf32>
    %6 = vector.broadcast %2 : vector<1x128xf32> to vector<16x128xf32>
    %7 = arith.addf %5, %6 : vector<16x128xf32>
    %8 = vector.extract_strided_slice %4 {offsets = [0, 0], sizes = [16, 16], strides = [1, 1]} : vector<18x16xf32> to vector<16x16xf32>
    %9 = arith.truncf %8 : vector<16x16xf32> to vector<16x16xbf16>
    %c0_5 = arith.constant 0 : index
    %c0_6 = arith.constant 0 : index
    %c0_7 = arith.constant 0 : index
    %10 = vector.load %arg2[%c0_5, %c0_6, %c0_7] : memref<3x16x128xbf16, #tpu.memory_space<vmem>>, vector<1x16x128xbf16>
    %11 = vector.shape_cast %10 : vector<1x16x128xbf16> to vector<16x128xbf16>
    %cst_8 = arith.constant dense<0.000000e+00> : vector<16x128xf32>
    %12 = tpu.matmul %9, %11, %cst_8 {dimension_numbers = #tpu.dot_dimension_numbers<[1], [0], [0], [1], [0, 0, 1, 1], [], []>} : vector<16x16xbf16>, vector<16x128xbf16>, vector<16x128xf32> -> vector<16x128xf32>
    %13 = arith.addf %7, %12 : vector<16x128xf32>
    %14 = vector.extract_strided_slice %4 {offsets = [1, 0], sizes = [16, 16], strides = [1, 1]} : vector<18x16xf32> to vector<16x16xf32>
    %15 = arith.truncf %14 : vector<16x16xf32> to vector<16x16xbf16>
    %c1 = arith.constant 1 : index
    %c0_9 = arith.constant 0 : index
    %c0_10 = arith.constant 0 : index
    %16 = vector.load %arg2[%c1, %c0_9, %c0_10] : memref<3x16x128xbf16, #tpu.memory_space<vmem>>, vector<1x16x128xbf16>
    %17 = vector.shape_cast %16 : vector<1x16x128xbf16> to vector<16x128xbf16>
    %cst_11 = arith.constant dense<0.000000e+00> : vector<16x128xf32>
    %18 = tpu.matmul %15, %17, %cst_11 {dimension_numbers = #tpu.dot_dimension_numbers<[1], [0], [0], [1], [0, 0, 1, 1], [], []>} : vector<16x16xbf16>, vector<16x128xbf16>, vector<16x128xf32> -> vector<16x128xf32>
    %19 = arith.addf %13, %18 : vector<16x128xf32>
    %20 = vector.extract_strided_slice %4 {offsets = [2, 0], sizes = [16, 16], strides = [1, 1]} : vector<18x16xf32> to vector<16x16xf32>
    %21 = arith.truncf %20 : vector<16x16xf32> to vector<16x16xbf16>
    %c2 = arith.constant 2 : index
    %c0_12 = arith.constant 0 : index
    %c0_13 = arith.constant 0 : index
    %22 = vector.load %arg2[%c2, %c0_12, %c0_13] : memref<3x16x128xbf16, #tpu.memory_space<vmem>>, vector<1x16x128xbf16>
    %23 = vector.shape_cast %22 : vector<1x16x128xbf16> to vector<16x128xbf16>
    %cst_14 = arith.constant dense<0.000000e+00> : vector<16x128xf32>
    %24 = tpu.matmul %21, %23, %cst_14 {dimension_numbers = #tpu.dot_dimension_numbers<[1], [0], [0], [1], [0, 0, 1, 1], [], []>} : vector<16x16xbf16>, vector<16x128xbf16>, vector<16x128xf32> -> vector<16x128xf32>
    %25 = arith.addf %19, %24 : vector<16x128xf32>
    %cst_15 = arith.constant 0.000000e+00 : f32
    %26 = vector.broadcast %cst_15 : f32 to vector<16x128xf32>
    %27 = arith.maximumf %25, %26 : vector<16x128xf32>
    %28 = tpu.iota {dimensions = array<i32: 0>} : vector<8x16xi32>
    %29 = tpu.iota {dimensions = array<i32: 1>} : vector<8x16xi32>
    %c2_i32 = arith.constant 2 : i32
    %30 = vector.broadcast %c2_i32 : i32 to vector<8x16xi32>
    %31 = arith.muli %30, %28 : vector<8x16xi32>
    %32 = arith.cmpi eq, %29, %31 : vector<8x16xi32>
    %33 = arith.extui %32 : vector<8x16xi1> to vector<8x16xi32>
    %34 = arith.sitofp %33 : vector<8x16xi32> to vector<8x16xf32>
    %c2_i32_16 = arith.constant 2 : i32
    %35 = vector.broadcast %c2_i32_16 : i32 to vector<8x16xi32>
    %36 = arith.muli %35, %28 : vector<8x16xi32>
    %c1_i32 = arith.constant 1 : i32
    %37 = vector.broadcast %c1_i32 : i32 to vector<8x16xi32>
    %38 = arith.addi %36, %37 : vector<8x16xi32>
    %39 = arith.cmpi eq, %29, %38 : vector<8x16xi32>
    %40 = arith.extui %39 : vector<8x16xi1> to vector<8x16xi32>
    %41 = arith.sitofp %40 : vector<8x16xi32> to vector<8x16xf32>
    %cst_17 = arith.constant dense<0.000000e+00> : vector<8x128xf32>
    %42 = tpu.matmul %34, %27, %cst_17 {dimension_numbers = #tpu.dot_dimension_numbers<[1], [0], [0], [1], [0, 0, 1, 1], [], []>} : vector<8x16xf32>, vector<16x128xf32>, vector<8x128xf32> -> vector<8x128xf32>
    %cst_18 = arith.constant dense<0.000000e+00> : vector<8x128xf32>
    %43 = tpu.matmul %41, %27, %cst_18 {dimension_numbers = #tpu.dot_dimension_numbers<[1], [0], [0], [1], [0, 0, 1, 1], [], []>} : vector<8x16xf32>, vector<16x128xf32>, vector<8x128xf32> -> vector<8x128xf32>
    %44 = arith.maximumf %42, %43 : vector<8x128xf32>
    %c0_19 = arith.constant 0 : index
    %c0_20 = arith.constant 0 : index
    %45 = vector.load %arg5[%c0_19, %c0_20] : memref<1x128xf32, #tpu.memory_space<vmem>>, vector<1x128xf32>
    %cst_21 = arith.constant 0.000000e+00 : f32
    %46 = vector.broadcast %cst_21 : f32 to vector<1x128xf32>
    %47 = tpu.concatenate %46, %44, %46 in 0 : vector<1x128xf32>, vector<8x128xf32>, vector<1x128xf32> -> vector<10x128xf32>
    %cst_22 = arith.constant 0.000000e+00 : f32
    %48 = vector.broadcast %cst_22 : f32 to vector<8x128xf32>
    %49 = vector.broadcast %45 : vector<1x128xf32> to vector<8x128xf32>
    %50 = arith.addf %48, %49 : vector<8x128xf32>
    %51 = vector.extract_strided_slice %47 {offsets = [0, 0], sizes = [8, 128], strides = [1, 1]} : vector<10x128xf32> to vector<8x128xf32>
    %52 = arith.truncf %51 : vector<8x128xf32> to vector<8x128xbf16>
    %c0_23 = arith.constant 0 : index
    %c0_24 = arith.constant 0 : index
    %c0_25 = arith.constant 0 : index
    %53 = vector.load %arg4[%c0_23, %c0_24, %c0_25] : memref<3x128x128xbf16, #tpu.memory_space<vmem>>, vector<1x128x128xbf16>
    %54 = vector.shape_cast %53 : vector<1x128x128xbf16> to vector<128x128xbf16>
    %cst_26 = arith.constant dense<0.000000e+00> : vector<8x128xf32>
    %55 = tpu.matmul %52, %54, %cst_26 {dimension_numbers = #tpu.dot_dimension_numbers<[1], [0], [0], [1], [0, 0, 1, 1], [], []>} : vector<8x128xbf16>, vector<128x128xbf16>, vector<8x128xf32> -> vector<8x128xf32>
    %56 = arith.addf %50, %55 : vector<8x128xf32>
    %57 = vector.extract_strided_slice %47 {offsets = [1, 0], sizes = [8, 128], strides = [1, 1]} : vector<10x128xf32> to vector<8x128xf32>
    %58 = arith.truncf %57 : vector<8x128xf32> to vector<8x128xbf16>
    %c1_27 = arith.constant 1 : index
    %c0_28 = arith.constant 0 : index
    %c0_29 = arith.constant 0 : index
    %59 = vector.load %arg4[%c1_27, %c0_28, %c0_29] : memref<3x128x128xbf16, #tpu.memory_space<vmem>>, vector<1x128x128xbf16>
    %60 = vector.shape_cast %59 : vector<1x128x128xbf16> to vector<128x128xbf16>
    %cst_30 = arith.constant dense<0.000000e+00> : vector<8x128xf32>
    %61 = tpu.matmul %58, %60, %cst_30 {dimension_numbers = #tpu.dot_dimension_numbers<[1], [0], [0], [1], [0, 0, 1, 1], [], []>} : vector<8x128xbf16>, vector<128x128xbf16>, vector<8x128xf32> -> vector<8x128xf32>
    %62 = arith.addf %56, %61 : vector<8x128xf32>
    %63 = vector.extract_strided_slice %47 {offsets = [2, 0], sizes = [8, 128], strides = [1, 1]} : vector<10x128xf32> to vector<8x128xf32>
    %64 = arith.truncf %63 : vector<8x128xf32> to vector<8x128xbf16>
    %c2_31 = arith.constant 2 : index
    %c0_32 = arith.constant 0 : index
    %c0_33 = arith.constant 0 : index
    %65 = vector.load %arg4[%c2_31, %c0_32, %c0_33] : memref<3x128x128xbf16, #tpu.memory_space<vmem>>, vector<1x128x128xbf16>
    %66 = vector.shape_cast %65 : vector<1x128x128xbf16> to vector<128x128xbf16>
    %cst_34 = arith.constant dense<0.000000e+00> : vector<8x128xf32>
    %67 = tpu.matmul %64, %66, %cst_34 {dimension_numbers = #tpu.dot_dimension_numbers<[1], [0], [0], [1], [0, 0, 1, 1], [], []>} : vector<8x128xbf16>, vector<128x128xbf16>, vector<8x128xf32> -> vector<8x128xf32>
    %68 = arith.addf %62, %67 : vector<8x128xf32>
    %cst_35 = arith.constant 0.000000e+00 : f32
    %69 = vector.broadcast %cst_35 : f32 to vector<8x128xf32>
    %70 = arith.maximumf %68, %69 : vector<8x128xf32>
    %c0_36 = arith.constant 0 : index
    %c0_37 = arith.constant 0 : index
    %71 = vector.load %arg7[%c0_36, %c0_37] : memref<1x128xf32, #tpu.memory_space<vmem>>, vector<1x128xf32>
    %cst_38 = arith.constant 0.000000e+00 : f32
    %72 = vector.broadcast %cst_38 : f32 to vector<1x128xf32>
    %73 = tpu.concatenate %72, %70, %72 in 0 : vector<1x128xf32>, vector<8x128xf32>, vector<1x128xf32> -> vector<10x128xf32>
    %cst_39 = arith.constant 0.000000e+00 : f32
    %74 = vector.broadcast %cst_39 : f32 to vector<8x128xf32>
    %75 = vector.broadcast %71 : vector<1x128xf32> to vector<8x128xf32>
    %76 = arith.addf %74, %75 : vector<8x128xf32>
    %77 = vector.extract_strided_slice %73 {offsets = [0, 0], sizes = [8, 128], strides = [1, 1]} : vector<10x128xf32> to vector<8x128xf32>
    %78 = arith.truncf %77 : vector<8x128xf32> to vector<8x128xbf16>
    %c0_40 = arith.constant 0 : index
    %c0_41 = arith.constant 0 : index
    %c0_42 = arith.constant 0 : index
    %79 = vector.load %arg6[%c0_40, %c0_41, %c0_42] : memref<3x128x128xbf16, #tpu.memory_space<vmem>>, vector<1x128x128xbf16>
    %80 = vector.shape_cast %79 : vector<1x128x128xbf16> to vector<128x128xbf16>
    %cst_43 = arith.constant dense<0.000000e+00> : vector<8x128xf32>
    %81 = tpu.matmul %78, %80, %cst_43 {dimension_numbers = #tpu.dot_dimension_numbers<[1], [0], [0], [1], [0, 0, 1, 1], [], []>} : vector<8x128xbf16>, vector<128x128xbf16>, vector<8x128xf32> -> vector<8x128xf32>
    %82 = arith.addf %76, %81 : vector<8x128xf32>
    %83 = vector.extract_strided_slice %73 {offsets = [1, 0], sizes = [8, 128], strides = [1, 1]} : vector<10x128xf32> to vector<8x128xf32>
    %84 = arith.truncf %83 : vector<8x128xf32> to vector<8x128xbf16>
    %c1_44 = arith.constant 1 : index
    %c0_45 = arith.constant 0 : index
    %c0_46 = arith.constant 0 : index
    %85 = vector.load %arg6[%c1_44, %c0_45, %c0_46] : memref<3x128x128xbf16, #tpu.memory_space<vmem>>, vector<1x128x128xbf16>
    %86 = vector.shape_cast %85 : vector<1x128x128xbf16> to vector<128x128xbf16>
    %cst_47 = arith.constant dense<0.000000e+00> : vector<8x128xf32>
    %87 = tpu.matmul %84, %86, %cst_47 {dimension_numbers = #tpu.dot_dimension_numbers<[1], [0], [0], [1], [0, 0, 1, 1], [], []>} : vector<8x128xbf16>, vector<128x128xbf16>, vector<8x128xf32> -> vector<8x128xf32>
    %88 = arith.addf %82, %87 : vector<8x128xf32>
    %89 = vector.extract_strided_slice %73 {offsets = [2, 0], sizes = [8, 128], strides = [1, 1]} : vector<10x128xf32> to vector<8x128xf32>
    %90 = arith.truncf %89 : vector<8x128xf32> to vector<8x128xbf16>
    %c2_48 = arith.constant 2 : index
    %c0_49 = arith.constant 0 : index
    %c0_50 = arith.constant 0 : index
    %91 = vector.load %arg6[%c2_48, %c0_49, %c0_50] : memref<3x128x128xbf16, #tpu.memory_space<vmem>>, vector<1x128x128xbf16>
    %92 = vector.shape_cast %91 : vector<1x128x128xbf16> to vector<128x128xbf16>
    %cst_51 = arith.constant dense<0.000000e+00> : vector<8x128xf32>
    %93 = tpu.matmul %90, %92, %cst_51 {dimension_numbers = #tpu.dot_dimension_numbers<[1], [0], [0], [1], [0, 0, 1, 1], [], []>} : vector<8x128xbf16>, vector<128x128xbf16>, vector<8x128xf32> -> vector<8x128xf32>
    %94 = arith.addf %88, %93 : vector<8x128xf32>
    %cst_52 = arith.constant 0.000000e+00 : f32
    %95 = vector.broadcast %cst_52 : f32 to vector<8x128xf32>
    %96 = arith.maximumf %94, %95 : vector<8x128xf32>
    %97 = tpu.iota {dimensions = array<i32: 0>} : vector<4x8xi32>
    %98 = tpu.iota {dimensions = array<i32: 1>} : vector<4x8xi32>
    %c2_i32_53 = arith.constant 2 : i32
    %99 = vector.broadcast %c2_i32_53 : i32 to vector<4x8xi32>
    %100 = arith.muli %99, %97 : vector<4x8xi32>
    %101 = arith.cmpi eq, %98, %100 : vector<4x8xi32>
    %102 = arith.extui %101 : vector<4x8xi1> to vector<4x8xi32>
    %103 = arith.sitofp %102 : vector<4x8xi32> to vector<4x8xf32>
    %c2_i32_54 = arith.constant 2 : i32
    %104 = vector.broadcast %c2_i32_54 : i32 to vector<4x8xi32>
    %105 = arith.muli %104, %97 : vector<4x8xi32>
    %c1_i32_55 = arith.constant 1 : i32
    %106 = vector.broadcast %c1_i32_55 : i32 to vector<4x8xi32>
    %107 = arith.addi %105, %106 : vector<4x8xi32>
    %108 = arith.cmpi eq, %98, %107 : vector<4x8xi32>
    %109 = arith.extui %108 : vector<4x8xi1> to vector<4x8xi32>
    %110 = arith.sitofp %109 : vector<4x8xi32> to vector<4x8xf32>
    %cst_56 = arith.constant dense<0.000000e+00> : vector<4x128xf32>
    %111 = tpu.matmul %103, %96, %cst_56 {dimension_numbers = #tpu.dot_dimension_numbers<[1], [0], [0], [1], [0, 0, 1, 1], [], []>} : vector<4x8xf32>, vector<8x128xf32>, vector<4x128xf32> -> vector<4x128xf32>
    %cst_57 = arith.constant dense<0.000000e+00> : vector<4x128xf32>
    %112 = tpu.matmul %110, %96, %cst_57 {dimension_numbers = #tpu.dot_dimension_numbers<[1], [0], [0], [1], [0, 0, 1, 1], [], []>} : vector<4x8xf32>, vector<8x128xf32>, vector<4x128xf32> -> vector<4x128xf32>
    %113 = arith.maximumf %111, %112 : vector<4x128xf32>
    %c0_58 = arith.constant 0 : index
    %c0_59 = arith.constant 0 : index
    %114 = vector.load %arg9[%c0_58, %c0_59] : memref<1x128xf32, #tpu.memory_space<vmem>>, vector<1x128xf32>
    %cst_60 = arith.constant 0.000000e+00 : f32
    %115 = vector.broadcast %cst_60 : f32 to vector<1x128xf32>
    %116 = tpu.concatenate %115, %113, %115 in 0 : vector<1x128xf32>, vector<4x128xf32>, vector<1x128xf32> -> vector<6x128xf32>
    %cst_61 = arith.constant 0.000000e+00 : f32
    %117 = vector.broadcast %cst_61 : f32 to vector<4x128xf32>
    %118 = vector.broadcast %114 : vector<1x128xf32> to vector<4x128xf32>
    %119 = arith.addf %117, %118 : vector<4x128xf32>
    %120 = vector.extract_strided_slice %116 {offsets = [0, 0], sizes = [4, 128], strides = [1, 1]} : vector<6x128xf32> to vector<4x128xf32>
    %121 = arith.truncf %120 : vector<4x128xf32> to vector<4x128xbf16>
    %c0_62 = arith.constant 0 : index
    %c0_63 = arith.constant 0 : index
    %c0_64 = arith.constant 0 : index
    %122 = vector.load %arg8[%c0_62, %c0_63, %c0_64] : memref<3x128x128xbf16, #tpu.memory_space<vmem>>, vector<1x128x128xbf16>
    %123 = vector.shape_cast %122 : vector<1x128x128xbf16> to vector<128x128xbf16>
    %cst_65 = arith.constant dense<0.000000e+00> : vector<4x128xf32>
    %124 = tpu.matmul %121, %123, %cst_65 {dimension_numbers = #tpu.dot_dimension_numbers<[1], [0], [0], [1], [0, 0, 1, 1], [], []>} : vector<4x128xbf16>, vector<128x128xbf16>, vector<4x128xf32> -> vector<4x128xf32>
    %125 = arith.addf %119, %124 : vector<4x128xf32>
    %126 = vector.extract_strided_slice %116 {offsets = [1, 0], sizes = [4, 128], strides = [1, 1]} : vector<6x128xf32> to vector<4x128xf32>
    %127 = arith.truncf %126 : vector<4x128xf32> to vector<4x128xbf16>
    %c1_66 = arith.constant 1 : index
    %c0_67 = arith.constant 0 : index
    %c0_68 = arith.constant 0 : index
    %128 = vector.load %arg8[%c1_66, %c0_67, %c0_68] : memref<3x128x128xbf16, #tpu.memory_space<vmem>>, vector<1x128x128xbf16>
    %129 = vector.shape_cast %128 : vector<1x128x128xbf16> to vector<128x128xbf16>
    %cst_69 = arith.constant dense<0.000000e+00> : vector<4x128xf32>
    %130 = tpu.matmul %127, %129, %cst_69 {dimension_numbers = #tpu.dot_dimension_numbers<[1], [0], [0], [1], [0, 0, 1, 1], [], []>} : vector<4x128xbf16>, vector<128x128xbf16>, vector<4x128xf32> -> vector<4x128xf32>
    %131 = arith.addf %125, %130 : vector<4x128xf32>
    %132 = vector.extract_strided_slice %116 {offsets = [2, 0], sizes = [4, 128], strides = [1, 1]} : vector<6x128xf32> to vector<4x128xf32>
    %133 = arith.truncf %132 : vector<4x128xf32> to vector<4x128xbf16>
    %c2_70 = arith.constant 2 : index
    %c0_71 = arith.constant 0 : index
    %c0_72 = arith.constant 0 : index
    %134 = vector.load %arg8[%c2_70, %c0_71, %c0_72] : memref<3x128x128xbf16, #tpu.memory_space<vmem>>, vector<1x128x128xbf16>
    %135 = vector.shape_cast %134 : vector<1x128x128xbf16> to vector<128x128xbf16>
    %cst_73 = arith.constant dense<0.000000e+00> : vector<4x128xf32>
    %136 = tpu.matmul %133, %135, %cst_73 {dimension_numbers = #tpu.dot_dimension_numbers<[1], [0], [0], [1], [0, 0, 1, 1], [], []>} : vector<4x128xbf16>, vector<128x128xbf16>, vector<4x128xf32> -> vector<4x128xf32>
    %137 = arith.addf %131, %136 : vector<4x128xf32>
    %cst_74 = arith.constant 0.000000e+00 : f32
    %138 = vector.broadcast %cst_74 : f32 to vector<4x128xf32>
    %139 = arith.maximumf %137, %138 : vector<4x128xf32>
    %140 = arith.truncf %139 : vector<4x128xf32> to vector<4x128xbf16>
    %c0_75 = arith.constant 0 : index
    %c0_76 = arith.constant 0 : index
    %141 = vector.load %arg10[%c0_75, %c0_76] : memref<128x32xbf16, #tpu.memory_space<vmem>>, vector<128x32xbf16>
    %cst_77 = arith.constant dense<0.000000e+00> : vector<4x32xf32>
    %142 = tpu.matmul %140, %141, %cst_77 {dimension_numbers = #tpu.dot_dimension_numbers<[1], [0], [0], [1], [0, 0, 1, 1], [], []>} : vector<4x128xbf16>, vector<128x32xbf16>, vector<4x32xf32> -> vector<4x32xf32>
    %c0_78 = arith.constant 0 : index
    %c0_79 = arith.constant 0 : index
    %143 = vector.load %arg11[%c0_78, %c0_79] : memref<1x32xf32, #tpu.memory_space<vmem>>, vector<1x32xf32>
    %144 = vector.broadcast %143 : vector<1x32xf32> to vector<4x32xf32>
    %145 = arith.addf %142, %144 : vector<4x32xf32>
    %c0_80 = arith.constant 0 : index
    %c0_81 = arith.constant 0 : index
    %c0_82 = arith.constant 0 : index
    %146 = vector.load %arg12[%c0_80, %c0_81, %c0_82] : memref<1x4x32xf32, #tpu.memory_space<vmem>>, vector<1x4x32xf32>
    %147 = vector.shape_cast %146 : vector<1x4x32xf32> to vector<4x32xf32>
    %148 = vector.shape_cast %145 : vector<4x32xf32> to vector<1x4x32xf32>
    tpu.vector_store %arg12[%c0_80, %c0_81, %c0_82], %148 {strides = array<i32>} : memref<1x4x32xf32, #tpu.memory_space<vmem>>, vector<1x4x32xf32>,
    return
  }
  func.func @transform_0(%arg0: i32) -> (i32, i32, i32) {
    %c0_i32 = arith.constant 0 : i32
    %c0_i32_0 = arith.constant 0 : i32
    %c0_i32_1 = arith.constant 0 : i32
    return %arg0, %c0_i32, %c0_i32_0 : i32, i32, i32
  }
  func.func @transform_1(%arg0: i32) -> (i32, i32, i32) {
    %c0_i32 = arith.constant 0 : i32
    %c0_i32_0 = arith.constant 0 : i32
    %c0_i32_1 = arith.constant 0 : i32
    %c0_i32_2 = arith.constant 0 : i32
    return %c0_i32, %c0_i32_0, %c0_i32_1 : i32, i32, i32
  }
  func.func @transform_2(%arg0: i32) -> (i32, i32) {
    %c0_i32 = arith.constant 0 : i32
    %c0_i32_0 = arith.constant 0 : i32
    %c0_i32_1 = arith.constant 0 : i32
    return %c0_i32, %c0_i32_0 : i32, i32
  }
  func.func @transform_3(%arg0: i32) -> (i32, i32, i32) {
    %c0_i32 = arith.constant 0 : i32
    %c0_i32_0 = arith.constant 0 : i32
    %c0_i32_1 = arith.constant 0 : i32
    %c0_i32_2 = arith.constant 0 : i32
    return %c0_i32, %c0_i32_0, %c0_i32_1 : i32, i32, i32
  }
  func.func @transform_4(%arg0: i32) -> (i32, i32) {
    %c0_i32 = arith.constant 0 : i32
    %c0_i32_0 = arith.constant 0 : i32
    %c0_i32_1 = arith.constant 0 : i32
    return %c0_i32, %c0_i32_0 : i32, i32
  }
  func.func @transform_5(%arg0: i32) -> (i32, i32, i32) {
    %c0_i32 = arith.constant 0 : i32
    %c0_i32_0 = arith.constant 0 : i32
    %c0_i32_1 = arith.constant 0 : i32
    %c0_i32_2 = arith.constant 0 : i32
    return %c0_i32, %c0_i32_0, %c0_i32_1 : i32, i32, i32
  }
  func.func @transform_6(%arg0: i32) -> (i32, i32) {
    %c0_i32 = arith.constant 0 : i32
    %c0_i32_0 = arith.constant 0 : i32
    %c0_i32_1 = arith.constant 0 : i32
    return %c0_i32, %c0_i32_0 : i32, i32
  }
  func.func @transform_7(%arg0: i32) -> (i32, i32, i32) {
    %c0_i32 = arith.constant 0 : i32
    %c0_i32_0 = arith.constant 0 : i32
    %c0_i32_1 = arith.constant 0 : i32
    %c0_i32_2 = arith.constant 0 : i32
    return %c0_i32, %c0_i32_0, %c0_i32_1 : i32, i32, i32
  }
  func.func @transform_8(%arg0: i32) -> (i32, i32) {
    %c0_i32 = arith.constant 0 : i32
    %c0_i32_0 = arith.constant 0 : i32
    %c0_i32_1 = arith.constant 0 : i32
    return %c0_i32, %c0_i32_0 : i32, i32
  }
  func.func @transform_9(%arg0: i32) -> (i32, i32) {
    %c0_i32 = arith.constant 0 : i32
    %c0_i32_0 = arith.constant 0 : i32
    %c0_i32_1 = arith.constant 0 : i32
    return %c0_i32, %c0_i32_0 : i32, i32
  }
  func.func @transform_10(%arg0: i32) -> (i32, i32) {
    %c0_i32 = arith.constant 0 : i32
    %c0_i32_0 = arith.constant 0 : i32
    %c0_i32_1 = arith.constant 0 : i32
    return %c0_i32, %c0_i32_0 : i32, i32
  }
  func.func @transform_11(%arg0: i32) -> (i32, i32, i32) {
    %c0_i32 = arith.constant 0 : i32
    %c0_i32_0 = arith.constant 0 : i32
    %c0_i32_1 = arith.constant 0 : i32
    return %arg0, %c0_i32, %c0_i32_0 : i32, i32, i32
  }
}

module attributes {stable_mosaic.version = 11 : i64} {
  func.func @_ff_kernel(%arg0: i32, %arg1: memref<56x32xf32, #tpu.memory_space<vmem>>, %arg2: memref<1x32xf32, #tpu.memory_space<vmem>>, %arg3: memref<1x32xf32, #tpu.memory_space<vmem>>, %arg4: memref<32x64xbf16, #tpu.memory_space<vmem>>, %arg5: memref<1x64xf32, #tpu.memory_space<vmem>>, %arg6: memref<64x32xbf16, #tpu.memory_space<vmem>>, %arg7: memref<1x32xf32, #tpu.memory_space<vmem>>, %arg8: memref<1x32xf32, #tpu.memory_space<vmem>>, %arg9: memref<1x32xf32, #tpu.memory_space<vmem>>, %arg10: memref<56x32xf32, #tpu.memory_space<vmem>>) attributes {dimension_semantics = [#tpu.dimension_semantics<parallel>], iteration_bounds = array<i64: 1>, scalar_prefetch = 0 : i64, scratch_operands = 0 : i64, tpu.core_type = #tpu.core_type<tc>, window_params = [{transform_indices = @transform_0, window_bounds = array<i64: 56, 32>}, {pipeline_mode = #tpu.pipeline_mode<synchronous>, transform_indices = @transform_1, window_bounds = array<i64: 1, 32>}, {pipeline_mode = #tpu.pipeline_mode<synchronous>, transform_indices = @transform_2, window_bounds = array<i64: 1, 32>}, {pipeline_mode = #tpu.pipeline_mode<synchronous>, transform_indices = @transform_3, window_bounds = array<i64: 32, 64>}, {pipeline_mode = #tpu.pipeline_mode<synchronous>, transform_indices = @transform_4, window_bounds = array<i64: 1, 64>}, {pipeline_mode = #tpu.pipeline_mode<synchronous>, transform_indices = @transform_5, window_bounds = array<i64: 64, 32>}, {pipeline_mode = #tpu.pipeline_mode<synchronous>, transform_indices = @transform_6, window_bounds = array<i64: 1, 32>}, {pipeline_mode = #tpu.pipeline_mode<synchronous>, transform_indices = @transform_7, window_bounds = array<i64: 1, 32>}, {pipeline_mode = #tpu.pipeline_mode<synchronous>, transform_indices = @transform_8, window_bounds = array<i64: 1, 32>}, {transform_indices = @transform_9, window_bounds = array<i64: 56, 32>}]} {
    %c0 = arith.constant 0 : index
    %c0_0 = arith.constant 0 : index
    %0 = vector.load %arg1[%c0, %c0_0] : memref<56x32xf32, #tpu.memory_space<vmem>>, vector<56x32xf32>
    %c0_1 = arith.constant 0 : index
    %c0_2 = arith.constant 0 : index
    %1 = vector.load %arg2[%c0_1, %c0_2] : memref<1x32xf32, #tpu.memory_space<vmem>>, vector<1x32xf32>
    %c0_3 = arith.constant 0 : index
    %c0_4 = arith.constant 0 : index
    %2 = vector.load %arg3[%c0_3, %c0_4] : memref<1x32xf32, #tpu.memory_space<vmem>>, vector<1x32xf32>
    %cst = arith.constant dense<0.000000e+00> : vector<56xf32>
    %3 = vector.multi_reduction <add>, %0, %cst [1] : vector<56x32xf32> to vector<56xf32>
    %4 = vector.shape_cast %3 : vector<56xf32> to vector<56x1xf32>
    %cst_5 = arith.constant 3.200000e+01 : f32
    %5 = vector.broadcast %cst_5 : f32 to vector<56x1xf32>
    %6 = arith.divf %4, %5 : vector<56x1xf32>
    %7 = vector.broadcast %6 : vector<56x1xf32> to vector<56x32xf32>
    %8 = arith.subf %0, %7 : vector<56x32xf32>
    %9 = arith.mulf %8, %8 : vector<56x32xf32>
    %cst_6 = arith.constant dense<0.000000e+00> : vector<56xf32>
    %10 = vector.multi_reduction <add>, %9, %cst_6 [1] : vector<56x32xf32> to vector<56xf32>
    %11 = vector.shape_cast %10 : vector<56xf32> to vector<56x1xf32>
    %cst_7 = arith.constant 3.200000e+01 : f32
    %12 = vector.broadcast %cst_7 : f32 to vector<56x1xf32>
    %13 = arith.divf %11, %12 : vector<56x1xf32>
    %14 = vector.broadcast %6 : vector<56x1xf32> to vector<56x32xf32>
    %15 = arith.subf %0, %14 : vector<56x32xf32>
    %cst_8 = arith.constant 9.99999974E-6 : f32
    %16 = vector.broadcast %cst_8 : f32 to vector<56x1xf32>
    %17 = arith.addf %13, %16 : vector<56x1xf32>
    %18 = math.rsqrt %17 : vector<56x1xf32>
    %19 = vector.broadcast %18 : vector<56x1xf32> to vector<56x32xf32>
    %20 = arith.mulf %15, %19 : vector<56x32xf32>
    %21 = vector.broadcast %1 : vector<1x32xf32> to vector<56x32xf32>
    %22 = arith.mulf %20, %21 : vector<56x32xf32>
    %23 = vector.broadcast %2 : vector<1x32xf32> to vector<56x32xf32>
    %24 = arith.addf %22, %23 : vector<56x32xf32>
    %25 = arith.truncf %24 : vector<56x32xf32> to vector<56x32xbf16>
    %c0_9 = arith.constant 0 : index
    %c0_10 = arith.constant 0 : index
    %26 = vector.load %arg4[%c0_9, %c0_10] : memref<32x64xbf16, #tpu.memory_space<vmem>>, vector<32x64xbf16>
    %cst_11 = arith.constant dense<0.000000e+00> : vector<56x64xf32>
    %27 = tpu.matmul %25, %26, %cst_11 {dimension_numbers = #tpu.dot_dimension_numbers<[1], [0], [0], [1], [0, 0, 1, 1], [], []>} : vector<56x32xbf16>, vector<32x64xbf16>, vector<56x64xf32> -> vector<56x64xf32>
    %c0_12 = arith.constant 0 : index
    %c0_13 = arith.constant 0 : index
    %28 = vector.load %arg5[%c0_12, %c0_13] : memref<1x64xf32, #tpu.memory_space<vmem>>, vector<1x64xf32>
    %29 = vector.broadcast %28 : vector<1x64xf32> to vector<56x64xf32>
    %30 = arith.addf %27, %29 : vector<56x64xf32>
    %cst_14 = arith.constant 0.000000e+00 : f32
    %31 = vector.broadcast %cst_14 : f32 to vector<56x64xf32>
    %32 = arith.subf %31, %30 : vector<56x64xf32>
    %33 = math.exp %32 : vector<56x64xf32>
    %cst_15 = arith.constant 1.000000e+00 : f32
    %34 = vector.broadcast %cst_15 : f32 to vector<56x64xf32>
    %35 = arith.addf %34, %33 : vector<56x64xf32>
    %cst_16 = arith.constant 1.000000e+00 : f32
    %36 = vector.broadcast %cst_16 : f32 to vector<56x64xf32>
    %37 = arith.divf %36, %35 : vector<56x64xf32>
    %38 = arith.mulf %30, %37 : vector<56x64xf32>
    %39 = arith.truncf %38 : vector<56x64xf32> to vector<56x64xbf16>
    %c0_17 = arith.constant 0 : index
    %c0_18 = arith.constant 0 : index
    %40 = vector.load %arg6[%c0_17, %c0_18] : memref<64x32xbf16, #tpu.memory_space<vmem>>, vector<64x32xbf16>
    %cst_19 = arith.constant dense<0.000000e+00> : vector<56x32xf32>
    %41 = tpu.matmul %39, %40, %cst_19 {dimension_numbers = #tpu.dot_dimension_numbers<[1], [0], [0], [1], [0, 0, 1, 1], [], []>} : vector<56x64xbf16>, vector<64x32xbf16>, vector<56x32xf32> -> vector<56x32xf32>
    %c0_20 = arith.constant 0 : index
    %c0_21 = arith.constant 0 : index
    %42 = vector.load %arg7[%c0_20, %c0_21] : memref<1x32xf32, #tpu.memory_space<vmem>>, vector<1x32xf32>
    %43 = vector.broadcast %42 : vector<1x32xf32> to vector<56x32xf32>
    %44 = arith.addf %41, %43 : vector<56x32xf32>
    %cst_22 = arith.constant 5.000000e-01 : f32
    %45 = vector.broadcast %cst_22 : f32 to vector<56x32xf32>
    %46 = arith.mulf %45, %44 : vector<56x32xf32>
    %47 = arith.addf %0, %46 : vector<56x32xf32>
    %c0_23 = arith.constant 0 : index
    %c0_24 = arith.constant 0 : index
    %48 = vector.load %arg10[%c0_23, %c0_24] : memref<56x32xf32, #tpu.memory_space<vmem>>, vector<56x32xf32>
    tpu.vector_store %arg10[%c0_23, %c0_24], %47 {strides = array<i32>} : memref<56x32xf32, #tpu.memory_space<vmem>>, vector<56x32xf32>,
    return
  }
  func.func @transform_0(%arg0: i32) -> (i32, i32) {
    %c0_i32 = arith.constant 0 : i32
    %c0_i32_0 = arith.constant 0 : i32
    return %arg0, %c0_i32 : i32, i32
  }
  func.func @transform_1(%arg0: i32) -> (i32, i32) {
    %c0_i32 = arith.constant 0 : i32
    %c0_i32_0 = arith.constant 0 : i32
    %c0_i32_1 = arith.constant 0 : i32
    return %c0_i32, %c0_i32_0 : i32, i32
  }
  func.func @transform_2(%arg0: i32) -> (i32, i32) {
    %c0_i32 = arith.constant 0 : i32
    %c0_i32_0 = arith.constant 0 : i32
    %c0_i32_1 = arith.constant 0 : i32
    return %c0_i32, %c0_i32_0 : i32, i32
  }
  func.func @transform_3(%arg0: i32) -> (i32, i32) {
    %c0_i32 = arith.constant 0 : i32
    %c0_i32_0 = arith.constant 0 : i32
    %c0_i32_1 = arith.constant 0 : i32
    return %c0_i32, %c0_i32_0 : i32, i32
  }
  func.func @transform_4(%arg0: i32) -> (i32, i32) {
    %c0_i32 = arith.constant 0 : i32
    %c0_i32_0 = arith.constant 0 : i32
    %c0_i32_1 = arith.constant 0 : i32
    return %c0_i32, %c0_i32_0 : i32, i32
  }
  func.func @transform_5(%arg0: i32) -> (i32, i32) {
    %c0_i32 = arith.constant 0 : i32
    %c0_i32_0 = arith.constant 0 : i32
    %c0_i32_1 = arith.constant 0 : i32
    return %c0_i32, %c0_i32_0 : i32, i32
  }
  func.func @transform_6(%arg0: i32) -> (i32, i32) {
    %c0_i32 = arith.constant 0 : i32
    %c0_i32_0 = arith.constant 0 : i32
    %c0_i32_1 = arith.constant 0 : i32
    return %c0_i32, %c0_i32_0 : i32, i32
  }
  func.func @transform_7(%arg0: i32) -> (i32, i32) {
    %c0_i32 = arith.constant 0 : i32
    %c0_i32_0 = arith.constant 0 : i32
    %c0_i32_1 = arith.constant 0 : i32
    return %c0_i32, %c0_i32_0 : i32, i32
  }
  func.func @transform_8(%arg0: i32) -> (i32, i32) {
    %c0_i32 = arith.constant 0 : i32
    %c0_i32_0 = arith.constant 0 : i32
    %c0_i32_1 = arith.constant 0 : i32
    return %c0_i32, %c0_i32_0 : i32, i32
  }
  func.func @transform_9(%arg0: i32) -> (i32, i32) {
    %c0_i32 = arith.constant 0 : i32
    %c0_i32_0 = arith.constant 0 : i32
    return %arg0, %c0_i32 : i32, i32
  }
}

module attributes {stable_mosaic.version = 11 : i64} {
  func.func @_ln_proj_kernel(%arg0: i32, %arg1: memref<56x32xf32, #tpu.memory_space<vmem>>, %arg2: memref<1x32xf32, #tpu.memory_space<vmem>>, %arg3: memref<1x32xf32, #tpu.memory_space<vmem>>, %arg4: memref<32x96xbf16, #tpu.memory_space<vmem>>, %arg5: memref<1x96xf32, #tpu.memory_space<vmem>>, %arg6: memref<56x96xf32, #tpu.memory_space<vmem>>) attributes {dimension_semantics = [#tpu.dimension_semantics<parallel>], iteration_bounds = array<i64: 1>, scalar_prefetch = 0 : i64, scratch_operands = 0 : i64, tpu.core_type = #tpu.core_type<tc>, window_params = [{transform_indices = @transform_0, window_bounds = array<i64: 56, 32>}, {pipeline_mode = #tpu.pipeline_mode<synchronous>, transform_indices = @transform_1, window_bounds = array<i64: 1, 32>}, {pipeline_mode = #tpu.pipeline_mode<synchronous>, transform_indices = @transform_2, window_bounds = array<i64: 1, 32>}, {pipeline_mode = #tpu.pipeline_mode<synchronous>, transform_indices = @transform_3, window_bounds = array<i64: 32, 96>}, {pipeline_mode = #tpu.pipeline_mode<synchronous>, transform_indices = @transform_4, window_bounds = array<i64: 1, 96>}, {transform_indices = @transform_5, window_bounds = array<i64: 56, 96>}]} {
    %c0 = arith.constant 0 : index
    %c0_0 = arith.constant 0 : index
    %0 = vector.load %arg1[%c0, %c0_0] : memref<56x32xf32, #tpu.memory_space<vmem>>, vector<56x32xf32>
    %c0_1 = arith.constant 0 : index
    %c0_2 = arith.constant 0 : index
    %1 = vector.load %arg2[%c0_1, %c0_2] : memref<1x32xf32, #tpu.memory_space<vmem>>, vector<1x32xf32>
    %c0_3 = arith.constant 0 : index
    %c0_4 = arith.constant 0 : index
    %2 = vector.load %arg3[%c0_3, %c0_4] : memref<1x32xf32, #tpu.memory_space<vmem>>, vector<1x32xf32>
    %cst = arith.constant dense<0.000000e+00> : vector<56xf32>
    %3 = vector.multi_reduction <add>, %0, %cst [1] : vector<56x32xf32> to vector<56xf32>
    %4 = vector.shape_cast %3 : vector<56xf32> to vector<56x1xf32>
    %cst_5 = arith.constant 3.200000e+01 : f32
    %5 = vector.broadcast %cst_5 : f32 to vector<56x1xf32>
    %6 = arith.divf %4, %5 : vector<56x1xf32>
    %7 = vector.broadcast %6 : vector<56x1xf32> to vector<56x32xf32>
    %8 = arith.subf %0, %7 : vector<56x32xf32>
    %9 = arith.mulf %8, %8 : vector<56x32xf32>
    %cst_6 = arith.constant dense<0.000000e+00> : vector<56xf32>
    %10 = vector.multi_reduction <add>, %9, %cst_6 [1] : vector<56x32xf32> to vector<56xf32>
    %11 = vector.shape_cast %10 : vector<56xf32> to vector<56x1xf32>
    %cst_7 = arith.constant 3.200000e+01 : f32
    %12 = vector.broadcast %cst_7 : f32 to vector<56x1xf32>
    %13 = arith.divf %11, %12 : vector<56x1xf32>
    %14 = vector.broadcast %6 : vector<56x1xf32> to vector<56x32xf32>
    %15 = arith.subf %0, %14 : vector<56x32xf32>
    %cst_8 = arith.constant 9.99999974E-6 : f32
    %16 = vector.broadcast %cst_8 : f32 to vector<56x1xf32>
    %17 = arith.addf %13, %16 : vector<56x1xf32>
    %18 = math.rsqrt %17 : vector<56x1xf32>
    %19 = vector.broadcast %18 : vector<56x1xf32> to vector<56x32xf32>
    %20 = arith.mulf %15, %19 : vector<56x32xf32>
    %21 = vector.broadcast %1 : vector<1x32xf32> to vector<56x32xf32>
    %22 = arith.mulf %20, %21 : vector<56x32xf32>
    %23 = vector.broadcast %2 : vector<1x32xf32> to vector<56x32xf32>
    %24 = arith.addf %22, %23 : vector<56x32xf32>
    %25 = arith.truncf %24 : vector<56x32xf32> to vector<56x32xbf16>
    %c0_9 = arith.constant 0 : index
    %c0_10 = arith.constant 0 : index
    %26 = vector.load %arg4[%c0_9, %c0_10] : memref<32x96xbf16, #tpu.memory_space<vmem>>, vector<32x96xbf16>
    %cst_11 = arith.constant dense<0.000000e+00> : vector<56x96xf32>
    %27 = tpu.matmul %25, %26, %cst_11 {dimension_numbers = #tpu.dot_dimension_numbers<[1], [0], [0], [1], [0, 0, 1, 1], [], []>} : vector<56x32xbf16>, vector<32x96xbf16>, vector<56x96xf32> -> vector<56x96xf32>
    %c0_12 = arith.constant 0 : index
    %c0_13 = arith.constant 0 : index
    %28 = vector.load %arg5[%c0_12, %c0_13] : memref<1x96xf32, #tpu.memory_space<vmem>>, vector<1x96xf32>
    %29 = vector.broadcast %28 : vector<1x96xf32> to vector<56x96xf32>
    %30 = arith.addf %27, %29 : vector<56x96xf32>
    %c0_14 = arith.constant 0 : index
    %c0_15 = arith.constant 0 : index
    %31 = vector.load %arg6[%c0_14, %c0_15] : memref<56x96xf32, #tpu.memory_space<vmem>>, vector<56x96xf32>
    tpu.vector_store %arg6[%c0_14, %c0_15], %30 {strides = array<i32>} : memref<56x96xf32, #tpu.memory_space<vmem>>, vector<56x96xf32>,
    return
  }
  func.func @transform_0(%arg0: i32) -> (i32, i32) {
    %c0_i32 = arith.constant 0 : i32
    %c0_i32_0 = arith.constant 0 : i32
    return %arg0, %c0_i32 : i32, i32
  }
  func.func @transform_1(%arg0: i32) -> (i32, i32) {
    %c0_i32 = arith.constant 0 : i32
    %c0_i32_0 = arith.constant 0 : i32
    %c0_i32_1 = arith.constant 0 : i32
    return %c0_i32, %c0_i32_0 : i32, i32
  }
  func.func @transform_2(%arg0: i32) -> (i32, i32) {
    %c0_i32 = arith.constant 0 : i32
    %c0_i32_0 = arith.constant 0 : i32
    %c0_i32_1 = arith.constant 0 : i32
    return %c0_i32, %c0_i32_0 : i32, i32
  }
  func.func @transform_3(%arg0: i32) -> (i32, i32) {
    %c0_i32 = arith.constant 0 : i32
    %c0_i32_0 = arith.constant 0 : i32
    %c0_i32_1 = arith.constant 0 : i32
    return %c0_i32, %c0_i32_0 : i32, i32
  }
  func.func @transform_4(%arg0: i32) -> (i32, i32) {
    %c0_i32 = arith.constant 0 : i32
    %c0_i32_0 = arith.constant 0 : i32
    %c0_i32_1 = arith.constant 0 : i32
    return %c0_i32, %c0_i32_0 : i32, i32
  }
  func.func @transform_5(%arg0: i32) -> (i32, i32) {
    %c0_i32 = arith.constant 0 : i32
    %c0_i32_0 = arith.constant 0 : i32
    return %arg0, %c0_i32 : i32, i32
  }
}

module attributes {stable_mosaic.version = 11 : i64} {
  func.func @_mhsa_attn_kernel(%arg0: i32, %arg1: memref<1x5x32xf32, #tpu.memory_space<vmem>>, %arg2: memref<1x13x32xf32, #tpu.memory_space<vmem>>, %arg3: memref<1x13x32xf32, #tpu.memory_space<vmem>>, %arg4: memref<1x1x13xf32, #tpu.memory_space<vmem>>, %arg5: memref<32x32xf32, #tpu.memory_space<vmem>>, %arg6: memref<1x32xf32, #tpu.memory_space<vmem>>, %arg7: memref<1x5x32xf32, #tpu.memory_space<vmem>>, %arg8: memref<1x5x32xf32, #tpu.memory_space<vmem>>) attributes {dimension_semantics = [#tpu.dimension_semantics<parallel>], iteration_bounds = array<i64: 10>, scalar_prefetch = 0 : i64, scratch_operands = 0 : i64, tpu.core_type = #tpu.core_type<tc>, window_params = [{transform_indices = @transform_0, window_bounds = array<i64: 1, 5, 32>}, {transform_indices = @transform_1, window_bounds = array<i64: 1, 13, 32>}, {transform_indices = @transform_2, window_bounds = array<i64: 1, 13, 32>}, {transform_indices = @transform_3, window_bounds = array<i64: 1, 1, 13>}, {pipeline_mode = #tpu.pipeline_mode<synchronous>, transform_indices = @transform_4, window_bounds = array<i64: 32, 32>}, {pipeline_mode = #tpu.pipeline_mode<synchronous>, transform_indices = @transform_5, window_bounds = array<i64: 1, 32>}, {transform_indices = @transform_6, window_bounds = array<i64: 1, 5, 32>}, {transform_indices = @transform_7, window_bounds = array<i64: 1, 5, 32>}]} {
    %c0 = arith.constant 0 : index
    %c0_0 = arith.constant 0 : index
    %c0_1 = arith.constant 0 : index
    %0 = vector.load %arg1[%c0, %c0_0, %c0_1] : memref<1x5x32xf32, #tpu.memory_space<vmem>>, vector<1x5x32xf32>
    %1 = vector.shape_cast %0 : vector<1x5x32xf32> to vector<5x32xf32>
    %c0_2 = arith.constant 0 : index
    %c0_3 = arith.constant 0 : index
    %c0_4 = arith.constant 0 : index
    %2 = vector.load %arg2[%c0_2, %c0_3, %c0_4] : memref<1x13x32xf32, #tpu.memory_space<vmem>>, vector<1x13x32xf32>
    %3 = vector.shape_cast %2 : vector<1x13x32xf32> to vector<13x32xf32>
    %c0_5 = arith.constant 0 : index
    %c0_6 = arith.constant 0 : index
    %c0_7 = arith.constant 0 : index
    %4 = vector.load %arg3[%c0_5, %c0_6, %c0_7] : memref<1x13x32xf32, #tpu.memory_space<vmem>>, vector<1x13x32xf32>
    %5 = vector.shape_cast %4 : vector<1x13x32xf32> to vector<13x32xf32>
    %c0_8 = arith.constant 0 : index
    %c0_9 = arith.constant 0 : index
    %c0_10 = arith.constant 0 : index
    %6 = vector.load %arg4[%c0_8, %c0_9, %c0_10] : memref<1x1x13xf32, #tpu.memory_space<vmem>>, vector<1x1x13xf32>
    %7 = vector.shape_cast %6 : vector<1x1x13xf32> to vector<1x13xf32>
    %c0_11 = arith.constant 0 : index
    %c0_12 = arith.constant 0 : index
    %8 = vector.load %arg5[%c0_11, %c0_12] : memref<32x32xf32, #tpu.memory_space<vmem>>, vector<32x32xf32>
    %cst = arith.constant 0.000000e+00 : f32
    %9 = vector.broadcast %cst : f32 to vector<5x32xf32>
    %10 = vector.extract_strided_slice %1 {offsets = [0, 0], sizes = [5, 8], strides = [1, 1]} : vector<5x32xf32> to vector<5x8xf32>
    %11 = arith.truncf %10 : vector<5x8xf32> to vector<5x8xbf16>
    %12 = vector.extract_strided_slice %3 {offsets = [0, 0], sizes = [13, 8], strides = [1, 1]} : vector<13x32xf32> to vector<13x8xf32>
    %13 = arith.truncf %12 : vector<13x8xf32> to vector<13x8xbf16>
    %cst_13 = arith.constant dense<0.000000e+00> : vector<5x13xf32>
    %14 = tpu.matmul %11, %13, %cst_13 {dimension_numbers = #tpu.dot_dimension_numbers<[1], [1], [0], [0], [0, 0, 1, 0], [], []>} : vector<5x8xbf16>, vector<13x8xbf16>, vector<5x13xf32> -> vector<5x13xf32>
    %cst_14 = arith.constant 0.353553385 : f32
    %15 = vector.broadcast %cst_14 : f32 to vector<5x13xf32>
    %16 = arith.mulf %14, %15 : vector<5x13xf32>
    %17 = vector.broadcast %7 : vector<1x13xf32> to vector<5x13xf32>
    %18 = arith.addf %16, %17 : vector<5x13xf32>
    %cst_15 = arith.constant dense<0xFF800000> : vector<5xf32>
    %19 = vector.multi_reduction <maximumf>, %18, %cst_15 [1] : vector<5x13xf32> to vector<5xf32>
    %20 = vector.shape_cast %19 : vector<5xf32> to vector<5x1xf32>
    %21 = vector.broadcast %20 : vector<5x1xf32> to vector<5x13xf32>
    %22 = arith.subf %18, %21 : vector<5x13xf32>
    %23 = math.exp %22 : vector<5x13xf32>
    %cst_16 = arith.constant dense<0.000000e+00> : vector<5xf32>
    %24 = vector.multi_reduction <add>, %23, %cst_16 [1] : vector<5x13xf32> to vector<5xf32>
    %25 = vector.shape_cast %24 : vector<5xf32> to vector<5x1xf32>
    %26 = tpu.reciprocal %25 {approx = true} : vector<5x1xf32> -> vector<5x1xf32>
    %27 = vector.broadcast %26 : vector<5x1xf32> to vector<5x13xf32>
    %28 = arith.mulf %23, %27 : vector<5x13xf32>
    %29 = arith.truncf %28 : vector<5x13xf32> to vector<5x13xbf16>
    %30 = vector.extract_strided_slice %5 {offsets = [0, 0], sizes = [13, 8], strides = [1, 1]} : vector<13x32xf32> to vector<13x8xf32>
    %31 = arith.truncf %30 : vector<13x8xf32> to vector<13x8xbf16>
    %cst_17 = arith.constant dense<0.000000e+00> : vector<5x8xf32>
    %32 = tpu.matmul %29, %31, %cst_17 {dimension_numbers = #tpu.dot_dimension_numbers<[1], [0], [0], [1], [0, 0, 1, 1], [], []>} : vector<5x13xbf16>, vector<13x8xbf16>, vector<5x8xf32> -> vector<5x8xf32>
    %33 = arith.truncf %32 : vector<5x8xf32> to vector<5x8xbf16>
    %34 = vector.extract_strided_slice %8 {offsets = [0, 0], sizes = [8, 32], strides = [1, 1]} : vector<32x32xf32> to vector<8x32xf32>
    %35 = arith.truncf %34 : vector<8x32xf32> to vector<8x32xbf16>
    %cst_18 = arith.constant dense<0.000000e+00> : vector<5x32xf32>
    %36 = tpu.matmul %33, %35, %cst_18 {dimension_numbers = #tpu.dot_dimension_numbers<[1], [0], [0], [1], [0, 0, 1, 1], [], []>} : vector<5x8xbf16>, vector<8x32xbf16>, vector<5x32xf32> -> vector<5x32xf32>
    %37 = arith.addf %9, %36 : vector<5x32xf32>
    %38 = vector.extract_strided_slice %1 {offsets = [0, 8], sizes = [5, 8], strides = [1, 1]} : vector<5x32xf32> to vector<5x8xf32>
    %39 = arith.truncf %38 : vector<5x8xf32> to vector<5x8xbf16>
    %40 = vector.extract_strided_slice %3 {offsets = [0, 8], sizes = [13, 8], strides = [1, 1]} : vector<13x32xf32> to vector<13x8xf32>
    %41 = arith.truncf %40 : vector<13x8xf32> to vector<13x8xbf16>
    %cst_19 = arith.constant dense<0.000000e+00> : vector<5x13xf32>
    %42 = tpu.matmul %39, %41, %cst_19 {dimension_numbers = #tpu.dot_dimension_numbers<[1], [1], [0], [0], [0, 0, 1, 0], [], []>} : vector<5x8xbf16>, vector<13x8xbf16>, vector<5x13xf32> -> vector<5x13xf32>
    %cst_20 = arith.constant 0.353553385 : f32
    %43 = vector.broadcast %cst_20 : f32 to vector<5x13xf32>
    %44 = arith.mulf %42, %43 : vector<5x13xf32>
    %45 = vector.broadcast %7 : vector<1x13xf32> to vector<5x13xf32>
    %46 = arith.addf %44, %45 : vector<5x13xf32>
    %cst_21 = arith.constant dense<0xFF800000> : vector<5xf32>
    %47 = vector.multi_reduction <maximumf>, %46, %cst_21 [1] : vector<5x13xf32> to vector<5xf32>
    %48 = vector.shape_cast %47 : vector<5xf32> to vector<5x1xf32>
    %49 = vector.broadcast %48 : vector<5x1xf32> to vector<5x13xf32>
    %50 = arith.subf %46, %49 : vector<5x13xf32>
    %51 = math.exp %50 : vector<5x13xf32>
    %cst_22 = arith.constant dense<0.000000e+00> : vector<5xf32>
    %52 = vector.multi_reduction <add>, %51, %cst_22 [1] : vector<5x13xf32> to vector<5xf32>
    %53 = vector.shape_cast %52 : vector<5xf32> to vector<5x1xf32>
    %54 = tpu.reciprocal %53 {approx = true} : vector<5x1xf32> -> vector<5x1xf32>
    %55 = vector.broadcast %54 : vector<5x1xf32> to vector<5x13xf32>
    %56 = arith.mulf %51, %55 : vector<5x13xf32>
    %57 = arith.truncf %56 : vector<5x13xf32> to vector<5x13xbf16>
    %58 = vector.extract_strided_slice %5 {offsets = [0, 8], sizes = [13, 8], strides = [1, 1]} : vector<13x32xf32> to vector<13x8xf32>
    %59 = arith.truncf %58 : vector<13x8xf32> to vector<13x8xbf16>
    %cst_23 = arith.constant dense<0.000000e+00> : vector<5x8xf32>
    %60 = tpu.matmul %57, %59, %cst_23 {dimension_numbers = #tpu.dot_dimension_numbers<[1], [0], [0], [1], [0, 0, 1, 1], [], []>} : vector<5x13xbf16>, vector<13x8xbf16>, vector<5x8xf32> -> vector<5x8xf32>
    %61 = arith.truncf %60 : vector<5x8xf32> to vector<5x8xbf16>
    %62 = vector.extract_strided_slice %8 {offsets = [8, 0], sizes = [8, 32], strides = [1, 1]} : vector<32x32xf32> to vector<8x32xf32>
    %63 = arith.truncf %62 : vector<8x32xf32> to vector<8x32xbf16>
    %cst_24 = arith.constant dense<0.000000e+00> : vector<5x32xf32>
    %64 = tpu.matmul %61, %63, %cst_24 {dimension_numbers = #tpu.dot_dimension_numbers<[1], [0], [0], [1], [0, 0, 1, 1], [], []>} : vector<5x8xbf16>, vector<8x32xbf16>, vector<5x32xf32> -> vector<5x32xf32>
    %65 = arith.addf %37, %64 : vector<5x32xf32>
    %66 = vector.extract_strided_slice %1 {offsets = [0, 16], sizes = [5, 8], strides = [1, 1]} : vector<5x32xf32> to vector<5x8xf32>
    %67 = arith.truncf %66 : vector<5x8xf32> to vector<5x8xbf16>
    %68 = vector.extract_strided_slice %3 {offsets = [0, 16], sizes = [13, 8], strides = [1, 1]} : vector<13x32xf32> to vector<13x8xf32>
    %69 = arith.truncf %68 : vector<13x8xf32> to vector<13x8xbf16>
    %cst_25 = arith.constant dense<0.000000e+00> : vector<5x13xf32>
    %70 = tpu.matmul %67, %69, %cst_25 {dimension_numbers = #tpu.dot_dimension_numbers<[1], [1], [0], [0], [0, 0, 1, 0], [], []>} : vector<5x8xbf16>, vector<13x8xbf16>, vector<5x13xf32> -> vector<5x13xf32>
    %cst_26 = arith.constant 0.353553385 : f32
    %71 = vector.broadcast %cst_26 : f32 to vector<5x13xf32>
    %72 = arith.mulf %70, %71 : vector<5x13xf32>
    %73 = vector.broadcast %7 : vector<1x13xf32> to vector<5x13xf32>
    %74 = arith.addf %72, %73 : vector<5x13xf32>
    %cst_27 = arith.constant dense<0xFF800000> : vector<5xf32>
    %75 = vector.multi_reduction <maximumf>, %74, %cst_27 [1] : vector<5x13xf32> to vector<5xf32>
    %76 = vector.shape_cast %75 : vector<5xf32> to vector<5x1xf32>
    %77 = vector.broadcast %76 : vector<5x1xf32> to vector<5x13xf32>
    %78 = arith.subf %74, %77 : vector<5x13xf32>
    %79 = math.exp %78 : vector<5x13xf32>
    %cst_28 = arith.constant dense<0.000000e+00> : vector<5xf32>
    %80 = vector.multi_reduction <add>, %79, %cst_28 [1] : vector<5x13xf32> to vector<5xf32>
    %81 = vector.shape_cast %80 : vector<5xf32> to vector<5x1xf32>
    %82 = tpu.reciprocal %81 {approx = true} : vector<5x1xf32> -> vector<5x1xf32>
    %83 = vector.broadcast %82 : vector<5x1xf32> to vector<5x13xf32>
    %84 = arith.mulf %79, %83 : vector<5x13xf32>
    %85 = arith.truncf %84 : vector<5x13xf32> to vector<5x13xbf16>
    %86 = vector.extract_strided_slice %5 {offsets = [0, 16], sizes = [13, 8], strides = [1, 1]} : vector<13x32xf32> to vector<13x8xf32>
    %87 = arith.truncf %86 : vector<13x8xf32> to vector<13x8xbf16>
    %cst_29 = arith.constant dense<0.000000e+00> : vector<5x8xf32>
    %88 = tpu.matmul %85, %87, %cst_29 {dimension_numbers = #tpu.dot_dimension_numbers<[1], [0], [0], [1], [0, 0, 1, 1], [], []>} : vector<5x13xbf16>, vector<13x8xbf16>, vector<5x8xf32> -> vector<5x8xf32>
    %89 = arith.truncf %88 : vector<5x8xf32> to vector<5x8xbf16>
    %90 = vector.extract_strided_slice %8 {offsets = [16, 0], sizes = [8, 32], strides = [1, 1]} : vector<32x32xf32> to vector<8x32xf32>
    %91 = arith.truncf %90 : vector<8x32xf32> to vector<8x32xbf16>
    %cst_30 = arith.constant dense<0.000000e+00> : vector<5x32xf32>
    %92 = tpu.matmul %89, %91, %cst_30 {dimension_numbers = #tpu.dot_dimension_numbers<[1], [0], [0], [1], [0, 0, 1, 1], [], []>} : vector<5x8xbf16>, vector<8x32xbf16>, vector<5x32xf32> -> vector<5x32xf32>
    %93 = arith.addf %65, %92 : vector<5x32xf32>
    %94 = vector.extract_strided_slice %1 {offsets = [0, 24], sizes = [5, 8], strides = [1, 1]} : vector<5x32xf32> to vector<5x8xf32>
    %95 = arith.truncf %94 : vector<5x8xf32> to vector<5x8xbf16>
    %96 = vector.extract_strided_slice %3 {offsets = [0, 24], sizes = [13, 8], strides = [1, 1]} : vector<13x32xf32> to vector<13x8xf32>
    %97 = arith.truncf %96 : vector<13x8xf32> to vector<13x8xbf16>
    %cst_31 = arith.constant dense<0.000000e+00> : vector<5x13xf32>
    %98 = tpu.matmul %95, %97, %cst_31 {dimension_numbers = #tpu.dot_dimension_numbers<[1], [1], [0], [0], [0, 0, 1, 0], [], []>} : vector<5x8xbf16>, vector<13x8xbf16>, vector<5x13xf32> -> vector<5x13xf32>
    %cst_32 = arith.constant 0.353553385 : f32
    %99 = vector.broadcast %cst_32 : f32 to vector<5x13xf32>
    %100 = arith.mulf %98, %99 : vector<5x13xf32>
    %101 = vector.broadcast %7 : vector<1x13xf32> to vector<5x13xf32>
    %102 = arith.addf %100, %101 : vector<5x13xf32>
    %cst_33 = arith.constant dense<0xFF800000> : vector<5xf32>
    %103 = vector.multi_reduction <maximumf>, %102, %cst_33 [1] : vector<5x13xf32> to vector<5xf32>
    %104 = vector.shape_cast %103 : vector<5xf32> to vector<5x1xf32>
    %105 = vector.broadcast %104 : vector<5x1xf32> to vector<5x13xf32>
    %106 = arith.subf %102, %105 : vector<5x13xf32>
    %107 = math.exp %106 : vector<5x13xf32>
    %cst_34 = arith.constant dense<0.000000e+00> : vector<5xf32>
    %108 = vector.multi_reduction <add>, %107, %cst_34 [1] : vector<5x13xf32> to vector<5xf32>
    %109 = vector.shape_cast %108 : vector<5xf32> to vector<5x1xf32>
    %110 = tpu.reciprocal %109 {approx = true} : vector<5x1xf32> -> vector<5x1xf32>
    %111 = vector.broadcast %110 : vector<5x1xf32> to vector<5x13xf32>
    %112 = arith.mulf %107, %111 : vector<5x13xf32>
    %113 = arith.truncf %112 : vector<5x13xf32> to vector<5x13xbf16>
    %114 = vector.extract_strided_slice %5 {offsets = [0, 24], sizes = [13, 8], strides = [1, 1]} : vector<13x32xf32> to vector<13x8xf32>
    %115 = arith.truncf %114 : vector<13x8xf32> to vector<13x8xbf16>
    %cst_35 = arith.constant dense<0.000000e+00> : vector<5x8xf32>
    %116 = tpu.matmul %113, %115, %cst_35 {dimension_numbers = #tpu.dot_dimension_numbers<[1], [0], [0], [1], [0, 0, 1, 1], [], []>} : vector<5x13xbf16>, vector<13x8xbf16>, vector<5x8xf32> -> vector<5x8xf32>
    %117 = arith.truncf %116 : vector<5x8xf32> to vector<5x8xbf16>
    %118 = vector.extract_strided_slice %8 {offsets = [24, 0], sizes = [8, 32], strides = [1, 1]} : vector<32x32xf32> to vector<8x32xf32>
    %119 = arith.truncf %118 : vector<8x32xf32> to vector<8x32xbf16>
    %cst_36 = arith.constant dense<0.000000e+00> : vector<5x32xf32>
    %120 = tpu.matmul %117, %119, %cst_36 {dimension_numbers = #tpu.dot_dimension_numbers<[1], [0], [0], [1], [0, 0, 1, 1], [], []>} : vector<5x8xbf16>, vector<8x32xbf16>, vector<5x32xf32> -> vector<5x32xf32>
    %121 = arith.addf %93, %120 : vector<5x32xf32>
    %c0_37 = arith.constant 0 : index
    %c0_38 = arith.constant 0 : index
    %c0_39 = arith.constant 0 : index
    %122 = vector.load %arg7[%c0_37, %c0_38, %c0_39] : memref<1x5x32xf32, #tpu.memory_space<vmem>>, vector<1x5x32xf32>
    %123 = vector.shape_cast %122 : vector<1x5x32xf32> to vector<5x32xf32>
    %124 = arith.addf %123, %121 : vector<5x32xf32>
    %c0_40 = arith.constant 0 : index
    %c0_41 = arith.constant 0 : index
    %125 = vector.load %arg6[%c0_40, %c0_41] : memref<1x32xf32, #tpu.memory_space<vmem>>, vector<1x32xf32>
    %126 = vector.broadcast %125 : vector<1x32xf32> to vector<5x32xf32>
    %127 = arith.addf %124, %126 : vector<5x32xf32>
    %c0_42 = arith.constant 0 : index
    %c0_43 = arith.constant 0 : index
    %c0_44 = arith.constant 0 : index
    %128 = vector.load %arg8[%c0_42, %c0_43, %c0_44] : memref<1x5x32xf32, #tpu.memory_space<vmem>>, vector<1x5x32xf32>
    %129 = vector.shape_cast %128 : vector<1x5x32xf32> to vector<5x32xf32>
    %130 = vector.shape_cast %127 : vector<5x32xf32> to vector<1x5x32xf32>
    tpu.vector_store %arg8[%c0_42, %c0_43, %c0_44], %130 {strides = array<i32>} : memref<1x5x32xf32, #tpu.memory_space<vmem>>, vector<1x5x32xf32>,
    return
  }
  func.func @transform_0(%arg0: i32) -> (i32, i32, i32) {
    %c0_i32 = arith.constant 0 : i32
    %c0_i32_0 = arith.constant 0 : i32
    %c0_i32_1 = arith.constant 0 : i32
    return %arg0, %c0_i32, %c0_i32_0 : i32, i32, i32
  }
  func.func @transform_1(%arg0: i32) -> (i32, i32, i32) {
    %c0_i32 = arith.constant 0 : i32
    %c0_i32_0 = arith.constant 0 : i32
    %c0_i32_1 = arith.constant 0 : i32
    return %arg0, %c0_i32, %c0_i32_0 : i32, i32, i32
  }
  func.func @transform_2(%arg0: i32) -> (i32, i32, i32) {
    %c0_i32 = arith.constant 0 : i32
    %c0_i32_0 = arith.constant 0 : i32
    %c0_i32_1 = arith.constant 0 : i32
    return %arg0, %c0_i32, %c0_i32_0 : i32, i32, i32
  }
  func.func @transform_3(%arg0: i32) -> (i32, i32, i32) {
    %c0_i32 = arith.constant 0 : i32
    %c0_i32_0 = arith.constant 0 : i32
    %c0_i32_1 = arith.constant 0 : i32
    return %arg0, %c0_i32, %c0_i32_0 : i32, i32, i32
  }
  func.func @transform_4(%arg0: i32) -> (i32, i32) {
    %c0_i32 = arith.constant 0 : i32
    %c0_i32_0 = arith.constant 0 : i32
    %c0_i32_1 = arith.constant 0 : i32
    return %c0_i32, %c0_i32_0 : i32, i32
  }
  func.func @transform_5(%arg0: i32) -> (i32, i32) {
    %c0_i32 = arith.constant 0 : i32
    %c0_i32_0 = arith.constant 0 : i32
    %c0_i32_1 = arith.constant 0 : i32
    return %c0_i32, %c0_i32_0 : i32, i32
  }
  func.func @transform_6(%arg0: i32) -> (i32, i32, i32) {
    %c0_i32 = arith.constant 0 : i32
    %c0_i32_0 = arith.constant 0 : i32
    %c0_i32_1 = arith.constant 0 : i32
    return %arg0, %c0_i32, %c0_i32_0 : i32, i32, i32
  }
  func.func @transform_7(%arg0: i32) -> (i32, i32, i32) {
    %c0_i32 = arith.constant 0 : i32
    %c0_i32_0 = arith.constant 0 : i32
    %c0_i32_1 = arith.constant 0 : i32
    return %arg0, %c0_i32, %c0_i32_0 : i32, i32, i32
  }
}

module attributes {stable_mosaic.version = 11 : i64} {
  func.func @_convmod_kernel(%arg0: i32, %arg1: memref<1x5x32xf32, #tpu.memory_space<vmem>>, %arg2: memref<1x32xf32, #tpu.memory_space<vmem>>, %arg3: memref<1x32xf32, #tpu.memory_space<vmem>>, %arg4: memref<32x64xbf16, #tpu.memory_space<vmem>>, %arg5: memref<1x64xf32, #tpu.memory_space<vmem>>, %arg6: memref<7x32xf32, #tpu.memory_space<vmem>>, %arg7: memref<1x32xf32, #tpu.memory_space<vmem>>, %arg8: memref<1x32xf32, #tpu.memory_space<vmem>>, %arg9: memref<1x32xf32, #tpu.memory_space<vmem>>, %arg10: memref<32x32xbf16, #tpu.memory_space<vmem>>, %arg11: memref<1x32xf32, #tpu.memory_space<vmem>>, %arg12: memref<1x5x32xf32, #tpu.memory_space<vmem>>) attributes {dimension_semantics = [#tpu.dimension_semantics<parallel>], iteration_bounds = array<i64: 10>, scalar_prefetch = 0 : i64, scratch_operands = 0 : i64, tpu.core_type = #tpu.core_type<tc>, window_params = [{transform_indices = @transform_0, window_bounds = array<i64: 1, 5, 32>}, {pipeline_mode = #tpu.pipeline_mode<synchronous>, transform_indices = @transform_1, window_bounds = array<i64: 1, 32>}, {pipeline_mode = #tpu.pipeline_mode<synchronous>, transform_indices = @transform_2, window_bounds = array<i64: 1, 32>}, {pipeline_mode = #tpu.pipeline_mode<synchronous>, transform_indices = @transform_3, window_bounds = array<i64: 32, 64>}, {pipeline_mode = #tpu.pipeline_mode<synchronous>, transform_indices = @transform_4, window_bounds = array<i64: 1, 64>}, {pipeline_mode = #tpu.pipeline_mode<synchronous>, transform_indices = @transform_5, window_bounds = array<i64: 7, 32>}, {pipeline_mode = #tpu.pipeline_mode<synchronous>, transform_indices = @transform_6, window_bounds = array<i64: 1, 32>}, {pipeline_mode = #tpu.pipeline_mode<synchronous>, transform_indices = @transform_7, window_bounds = array<i64: 1, 32>}, {pipeline_mode = #tpu.pipeline_mode<synchronous>, transform_indices = @transform_8, window_bounds = array<i64: 1, 32>}, {pipeline_mode = #tpu.pipeline_mode<synchronous>, transform_indices = @transform_9, window_bounds = array<i64: 32, 32>}, {pipeline_mode = #tpu.pipeline_mode<synchronous>, transform_indices = @transform_10, window_bounds = array<i64: 1, 32>}, {transform_indices = @transform_11, window_bounds = array<i64: 1, 5, 32>}]} {
    %c0 = arith.constant 0 : index
    %c0_0 = arith.constant 0 : index
    %c0_1 = arith.constant 0 : index
    %0 = vector.load %arg1[%c0, %c0_0, %c0_1] : memref<1x5x32xf32, #tpu.memory_space<vmem>>, vector<1x5x32xf32>
    %1 = vector.shape_cast %0 : vector<1x5x32xf32> to vector<5x32xf32>
    %c0_2 = arith.constant 0 : index
    %c0_3 = arith.constant 0 : index
    %2 = vector.load %arg2[%c0_2, %c0_3] : memref<1x32xf32, #tpu.memory_space<vmem>>, vector<1x32xf32>
    %c0_4 = arith.constant 0 : index
    %c0_5 = arith.constant 0 : index
    %3 = vector.load %arg3[%c0_4, %c0_5] : memref<1x32xf32, #tpu.memory_space<vmem>>, vector<1x32xf32>
    %cst = arith.constant dense<0.000000e+00> : vector<5xf32>
    %4 = vector.multi_reduction <add>, %1, %cst [1] : vector<5x32xf32> to vector<5xf32>
    %5 = vector.shape_cast %4 : vector<5xf32> to vector<5x1xf32>
    %cst_6 = arith.constant 3.200000e+01 : f32
    %6 = vector.broadcast %cst_6 : f32 to vector<5x1xf32>
    %7 = arith.divf %5, %6 : vector<5x1xf32>
    %8 = vector.broadcast %7 : vector<5x1xf32> to vector<5x32xf32>
    %9 = arith.subf %1, %8 : vector<5x32xf32>
    %10 = arith.mulf %9, %9 : vector<5x32xf32>
    %cst_7 = arith.constant dense<0.000000e+00> : vector<5xf32>
    %11 = vector.multi_reduction <add>, %10, %cst_7 [1] : vector<5x32xf32> to vector<5xf32>
    %12 = vector.shape_cast %11 : vector<5xf32> to vector<5x1xf32>
    %cst_8 = arith.constant 3.200000e+01 : f32
    %13 = vector.broadcast %cst_8 : f32 to vector<5x1xf32>
    %14 = arith.divf %12, %13 : vector<5x1xf32>
    %15 = vector.broadcast %7 : vector<5x1xf32> to vector<5x32xf32>
    %16 = arith.subf %1, %15 : vector<5x32xf32>
    %cst_9 = arith.constant 9.99999974E-6 : f32
    %17 = vector.broadcast %cst_9 : f32 to vector<5x1xf32>
    %18 = arith.addf %14, %17 : vector<5x1xf32>
    %19 = math.rsqrt %18 : vector<5x1xf32>
    %20 = vector.broadcast %19 : vector<5x1xf32> to vector<5x32xf32>
    %21 = arith.mulf %16, %20 : vector<5x32xf32>
    %22 = vector.broadcast %2 : vector<1x32xf32> to vector<5x32xf32>
    %23 = arith.mulf %21, %22 : vector<5x32xf32>
    %24 = vector.broadcast %3 : vector<1x32xf32> to vector<5x32xf32>
    %25 = arith.addf %23, %24 : vector<5x32xf32>
    %26 = arith.truncf %25 : vector<5x32xf32> to vector<5x32xbf16>
    %c0_10 = arith.constant 0 : index
    %c0_11 = arith.constant 0 : index
    %27 = vector.load %arg4[%c0_10, %c0_11] : memref<32x64xbf16, #tpu.memory_space<vmem>>, vector<32x64xbf16>
    %cst_12 = arith.constant dense<0.000000e+00> : vector<5x64xf32>
    %28 = tpu.matmul %26, %27, %cst_12 {dimension_numbers = #tpu.dot_dimension_numbers<[1], [0], [0], [1], [0, 0, 1, 1], [], []>} : vector<5x32xbf16>, vector<32x64xbf16>, vector<5x64xf32> -> vector<5x64xf32>
    %c0_13 = arith.constant 0 : index
    %c0_14 = arith.constant 0 : index
    %29 = vector.load %arg5[%c0_13, %c0_14] : memref<1x64xf32, #tpu.memory_space<vmem>>, vector<1x64xf32>
    %30 = vector.broadcast %29 : vector<1x64xf32> to vector<5x64xf32>
    %31 = arith.addf %28, %30 : vector<5x64xf32>
    %32 = vector.extract_strided_slice %31 {offsets = [0, 0], sizes = [5, 32], strides = [1, 1]} : vector<5x64xf32> to vector<5x32xf32>
    %33 = vector.extract_strided_slice %31 {offsets = [0, 32], sizes = [5, 32], strides = [1, 1]} : vector<5x64xf32> to vector<5x32xf32>
    %cst_15 = arith.constant 0.000000e+00 : f32
    %34 = vector.broadcast %cst_15 : f32 to vector<5x32xf32>
    %35 = arith.subf %34, %33 : vector<5x32xf32>
    %36 = math.exp %35 : vector<5x32xf32>
    %cst_16 = arith.constant 1.000000e+00 : f32
    %37 = vector.broadcast %cst_16 : f32 to vector<5x32xf32>
    %38 = arith.addf %37, %36 : vector<5x32xf32>
    %cst_17 = arith.constant 1.000000e+00 : f32
    %39 = vector.broadcast %cst_17 : f32 to vector<5x32xf32>
    %40 = arith.divf %39, %38 : vector<5x32xf32>
    %41 = arith.mulf %32, %40 : vector<5x32xf32>
    %cst_18 = arith.constant 0.000000e+00 : f32
    %42 = vector.broadcast %cst_18 : f32 to vector<3x32xf32>
    %43 = tpu.concatenate %42, %41, %42 in 0 : vector<3x32xf32>, vector<5x32xf32>, vector<3x32xf32> -> vector<11x32xf32>
    %c0_19 = arith.constant 0 : index
    %c0_20 = arith.constant 0 : index
    %44 = vector.load %arg6[%c0_19, %c0_20] : memref<7x32xf32, #tpu.memory_space<vmem>>, vector<7x32xf32>
    %cst_21 = arith.constant 0.000000e+00 : f32
    %45 = vector.broadcast %cst_21 : f32 to vector<5x32xf32>
    %c0_22 = arith.constant 0 : index
    %c0_23 = arith.constant 0 : index
    %46 = vector.load %arg7[%c0_22, %c0_23] : memref<1x32xf32, #tpu.memory_space<vmem>>, vector<1x32xf32>
    %47 = vector.broadcast %46 : vector<1x32xf32> to vector<5x32xf32>
    %48 = arith.addf %45, %47 : vector<5x32xf32>
    %49 = vector.extract_strided_slice %43 {offsets = [0, 0], sizes = [5, 32], strides = [1, 1]} : vector<11x32xf32> to vector<5x32xf32>
    %50 = vector.extract_strided_slice %44 {offsets = [0, 0], sizes = [1, 32], strides = [1, 1]} : vector<7x32xf32> to vector<1x32xf32>
    %51 = vector.broadcast %50 : vector<1x32xf32> to vector<5x32xf32>
    %52 = arith.mulf %49, %51 : vector<5x32xf32>
    %53 = arith.addf %48, %52 : vector<5x32xf32>
    %54 = vector.extract_strided_slice %43 {offsets = [1, 0], sizes = [5, 32], strides = [1, 1]} : vector<11x32xf32> to vector<5x32xf32>
    %55 = vector.extract_strided_slice %44 {offsets = [1, 0], sizes = [1, 32], strides = [1, 1]} : vector<7x32xf32> to vector<1x32xf32>
    %56 = vector.broadcast %55 : vector<1x32xf32> to vector<5x32xf32>
    %57 = arith.mulf %54, %56 : vector<5x32xf32>
    %58 = arith.addf %53, %57 : vector<5x32xf32>
    %59 = vector.extract_strided_slice %43 {offsets = [2, 0], sizes = [5, 32], strides = [1, 1]} : vector<11x32xf32> to vector<5x32xf32>
    %60 = vector.extract_strided_slice %44 {offsets = [2, 0], sizes = [1, 32], strides = [1, 1]} : vector<7x32xf32> to vector<1x32xf32>
    %61 = vector.broadcast %60 : vector<1x32xf32> to vector<5x32xf32>
    %62 = arith.mulf %59, %61 : vector<5x32xf32>
    %63 = arith.addf %58, %62 : vector<5x32xf32>
    %64 = vector.extract_strided_slice %43 {offsets = [3, 0], sizes = [5, 32], strides = [1, 1]} : vector<11x32xf32> to vector<5x32xf32>
    %65 = vector.extract_strided_slice %44 {offsets = [3, 0], sizes = [1, 32], strides = [1, 1]} : vector<7x32xf32> to vector<1x32xf32>
    %66 = vector.broadcast %65 : vector<1x32xf32> to vector<5x32xf32>
    %67 = arith.mulf %64, %66 : vector<5x32xf32>
    %68 = arith.addf %63, %67 : vector<5x32xf32>
    %69 = vector.extract_strided_slice %43 {offsets = [4, 0], sizes = [5, 32], strides = [1, 1]} : vector<11x32xf32> to vector<5x32xf32>
    %70 = vector.extract_strided_slice %44 {offsets = [4, 0], sizes = [1, 32], strides = [1, 1]} : vector<7x32xf32> to vector<1x32xf32>
    %71 = vector.broadcast %70 : vector<1x32xf32> to vector<5x32xf32>
    %72 = arith.mulf %69, %71 : vector<5x32xf32>
    %73 = arith.addf %68, %72 : vector<5x32xf32>
    %74 = vector.extract_strided_slice %43 {offsets = [5, 0], sizes = [5, 32], strides = [1, 1]} : vector<11x32xf32> to vector<5x32xf32>
    %75 = vector.extract_strided_slice %44 {offsets = [5, 0], sizes = [1, 32], strides = [1, 1]} : vector<7x32xf32> to vector<1x32xf32>
    %76 = vector.broadcast %75 : vector<1x32xf32> to vector<5x32xf32>
    %77 = arith.mulf %74, %76 : vector<5x32xf32>
    %78 = arith.addf %73, %77 : vector<5x32xf32>
    %79 = vector.extract_strided_slice %43 {offsets = [6, 0], sizes = [5, 32], strides = [1, 1]} : vector<11x32xf32> to vector<5x32xf32>
    %80 = vector.extract_strided_slice %44 {offsets = [6, 0], sizes = [1, 32], strides = [1, 1]} : vector<7x32xf32> to vector<1x32xf32>
    %81 = vector.broadcast %80 : vector<1x32xf32> to vector<5x32xf32>
    %82 = arith.mulf %79, %81 : vector<5x32xf32>
    %83 = arith.addf %78, %82 : vector<5x32xf32>
    %c0_24 = arith.constant 0 : index
    %c0_25 = arith.constant 0 : index
    %84 = vector.load %arg8[%c0_24, %c0_25] : memref<1x32xf32, #tpu.memory_space<vmem>>, vector<1x32xf32>
    %c0_26 = arith.constant 0 : index
    %c0_27 = arith.constant 0 : index
    %85 = vector.load %arg9[%c0_26, %c0_27] : memref<1x32xf32, #tpu.memory_space<vmem>>, vector<1x32xf32>
    %cst_28 = arith.constant dense<0.000000e+00> : vector<5xf32>
    %86 = vector.multi_reduction <add>, %83, %cst_28 [1] : vector<5x32xf32> to vector<5xf32>
    %87 = vector.shape_cast %86 : vector<5xf32> to vector<5x1xf32>
    %cst_29 = arith.constant 3.200000e+01 : f32
    %88 = vector.broadcast %cst_29 : f32 to vector<5x1xf32>
    %89 = arith.divf %87, %88 : vector<5x1xf32>
    %90 = vector.broadcast %89 : vector<5x1xf32> to vector<5x32xf32>
    %91 = arith.subf %83, %90 : vector<5x32xf32>
    %92 = arith.mulf %91, %91 : vector<5x32xf32>
    %cst_30 = arith.constant dense<0.000000e+00> : vector<5xf32>
    %93 = vector.multi_reduction <add>, %92, %cst_30 [1] : vector<5x32xf32> to vector<5xf32>
    %94 = vector.shape_cast %93 : vector<5xf32> to vector<5x1xf32>
    %cst_31 = arith.constant 3.200000e+01 : f32
    %95 = vector.broadcast %cst_31 : f32 to vector<5x1xf32>
    %96 = arith.divf %94, %95 : vector<5x1xf32>
    %97 = vector.broadcast %89 : vector<5x1xf32> to vector<5x32xf32>
    %98 = arith.subf %83, %97 : vector<5x32xf32>
    %cst_32 = arith.constant 9.99999974E-6 : f32
    %99 = vector.broadcast %cst_32 : f32 to vector<5x1xf32>
    %100 = arith.addf %96, %99 : vector<5x1xf32>
    %101 = math.rsqrt %100 : vector<5x1xf32>
    %102 = vector.broadcast %101 : vector<5x1xf32> to vector<5x32xf32>
    %103 = arith.mulf %98, %102 : vector<5x32xf32>
    %104 = vector.broadcast %84 : vector<1x32xf32> to vector<5x32xf32>
    %105 = arith.mulf %103, %104 : vector<5x32xf32>
    %106 = vector.broadcast %85 : vector<1x32xf32> to vector<5x32xf32>
    %107 = arith.addf %105, %106 : vector<5x32xf32>
    %cst_33 = arith.constant 0.000000e+00 : f32
    %108 = vector.broadcast %cst_33 : f32 to vector<5x32xf32>
    %109 = arith.subf %108, %107 : vector<5x32xf32>
    %110 = math.exp %109 : vector<5x32xf32>
    %cst_34 = arith.constant 1.000000e+00 : f32
    %111 = vector.broadcast %cst_34 : f32 to vector<5x32xf32>
    %112 = arith.addf %111, %110 : vector<5x32xf32>
    %cst_35 = arith.constant 1.000000e+00 : f32
    %113 = vector.broadcast %cst_35 : f32 to vector<5x32xf32>
    %114 = arith.divf %113, %112 : vector<5x32xf32>
    %115 = arith.mulf %107, %114 : vector<5x32xf32>
    %116 = arith.truncf %115 : vector<5x32xf32> to vector<5x32xbf16>
    %c0_36 = arith.constant 0 : index
    %c0_37 = arith.constant 0 : index
    %117 = vector.load %arg10[%c0_36, %c0_37] : memref<32x32xbf16, #tpu.memory_space<vmem>>, vector<32x32xbf16>
    %cst_38 = arith.constant dense<0.000000e+00> : vector<5x32xf32>
    %118 = tpu.matmul %116, %117, %cst_38 {dimension_numbers = #tpu.dot_dimension_numbers<[1], [0], [0], [1], [0, 0, 1, 1], [], []>} : vector<5x32xbf16>, vector<32x32xbf16>, vector<5x32xf32> -> vector<5x32xf32>
    %c0_39 = arith.constant 0 : index
    %c0_40 = arith.constant 0 : index
    %119 = vector.load %arg11[%c0_39, %c0_40] : memref<1x32xf32, #tpu.memory_space<vmem>>, vector<1x32xf32>
    %120 = vector.broadcast %119 : vector<1x32xf32> to vector<5x32xf32>
    %121 = arith.addf %118, %120 : vector<5x32xf32>
    %122 = arith.addf %1, %121 : vector<5x32xf32>
    %c0_41 = arith.constant 0 : index
    %c0_42 = arith.constant 0 : index
    %c0_43 = arith.constant 0 : index
    %123 = vector.load %arg12[%c0_41, %c0_42, %c0_43] : memref<1x5x32xf32, #tpu.memory_space<vmem>>, vector<1x5x32xf32>
    %124 = vector.shape_cast %123 : vector<1x5x32xf32> to vector<5x32xf32>
    %125 = vector.shape_cast %122 : vector<5x32xf32> to vector<1x5x32xf32>
    tpu.vector_store %arg12[%c0_41, %c0_42, %c0_43], %125 {strides = array<i32>} : memref<1x5x32xf32, #tpu.memory_space<vmem>>, vector<1x5x32xf32>,
    return
  }
  func.func @transform_0(%arg0: i32) -> (i32, i32, i32) {
    %c0_i32 = arith.constant 0 : i32
    %c0_i32_0 = arith.constant 0 : i32
    %c0_i32_1 = arith.constant 0 : i32
    return %arg0, %c0_i32, %c0_i32_0 : i32, i32, i32
  }
  func.func @transform_1(%arg0: i32) -> (i32, i32) {
    %c0_i32 = arith.constant 0 : i32
    %c0_i32_0 = arith.constant 0 : i32
    %c0_i32_1 = arith.constant 0 : i32
    return %c0_i32, %c0_i32_0 : i32, i32
  }
  func.func @transform_2(%arg0: i32) -> (i32, i32) {
    %c0_i32 = arith.constant 0 : i32
    %c0_i32_0 = arith.constant 0 : i32
    %c0_i32_1 = arith.constant 0 : i32
    return %c0_i32, %c0_i32_0 : i32, i32
  }
  func.func @transform_3(%arg0: i32) -> (i32, i32) {
    %c0_i32 = arith.constant 0 : i32
    %c0_i32_0 = arith.constant 0 : i32
    %c0_i32_1 = arith.constant 0 : i32
    return %c0_i32, %c0_i32_0 : i32, i32
  }
  func.func @transform_4(%arg0: i32) -> (i32, i32) {
    %c0_i32 = arith.constant 0 : i32
    %c0_i32_0 = arith.constant 0 : i32
    %c0_i32_1 = arith.constant 0 : i32
    return %c0_i32, %c0_i32_0 : i32, i32
  }
  func.func @transform_5(%arg0: i32) -> (i32, i32) {
    %c0_i32 = arith.constant 0 : i32
    %c0_i32_0 = arith.constant 0 : i32
    %c0_i32_1 = arith.constant 0 : i32
    return %c0_i32, %c0_i32_0 : i32, i32
  }
  func.func @transform_6(%arg0: i32) -> (i32, i32) {
    %c0_i32 = arith.constant 0 : i32
    %c0_i32_0 = arith.constant 0 : i32
    %c0_i32_1 = arith.constant 0 : i32
    return %c0_i32, %c0_i32_0 : i32, i32
  }
  func.func @transform_7(%arg0: i32) -> (i32, i32) {
    %c0_i32 = arith.constant 0 : i32
    %c0_i32_0 = arith.constant 0 : i32
    %c0_i32_1 = arith.constant 0 : i32
    return %c0_i32, %c0_i32_0 : i32, i32
  }
  func.func @transform_8(%arg0: i32) -> (i32, i32) {
    %c0_i32 = arith.constant 0 : i32
    %c0_i32_0 = arith.constant 0 : i32
    %c0_i32_1 = arith.constant 0 : i32
    return %c0_i32, %c0_i32_0 : i32, i32
  }
  func.func @transform_9(%arg0: i32) -> (i32, i32) {
    %c0_i32 = arith.constant 0 : i32
    %c0_i32_0 = arith.constant 0 : i32
    %c0_i32_1 = arith.constant 0 : i32
    return %c0_i32, %c0_i32_0 : i32, i32
  }
  func.func @transform_10(%arg0: i32) -> (i32, i32) {
    %c0_i32 = arith.constant 0 : i32
    %c0_i32_0 = arith.constant 0 : i32
    %c0_i32_1 = arith.constant 0 : i32
    return %c0_i32, %c0_i32_0 : i32, i32
  }
  func.func @transform_11(%arg0: i32) -> (i32, i32, i32) {
    %c0_i32 = arith.constant 0 : i32
    %c0_i32_0 = arith.constant 0 : i32
    %c0_i32_1 = arith.constant 0 : i32
    return %arg0, %c0_i32, %c0_i32_0 : i32, i32, i32
  }
}

module attributes {stable_mosaic.version = 11 : i64} {
  func.func @_ff_kernel(%arg0: i32, %arg1: memref<56x32xf32, #tpu.memory_space<vmem>>, %arg2: memref<1x32xf32, #tpu.memory_space<vmem>>, %arg3: memref<1x32xf32, #tpu.memory_space<vmem>>, %arg4: memref<32x64xbf16, #tpu.memory_space<vmem>>, %arg5: memref<1x64xf32, #tpu.memory_space<vmem>>, %arg6: memref<64x32xbf16, #tpu.memory_space<vmem>>, %arg7: memref<1x32xf32, #tpu.memory_space<vmem>>, %arg8: memref<1x32xf32, #tpu.memory_space<vmem>>, %arg9: memref<1x32xf32, #tpu.memory_space<vmem>>, %arg10: memref<56x32xf32, #tpu.memory_space<vmem>>) attributes {dimension_semantics = [#tpu.dimension_semantics<parallel>], iteration_bounds = array<i64: 1>, scalar_prefetch = 0 : i64, scratch_operands = 0 : i64, tpu.core_type = #tpu.core_type<tc>, window_params = [{transform_indices = @transform_0, window_bounds = array<i64: 56, 32>}, {pipeline_mode = #tpu.pipeline_mode<synchronous>, transform_indices = @transform_1, window_bounds = array<i64: 1, 32>}, {pipeline_mode = #tpu.pipeline_mode<synchronous>, transform_indices = @transform_2, window_bounds = array<i64: 1, 32>}, {pipeline_mode = #tpu.pipeline_mode<synchronous>, transform_indices = @transform_3, window_bounds = array<i64: 32, 64>}, {pipeline_mode = #tpu.pipeline_mode<synchronous>, transform_indices = @transform_4, window_bounds = array<i64: 1, 64>}, {pipeline_mode = #tpu.pipeline_mode<synchronous>, transform_indices = @transform_5, window_bounds = array<i64: 64, 32>}, {pipeline_mode = #tpu.pipeline_mode<synchronous>, transform_indices = @transform_6, window_bounds = array<i64: 1, 32>}, {pipeline_mode = #tpu.pipeline_mode<synchronous>, transform_indices = @transform_7, window_bounds = array<i64: 1, 32>}, {pipeline_mode = #tpu.pipeline_mode<synchronous>, transform_indices = @transform_8, window_bounds = array<i64: 1, 32>}, {transform_indices = @transform_9, window_bounds = array<i64: 56, 32>}]} {
    %c0 = arith.constant 0 : index
    %c0_0 = arith.constant 0 : index
    %0 = vector.load %arg1[%c0, %c0_0] : memref<56x32xf32, #tpu.memory_space<vmem>>, vector<56x32xf32>
    %c0_1 = arith.constant 0 : index
    %c0_2 = arith.constant 0 : index
    %1 = vector.load %arg2[%c0_1, %c0_2] : memref<1x32xf32, #tpu.memory_space<vmem>>, vector<1x32xf32>
    %c0_3 = arith.constant 0 : index
    %c0_4 = arith.constant 0 : index
    %2 = vector.load %arg3[%c0_3, %c0_4] : memref<1x32xf32, #tpu.memory_space<vmem>>, vector<1x32xf32>
    %cst = arith.constant dense<0.000000e+00> : vector<56xf32>
    %3 = vector.multi_reduction <add>, %0, %cst [1] : vector<56x32xf32> to vector<56xf32>
    %4 = vector.shape_cast %3 : vector<56xf32> to vector<56x1xf32>
    %cst_5 = arith.constant 3.200000e+01 : f32
    %5 = vector.broadcast %cst_5 : f32 to vector<56x1xf32>
    %6 = arith.divf %4, %5 : vector<56x1xf32>
    %7 = vector.broadcast %6 : vector<56x1xf32> to vector<56x32xf32>
    %8 = arith.subf %0, %7 : vector<56x32xf32>
    %9 = arith.mulf %8, %8 : vector<56x32xf32>
    %cst_6 = arith.constant dense<0.000000e+00> : vector<56xf32>
    %10 = vector.multi_reduction <add>, %9, %cst_6 [1] : vector<56x32xf32> to vector<56xf32>
    %11 = vector.shape_cast %10 : vector<56xf32> to vector<56x1xf32>
    %cst_7 = arith.constant 3.200000e+01 : f32
    %12 = vector.broadcast %cst_7 : f32 to vector<56x1xf32>
    %13 = arith.divf %11, %12 : vector<56x1xf32>
    %14 = vector.broadcast %6 : vector<56x1xf32> to vector<56x32xf32>
    %15 = arith.subf %0, %14 : vector<56x32xf32>
    %cst_8 = arith.constant 9.99999974E-6 : f32
    %16 = vector.broadcast %cst_8 : f32 to vector<56x1xf32>
    %17 = arith.addf %13, %16 : vector<56x1xf32>
    %18 = math.rsqrt %17 : vector<56x1xf32>
    %19 = vector.broadcast %18 : vector<56x1xf32> to vector<56x32xf32>
    %20 = arith.mulf %15, %19 : vector<56x32xf32>
    %21 = vector.broadcast %1 : vector<1x32xf32> to vector<56x32xf32>
    %22 = arith.mulf %20, %21 : vector<56x32xf32>
    %23 = vector.broadcast %2 : vector<1x32xf32> to vector<56x32xf32>
    %24 = arith.addf %22, %23 : vector<56x32xf32>
    %25 = arith.truncf %24 : vector<56x32xf32> to vector<56x32xbf16>
    %c0_9 = arith.constant 0 : index
    %c0_10 = arith.constant 0 : index
    %26 = vector.load %arg4[%c0_9, %c0_10] : memref<32x64xbf16, #tpu.memory_space<vmem>>, vector<32x64xbf16>
    %cst_11 = arith.constant dense<0.000000e+00> : vector<56x64xf32>
    %27 = tpu.matmul %25, %26, %cst_11 {dimension_numbers = #tpu.dot_dimension_numbers<[1], [0], [0], [1], [0, 0, 1, 1], [], []>} : vector<56x32xbf16>, vector<32x64xbf16>, vector<56x64xf32> -> vector<56x64xf32>
    %c0_12 = arith.constant 0 : index
    %c0_13 = arith.constant 0 : index
    %28 = vector.load %arg5[%c0_12, %c0_13] : memref<1x64xf32, #tpu.memory_space<vmem>>, vector<1x64xf32>
    %29 = vector.broadcast %28 : vector<1x64xf32> to vector<56x64xf32>
    %30 = arith.addf %27, %29 : vector<56x64xf32>
    %cst_14 = arith.constant 0.000000e+00 : f32
    %31 = vector.broadcast %cst_14 : f32 to vector<56x64xf32>
    %32 = arith.subf %31, %30 : vector<56x64xf32>
    %33 = math.exp %32 : vector<56x64xf32>
    %cst_15 = arith.constant 1.000000e+00 : f32
    %34 = vector.broadcast %cst_15 : f32 to vector<56x64xf32>
    %35 = arith.addf %34, %33 : vector<56x64xf32>
    %cst_16 = arith.constant 1.000000e+00 : f32
    %36 = vector.broadcast %cst_16 : f32 to vector<56x64xf32>
    %37 = arith.divf %36, %35 : vector<56x64xf32>
    %38 = arith.mulf %30, %37 : vector<56x64xf32>
    %39 = arith.truncf %38 : vector<56x64xf32> to vector<56x64xbf16>
    %c0_17 = arith.constant 0 : index
    %c0_18 = arith.constant 0 : index
    %40 = vector.load %arg6[%c0_17, %c0_18] : memref<64x32xbf16, #tpu.memory_space<vmem>>, vector<64x32xbf16>
    %cst_19 = arith.constant dense<0.000000e+00> : vector<56x32xf32>
    %41 = tpu.matmul %39, %40, %cst_19 {dimension_numbers = #tpu.dot_dimension_numbers<[1], [0], [0], [1], [0, 0, 1, 1], [], []>} : vector<56x64xbf16>, vector<64x32xbf16>, vector<56x32xf32> -> vector<56x32xf32>
    %c0_20 = arith.constant 0 : index
    %c0_21 = arith.constant 0 : index
    %42 = vector.load %arg7[%c0_20, %c0_21] : memref<1x32xf32, #tpu.memory_space<vmem>>, vector<1x32xf32>
    %43 = vector.broadcast %42 : vector<1x32xf32> to vector<56x32xf32>
    %44 = arith.addf %41, %43 : vector<56x32xf32>
    %cst_22 = arith.constant 5.000000e-01 : f32
    %45 = vector.broadcast %cst_22 : f32 to vector<56x32xf32>
    %46 = arith.mulf %45, %44 : vector<56x32xf32>
    %47 = arith.addf %0, %46 : vector<56x32xf32>
    %c0_23 = arith.constant 0 : index
    %c0_24 = arith.constant 0 : index
    %48 = vector.load %arg8[%c0_23, %c0_24] : memref<1x32xf32, #tpu.memory_space<vmem>>, vector<1x32xf32>
    %c0_25 = arith.constant 0 : index
    %c0_26 = arith.constant 0 : index
    %49 = vector.load %arg9[%c0_25, %c0_26] : memref<1x32xf32, #tpu.memory_space<vmem>>, vector<1x32xf32>
    %cst_27 = arith.constant dense<0.000000e+00> : vector<56xf32>
    %50 = vector.multi_reduction <add>, %47, %cst_27 [1] : vector<56x32xf32> to vector<56xf32>
    %51 = vector.shape_cast %50 : vector<56xf32> to vector<56x1xf32>
    %cst_28 = arith.constant 3.200000e+01 : f32
    %52 = vector.broadcast %cst_28 : f32 to vector<56x1xf32>
    %53 = arith.divf %51, %52 : vector<56x1xf32>
    %54 = vector.broadcast %53 : vector<56x1xf32> to vector<56x32xf32>
    %55 = arith.subf %47, %54 : vector<56x32xf32>
    %56 = arith.mulf %55, %55 : vector<56x32xf32>
    %cst_29 = arith.constant dense<0.000000e+00> : vector<56xf32>
    %57 = vector.multi_reduction <add>, %56, %cst_29 [1] : vector<56x32xf32> to vector<56xf32>
    %58 = vector.shape_cast %57 : vector<56xf32> to vector<56x1xf32>
    %cst_30 = arith.constant 3.200000e+01 : f32
    %59 = vector.broadcast %cst_30 : f32 to vector<56x1xf32>
    %60 = arith.divf %58, %59 : vector<56x1xf32>
    %61 = vector.broadcast %53 : vector<56x1xf32> to vector<56x32xf32>
    %62 = arith.subf %47, %61 : vector<56x32xf32>
    %cst_31 = arith.constant 9.99999974E-6 : f32
    %63 = vector.broadcast %cst_31 : f32 to vector<56x1xf32>
    %64 = arith.addf %60, %63 : vector<56x1xf32>
    %65 = math.rsqrt %64 : vector<56x1xf32>
    %66 = vector.broadcast %65 : vector<56x1xf32> to vector<56x32xf32>
    %67 = arith.mulf %62, %66 : vector<56x32xf32>
    %68 = vector.broadcast %48 : vector<1x32xf32> to vector<56x32xf32>
    %69 = arith.mulf %67, %68 : vector<56x32xf32>
    %70 = vector.broadcast %49 : vector<1x32xf32> to vector<56x32xf32>
    %71 = arith.addf %69, %70 : vector<56x32xf32>
    %c0_32 = arith.constant 0 : index
    %c0_33 = arith.constant 0 : index
    %72 = vector.load %arg10[%c0_32, %c0_33] : memref<56x32xf32, #tpu.memory_space<vmem>>, vector<56x32xf32>
    tpu.vector_store %arg10[%c0_32, %c0_33], %71 {strides = array<i32>} : memref<56x32xf32, #tpu.memory_space<vmem>>, vector<56x32xf32>,
    return
  }
  func.func @transform_0(%arg0: i32) -> (i32, i32) {
    %c0_i32 = arith.constant 0 : i32
    %c0_i32_0 = arith.constant 0 : i32
    return %arg0, %c0_i32 : i32, i32
  }
  func.func @transform_1(%arg0: i32) -> (i32, i32) {
    %c0_i32 = arith.constant 0 : i32
    %c0_i32_0 = arith.constant 0 : i32
    %c0_i32_1 = arith.constant 0 : i32
    return %c0_i32, %c0_i32_0 : i32, i32
  }
  func.func @transform_2(%arg0: i32) -> (i32, i32) {
    %c0_i32 = arith.constant 0 : i32
    %c0_i32_0 = arith.constant 0 : i32
    %c0_i32_1 = arith.constant 0 : i32
    return %c0_i32, %c0_i32_0 : i32, i32
  }
  func.func @transform_3(%arg0: i32) -> (i32, i32) {
    %c0_i32 = arith.constant 0 : i32
    %c0_i32_0 = arith.constant 0 : i32
    %c0_i32_1 = arith.constant 0 : i32
    return %c0_i32, %c0_i32_0 : i32, i32
  }
  func.func @transform_4(%arg0: i32) -> (i32, i32) {
    %c0_i32 = arith.constant 0 : i32
    %c0_i32_0 = arith.constant 0 : i32
    %c0_i32_1 = arith.constant 0 : i32
    return %c0_i32, %c0_i32_0 : i32, i32
  }
  func.func @transform_5(%arg0: i32) -> (i32, i32) {
    %c0_i32 = arith.constant 0 : i32
    %c0_i32_0 = arith.constant 0 : i32
    %c0_i32_1 = arith.constant 0 : i32
    return %c0_i32, %c0_i32_0 : i32, i32
  }
  func.func @transform_6(%arg0: i32) -> (i32, i32) {
    %c0_i32 = arith.constant 0 : i32
    %c0_i32_0 = arith.constant 0 : i32
    %c0_i32_1 = arith.constant 0 : i32
    return %c0_i32, %c0_i32_0 : i32, i32
  }
  func.func @transform_7(%arg0: i32) -> (i32, i32) {
    %c0_i32 = arith.constant 0 : i32
    %c0_i32_0 = arith.constant 0 : i32
    %c0_i32_1 = arith.constant 0 : i32
    return %c0_i32, %c0_i32_0 : i32, i32
  }
  func.func @transform_8(%arg0: i32) -> (i32, i32) {
    %c0_i32 = arith.constant 0 : i32
    %c0_i32_0 = arith.constant 0 : i32
    %c0_i32_1 = arith.constant 0 : i32
    return %c0_i32, %c0_i32_0 : i32, i32
  }
  func.func @transform_9(%arg0: i32) -> (i32, i32) {
    %c0_i32 = arith.constant 0 : i32
    %c0_i32_0 = arith.constant 0 : i32
    return %arg0, %c0_i32 : i32, i32
  }
}

module attributes {stable_mosaic.version = 11 : i64} {
  func.func @_final_kernel(%arg0: i32, %arg1: memref<40x32xf32, #tpu.memory_space<vmem>>, %arg2: memref<32x128xbf16, #tpu.memory_space<vmem>>, %arg3: memref<1x128xf32, #tpu.memory_space<vmem>>, %arg4: memref<40x128xf32, #tpu.memory_space<vmem>>) attributes {dimension_semantics = [#tpu.dimension_semantics<parallel>], iteration_bounds = array<i64: 1>, scalar_prefetch = 0 : i64, scratch_operands = 0 : i64, tpu.core_type = #tpu.core_type<tc>, window_params = [{transform_indices = @transform_0, window_bounds = array<i64: 40, 32>}, {pipeline_mode = #tpu.pipeline_mode<synchronous>, transform_indices = @transform_1, window_bounds = array<i64: 32, 128>}, {pipeline_mode = #tpu.pipeline_mode<synchronous>, transform_indices = @transform_2, window_bounds = array<i64: 1, 128>}, {transform_indices = @transform_3, window_bounds = array<i64: 40, 128>}]} {
    %c0 = arith.constant 0 : index
    %c0_0 = arith.constant 0 : index
    %0 = vector.load %arg1[%c0, %c0_0] : memref<40x32xf32, #tpu.memory_space<vmem>>, vector<40x32xf32>
    %1 = arith.truncf %0 : vector<40x32xf32> to vector<40x32xbf16>
    %c0_1 = arith.constant 0 : index
    %c0_2 = arith.constant 0 : index
    %2 = vector.load %arg2[%c0_1, %c0_2] : memref<32x128xbf16, #tpu.memory_space<vmem>>, vector<32x128xbf16>
    %cst = arith.constant dense<0.000000e+00> : vector<40x128xf32>
    %3 = tpu.matmul %1, %2, %cst {dimension_numbers = #tpu.dot_dimension_numbers<[1], [0], [0], [1], [0, 0, 1, 1], [], []>} : vector<40x32xbf16>, vector<32x128xbf16>, vector<40x128xf32> -> vector<40x128xf32>
    %c0_3 = arith.constant 0 : index
    %c0_4 = arith.constant 0 : index
    %4 = vector.load %arg3[%c0_3, %c0_4] : memref<1x128xf32, #tpu.memory_space<vmem>>, vector<1x128xf32>
    %5 = vector.broadcast %4 : vector<1x128xf32> to vector<40x128xf32>
    %6 = arith.addf %3, %5 : vector<40x128xf32>
    %cst_5 = arith.constant dense<0xFF800000> : vector<40xf32>
    %7 = vector.multi_reduction <maximumf>, %6, %cst_5 [1] : vector<40x128xf32> to vector<40xf32>
    %8 = vector.shape_cast %7 : vector<40xf32> to vector<40x1xf32>
    %9 = vector.broadcast %8 : vector<40x1xf32> to vector<40x128xf32>
    %10 = arith.subf %6, %9 : vector<40x128xf32>
    %11 = math.exp %10 : vector<40x128xf32>
    %cst_6 = arith.constant dense<0.000000e+00> : vector<40xf32>
    %12 = vector.multi_reduction <add>, %11, %cst_6 [1] : vector<40x128xf32> to vector<40xf32>
    %13 = vector.shape_cast %12 : vector<40xf32> to vector<40x1xf32>
    %14 = math.log %13 : vector<40x1xf32>
    %15 = vector.broadcast %14 : vector<40x1xf32> to vector<40x128xf32>
    %16 = arith.subf %10, %15 : vector<40x128xf32>
    %c0_7 = arith.constant 0 : index
    %c0_8 = arith.constant 0 : index
    %17 = vector.load %arg4[%c0_7, %c0_8] : memref<40x128xf32, #tpu.memory_space<vmem>>, vector<40x128xf32>
    tpu.vector_store %arg4[%c0_7, %c0_8], %16 {strides = array<i32>} : memref<40x128xf32, #tpu.memory_space<vmem>>, vector<40x128xf32>,
    return
  }
  func.func @transform_0(%arg0: i32) -> (i32, i32) {
    %c0_i32 = arith.constant 0 : i32
    %c0_i32_0 = arith.constant 0 : i32
    return %arg0, %c0_i32 : i32, i32
  }
  func.func @transform_1(%arg0: i32) -> (i32, i32) {
    %c0_i32 = arith.constant 0 : i32
    %c0_i32_0 = arith.constant 0 : i32
    %c0_i32_1 = arith.constant 0 : i32
    return %c0_i32, %c0_i32_0 : i32, i32
  }
  func.func @transform_2(%arg0: i32) -> (i32, i32) {
    %c0_i32 = arith.constant 0 : i32
    %c0_i32_0 = arith.constant 0 : i32
    %c0_i32_1 = arith.constant 0 : i32
    return %c0_i32, %c0_i32_0 : i32, i32
  }
  func.func @transform_3(%arg0: i32) -> (i32, i32) {
    %c0_i32 = arith.constant 0 : i32
    %c0_i32_0 = arith.constant 0 : i32
    return %arg0, %c0_i32 : i32, i32
  }
}

</mosaic_0001>

<llo_original>
// kernel: model_forward.13
$region0: #{model_forward.13}
  #allocation0 [shape = 'u32[]', space=smem, size = 0x4, offset = 0x4, fixed_abs, tag = 'smem constant byte address 0x4 - core index']
  #allocation1 [shape = 'u32[144,128]{1,0:T(1,128)}', space=vmem, size = 0x12000, scoped, tag = 'internal scratch']
  %s0 = inlined_call_operand.vmem [shape: f32[152,64], index: 0, kind: input, shape index: {}]
  %s1 = inlined_call_operand.vmem [shape: bf16[64,33], index: 1, kind: input, shape index: {}]
  %s2 = inlined_call_operand.vmem [shape: bf16[64,33], index: 2, kind: input, shape index: {}]
  %s3 = inlined_call_operand.vmem [shape: bf16[33,16], index: 3, kind: input, shape index: {}]
  %s4 = inlined_call_operand.vmem [shape: f32[152,16], index: 4, kind: output, shape index: {}]
  %s5 = sld [smem:[#allocation0]]
  $region26: #{model_forward.13} parent=0
    _
  %s7 = ssub.s32 1, %s5
  %s8 = scalar_select 0, %s7, %s5
  // Predicated region
  $region2: #{model_forward.13} parent=0 // pred_check
    _
  $region3: #{model_forward.13} parent=0 // pred_check_branch
    %10 = sbr.rel (0) target = $region5
  $region4: #{model_forward.13} parent=0 // pred_region
    _
  $region5: #{model_forward.13} parent=0 // pred_fallthru
    _
  // Predicated region
  $region6: #{model_forward.13} parent=0 // pred_check
    _
  $region7: #{model_forward.13} parent=0 // pred_check_branch
    %12 = sbr.rel (0) target = $region9
  $region8: #{model_forward.13} parent=0 // pred_region
    _
  $region9: #{model_forward.13} parent=0 // pred_fallthru
    _
  // Predicated region
  $region10: #{model_forward.13} parent=0 // pred_check
    _
  $region11: #{model_forward.13} parent=0 // pred_check_branch
    %14 = sbr.rel (0) target = $region13
  $region12: #{model_forward.13} parent=0 // pred_region
    _
  $region13: #{model_forward.13} parent=0 // pred_fallthru
    _
  // Predicated region
  $region14: #{model_forward.13} parent=0 // pred_check
    _
  $region15: #{model_forward.13} parent=0 // pred_check_branch
    %16 = sbr.rel (0) target = $region17
  $region16: #{model_forward.13} parent=0 // pred_region
    _
  $region17: #{model_forward.13} parent=0 // pred_fallthru
    _
  %v18 = vld [vmem:[%s0] sm:$0xff]
  %v19 = vld [vmem:[%s0 + $0x8] sm:$0xff]
  %v20 = vld [vmem:[%s0 + $0x10] sm:$0xff]
  %v21 = vld [vmem:[%s0 + $0x18] sm:$0xff]
  %v22 = vld [vmem:[%s0 + $0x20] sm:$0xff]
  %v23 = vld [vmem:[%s0 + $0x28] sm:$0xff]
  %v24 = vld [vmem:[%s0 + $0x30] sm:$0xff]
  %v25 = vld [vmem:[%s0 + $0x38] sm:$0xff]
  %v26 = vld [vmem:[%s0 + $0x40] sm:$0xff]
  %v27 = vld [vmem:[%s0 + $0x48] sm:$0xff]
  %v28 = vld [vmem:[%s0 + $0x50] sm:$0xff]
  %v29 = vld [vmem:[%s0 + $0x58] sm:$0xff]
  %v30 = vld [vmem:[%s0 + $0x60] sm:$0xff]
  %v31 = vld [vmem:[%s0 + $0x68] sm:$0xff]
  %v32 = vld [vmem:[%s0 + $0x70] sm:$0xff]
  %v33 = vld [vmem:[%s0 + $0x78] sm:$0xff]
  %v34 = vld [vmem:[%s0 + $0x80] sm:$0xff]
  %v35 = vld [vmem:[%s0 + $0x88] sm:$0xff]
  %v36 = vld [vmem:[%s0 + $0x90] sm:$0xff]
  %v37 = vpack.c.bf16 %v19, %v18
  %v38 = vpack.c.bf16 %v21, %v20
  %v39 = vpack.c.bf16 %v23, %v22
  %v40 = vpack.c.bf16 %v25, %v24
  %v41 = vpack.c.bf16 %v27, %v26
  %v42 = vpack.c.bf16 %v29, %v28
  %v43 = vpack.c.bf16 %v31, %v30
  %v44 = vpack.c.bf16 %v33, %v32
  %v45 = vpack.c.bf16 %v35, %v34
  %v46 = vpack.c.bf16 %v36, %v36
  %v47 = vld [vmem:[%s1] sm:$0xf]
  %v48 = vld [vmem:[%s1 + $0x4] sm:$0xf]
  %v49 = vld [vmem:[%s1 + $0x8] sm:$0xf]
  %v50 = vld [vmem:[%s1 + $0xc] sm:$0xf]
  %v51 = vld [vmem:[%s1 + $0x10] sm:$0xf]
  %v52 = vld [vmem:[%s1 + $0x14] sm:$0xf]
  %v53 = vld [vmem:[%s1 + $0x18] sm:$0xf]
  %v54 = vld [vmem:[%s1 + $0x1c] sm:$0xf]
  %v63 = vunpack.c.l.b16 %v47
  %v64 = vunpack.c.l.b16 %v48
  %v65 = vunpack.c.l.b16 %v49
  %v66 = vunpack.c.l.b16 %v50
  %v67 = vunpack.c.l.b16 %v51
  %v68 = vunpack.c.l.b16 %v52
  %v69 = vunpack.c.l.b16 %v53
  %v70 = vunpack.c.l.b16 %v54
  %v71 = vpack.c.b16 %v64, %v63
  %v72 = vpack.c.b16 %v66, %v65
  %v73 = vpack.c.b16 %v68, %v67
  %v74 = vpack.c.b16 %v70, %v69
  %vm79 = vcmask 523264
  %v81 = vsel %vm79, %v37, 0
  %v84 = vsel %vm79, %v38, 0
  %v87 = vsel %vm79, %v39, 0
  %v90 = vsel %vm79, %v40, 0
  %v93 = vsel %vm79, %v41, 0
  %v96 = vsel %vm79, %v42, 0
  %v99 = vsel %vm79, %v43, 0
  %v102 = vsel %vm79, %v44, 0
  %v105 = vsel %vm79, %v45, 0
  %v108 = vsel %vm79, %v46, 0
  %110 = vmatprep.subr.bf16.mxu0 0
  %111 = vmatpush1.bf16.msra.mxu0 %v71
  %112 = vmatprep.subr.bf16.mxu0 0
  %113 = vmatpush1.bf16.msra.mxu0 %v72
  %114 = vmatprep.subr.bf16.mxu0 0
  %115 = vmatpush1.bf16.msra.mxu0 %v73
  %116 = vmatprep.subr.bf16.mxu0 0
  %117 = vmatpush1.bf16.msra.mxu0 %v74
  %118 = vmatprep.subr.bf16.mxu0 0
  %119 = vmatpush1.bf16.msra.mxu0 0
  %120 = vmatprep.subr.bf16.mxu0 0
  %121 = vmatpush1.bf16.msra.mxu0 0
  %122 = vmatprep.subr.bf16.mxu0 0
  %123 = vmatpush1.bf16.msra.mxu0 0
  %124 = vmatprep.subr.bf16.mxu0 0
  %125 = vmatpush1.bf16.msra.mxu0 0
  %126 = vmatprep.subr.bf16.mxu0 0
  %127 = vmatpush1.bf16.msra.mxu0 0
  %128 = vmatprep.subr.bf16.mxu0 0
  %129 = vmatpush1.bf16.msra.mxu0 0
  %130 = vmatprep.subr.bf16.mxu0 0
  %131 = vmatpush1.bf16.msra.mxu0 0
  %132 = vmatprep.subr.bf16.mxu0 0
  %133 = vmatpush1.bf16.msra.mxu0 0
  %134 = vmatprep.subr.bf16.mxu0 0
  %135 = vmatpush1.bf16.msra.mxu0 0
  %136 = vmatprep.subr.bf16.mxu0 0
  %137 = vmatpush1.bf16.msra.mxu0 0
  %138 = vmatprep.subr.bf16.mxu0 0
  %139 = vmatpush1.bf16.msra.mxu0 0
  %140 = vmatprep.subr.bf16.mxu0 0
  %141 = vmatpush1.bf16.msra.mxu0 0
  %142 = vmatprep.mubr.bf16.mxu0 0
  %143 = vmatmul.mubr.bf16.gmra.mrb[0].mxu0 %v81
  %v144 = vpop.f32.mrb[0].mxu0
  %v145 = vadd.f32 0.0, %v144
  %v146 = vpop.f32.mrb[0].mxu0
  %v147 = vpop.f32.mrb[0].mxu0
  %v148 = vadd.f32 0.0, %v147
  %v149 = vpop.f32.mrb[0].mxu0
  %150 = vmatprep.mubr.bf16.mxu0 0
  %151 = vmatmul.mubr.bf16.gmra.mrb[0].mxu0 %v84
  %v152 = vpop.f32.mrb[0].mxu0
  %v153 = vadd.f32 0.0, %v152
  %v154 = vpop.f32.mrb[0].mxu0
  %v155 = vpop.f32.mrb[0].mxu0
  %v156 = vadd.f32 0.0, %v155
  %v157 = vpop.f32.mrb[0].mxu0
  %158 = vmatprep.mubr.bf16.mxu0 0
  %159 = vmatmul.mubr.bf16.gmra.mrb[0].mxu0 %v87
  %v160 = vpop.f32.mrb[0].mxu0
  %v161 = vadd.f32 0.0, %v160
  %v162 = vpop.f32.mrb[0].mxu0
  %v163 = vpop.f32.mrb[0].mxu0
  %v164 = vadd.f32 0.0, %v163
  %v165 = vpop.f32.mrb[0].mxu0
  %166 = vmatprep.mubr.bf16.mxu0 0
  %167 = vmatmul.mubr.bf16.gmra.mrb[0].mxu0 %v90
  %v168 = vpop.f32.mrb[0].mxu0
  %v169 = vadd.f32 0.0, %v168
  %v170 = vpop.f32.mrb[0].mxu0
  %v171 = vpop.f32.mrb[0].mxu0
  %v172 = vadd.f32 0.0, %v171
  %v173 = vpop.f32.mrb[0].mxu0
  %174 = vmatprep.mubr.bf16.mxu0 0
  %175 = vmatmul.mubr.bf16.gmra.mrb[0].mxu0 %v93
  %v176 = vpop.f32.mrb[0].mxu0
  %v177 = vadd.f32 0.0, %v176
  %v178 = vpop.f32.mrb[0].mxu0
  %v179 = vpop.f32.mrb[0].mxu0
  %v180 = vadd.f32 0.0, %v179
  %v181 = vpop.f32.mrb[0].mxu0
  %182 = vmatprep.mubr.bf16.mxu0 0
  %183 = vmatmul.mubr.bf16.gmra.mrb[0].mxu0 %v96
  %v184 = vpop.f32.mrb[0].mxu0
  %v185 = vadd.f32 0.0, %v184
  %v186 = vpop.f32.mrb[0].mxu0
  %v187 = vpop.f32.mrb[0].mxu0
  %v188 = vadd.f32 0.0, %v187
  %v189 = vpop.f32.mrb[0].mxu0
  %190 = vmatprep.mubr.bf16.mxu0 0
  %191 = vmatmul.mubr.bf16.gmra.mrb[0].mxu0 %v99
  %v192 = vpop.f32.mrb[0].mxu0
  %v193 = vadd.f32 0.0, %v192
  %v194 = vpop.f32.mrb[0].mxu0
  %v195 = vpop.f32.mrb[0].mxu0
  %v196 = vadd.f32 0.0, %v195
  %v197 = vpop.f32.mrb[0].mxu0
  %198 = vmatprep.mubr.bf16.mxu0 0
  %199 = vmatmul.mubr.bf16.gmra.mrb[0].mxu0 %v102
  %v200 = vpop.f32.mrb[0].mxu0
  %v201 = vadd.f32 0.0, %v200
  %v202 = vpop.f32.mrb[0].mxu0
  %v203 = vpop.f32.mrb[0].mxu0
  %v204 = vadd.f32 0.0, %v203
  %v205 = vpop.f32.mrb[0].mxu0
  %206 = vmatprep.mubr.bf16.mxu0 0
  %207 = vmatmul.mubr.bf16.gmra.mrb[0].mxu0 %v105
  %v208 = vpop.f32.mrb[0].mxu0
  %v209 = vadd.f32 0.0, %v208
  %v210 = vpop.f32.mrb[0].mxu0
  %v211 = vpop.f32.mrb[0].mxu0
  %v212 = vadd.f32 0.0, %v211
  %v213 = vpop.f32.mrb[0].mxu0
  %214 = vmatprep.mubr.bf16.mxu0 0
  %215 = vmatmul.mubr.bf16.gmra.mrb[0].mxu0 %v108
  %v216 = vpop.f32.mrb[0].mxu0
  %v217 = vadd.f32 0.0, %v216
  %v218 = vpop.f32.mrb[0].mxu0
  %v219 = vpop.f32.mrb[0].mxu0
  %v220 = vpop.f32.mrb[0].mxu0
  %221 = vdwg.mxu0
  %v222 = vld [vmem:[%s2] sm:$0xf]
  %v223 = vld [vmem:[%s2 + $0x4] sm:$0xf]
  %v224 = vld [vmem:[%s2 + $0x8] sm:$0xf]
  %v225 = vld [vmem:[%s2 + $0xc] sm:$0xf]
  %v226 = vld [vmem:[%s2 + $0x10] sm:$0xf]
  %v227 = vld [vmem:[%s2 + $0x14] sm:$0xf]
  %v228 = vld [vmem:[%s2 + $0x18] sm:$0xf]
  %v229 = vld [vmem:[%s2 + $0x1c] sm:$0xf]
  %v238 = vunpack.c.l.b16 %v222
  %v239 = vunpack.c.l.b16 %v223
  %v240 = vunpack.c.l.b16 %v224
  %v241 = vunpack.c.l.b16 %v225
  %v242 = vunpack.c.l.b16 %v226
  %v243 = vunpack.c.l.b16 %v227
  %v244 = vunpack.c.l.b16 %v228
  %v245 = vunpack.c.l.b16 %v229
  %v246 = vpack.c.b16 %v239, %v238
  %v247 = vpack.c.b16 %v241, %v240
  %v248 = vpack.c.b16 %v243, %v242
  %v249 = vpack.c.b16 %v245, %v244
  %254 = vmatprep.subr.bf16.mxu0 0
  %255 = vmatpush1.bf16.msra.mxu0 %v246
  %256 = vmatprep.subr.bf16.mxu0 0
  %257 = vmatpush1.bf16.msra.mxu0 %v247
  %258 = vmatprep.subr.bf16.mxu0 0
  %259 = vmatpush1.bf16.msra.mxu0 %v248
  %260 = vmatprep.subr.bf16.mxu0 0
  %261 = vmatpush1.bf16.msra.mxu0 %v249
  %262 = vmatprep.subr.bf16.mxu0 0
  %263 = vmatpush1.bf16.msra.mxu0 0
  %264 = vmatprep.subr.bf16.mxu0 0
  %265 = vmatpush1.bf16.msra.mxu0 0
  %266 = vmatprep.subr.bf16.mxu0 0
  %267 = vmatpush1.bf16.msra.mxu0 0
  %268 = vmatprep.subr.bf16.mxu0 0
  %269 = vmatpush1.bf16.msra.mxu0 0
  %270 = vmatprep.subr.bf16.mxu0 0
  %271 = vmatpush1.bf16.msra.mxu0 0
  %272 = vmatprep.subr.bf16.mxu0 0
  %273 = vmatpush1.bf16.msra.mxu0 0
  %274 = vmatprep.subr.bf16.mxu0 0
  %275 = vmatpush1.bf16.msra.mxu0 0
  %276 = vmatprep.subr.bf16.mxu0 0
  %277 = vmatpush1.bf16.msra.mxu0 0
  %278 = vmatprep.subr.bf16.mxu0 0
  %279 = vmatpush1.bf16.msra.mxu0 0
  %280 = vmatprep.subr.bf16.mxu0 0
  %281 = vmatpush1.bf16.msra.mxu0 0
  %282 = vmatprep.subr.bf16.mxu0 0
  %283 = vmatpush1.bf16.msra.mxu0 0
  %284 = vmatprep.subr.bf16.mxu0 0
  %285 = vmatpush1.bf16.msra.mxu0 0
  %286 = vmatprep.mubr.bf16.mxu0 0
  %287 = vmatmul.mubr.bf16.gmra.mrb[0].mxu0 %v81
  %v288 = vpop.f32.mrb[0].mxu0
  %v289 = vadd.f32 0.0, %v288
  %v290 = vpop.f32.mrb[0].mxu0
  %v291 = vpop.f32.mrb[0].mxu0
  %v292 = vadd.f32 0.0, %v291
  %v293 = vpop.f32.mrb[0].mxu0
  %294 = vmatprep.mubr.bf16.mxu0 0
  %295 = vmatmul.mubr.bf16.gmra.mrb[0].mxu0 %v84
  %v296 = vpop.f32.mrb[0].mxu0
  %v297 = vadd.f32 0.0, %v296
  %v298 = vpop.f32.mrb[0].mxu0
  %v299 = vpop.f32.mrb[0].mxu0
  %v300 = vadd.f32 0.0, %v299
  %v301 = vpop.f32.mrb[0].mxu0
  %302 = vmatprep.mubr.bf16.mxu0 0
  %303 = vmatmul.mubr.bf16.gmra.mrb[0].mxu0 %v87
  %v304 = vpop.f32.mrb[0].mxu0
  %v305 = vadd.f32 0.0, %v304
  %v306 = vpop.f32.mrb[0].mxu0
  %v307 = vpop.f32.mrb[0].mxu0
  %v308 = vadd.f32 0.0, %v307
  %v309 = vpop.f32.mrb[0].mxu0
  %310 = vmatprep.mubr.bf16.mxu0 0
  %311 = vmatmul.mubr.bf16.gmra.mrb[0].mxu0 %v90
  %v312 = vpop.f32.mrb[0].mxu0
  %v313 = vadd.f32 0.0, %v312
  %v314 = vpop.f32.mrb[0].mxu0
  %v315 = vpop.f32.mrb[0].mxu0
  %v316 = vadd.f32 0.0, %v315
  %v317 = vpop.f32.mrb[0].mxu0
  %318 = vmatprep.mubr.bf16.mxu0 0
  %319 = vmatmul.mubr.bf16.gmra.mrb[0].mxu0 %v93
  %v320 = vpop.f32.mrb[0].mxu0
  %v321 = vadd.f32 0.0, %v320
  %v322 = vpop.f32.mrb[0].mxu0
  %v323 = vpop.f32.mrb[0].mxu0
  %v324 = vadd.f32 0.0, %v323
  %v325 = vpop.f32.mrb[0].mxu0
  %326 = vmatprep.mubr.bf16.mxu0 0
  %327 = vmatmul.mubr.bf16.gmra.mrb[0].mxu0 %v96
  %v328 = vpop.f32.mrb[0].mxu0
  %v329 = vadd.f32 0.0, %v328
  %v330 = vpop.f32.mrb[0].mxu0
  %v331 = vpop.f32.mrb[0].mxu0
  %v332 = vadd.f32 0.0, %v331
  %v333 = vpop.f32.mrb[0].mxu0
  %334 = vmatprep.mubr.bf16.mxu0 0
  %335 = vmatmul.mubr.bf16.gmra.mrb[0].mxu0 %v99
  %v336 = vpop.f32.mrb[0].mxu0
  %v337 = vadd.f32 0.0, %v336
  %v338 = vpop.f32.mrb[0].mxu0
  %v339 = vpop.f32.mrb[0].mxu0
  %v340 = vadd.f32 0.0, %v339
  %v341 = vpop.f32.mrb[0].mxu0
  %342 = vmatprep.mubr.bf16.mxu0 0
  %343 = vmatmul.mubr.bf16.gmra.mrb[0].mxu0 %v102
  %v344 = vpop.f32.mrb[0].mxu0
  %v345 = vadd.f32 0.0, %v344
  %v346 = vpop.f32.mrb[0].mxu0
  %v347 = vpop.f32.mrb[0].mxu0
  %v348 = vadd.f32 0.0, %v347
  %v349 = vpop.f32.mrb[0].mxu0
  %350 = vmatprep.mubr.bf16.mxu0 0
  %351 = vmatmul.mubr.bf16.gmra.mrb[0].mxu0 %v105
  %v352 = vpop.f32.mrb[0].mxu0
  %v353 = vadd.f32 0.0, %v352
  %v354 = vpop.f32.mrb[0].mxu0
  %v355 = vpop.f32.mrb[0].mxu0
  %v356 = vadd.f32 0.0, %v355
  %v357 = vpop.f32.mrb[0].mxu0
  %358 = vmatprep.mubr.bf16.mxu0 0
  %359 = vmatmul.mubr.bf16.gmra.mrb[0].mxu0 %v108
  %v360 = vpop.f32.mrb[0].mxu0
  %v361 = vadd.f32 0.0, %v360
  %v362 = vpop.f32.mrb[0].mxu0
  %v363 = vpop.f32.mrb[0].mxu0
  %v364 = vpop.f32.mrb[0].mxu0
  %365 = vdwg.mxu0
  %v366 = vmul.f32 %v145, %v145
  %v367 = vmul.f32 %v148, %v148
  %v368 = vmul.f32 %v153, %v153
  %v369 = vmul.f32 %v156, %v156
  %v370 = vmul.f32 %v161, %v161
  %v371 = vmul.f32 %v164, %v164
  %v372 = vmul.f32 %v169, %v169
  %v373 = vmul.f32 %v172, %v172
  %v374 = vmul.f32 %v177, %v177
  %v375 = vmul.f32 %v180, %v180
  %v376 = vmul.f32 %v185, %v185
  %v377 = vmul.f32 %v188, %v188
  %v378 = vmul.f32 %v193, %v193
  %v379 = vmul.f32 %v196, %v196
  %v380 = vmul.f32 %v201, %v201
  %v381 = vmul.f32 %v204, %v204
  %v382 = vmul.f32 %v209, %v209
  %v383 = vmul.f32 %v212, %v212
  %v384 = vmul.f32 %v217, %v217
  %v385 = vmul.f32 %v289, %v289
  %v386 = vmul.f32 %v292, %v292
  %v387 = vmul.f32 %v297, %v297
  %v388 = vmul.f32 %v300, %v300
  %v389 = vmul.f32 %v305, %v305
  %v390 = vmul.f32 %v308, %v308
  %v391 = vmul.f32 %v313, %v313
  %v392 = vmul.f32 %v316, %v316
  %v393 = vmul.f32 %v321, %v321
  %v394 = vmul.f32 %v324, %v324
  %v395 = vmul.f32 %v329, %v329
  %v396 = vmul.f32 %v332, %v332
  %v397 = vmul.f32 %v337, %v337
  %v398 = vmul.f32 %v340, %v340
  %v399 = vmul.f32 %v345, %v345
  %v400 = vmul.f32 %v348, %v348
  %v401 = vmul.f32 %v353, %v353
  %v402 = vmul.f32 %v356, %v356
  %v403 = vmul.f32 %v361, %v361
  %v404 = vadd.f32 %v366, %v385
  %v405 = vadd.f32 %v367, %v386
  %v406 = vadd.f32 %v368, %v387
  %v407 = vadd.f32 %v369, %v388
  %v408 = vadd.f32 %v370, %v389
  %v409 = vadd.f32 %v371, %v390
  %v410 = vadd.f32 %v372, %v391
  %v411 = vadd.f32 %v373, %v392
  %v412 = vadd.f32 %v374, %v393
  %v413 = vadd.f32 %v375, %v394
  %v414 = vadd.f32 %v376, %v395
  %v415 = vadd.f32 %v377, %v396
  %v416 = vadd.f32 %v378, %v397
  %v417 = vadd.f32 %v379, %v398
  %v418 = vadd.f32 %v380, %v399
  %v419 = vadd.f32 %v381, %v400
  %v420 = vadd.f32 %v382, %v401
  %v421 = vadd.f32 %v383, %v402
  %v422 = vadd.f32 %v384, %v403
  %v423 = vpack.c.bf16 %v405, %v404
  %v424 = vpack.c.bf16 %v407, %v406
  %v425 = vpack.c.bf16 %v409, %v408
  %v426 = vpack.c.bf16 %v411, %v410
  %v427 = vpack.c.bf16 %v413, %v412
  %v428 = vpack.c.bf16 %v415, %v414
  %v429 = vpack.c.bf16 %v417, %v416
  %v430 = vpack.c.bf16 %v419, %v418
  %v431 = vpack.c.bf16 %v421, %v420
  %v432 = vpack.c.bf16 %v422, %v422
  %v433 = vld [vmem:[%s3] sm:$0xf]
  %v434 = vld [vmem:[%s3 + $0x4] sm:$0xf]
  %v435 = vld [vmem:[%s3 + $0x8] sm:$0xf]
  %v436 = vld [vmem:[%s3 + $0xc] sm:$0xf]
  %v437 = vld [vmem:[%s3 + $0x10] sm:$0x1]
  %v443 = vunpack.c.l.b16 %v433
  %v444 = vunpack.c.l.b16 %v434
  %v445 = vunpack.c.l.b16 %v435
  %v446 = vunpack.c.l.b16 %v436
  %v447 = vunpack.c.l.b16 %v437
  %v448 = vpack.c.b16 %v444, %v443
  %v449 = vpack.c.b16 %v446, %v445
  %v450 = vpack.c.b16 %v447, %v447
  %vm453 = vcmask 269312
  %v455 = vsel %vm453, %v423, 0
  %v458 = vsel %vm453, %v424, 0
  %v461 = vsel %vm453, %v425, 0
  %v464 = vsel %vm453, %v426, 0
  %v467 = vsel %vm453, %v427, 0
  %v470 = vsel %vm453, %v428, 0
  %v473 = vsel %vm453, %v429, 0
  %v476 = vsel %vm453, %v430, 0
  %v479 = vsel %vm453, %v431, 0
  %v482 = vsel %vm453, %v432, 0
  %vm484 = vcmask 1040384
  %v485 = vsel 0, 4294967295, 65535
  %v486 = vsel %vm484, %v485, 0
  %v488 = vand.u32 %v450, %v486
  %490 = vmatprep.subr.bf16.mxu0 0
  %491 = vmatpush1.bf16.msra.mxu0 %v448
  %492 = vmatprep.subr.bf16.mxu0 0
  %493 = vmatpush1.bf16.msra.mxu0 %v449
  %494 = vmatprep.subr.bf16.mxu0 0
  %495 = vmatpush1.bf16.msra.mxu0 %v488
  %496 = vmatprep.subr.bf16.mxu0 0
  %497 = vmatpush1.bf16.msra.mxu0 0
  %498 = vmatprep.subr.bf16.mxu0 0
  %499 = vmatpush1.bf16.msra.mxu0 0
  %500 = vmatprep.subr.bf16.mxu0 0
  %501 = vmatpush1.bf16.msra.mxu0 0
  %502 = vmatprep.subr.bf16.mxu0 0
  %503 = vmatpush1.bf16.msra.mxu0 0
  %504 = vmatprep.subr.bf16.mxu0 0
  %505 = vmatpush1.bf16.msra.mxu0 0
  %506 = vmatprep.subr.bf16.mxu0 0
  %507 = vmatpush1.bf16.msra.mxu0 0
  %508 = vmatprep.subr.bf16.mxu0 0
  %509 = vmatpush1.bf16.msra.mxu0 0
  %510 = vmatprep.subr.bf16.mxu0 0
  %511 = vmatpush1.bf16.msra.mxu0 0
  %512 = vmatprep.subr.bf16.mxu0 0
  %513 = vmatpush1.bf16.msra.mxu0 0
  %514 = vmatprep.subr.bf16.mxu0 0
  %515 = vmatpush1.bf16.msra.mxu0 0
  %516 = vmatprep.subr.bf16.mxu0 0
  %517 = vmatpush1.bf16.msra.mxu0 0
  %518 = vmatprep.subr.bf16.mxu0 0
  %519 = vmatpush1.bf16.msra.mxu0 0
  %520 = vmatprep.subr.bf16.mxu0 0
  %521 = vmatpush1.bf16.msra.mxu0 0
  %522 = vmatprep.mubr.bf16.mxu0 0
  %523 = vmatmul.mubr.bf16.gmra.mrb[0].mxu0 %v455
  %v524 = vpop.f32.mrb[0].mxu0
  %v525 = vadd.f32 0.0, %v524
  %v526 = vpop.f32.mrb[0].mxu0
  %v527 = vpop.f32.mrb[0].mxu0
  %v528 = vadd.f32 0.0, %v527
  %v529 = vpop.f32.mrb[0].mxu0
  %530 = vmatprep.mubr.bf16.mxu0 0
  %531 = vmatmul.mubr.bf16.gmra.mrb[0].mxu0 %v458
  %v532 = vpop.f32.mrb[0].mxu0
  %v533 = vadd.f32 0.0, %v532
  %v534 = vpop.f32.mrb[0].mxu0
  %v535 = vpop.f32.mrb[0].mxu0
  %v536 = vadd.f32 0.0, %v535
  %v537 = vpop.f32.mrb[0].mxu0
  %538 = vmatprep.mubr.bf16.mxu0 0
  %539 = vmatmul.mubr.bf16.gmra.mrb[0].mxu0 %v461
  %v540 = vpop.f32.mrb[0].mxu0
  %v541 = vadd.f32 0.0, %v540
  %v542 = vpop.f32.mrb[0].mxu0
  %v543 = vpop.f32.mrb[0].mxu0
  %v544 = vadd.f32 0.0, %v543
  %v545 = vpop.f32.mrb[0].mxu0
  %546 = vmatprep.mubr.bf16.mxu0 0
  %547 = vmatmul.mubr.bf16.gmra.mrb[0].mxu0 %v464
  %v548 = vpop.f32.mrb[0].mxu0
  %v549 = vadd.f32 0.0, %v548
  %v550 = vpop.f32.mrb[0].mxu0
  %v551 = vpop.f32.mrb[0].mxu0
  %v552 = vadd.f32 0.0, %v551
  %v553 = vpop.f32.mrb[0].mxu0
  %554 = vmatprep.mubr.bf16.mxu0 0
  %555 = vmatmul.mubr.bf16.gmra.mrb[0].mxu0 %v467
  %v556 = vpop.f32.mrb[0].mxu0
  %v557 = vadd.f32 0.0, %v556
  %v558 = vpop.f32.mrb[0].mxu0
  %v559 = vpop.f32.mrb[0].mxu0
  %v560 = vadd.f32 0.0, %v559
  %v561 = vpop.f32.mrb[0].mxu0
  %562 = vmatprep.mubr.bf16.mxu0 0
  %563 = vmatmul.mubr.bf16.gmra.mrb[0].mxu0 %v470
  %v564 = vpop.f32.mrb[0].mxu0
  %v565 = vadd.f32 0.0, %v564
  %v566 = vpop.f32.mrb[0].mxu0
  %v567 = vpop.f32.mrb[0].mxu0
  %v568 = vadd.f32 0.0, %v567
  %v569 = vpop.f32.mrb[0].mxu0
  %570 = vmatprep.mubr.bf16.mxu0 0
  %571 = vmatmul.mubr.bf16.gmra.mrb[0].mxu0 %v473
  %v572 = vpop.f32.mrb[0].mxu0
  %v573 = vadd.f32 0.0, %v572
  %v574 = vpop.f32.mrb[0].mxu0
  %v575 = vpop.f32.mrb[0].mxu0
  %v576 = vadd.f32 0.0, %v575
  %v577 = vpop.f32.mrb[0].mxu0
  %578 = vmatprep.mubr.bf16.mxu0 0
  %579 = vmatmul.mubr.bf16.gmra.mrb[0].mxu0 %v476
  %v580 = vpop.f32.mrb[0].mxu0
  %v581 = vadd.f32 0.0, %v580
  %v582 = vpop.f32.mrb[0].mxu0
  %v583 = vpop.f32.mrb[0].mxu0
  %v584 = vadd.f32 0.0, %v583
  %v585 = vpop.f32.mrb[0].mxu0
  %586 = vmatprep.mubr.bf16.mxu0 0
  %587 = vmatmul.mubr.bf16.gmra.mrb[0].mxu0 %v479
  %v588 = vpop.f32.mrb[0].mxu0
  %v589 = vadd.f32 0.0, %v588
  %v590 = vpop.f32.mrb[0].mxu0
  %v591 = vpop.f32.mrb[0].mxu0
  %v592 = vadd.f32 0.0, %v591
  %v593 = vpop.f32.mrb[0].mxu0
  %594 = vmatprep.mubr.bf16.mxu0 0
  %595 = vmatmul.mubr.bf16.gmra.mrb[0].mxu0 %v482
  %v596 = vpop.f32.mrb[0].mxu0
  %v597 = vadd.f32 0.0, %v596
  %v598 = vpop.f32.mrb[0].mxu0
  %v599 = vpop.f32.mrb[0].mxu0
  %v600 = vpop.f32.mrb[0].mxu0
  %601 = vdwg.mxu0
  %v602 = vmax.f32 %v525, 1e-10
  %v603 = vmax.f32 %v528, 1e-10
  %v604 = vmax.f32 %v533, 1e-10
  %v605 = vmax.f32 %v536, 1e-10
  %v606 = vmax.f32 %v541, 1e-10
  %v607 = vmax.f32 %v544, 1e-10
  %v608 = vmax.f32 %v549, 1e-10
  %v609 = vmax.f32 %v552, 1e-10
  %v610 = vmax.f32 %v557, 1e-10
  %v611 = vmax.f32 %v560, 1e-10
  %v612 = vmax.f32 %v565, 1e-10
  %v613 = vmax.f32 %v568, 1e-10
  %v614 = vmax.f32 %v573, 1e-10
  %v615 = vmax.f32 %v576, 1e-10
  %v616 = vmax.f32 %v581, 1e-10
  %v617 = vmax.f32 %v584, 1e-10
  %v618 = vmax.f32 %v589, 1e-10
  %v619 = vmax.f32 %v592, 1e-10
  %v620 = vmax.f32 %v597, 1e-10
  %v621 = vlog2.pop %v602
  %v622 = vmul.f32 %v621, 0.6931472
  %v623 = vlog2.pop %v603
  %v624 = vmul.f32 %v623, 0.6931472
  %v625 = vlog2.pop %v604
  %v626 = vmul.f32 %v625, 0.6931472
  %v627 = vlog2.pop %v605
  %v628 = vmul.f32 %v627, 0.6931472
  %v629 = vlog2.pop %v606
  %v630 = vmul.f32 %v629, 0.6931472
  %v631 = vlog2.pop %v607
  %v632 = vmul.f32 %v631, 0.6931472
  %v633 = vlog2.pop %v608
  %v634 = vmul.f32 %v633, 0.6931472
  %v635 = vlog2.pop %v609
  %v636 = vmul.f32 %v635, 0.6931472
  %v637 = vlog2.pop %v610
  %v638 = vmul.f32 %v637, 0.6931472
  %v639 = vlog2.pop %v611
  %v640 = vmul.f32 %v639, 0.6931472
  %v641 = vlog2.pop %v612
  %v642 = vmul.f32 %v641, 0.6931472
  %v643 = vlog2.pop %v613
  %v644 = vmul.f32 %v643, 0.6931472
  %v645 = vlog2.pop %v614
  %v646 = vmul.f32 %v645, 0.6931472
  %v647 = vlog2.pop %v615
  %v648 = vmul.f32 %v647, 0.6931472
  %v649 = vlog2.pop %v616
  %v650 = vmul.f32 %v649, 0.6931472
  %v651 = vlog2.pop %v617
  %v652 = vmul.f32 %v651, 0.6931472
  %v653 = vlog2.pop %v618
  %v654 = vmul.f32 %v653, 0.6931472
  %v655 = vlog2.pop %v619
  %v656 = vmul.f32 %v655, 0.6931472
  %v657 = vlog2.pop %v620
  %v658 = vmul.f32 %v657, 0.6931472
  %v659 = vmul.f32 %v622, 0.4342945
  %v660 = vmul.f32 %v624, 0.4342945
  %v661 = vmul.f32 %v626, 0.4342945
  %v662 = vmul.f32 %v628, 0.4342945
  %v663 = vmul.f32 %v630, 0.4342945
  %v664 = vmul.f32 %v632, 0.4342945
  %v665 = vmul.f32 %v634, 0.4342945
  %v666 = vmul.f32 %v636, 0.4342945
  %v667 = vmul.f32 %v638, 0.4342945
  %v668 = vmul.f32 %v640, 0.4342945
  %v669 = vmul.f32 %v642, 0.4342945
  %v670 = vmul.f32 %v644, 0.4342945
  %v671 = vmul.f32 %v646, 0.4342945
  %v672 = vmul.f32 %v648, 0.4342945
  %v673 = vmul.f32 %v650, 0.4342945
  %v674 = vmul.f32 %v652, 0.4342945
  %v675 = vmul.f32 %v654, 0.4342945
  %v676 = vmul.f32 %v656, 0.4342945
  %v677 = vmul.f32 %v658, 0.4342945
  %vm678 = vcmask 130048
  %679 = vst.msk [vmem:[%s4] sm:$0xff] %vm678, %v659
  %680 = vst.msk [vmem:[%s4 + $0x8] sm:$0xff] %vm678, %v660
  %681 = vst.msk [vmem:[%s4 + $0x10] sm:$0xff] %vm678, %v661
  %682 = vst.msk [vmem:[%s4 + $0x18] sm:$0xff] %vm678, %v662
  %683 = vst.msk [vmem:[%s4 + $0x20] sm:$0xff] %vm678, %v663
  %684 = vst.msk [vmem:[%s4 + $0x28] sm:$0xff] %vm678, %v664
  %685 = vst.msk [vmem:[%s4 + $0x30] sm:$0xff] %vm678, %v665
  %686 = vst.msk [vmem:[%s4 + $0x38] sm:$0xff] %vm678, %v666
  %687 = vst.msk [vmem:[%s4 + $0x40] sm:$0xff] %vm678, %v667
  %688 = vst.msk [vmem:[%s4 + $0x48] sm:$0xff] %vm678, %v668
  %689 = vst.msk [vmem:[%s4 + $0x50] sm:$0xff] %vm678, %v669
  %690 = vst.msk [vmem:[%s4 + $0x58] sm:$0xff] %vm678, %v670
  %691 = vst.msk [vmem:[%s4 + $0x60] sm:$0xff] %vm678, %v671
  %692 = vst.msk [vmem:[%s4 + $0x68] sm:$0xff] %vm678, %v672
  %693 = vst.msk [vmem:[%s4 + $0x70] sm:$0xff] %vm678, %v673
  %694 = vst.msk [vmem:[%s4 + $0x78] sm:$0xff] %vm678, %v674
  %695 = vst.msk [vmem:[%s4 + $0x80] sm:$0xff] %vm678, %v675
  %696 = vst.msk [vmem:[%s4 + $0x88] sm:$0xff] %vm678, %v676
  %697 = vst.msk [vmem:[%s4 + $0x90] sm:$0xff] %vm678, %v677
  // Predicated region
  $region18: #{model_forward.13} parent=0 // pred_check
    _
  $region19: #{model_forward.13} parent=0 // pred_check_branch
    %699 = sbr.rel (0) target = $region21
  $region20: #{model_forward.13} parent=0 // pred_region
    _
  $region21: #{model_forward.13} parent=0 // pred_fallthru
    _
  // Predicated region
  $region22: #{model_forward.13} parent=0 // pred_check
    _
  $region23: #{model_forward.13} parent=0 // pred_check_branch
    %701 = sbr.rel (0) target = $region25
  $region24: #{model_forward.13} parent=0 // pred_region
    _
  $region25: #{model_forward.13} parent=0 // pred_fallthru
    _

// kernel: model_forward.15
$region0: #{model_forward.15}
  #allocation0 [shape = 'u32[]', space=smem, size = 0x4, offset = 0x4, fixed_abs, tag = 'smem constant byte address 0x4 - core index']
  #allocation1 [shape = 'u32[144,128]{1,0:T(1,128)}', space=vmem, size = 0x12000, scoped, tag = 'internal scratch']
  %s0 = inlined_call_operand.vmem [shape: f32[56,32], index: 0, kind: input, shape index: {}]
  %s1 = inlined_call_operand.vmem [shape: f32[1,32], index: 1, kind: input, shape index: {}]
  %s2 = inlined_call_operand.vmem [shape: f32[1,32], index: 2, kind: input, shape index: {}]
  %s3 = inlined_call_operand.vmem [shape: bf16[32,64], index: 3, kind: input, shape index: {}]
  %s4 = inlined_call_operand.vmem [shape: f32[1,64], index: 4, kind: input, shape index: {}]
  %s5 = inlined_call_operand.vmem [shape: bf16[64,32], index: 5, kind: input, shape index: {}]
  %s6 = inlined_call_operand.vmem [shape: f32[1,32], index: 6, kind: input, shape index: {}]
  %s7 = inlined_call_operand.vmem [shape: f32[1,32], index: 7, kind: input, shape index: {}]
  %s8 = inlined_call_operand.vmem [shape: f32[1,32], index: 8, kind: input, shape index: {}]
  %s9 = inlined_call_operand.vmem [shape: f32[56,32], index: 9, kind: output, shape index: {}]
  %s10 = sld [smem:[#allocation0]]
  $region46: #{model_forward.15} parent=0
    _
  %s12 = ssub.s32 1, %s10
  %s13 = scalar_select 0, %s12, %s10
  // Predicated region
  $region2: #{model_forward.15} parent=0 // pred_check
    _
  $region3: #{model_forward.15} parent=0 // pred_check_branch
    %15 = sbr.rel (0) target = $region5
  $region4: #{model_forward.15} parent=0 // pred_region
    _
  $region5: #{model_forward.15} parent=0 // pred_fallthru
    _
  // Predicated region
  $region6: #{model_forward.15} parent=0 // pred_check
    _
  $region7: #{model_forward.15} parent=0 // pred_check_branch
    %17 = sbr.rel (0) target = $region9
  $region8: #{model_forward.15} parent=0 // pred_region
    _
  $region9: #{model_forward.15} parent=0 // pred_fallthru
    _
  // Predicated region
  $region10: #{model_forward.15} parent=0 // pred_check
    _
  $region11: #{model_forward.15} parent=0 // pred_check_branch
    %19 = sbr.rel (0) target = $region13
  $region12: #{model_forward.15} parent=0 // pred_region
    _
  $region13: #{model_forward.15} parent=0 // pred_fallthru
    _
  // Predicated region
  $region14: #{model_forward.15} parent=0 // pred_check
    _
  $region15: #{model_forward.15} parent=0 // pred_check_branch
    %21 = sbr.rel (0) target = $region17
  $region16: #{model_forward.15} parent=0 // pred_region
    _
  $region17: #{model_forward.15} parent=0 // pred_fallthru
    _
  // Predicated region
  $region18: #{model_forward.15} parent=0 // pred_check
    _
  $region19: #{model_forward.15} parent=0 // pred_check_branch
    %23 = sbr.rel (0) target = $region21
  $region20: #{model_forward.15} parent=0 // pred_region
    _
  $region21: #{model_forward.15} parent=0 // pred_fallthru
    _
  // Predicated region
  $region22: #{model_forward.15} parent=0 // pred_check
    _
  $region23: #{model_forward.15} parent=0 // pred_check_branch
    %25 = sbr.rel (0) target = $region25
  $region24: #{model_forward.15} parent=0 // pred_region
    _
  $region25: #{model_forward.15} parent=0 // pred_fallthru
    _
  // Predicated region
  $region26: #{model_forward.15} parent=0 // pred_check
    _
  $region27: #{model_forward.15} parent=0 // pred_check_branch
    %27 = sbr.rel (0) target = $region29
  $region28: #{model_forward.15} parent=0 // pred_region
    _
  $region29: #{model_forward.15} parent=0 // pred_fallthru
    _
  // Predicated region
  $region30: #{model_forward.15} parent=0 // pred_check
    _
  $region31: #{model_forward.15} parent=0 // pred_check_branch
    %29 = sbr.rel (0) target = $region33
  $region32: #{model_forward.15} parent=0 // pred_region
    _
  $region33: #{model_forward.15} parent=0 // pred_fallthru
    _
  // Predicated region
  $region34: #{model_forward.15} parent=0 // pred_check
    _
  $region35: #{model_forward.15} parent=0 // pred_check_branch
    %31 = sbr.rel (0) target = $region37
  $region36: #{model_forward.15} parent=0 // pred_region
    _
  $region37: #{model_forward.15} parent=0 // pred_fallthru
    _
  %v33 = vld [vmem:[%s0] sm:$0xff]
  %v34 = vld [vmem:[%s0 + $0x8] sm:$0xff]
  %v35 = vld [vmem:[%s0 + $0x10] sm:$0xff]
  %v36 = vld [vmem:[%s0 + $0x18] sm:$0xff]
  %v37 = vld [vmem:[%s0 + $0x20] sm:$0xff]
  %v38 = vld [vmem:[%s0 + $0x28] sm:$0xff]
  %v39 = vld [vmem:[%s0 + $0x30] sm:$0xff]
  %v40 = vld [vmem:[%s1] sm:$0x1]
  %v41 = vld [vmem:[%s2] sm:$0x1]
  %vm42 = vcmask 261120
  %v43 = vsel %vm42, %v33, 0.0
  %44 = vadd.xlane.f32.xlu0 %v43
  %v45 = vpop.xlane.xlu0 %44
  %v46 = vsel %vm42, %v34, 0.0
  %47 = vadd.xlane.f32.xlu0 %v46
  %v48 = vpop.xlane.xlu0 %47
  %v49 = vsel %vm42, %v35, 0.0
  %50 = vadd.xlane.f32.xlu0 %v49
  %v51 = vpop.xlane.xlu0 %50
  %v52 = vsel %vm42, %v36, 0.0
  %53 = vadd.xlane.f32.xlu0 %v52
  %v54 = vpop.xlane.xlu0 %53
  %v55 = vsel %vm42, %v37, 0.0
  %56 = vadd.xlane.f32.xlu0 %v55
  %v57 = vpop.xlane.xlu0 %56
  %v58 = vsel %vm42, %v38, 0.0
  %59 = vadd.xlane.f32.xlu0 %v58
  %v60 = vpop.xlane.xlu0 %59
  %v61 = vsel %vm42, %v39, 0.0
  %62 = vadd.xlane.f32.xlu0 %v61
  %v63 = vpop.xlane.xlu0 %62
  %v64 = vrcp.pop 32.0
  %v65 = vmul.f32 %v45, %v64
  %v66 = vmul.f32 %v48, %v64
  %v67 = vmul.f32 %v51, %v64
  %v68 = vmul.f32 %v54, %v64
  %v69 = vmul.f32 %v57, %v64
  %v70 = vmul.f32 %v60, %v64
  %v71 = vmul.f32 %v63, %v64
  %v72 = vsub.f32 %v33, %v65
  %v73 = vsub.f32 %v34, %v66
  %v74 = vsub.f32 %v35, %v67
  %v75 = vsub.f32 %v36, %v68
  %v76 = vsub.f32 %v37, %v69
  %v77 = vsub.f32 %v38, %v70
  %v78 = vsub.f32 %v39, %v71
  %v79 = vmul.f32 %v72, %v72
  %v80 = vmul.f32 %v73, %v73
  %v81 = vmul.f32 %v74, %v74
  %v82 = vmul.f32 %v75, %v75
  %v83 = vmul.f32 %v76, %v76
  %v84 = vmul.f32 %v77, %v77
  %v85 = vmul.f32 %v78, %v78
  %v86 = vsel %vm42, %v79, 0.0
  %87 = vadd.xlane.f32.xlu0 %v86
  %v88 = vpop.xlane.xlu0 %87
  %v89 = vsel %vm42, %v80, 0.0
  %90 = vadd.xlane.f32.xlu0 %v89
  %v91 = vpop.xlane.xlu0 %90
  %v92 = vsel %vm42, %v81, 0.0
  %93 = vadd.xlane.f32.xlu0 %v92
  %v94 = vpop.xlane.xlu0 %93
  %v95 = vsel %vm42, %v82, 0.0
  %96 = vadd.xlane.f32.xlu0 %v95
  %v97 = vpop.xlane.xlu0 %96
  %v98 = vsel %vm42, %v83, 0.0
  %99 = vadd.xlane.f32.xlu0 %v98
  %v100 = vpop.xlane.xlu0 %99
  %v101 = vsel %vm42, %v84, 0.0
  %102 = vadd.xlane.f32.xlu0 %v101
  %v103 = vpop.xlane.xlu0 %102
  %v104 = vsel %vm42, %v85, 0.0
  %105 = vadd.xlane.f32.xlu0 %v104
  %v106 = vpop.xlane.xlu0 %105
  %v107 = vmul.f32 %v88, %v64
  %v108 = vmul.f32 %v91, %v64
  %v109 = vmul.f32 %v94, %v64
  %v110 = vmul.f32 %v97, %v64
  %v111 = vmul.f32 %v100, %v64
  %v112 = vmul.f32 %v103, %v64
  %v113 = vmul.f32 %v106, %v64
  %v114 = vadd.f32 %v107, 1e-05
  %v115 = vadd.f32 %v108, 1e-05
  %v116 = vadd.f32 %v109, 1e-05
  %v117 = vadd.f32 %v110, 1e-05
  %v118 = vadd.f32 %v111, 1e-05
  %v119 = vadd.f32 %v112, 1e-05
  %v120 = vadd.f32 %v113, 1e-05
  %v121 = vrsqrt.pop %v114
  %v122 = vrsqrt.pop %v115
  %v123 = vrsqrt.pop %v116
  %v124 = vrsqrt.pop %v117
  %v125 = vrsqrt.pop %v118
  %v126 = vrsqrt.pop %v119
  %v127 = vrsqrt.pop %v120
  %v128 = vmul.f32 %v72, %v121
  %v129 = vmul.f32 %v73, %v122
  %v130 = vmul.f32 %v74, %v123
  %v131 = vmul.f32 %v75, %v124
  %v132 = vmul.f32 %v76, %v125
  %v133 = vmul.f32 %v77, %v126
  %v134 = vmul.f32 %v78, %v127
  %v136 = vlaneseq
  %v137 = vshrl.u32 %v136, 7
  %v138 = vsub.s32 0, %v137
  %v139 = vrot.slane %v40, %v138
  %v141 = vmul.f32 %v128, %v139
  %v142 = vmul.f32 %v129, %v139
  %v143 = vmul.f32 %v130, %v139
  %v144 = vmul.f32 %v131, %v139
  %v145 = vmul.f32 %v132, %v139
  %v146 = vmul.f32 %v133, %v139
  %v147 = vmul.f32 %v134, %v139
  %v149 = vlaneseq
  %v150 = vshrl.u32 %v149, 7
  %v151 = vsub.s32 0, %v150
  %v152 = vrot.slane %v41, %v151
  %v154 = vadd.f32 %v141, %v152
  %v155 = vadd.f32 %v142, %v152
  %v156 = vadd.f32 %v143, %v152
  %v157 = vadd.f32 %v144, %v152
  %v158 = vadd.f32 %v145, %v152
  %v159 = vadd.f32 %v146, %v152
  %v160 = vadd.f32 %v147, %v152
  %v161 = vpack.c.bf16 %v155, %v154
  %v162 = vpack.c.bf16 %v157, %v156
  %v163 = vpack.c.bf16 %v159, %v158
  %v164 = vpack.c.bf16 %v160, %v160
  %v165 = vld [vmem:[%s3] sm:$0xf]
  %v166 = vld [vmem:[%s3 + $0x4] sm:$0xf]
  %v167 = vld [vmem:[%s3 + $0x8] sm:$0xf]
  %v168 = vld [vmem:[%s3 + $0xc] sm:$0xf]
  %v169 = vld [vmem:[%s4] sm:$0x1]
  %v171 = vlaneseq
  %v172 = vshrl.u32 %v171, 7
  %v173 = vsub.s32 0, %v172
  %v174 = vrot.slane %v169, %v173
  %v180 = vunpack.c.l.b16 %v165
  %v181 = vunpack.c.l.b16 %v166
  %v182 = vunpack.c.l.b16 %v167
  %v183 = vunpack.c.l.b16 %v168
  %v184 = vpack.c.b16 %v181, %v180
  %v185 = vpack.c.b16 %v183, %v182
  %v189 = vsel %vm42, %v161, 0
  %v192 = vsel %vm42, %v162, 0
  %v195 = vsel %vm42, %v163, 0
  %v198 = vsel %vm42, %v164, 0
  %200 = vmatprep.subr.bf16.mxu0 0
  %201 = vmatpush1.bf16.msra.mxu0 %v184
  %202 = vmatprep.subr.bf16.mxu0 0
  %203 = vmatpush1.bf16.msra.mxu0 %v185
  %204 = vmatprep.subr.bf16.mxu0 0
  %205 = vmatpush1.bf16.msra.mxu0 0
  %206 = vmatprep.subr.bf16.mxu0 0
  %207 = vmatpush1.bf16.msra.mxu0 0
  %208 = vmatprep.subr.bf16.mxu0 0
  %209 = vmatpush1.bf16.msra.mxu0 0
  %210 = vmatprep.subr.bf16.mxu0 0
  %211 = vmatpush1.bf16.msra.mxu0 0
  %212 = vmatprep.subr.bf16.mxu0 0
  %213 = vmatpush1.bf16.msra.mxu0 0
  %214 = vmatprep.subr.bf16.mxu0 0
  %215 = vmatpush1.bf16.msra.mxu0 0
  %216 = vmatprep.subr.bf16.mxu0 0
  %217 = vmatpush1.bf16.msra.mxu0 0
  %218 = vmatprep.subr.bf16.mxu0 0
  %219 = vmatpush1.bf16.msra.mxu0 0
  %220 = vmatprep.subr.bf16.mxu0 0
  %221 = vmatpush1.bf16.msra.mxu0 0
  %222 = vmatprep.subr.bf16.mxu0 0
  %223 = vmatpush1.bf16.msra.mxu0 0
  %224 = vmatprep.subr.bf16.mxu0 0
  %225 = vmatpush1.bf16.msra.mxu0 0
  %226 = vmatprep.subr.bf16.mxu0 0
  %227 = vmatpush1.bf16.msra.mxu0 0
  %228 = vmatprep.subr.bf16.mxu0 0
  %229 = vmatpush1.bf16.msra.mxu0 0
  %230 = vmatprep.subr.bf16.mxu0 0
  %231 = vmatpush1.bf16.msra.mxu0 0
  %232 = vmatprep.mubr.bf16.mxu0 0
  %233 = vmatmul.mubr.bf16.gmra.mrb[0].mxu0 %v189
  %v234 = vpop.f32.mrb[0].mxu0
  %v235 = vadd.f32 %v174, %v234
  %v236 = vpop.f32.mrb[0].mxu0
  %v237 = vpop.f32.mrb[0].mxu0
  %v238 = vadd.f32 %v174, %v237
  %v239 = vpop.f32.mrb[0].mxu0
  %240 = vmatprep.mubr.bf16.mxu0 0
  %241 = vmatmul.mubr.bf16.gmra.mrb[0].mxu0 %v192
  %v242 = vpop.f32.mrb[0].mxu0
  %v243 = vadd.f32 %v174, %v242
  %v244 = vpop.f32.mrb[0].mxu0
  %v245 = vpop.f32.mrb[0].mxu0
  %v246 = vadd.f32 %v174, %v245
  %v247 = vpop.f32.mrb[0].mxu0
  %248 = vmatprep.mubr.bf16.mxu0 0
  %249 = vmatmul.mubr.bf16.gmra.mrb[0].mxu0 %v195
  %v250 = vpop.f32.mrb[0].mxu0
  %v251 = vadd.f32 %v174, %v250
  %v252 = vpop.f32.mrb[0].mxu0
  %v253 = vpop.f32.mrb[0].mxu0
  %v254 = vadd.f32 %v174, %v253
  %v255 = vpop.f32.mrb[0].mxu0
  %256 = vmatprep.mubr.bf16.mxu0 0
  %257 = vmatmul.mubr.bf16.gmra.mrb[0].mxu0 %v198
  %v258 = vpop.f32.mrb[0].mxu0
  %v259 = vadd.f32 %v174, %v258
  %v260 = vpop.f32.mrb[0].mxu0
  %v261 = vpop.f32.mrb[0].mxu0
  %v262 = vpop.f32.mrb[0].mxu0
  %263 = vdwg.mxu0
  %v264 = vsub.f32 0.0, %v235
  %v265 = vsub.f32 0.0, %v238
  %v266 = vsub.f32 0.0, %v243
  %v267 = vsub.f32 0.0, %v246
  %v268 = vsub.f32 0.0, %v251
  %v269 = vsub.f32 0.0, %v254
  %v270 = vsub.f32 0.0, %v259
  %v271 = vmul.f32 %v264, 1.442695
  %v272 = vpow.pop %v271
  %v273 = vmul.f32 %v265, 1.442695
  %v274 = vpow.pop %v273
  %v275 = vmul.f32 %v266, 1.442695
  %v276 = vpow.pop %v275
  %v277 = vmul.f32 %v267, 1.442695
  %v278 = vpow.pop %v277
  %v279 = vmul.f32 %v268, 1.442695
  %v280 = vpow.pop %v279
  %v281 = vmul.f32 %v269, 1.442695
  %v282 = vpow.pop %v281
  %v283 = vmul.f32 %v270, 1.442695
  %v284 = vpow.pop %v283
  %v285 = vadd.f32 %v272, 1.0
  %v286 = vadd.f32 %v274, 1.0
  %v287 = vadd.f32 %v276, 1.0
  %v288 = vadd.f32 %v278, 1.0
  %v289 = vadd.f32 %v280, 1.0
  %v290 = vadd.f32 %v282, 1.0
  %v291 = vadd.f32 %v284, 1.0
  %v292 = vrcp.pop %v285
  %v293 = vmul.f32 1.0, %v292
  %v294 = vrcp.pop %v286
  %v295 = vmul.f32 1.0, %v294
  %v296 = vrcp.pop %v287
  %v297 = vmul.f32 1.0, %v296
  %v298 = vrcp.pop %v288
  %v299 = vmul.f32 1.0, %v298
  %v300 = vrcp.pop %v289
  %v301 = vmul.f32 1.0, %v300
  %v302 = vrcp.pop %v290
  %v303 = vmul.f32 1.0, %v302
  %v304 = vrcp.pop %v291
  %v305 = vmul.f32 1.0, %v304
  %v306 = vmul.f32 %v235, %v293
  %v307 = vmul.f32 %v238, %v295
  %v308 = vmul.f32 %v243, %v297
  %v309 = vmul.f32 %v246, %v299
  %v310 = vmul.f32 %v251, %v301
  %v311 = vmul.f32 %v254, %v303
  %v312 = vmul.f32 %v259, %v305
  %v313 = vpack.c.bf16 %v307, %v306
  %v314 = vpack.c.bf16 %v309, %v308
  %v315 = vpack.c.bf16 %v311, %v310
  %v316 = vpack.c.bf16 %v312, %v312
  %v317 = vld [vmem:[%s5] sm:$0xf]
  %v318 = vld [vmem:[%s5 + $0x4] sm:$0xf]
  %v319 = vld [vmem:[%s5 + $0x8] sm:$0xf]
  %v320 = vld [vmem:[%s5 + $0xc] sm:$0xf]
  %v321 = vld [vmem:[%s5 + $0x10] sm:$0xf]
  %v322 = vld [vmem:[%s5 + $0x14] sm:$0xf]
  %v323 = vld [vmem:[%s5 + $0x18] sm:$0xf]
  %v324 = vld [vmem:[%s5 + $0x1c] sm:$0xf]
  %v325 = vld [vmem:[%s6] sm:$0x1]
  %v327 = vlaneseq
  %v328 = vshrl.u32 %v327, 7
  %v329 = vsub.s32 0, %v328
  %v330 = vrot.slane %v325, %v329
  %v340 = vunpack.c.l.b16 %v317
  %v341 = vunpack.c.l.b16 %v318
  %v342 = vunpack.c.l.b16 %v319
  %v343 = vunpack.c.l.b16 %v320
  %v344 = vunpack.c.l.b16 %v321
  %v345 = vunpack.c.l.b16 %v322
  %v346 = vunpack.c.l.b16 %v323
  %v347 = vunpack.c.l.b16 %v324
  %v348 = vpack.c.b16 %v341, %v340
  %v349 = vpack.c.b16 %v343, %v342
  %v350 = vpack.c.b16 %v345, %v344
  %v351 = vpack.c.b16 %v347, %v346
  %vm356 = vcmask 523264
  %v358 = vsel %vm356, %v313, 0
  %v361 = vsel %vm356, %v314, 0
  %v364 = vsel %vm356, %v315, 0
  %v367 = vsel %vm356, %v316, 0
  %369 = vmatprep.subr.bf16.mxu0 0
  %370 = vmatpush1.bf16.msra.mxu0 %v348
  %371 = vmatprep.subr.bf16.mxu0 0
  %372 = vmatpush1.bf16.msra.mxu0 %v349
  %373 = vmatprep.subr.bf16.mxu0 0
  %374 = vmatpush1.bf16.msra.mxu0 %v350
  %375 = vmatprep.subr.bf16.mxu0 0
  %376 = vmatpush1.bf16.msra.mxu0 %v351
  %377 = vmatprep.subr.bf16.mxu0 0
  %378 = vmatpush1.bf16.msra.mxu0 0
  %379 = vmatprep.subr.bf16.mxu0 0
  %380 = vmatpush1.bf16.msra.mxu0 0
  %381 = vmatprep.subr.bf16.mxu0 0
  %382 = vmatpush1.bf16.msra.mxu0 0
  %383 = vmatprep.subr.bf16.mxu0 0
  %384 = vmatpush1.bf16.msra.mxu0 0
  %385 = vmatprep.subr.bf16.mxu0 0
  %386 = vmatpush1.bf16.msra.mxu0 0
  %387 = vmatprep.subr.bf16.mxu0 0
  %388 = vmatpush1.bf16.msra.mxu0 0
  %389 = vmatprep.subr.bf16.mxu0 0
  %390 = vmatpush1.bf16.msra.mxu0 0
  %391 = vmatprep.subr.bf16.mxu0 0
  %392 = vmatpush1.bf16.msra.mxu0 0
  %393 = vmatprep.subr.bf16.mxu0 0
  %394 = vmatpush1.bf16.msra.mxu0 0
  %395 = vmatprep.subr.bf16.mxu0 0
  %396 = vmatpush1.bf16.msra.mxu0 0
  %397 = vmatprep.subr.bf16.mxu0 0
  %398 = vmatpush1.bf16.msra.mxu0 0
  %399 = vmatprep.subr.bf16.mxu0 0
  %400 = vmatpush1.bf16.msra.mxu0 0
  %401 = vmatprep.mubr.bf16.mxu0 0
  %402 = vmatmul.mubr.bf16.gmra.mrb[0].mxu0 %v358
  %v403 = vpop.f32.mrb[0].mxu0
  %v404 = vadd.f32 %v330, %v403
  %v405 = vpop.f32.mrb[0].mxu0
  %v406 = vpop.f32.mrb[0].mxu0
  %v407 = vadd.f32 %v330, %v406
  %v408 = vpop.f32.mrb[0].mxu0
  %409 = vmatprep.mubr.bf16.mxu0 0
  %410 = vmatmul.mubr.bf16.gmra.mrb[0].mxu0 %v361
  %v411 = vpop.f32.mrb[0].mxu0
  %v412 = vadd.f32 %v330, %v411
  %v413 = vpop.f32.mrb[0].mxu0
  %v414 = vpop.f32.mrb[0].mxu0
  %v415 = vadd.f32 %v330, %v414
  %v416 = vpop.f32.mrb[0].mxu0
  %417 = vmatprep.mubr.bf16.mxu0 0
  %418 = vmatmul.mubr.bf16.gmra.mrb[0].mxu0 %v364
  %v419 = vpop.f32.mrb[0].mxu0
  %v420 = vadd.f32 %v330, %v419
  %v421 = vpop.f32.mrb[0].mxu0
  %v422 = vpop.f32.mrb[0].mxu0
  %v423 = vadd.f32 %v330, %v422
  %v424 = vpop.f32.mrb[0].mxu0
  %425 = vmatprep.mubr.bf16.mxu0 0
  %426 = vmatmul.mubr.bf16.gmra.mrb[0].mxu0 %v367
  %v427 = vpop.f32.mrb[0].mxu0
  %v428 = vadd.f32 %v330, %v427
  %v429 = vpop.f32.mrb[0].mxu0
  %v430 = vpop.f32.mrb[0].mxu0
  %v431 = vpop.f32.mrb[0].mxu0
  %432 = vdwg.mxu0
  %v433 = vmul.f32 %v404, 0.5
  %v434 = vmul.f32 %v407, 0.5
  %v435 = vmul.f32 %v412, 0.5
  %v436 = vmul.f32 %v415, 0.5
  %v437 = vmul.f32 %v420, 0.5
  %v438 = vmul.f32 %v423, 0.5
  %v439 = vmul.f32 %v428, 0.5
  %v440 = vadd.f32 %v33, %v433
  %v441 = vadd.f32 %v34, %v434
  %v442 = vadd.f32 %v35, %v435
  %v443 = vadd.f32 %v36, %v436
  %v444 = vadd.f32 %v37, %v437
  %v445 = vadd.f32 %v38, %v438
  %v446 = vadd.f32 %v39, %v439
  %447 = vst.msk [vmem:[%s9] sm:$0xff] %vm42, %v440
  %448 = vst.msk [vmem:[%s9 + $0x8] sm:$0xff] %vm42, %v441
  %449 = vst.msk [vmem:[%s9 + $0x10] sm:$0xff] %vm42, %v442
  %450 = vst.msk [vmem:[%s9 + $0x18] sm:$0xff] %vm42, %v443
  %451 = vst.msk [vmem:[%s9 + $0x20] sm:$0xff] %vm42, %v444
  %452 = vst.msk [vmem:[%s9 + $0x28] sm:$0xff] %vm42, %v445
  %453 = vst.msk [vmem:[%s9 + $0x30] sm:$0xff] %vm42, %v446
  // Predicated region
  $region38: #{model_forward.15} parent=0 // pred_check
    _
  $region39: #{model_forward.15} parent=0 // pred_check_branch
    %455 = sbr.rel (0) target = $region41
  $region40: #{model_forward.15} parent=0 // pred_region
    _
  $region41: #{model_forward.15} parent=0 // pred_fallthru
    _
  // Predicated region
  $region42: #{model_forward.15} parent=0 // pred_check
    _
  $region43: #{model_forward.15} parent=0 // pred_check_branch
    %457 = sbr.rel (0) target = $region45
  $region44: #{model_forward.15} parent=0 // pred_region
    _
  $region45: #{model_forward.15} parent=0 // pred_fallthru
    _

// kernel: model_forward.14
$region0: #{model_forward.14}
  #allocation0 [shape = 'u32[]', space=smem, size = 0x4, offset = 0x4, fixed_abs, tag = 'smem constant byte address 0x4 - core index']
  #allocation1 [shape = 'u32[144,128]{1,0:T(1,128)}', space=vmem, size = 0x12000, scoped, tag = 'internal scratch']
  %s0 = inlined_call_operand.vmem [shape: f32[10,16,16], index: 0, kind: input, shape index: {}]
  %s1 = inlined_call_operand.vmem [shape: bf16[3,16,128], index: 1, kind: input, shape index: {}]
  %s2 = inlined_call_operand.vmem [shape: f32[1,128], index: 2, kind: input, shape index: {}]
  %s3 = inlined_call_operand.vmem [shape: bf16[3,128,128], index: 3, kind: input, shape index: {}]
  %s4 = inlined_call_operand.vmem [shape: f32[1,128], index: 4, kind: input, shape index: {}]
  %s5 = inlined_call_operand.vmem [shape: bf16[3,128,128], index: 5, kind: input, shape index: {}]
  %s6 = inlined_call_operand.vmem [shape: f32[1,128], index: 6, kind: input, shape index: {}]
  %s7 = inlined_call_operand.vmem [shape: bf16[3,128,128], index: 7, kind: input, shape index: {}]
  %s8 = inlined_call_operand.vmem [shape: f32[1,128], index: 8, kind: input, shape index: {}]
  %s9 = inlined_call_operand.vmem [shape: bf16[128,32], index: 9, kind: input, shape index: {}]
  %s10 = inlined_call_operand.vmem [shape: f32[1,32], index: 10, kind: input, shape index: {}]
  %s11 = inlined_call_operand.vmem [shape: f32[10,4,32], index: 11, kind: output, shape index: {}]
  %s12 = sld [smem:[#allocation0]]
  $region77: #{model_forward.14} parent=0
    _
  %s14 = ssub.s32 1, %s12
  %s15 = scalar_select 0, %s14, %s12
  loop: start=0, step=1, limit=12
  $region2: #{model_forward.14} parent=0 // loop_pre_header
    _
  $region3: #{model_forward.14} parent=0 // loop_header
    %s17 = sphi 0, %s21
    %p18 = scmp.ge.s32.totalorder %s17, 12
    %s27 = sphi 0, %s29
    %s30 = sphi 0, %s27
    %s31 = sphi 0, %s30
    %s47 = sphi 0, %s31
    %s51 = sphi 0, %s51
    %s53 = sphi 0, %s51
    %s54 = sphi 0, %s53
    %s68 = sphi 0, %s54
    %s72 = sphi 0, %s72
    %s74 = sphi 0, %s72
    %s75 = sphi 0, %s74
    %s89 = sphi 0, %s75
    %s93 = sphi 0, %s93
    %s95 = sphi 0, %s93
    %s96 = sphi 0, %s95
    %s110 = sphi 0, %s96
    %s114 = sphi 0, %s114
    %s116 = sphi 0, %s114
    %s117 = sphi 0, %s116
    %s131 = sphi 0, %s117
    %s135 = sphi 0, %s135
    %s137 = sphi 0, %s135
    %s138 = sphi 0, %s137
    %s152 = sphi 0, %s138
    %s156 = sphi 0, %s156
    %s158 = sphi 0, %s156
    %s159 = sphi 0, %s158
    %s173 = sphi 0, %s159
    %s177 = sphi 0, %s177
    %s179 = sphi 0, %s177
    %s180 = sphi 0, %s179
    %s194 = sphi 0, %s180
    %s198 = sphi 0, %s198
    %s200 = sphi 0, %s198
    %s201 = sphi 0, %s200
    %s215 = sphi 0, %s201
    %s219 = sphi 0, %s219
    %s221 = sphi 0, %s219
    %s222 = sphi 0, %s221
    %s236 = sphi 0, %s222
    %s240 = sphi 0, %s240
    %s242 = sphi 0, %s240
    %s243 = sphi 0, %s242
    %s257 = sphi 0, %s243
    %s263 = sphi 0, %s265
    %s266 = sphi 0, %s263
    %s267 = sphi 0, %s266
    %s283 = sphi 0, %s267
  $region4: #{model_forward.14} parent=0 // loop_header_branch
    %20 = sbr.rel (%p18) target = $region8
  $region5: #{model_forward.14} parent=0 // loop_body
    %s22 = ssub.s32 %s17, 1
    %s23 = ssub.s32 %s17, 2
    %s24 = sadd.s32 %s17, 1
    %s25 = ssub.s32 %s17, %s24
    %p26 = scmp.eq.s32.totalorder %s25, 0
    %s28 = sadd.s32 %s27, 1
    %s29 = scalar_select %p26, %s27, %s28
    %p32 = pneg %p26
    %p33 = scmp.eq.s32.totalorder %s17, 9
    %p34 = por %p32, %p33
    %p35 = scmp.ne.s32.totalorder %s27, %s30
    %p36 = scmp.eq.s32.totalorder %s17, 0
    %p37 = por %p35, %p36
    %p38 = scmp.ne.s32.totalorder %s27, %s30
    %p39 = scmp.eq.s32.totalorder %s22, 9
    %p40 = por %p38, %p39
    %p41 = scmp.ne.s32.totalorder %s30, %s31
    %p42 = scmp.eq.s32.totalorder %s22, 0
    %p43 = por %p41, %p42
    %p44 = scmp.ne.s32.totalorder %s30, %s31
    %p45 = scmp.eq.s32.totalorder %s23, 9
    %p46 = por %p44, %p45
    %p48 = scmp.ne.s32.totalorder %s31, %s47
    %p49 = scmp.eq.s32.totalorder %s23, 0
    %p50 = por %p48, %p49
    %s52 = sadd.s32 %s51, 1
    %p55 = scmp.eq.s32.totalorder %s17, 9
    %p56 = scmp.ne.s32.totalorder %s51, %s53
    %p57 = scmp.eq.s32.totalorder %s17, 0
    %p58 = por %p56, %p57
    %p59 = scmp.ne.s32.totalorder %s51, %s53
    %p60 = scmp.eq.s32.totalorder %s22, 9
    %p61 = por %p59, %p60
    %p62 = scmp.ne.s32.totalorder %s53, %s54
    %p63 = scmp.eq.s32.totalorder %s22, 0
    %p64 = por %p62, %p63
    %p65 = scmp.ne.s32.totalorder %s53, %s54
    %p66 = scmp.eq.s32.totalorder %s23, 9
    %p67 = por %p65, %p66
    %p69 = scmp.ne.s32.totalorder %s54, %s68
    %p70 = scmp.eq.s32.totalorder %s23, 0
    %p71 = por %p69, %p70
    %s73 = sadd.s32 %s72, 1
    %p76 = scmp.eq.s32.totalorder %s17, 9
    %p77 = scmp.ne.s32.totalorder %s72, %s74
    %p78 = scmp.eq.s32.totalorder %s17, 0
    %p79 = por %p77, %p78
    %p80 = scmp.ne.s32.totalorder %s72, %s74
    %p81 = scmp.eq.s32.totalorder %s22, 9
    %p82 = por %p80, %p81
    %p83 = scmp.ne.s32.totalorder %s74, %s75
    %p84 = scmp.eq.s32.totalorder %s22, 0
    %p85 = por %p83, %p84
    %p86 = scmp.ne.s32.totalorder %s74, %s75
    %p87 = scmp.eq.s32.totalorder %s23, 9
    %p88 = por %p86, %p87
    %p90 = scmp.ne.s32.totalorder %s75, %s89
    %p91 = scmp.eq.s32.totalorder %s23, 0
    %p92 = por %p90, %p91
    %s94 = sadd.s32 %s93, 1
    %p97 = scmp.eq.s32.totalorder %s17, 9
    %p98 = scmp.ne.s32.totalorder %s93, %s95
    %p99 = scmp.eq.s32.totalorder %s17, 0
    %p100 = por %p98, %p99
    %p101 = scmp.ne.s32.totalorder %s93, %s95
    %p102 = scmp.eq.s32.totalorder %s22, 9
    %p103 = por %p101, %p102
    %p104 = scmp.ne.s32.totalorder %s95, %s96
    %p105 = scmp.eq.s32.totalorder %s22, 0
    %p106 = por %p104, %p105
    %p107 = scmp.ne.s32.totalorder %s95, %s96
    %p108 = scmp.eq.s32.totalorder %s23, 9
    %p109 = por %p107, %p108
    %p111 = scmp.ne.s32.totalorder %s96, %s110
    %p112 = scmp.eq.s32.totalorder %s23, 0
    %p113 = por %p111, %p112
    %s115 = sadd.s32 %s114, 1
    %p118 = scmp.eq.s32.totalorder %s17, 9
    %p119 = scmp.ne.s32.totalorder %s114, %s116
    %p120 = scmp.eq.s32.totalorder %s17, 0
    %p121 = por %p119, %p120
    %p122 = scmp.ne.s32.totalorder %s114, %s116
    %p123 = scmp.eq.s32.totalorder %s22, 9
    %p124 = por %p122, %p123
    %p125 = scmp.ne.s32.totalorder %s116, %s117
    %p126 = scmp.eq.s32.totalorder %s22, 0
    %p127 = por %p125, %p126
    %p128 = scmp.ne.s32.totalorder %s116, %s117
    %p129 = scmp.eq.s32.totalorder %s23, 9
    %p130 = por %p128, %p129
    %p132 = scmp.ne.s32.totalorder %s117, %s131
    %p133 = scmp.eq.s32.totalorder %s23, 0
    %p134 = por %p132, %p133
    %s136 = sadd.s32 %s135, 1
    %p139 = scmp.eq.s32.totalorder %s17, 9
    %p140 = scmp.ne.s32.totalorder %s135, %s137
    %p141 = scmp.eq.s32.totalorder %s17, 0
    %p142 = por %p140, %p141
    %p143 = scmp.ne.s32.totalorder %s135, %s137
    %p144 = scmp.eq.s32.totalorder %s22, 9
    %p145 = por %p143, %p144
    %p146 = scmp.ne.s32.totalorder %s137, %s138
    %p147 = scmp.eq.s32.totalorder %s22, 0
    %p148 = por %p146, %p147
    %p149 = scmp.ne.s32.totalorder %s137, %s138
    %p150 = scmp.eq.s32.totalorder %s23, 9
    %p151 = por %p149, %p150
    %p153 = scmp.ne.s32.totalorder %s138, %s152
    %p154 = scmp.eq.s32.totalorder %s23, 0
    %p155 = por %p153, %p154
    %s157 = sadd.s32 %s156, 1
    %p160 = scmp.eq.s32.totalorder %s17, 9
    %p161 = scmp.ne.s32.totalorder %s156, %s158
    %p162 = scmp.eq.s32.totalorder %s17, 0
    %p163 = por %p161, %p162
    %p164 = scmp.ne.s32.totalorder %s156, %s158
    %p165 = scmp.eq.s32.totalorder %s22, 9
    %p166 = por %p164, %p165
    %p167 = scmp.ne.s32.totalorder %s158, %s159
    %p168 = scmp.eq.s32.totalorder %s22, 0
    %p169 = por %p167, %p168
    %p170 = scmp.ne.s32.totalorder %s158, %s159
    %p171 = scmp.eq.s32.totalorder %s23, 9
    %p172 = por %p170, %p171
    %p174 = scmp.ne.s32.totalorder %s159, %s173
    %p175 = scmp.eq.s32.totalorder %s23, 0
    %p176 = por %p174, %p175
    %s178 = sadd.s32 %s177, 1
    %p181 = scmp.eq.s32.totalorder %s17, 9
    %p182 = scmp.ne.s32.totalorder %s177, %s179
    %p183 = scmp.eq.s32.totalorder %s17, 0
    %p184 = por %p182, %p183
    %p185 = scmp.ne.s32.totalorder %s177, %s179
    %p186 = scmp.eq.s32.totalorder %s22, 9
    %p187 = por %p185, %p186
    %p188 = scmp.ne.s32.totalorder %s179, %s180
    %p189 = scmp.eq.s32.totalorder %s22, 0
    %p190 = por %p188, %p189
    %p191 = scmp.ne.s32.totalorder %s179, %s180
    %p192 = scmp.eq.s32.totalorder %s23, 9
    %p193 = por %p191, %p192
    %p195 = scmp.ne.s32.totalorder %s180, %s194
    %p196 = scmp.eq.s32.totalorder %s23, 0
    %p197 = por %p195, %p196
    %s199 = sadd.s32 %s198, 1
    %p202 = scmp.eq.s32.totalorder %s17, 9
    %p203 = scmp.ne.s32.totalorder %s198, %s200
    %p204 = scmp.eq.s32.totalorder %s17, 0
    %p205 = por %p203, %p204
    %p206 = scmp.ne.s32.totalorder %s198, %s200
    %p207 = scmp.eq.s32.totalorder %s22, 9
    %p208 = por %p206, %p207
    %p209 = scmp.ne.s32.totalorder %s200, %s201
    %p210 = scmp.eq.s32.totalorder %s22, 0
    %p211 = por %p209, %p210
    %p212 = scmp.ne.s32.totalorder %s200, %s201
    %p213 = scmp.eq.s32.totalorder %s23, 9
    %p214 = por %p212, %p213
    %p216 = scmp.ne.s32.totalorder %s201, %s215
    %p217 = scmp.eq.s32.totalorder %s23, 0
    %p218 = por %p216, %p217
    %s220 = sadd.s32 %s219, 1
    %p223 = scmp.eq.s32.totalorder %s17, 9
    %p224 = scmp.ne.s32.totalorder %s219, %s221
    %p225 = scmp.eq.s32.totalorder %s17, 0
    %p226 = por %p224, %p225
    %p227 = scmp.ne.s32.totalorder %s219, %s221
    %p228 = scmp.eq.s32.totalorder %s22, 9
    %p229 = por %p227, %p228
    %p230 = scmp.ne.s32.totalorder %s221, %s222
    %p231 = scmp.eq.s32.totalorder %s22, 0
    %p232 = por %p230, %p231
    %p233 = scmp.ne.s32.totalorder %s221, %s222
    %p234 = scmp.eq.s32.totalorder %s23, 9
    %p235 = por %p233, %p234
    %p237 = scmp.ne.s32.totalorder %s222, %s236
    %p238 = scmp.eq.s32.totalorder %s23, 0
    %p239 = por %p237, %p238
    %s241 = sadd.s32 %s240, 1
    %p244 = scmp.eq.s32.totalorder %s17, 9
    %p245 = scmp.ne.s32.totalorder %s240, %s242
    %p246 = scmp.eq.s32.totalorder %s17, 0
    %p247 = por %p245, %p246
    %p248 = scmp.ne.s32.totalorder %s240, %s242
    %p249 = scmp.eq.s32.totalorder %s22, 9
    %p250 = por %p248, %p249
    %p251 = scmp.ne.s32.totalorder %s242, %s243
    %p252 = scmp.eq.s32.totalorder %s22, 0
    %p253 = por %p251, %p252
    %p254 = scmp.ne.s32.totalorder %s242, %s243
    %p255 = scmp.eq.s32.totalorder %s23, 9
    %p256 = por %p254, %p255
    %p258 = scmp.ne.s32.totalorder %s243, %s257
    %p259 = scmp.eq.s32.totalorder %s23, 0
    %p260 = por %p258, %p259
    %s261 = ssub.s32 %s17, %s24
    %p262 = scmp.eq.s32.totalorder %s261, 0
    %s264 = sadd.s32 %s263, 1
    %s265 = scalar_select %p262, %s263, %s264
    %p268 = pneg %p262
    %p269 = scmp.eq.s32.totalorder %s17, 9
    %p270 = por %p268, %p269
    %p271 = scmp.ne.s32.totalorder %s263, %s266
    %p272 = scmp.eq.s32.totalorder %s17, 0
    %p273 = por %p271, %p272
    %p274 = scmp.ne.s32.totalorder %s263, %s266
    %p275 = scmp.eq.s32.totalorder %s22, 9
    %p276 = por %p274, %p275
    %p277 = scmp.ne.s32.totalorder %s266, %s267
    %p278 = scmp.eq.s32.totalorder %s22, 0
    %p279 = por %p277, %p278
    %p280 = scmp.ne.s32.totalorder %s266, %s267
    %p281 = scmp.eq.s32.totalorder %s23, 9
    %p282 = por %p280, %p281
    %p284 = scmp.ne.s32.totalorder %s267, %s283
    %p285 = scmp.eq.s32.totalorder %s23, 0
    %p286 = por %p284, %p285
    %p287 = scmp.le.s32.totalorder 1, %s17
    %p288 = scmp.lt.s32.totalorder %s17, 11
    %p289 = pnand %p287, %p288
    %p290 = pneg %p289
    // Predicated region
    $region9: #{model_forward.14} parent=5 // pred_check
      _
    $region10: #{model_forward.14} parent=5 // pred_check_branch
      %292 = sbr.rel (%p289) target = $region12
    $region11: #{model_forward.14} parent=5 // pred_region
      %s293 = ssub.s32 %s17, 1
      // Predicated region
      $region13: #{model_forward.14} parent=11 // pred_check
        %p294 = pneg %p64
      $region14: #{model_forward.14} parent=11 // pred_check_branch
        %296 = sbr.rel (%p294) target = $region16
      $region15: #{model_forward.14} parent=11 // pred_region
        _
      $region16: #{model_forward.14} parent=11 // pred_fallthru
        _
      // Predicated region
      $region17: #{model_forward.14} parent=11 // pred_check
        %p297 = pneg %p85
      $region18: #{model_forward.14} parent=11 // pred_check_branch
        %299 = sbr.rel (%p297) target = $region20
      $region19: #{model_forward.14} parent=11 // pred_region
        _
      $region20: #{model_forward.14} parent=11 // pred_fallthru
        _
      // Predicated region
      $region21: #{model_forward.14} parent=11 // pred_check
        %p300 = pneg %p106
      $region22: #{model_forward.14} parent=11 // pred_check_branch
        %302 = sbr.rel (%p300) target = $region24
      $region23: #{model_forward.14} parent=11 // pred_region
        _
      $region24: #{model_forward.14} parent=11 // pred_fallthru
        _
      // Predicated region
      $region25: #{model_forward.14} parent=11 // pred_check
        %p303 = pneg %p127
      $region26: #{model_forward.14} parent=11 // pred_check_branch
        %305 = sbr.rel (%p303) target = $region28
      $region27: #{model_forward.14} parent=11 // pred_region
        _
      $region28: #{model_forward.14} parent=11 // pred_fallthru
        _
      // Predicated region
      $region29: #{model_forward.14} parent=11 // pred_check
        %p306 = pneg %p148
      $region30: #{model_forward.14} parent=11 // pred_check_branch
        %308 = sbr.rel (%p306) target = $region32
      $region31: #{model_forward.14} parent=11 // pred_region
        _
      $region32: #{model_forward.14} parent=11 // pred_fallthru
        _
      // Predicated region
      $region33: #{model_forward.14} parent=11 // pred_check
        %p309 = pneg %p169
      $region34: #{model_forward.14} parent=11 // pred_check_branch
        %311 = sbr.rel (%p309) target = $region36
      $region35: #{model_forward.14} parent=11 // pred_region
        _
      $region36: #{model_forward.14} parent=11 // pred_fallthru
        _
      // Predicated region
      $region37: #{model_forward.14} parent=11 // pred_check
        %p312 = pneg %p190
      $region38: #{model_forward.14} parent=11 // pred_check_branch
        %314 = sbr.rel (%p312) target = $region40
      $region39: #{model_forward.14} parent=11 // pred_region
        _
      $region40: #{model_forward.14} parent=11 // pred_fallthru
        _
      // Predicated region
      $region41: #{model_forward.14} parent=11 // pred_check
        %p315 = pneg %p211
      $region42: #{model_forward.14} parent=11 // pred_check_branch
        %317 = sbr.rel (%p315) target = $region44
      $region43: #{model_forward.14} parent=11 // pred_region
        _
      $region44: #{model_forward.14} parent=11 // pred_fallthru
        _
      // Predicated region
      $region45: #{model_forward.14} parent=11 // pred_check
        %p318 = pneg %p232
      $region46: #{model_forward.14} parent=11 // pred_check_branch
        %320 = sbr.rel (%p318) target = $region48
      $region47: #{model_forward.14} parent=11 // pred_region
        _
      $region48: #{model_forward.14} parent=11 // pred_fallthru
        _
      // Predicated region
      $region49: #{model_forward.14} parent=11 // pred_check
        %p321 = pneg %p253
      $region50: #{model_forward.14} parent=11 // pred_check_branch
        %323 = sbr.rel (%p321) target = $region52
      $region51: #{model_forward.14} parent=11 // pred_region
        _
      $region52: #{model_forward.14} parent=11 // pred_fallthru
        _
    $region12: #{model_forward.14} parent=5 // pred_fallthru
      _
    %p324 = scmp.lt.s32.totalorder %s17, 10
    // Predicated region
    $region53: #{model_forward.14} parent=5 // pred_check
      %p325 = pneg %p324
    $region54: #{model_forward.14} parent=5 // pred_check_branch
      %327 = sbr.rel (%p325) target = $region56
    $region55: #{model_forward.14} parent=5 // pred_region
      // Predicated region
      $region57: #{model_forward.14} parent=55 // pred_check
        %p328 = pneg %p37
      $region58: #{model_forward.14} parent=55 // pred_check_branch
        %330 = sbr.rel (%p328) target = $region60
      $region59: #{model_forward.14} parent=55 // pred_region
        %p331 = scmp.lt.s32.totalorder %s17, 9
        %s332 = scalar_select %p331, %s17, 9
        %s333 = smul.addr %s332, 2
        %s334 = smul.addr %s333, 8
        %s335 = scalar_lea.vmem %s0, %s334
      $region60: #{model_forward.14} parent=55 // pred_fallthru
        _
    $region56: #{model_forward.14} parent=5 // pred_fallthru
      _
    %p336 = scmp.le.s32.totalorder 1, %s17
    %p337 = scmp.lt.s32.totalorder %s17, 11
    %p338 = pnand %p336, %p337
    %p339 = pneg %p338
    // Predicated region
    $region61: #{model_forward.14} parent=5 // pred_check
      _
    $region62: #{model_forward.14} parent=5 // pred_check_branch
      %341 = sbr.rel (%p338) target = $region64
    $region63: #{model_forward.14} parent=5 // pred_region
      %s342 = ssub.s32 %s17, 1
      %p343 = scmp.lt.s32.totalorder %s22, 9
      %s344 = scalar_select %p343, %s22, 9
      %s345 = smul.addr %s344, 2
      %s346 = smul.addr %s345, 8
      %s347 = scalar_lea.vmem %s0, %s346
      %p348 = pneg %p43
      %p349 = pneg %p40
      %p350 = pneg %p64
      %p351 = pneg %p61
      %p352 = pneg %p85
      %p353 = pneg %p82
      %p354 = pneg %p106
      %p355 = pneg %p103
      %p356 = pneg %p127
      %p357 = pneg %p124
      %p358 = pneg %p148
      %p359 = pneg %p145
      %p360 = pneg %p169
      %p361 = pneg %p166
      %p362 = pneg %p190
      %p363 = pneg %p187
      %p364 = pneg %p211
      %p365 = pneg %p208
      %p366 = pneg %p232
      %p367 = pneg %p229
      %p368 = pneg %p253
      %p369 = pneg %p250
      %p370 = pneg %p279
      %p371 = pneg %p276
      %p372 = scmp.lt.s32.totalorder %s22, 9
      %s373 = scalar_select %p372, %s22, 9
      %s374 = smul.addr %s373, 4
      %s375 = scalar_lea.vmem %s11, %s374
      %p376 = scmp.lt.s32.totalorder %s22, 9
      %s377 = scalar_select %p376, %s22, 9
      %s378 = smul.addr %s377, 2
      %s379 = smul.addr %s378, 8
      %s380 = scalar_lea.vmem %s0, %s379
      %p381 = scmp.lt.s32.totalorder %s22, 9
      %s382 = scalar_select %p381, %s22, 9
      %s383 = smul.addr %s382, 4
      %s384 = scalar_lea.vmem %s11, %s383
      %v386 = vld [vmem:[%s380] sm:$0xff]
      %v387 = vld [vmem:[%s380 + $0x8] sm:$0xff]
      %v388 = vld [vmem:[%s2] sm:$0x1]
      %vm391 = vcmask 1040384
      %v392 = vrot.slane %v386, 7
      %v393 = vrot.slane %v387, 7
      %v394 = vsel %vm391, %v392, %v393
      %v398 = vsel %vm391, 0.0, %v392
      %v399 = vsel %vm391, %v393, 0.0
      %v401 = vlaneseq
      %v402 = vshrl.u32 %v401, 7
      %v403 = vsub.s32 0, %v402
      %v404 = vrot.slane %v388, %v403
      %v406 = vadd.f32 %v404, 0.0
      %v407 = vpack.c.bf16 %v394, %v398
      %v408 = vld [vmem:[%s1] sm:$0xf]
      %v409 = vld [vmem:[%s1 + $0x4] sm:$0xf]
      %v412 = vunpack.c.l.b16 %v408
      %v413 = vunpack.c.l.b16 %v409
      %v414 = vpack.c.b16 %v413, %v412
      %vm416 = vcmask 130048
      %v418 = vsel %vm416, %v407, 0
      %420 = vmatprep.subr.bf16.mxu0 0
      %421 = vmatpush1.bf16.msra.mxu0 %v414
      %422 = vmatprep.subr.bf16.mxu0 0
      %423 = vmatpush1.bf16.msra.mxu0 0
      %424 = vmatprep.subr.bf16.mxu0 0
      %425 = vmatpush1.bf16.msra.mxu0 0
      %426 = vmatprep.subr.bf16.mxu0 0
      %427 = vmatpush1.bf16.msra.mxu0 0
      %428 = vmatprep.subr.bf16.mxu0 0
      %429 = vmatpush1.bf16.msra.mxu0 0
      %430 = vmatprep.subr.bf16.mxu0 0
      %431 = vmatpush1.bf16.msra.mxu0 0
      %432 = vmatprep.subr.bf16.mxu0 0
      %433 = vmatpush1.bf16.msra.mxu0 0
      %434 = vmatprep.subr.bf16.mxu0 0
      %435 = vmatpush1.bf16.msra.mxu0 0
      %436 = vmatprep.subr.bf16.mxu0 0
      %437 = vmatpush1.bf16.msra.mxu0 0
      %438 = vmatprep.subr.bf16.mxu0 0
      %439 = vmatpush1.bf16.msra.mxu0 0
      %440 = vmatprep.subr.bf16.mxu0 0
      %441 = vmatpush1.bf16.msra.mxu0 0
      %442 = vmatprep.subr.bf16.mxu0 0
      %443 = vmatpush1.bf16.msra.mxu0 0
      %444 = vmatprep.subr.bf16.mxu0 0
      %445 = vmatpush1.bf16.msra.mxu0 0
      %446 = vmatprep.subr.bf16.mxu0 0
      %447 = vmatpush1.bf16.msra.mxu0 0
      %448 = vmatprep.subr.bf16.mxu0 0
      %449 = vmatpush1.bf16.msra.mxu0 0
      %450 = vmatprep.subr.bf16.mxu0 0
      %451 = vmatpush1.bf16.msra.mxu0 0
      %452 = vmatprep.mubr.bf16.mxu0 0
      %453 = vmatmul.mubr.bf16.gmra.mrb[0].mxu0 %v418
      %v454 = vpop.f32.mrb[0].mxu0
      %v455 = vadd.f32 0.0, %v454
      %v456 = vpop.f32.mrb[0].mxu0
      %v457 = vpop.f32.mrb[0].mxu0
      %v458 = vadd.f32 0.0, %v457
      %v459 = vpop.f32.mrb[0].mxu0
      %460 = vdwg.mxu0
      %v461 = vadd.f32 %v406, %v455
      %v462 = vadd.f32 %v406, %v458
      %v463 = vpack.c.bf16 %v399, %v399
      %s464 = scalar_lea.vmem %s1, 8
      %v465 = vld [vmem:[%s464] sm:$0xf]
      %v466 = vld [vmem:[%s464 + $0x4] sm:$0xf]
      %vm467 = vsmask.f32 7424
      %v468 = vshrl.u32 %v407, 16
      %v470 = vshll.u32 %v407, 16
      %v472 = vrot.slane %v470, 1
      %v473 = vor.u32 %v468, %v472
      %v475 = vshll.u32 %v463, 16
      %v477 = vrot.slane %v475, 1
      %v478 = vsel %vm467, %v473, %v477
      %v481 = vunpack.c.l.b16 %v465
      %v482 = vunpack.c.l.b16 %v466
      %v483 = vpack.c.b16 %v482, %v481
      %v486 = vsel %vm416, %v478, 0
      %488 = vmatprep.subr.bf16.mxu0 0
      %489 = vmatpush1.bf16.msra.mxu0 %v483
      %490 = vmatprep.subr.bf16.mxu0 0
      %491 = vmatpush1.bf16.msra.mxu0 0
      %492 = vmatprep.subr.bf16.mxu0 0
      %493 = vmatpush1.bf16.msra.mxu0 0
      %494 = vmatprep.subr.bf16.mxu0 0
      %495 = vmatpush1.bf16.msra.mxu0 0
      %496 = vmatprep.subr.bf16.mxu0 0
      %497 = vmatpush1.bf16.msra.mxu0 0
      %498 = vmatprep.subr.bf16.mxu0 0
      %499 = vmatpush1.bf16.msra.mxu0 0
      %500 = vmatprep.subr.bf16.mxu0 0
      %501 = vmatpush1.bf16.msra.mxu0 0
      %502 = vmatprep.subr.bf16.mxu0 0
      %503 = vmatpush1.bf16.msra.mxu0 0
      %504 = vmatprep.subr.bf16.mxu0 0
      %505 = vmatpush1.bf16.msra.mxu0 0
      %506 = vmatprep.subr.bf16.mxu0 0
      %507 = vmatpush1.bf16.msra.mxu0 0
      %508 = vmatprep.subr.bf16.mxu0 0
      %509 = vmatpush1.bf16.msra.mxu0 0
      %510 = vmatprep.subr.bf16.mxu0 0
      %511 = vmatpush1.bf16.msra.mxu0 0
      %512 = vmatprep.subr.bf16.mxu0 0
      %513 = vmatpush1.bf16.msra.mxu0 0
      %514 = vmatprep.subr.bf16.mxu0 0
      %515 = vmatpush1.bf16.msra.mxu0 0
      %516 = vmatprep.subr.bf16.mxu0 0
      %517 = vmatpush1.bf16.msra.mxu0 0
      %518 = vmatprep.subr.bf16.mxu0 0
      %519 = vmatpush1.bf16.msra.mxu0 0
      %520 = vmatprep.mubr.bf16.mxu0 0
      %521 = vmatmul.mubr.bf16.gmra.mrb[0].mxu0 %v486
      %v522 = vpop.f32.mrb[0].mxu0
      %v523 = vadd.f32 0.0, %v522
      %v524 = vpop.f32.mrb[0].mxu0
      %v525 = vpop.f32.mrb[0].mxu0
      %v526 = vadd.f32 0.0, %v525
      %v527 = vpop.f32.mrb[0].mxu0
      %528 = vdwg.mxu0
      %v529 = vadd.f32 %v461, %v523
      %v530 = vadd.f32 %v462, %v526
      %s531 = scalar_lea.vmem %s1, 16
      %v532 = vld [vmem:[%s531] sm:$0xf]
      %v533 = vld [vmem:[%s531 + $0x4] sm:$0xf]
      %vm536 = vcmask 1046528
      %v537 = vrot.slane %v407, 1
      %v538 = vrot.slane %v463, 1
      %v539 = vsel %vm536, %v537, %v538
      %v542 = vunpack.c.l.b16 %v532
      %v543 = vunpack.c.l.b16 %v533
      %v544 = vpack.c.b16 %v543, %v542
      %v547 = vsel %vm416, %v539, 0
      %549 = vmatprep.subr.bf16.mxu0 0
      %550 = vmatpush1.bf16.msra.mxu0 %v544
      %551 = vmatprep.subr.bf16.mxu0 0
      %552 = vmatpush1.bf16.msra.mxu0 0
      %553 = vmatprep.subr.bf16.mxu0 0
      %554 = vmatpush1.bf16.msra.mxu0 0
      %555 = vmatprep.subr.bf16.mxu0 0
      %556 = vmatpush1.bf16.msra.mxu0 0
      %557 = vmatprep.subr.bf16.mxu0 0
      %558 = vmatpush1.bf16.msra.mxu0 0
      %559 = vmatprep.subr.bf16.mxu0 0
      %560 = vmatpush1.bf16.msra.mxu0 0
      %561 = vmatprep.subr.bf16.mxu0 0
      %562 = vmatpush1.bf16.msra.mxu0 0
      %563 = vmatprep.subr.bf16.mxu0 0
      %564 = vmatpush1.bf16.msra.mxu0 0
      %565 = vmatprep.subr.bf16.mxu0 0
      %566 = vmatpush1.bf16.msra.mxu0 0
      %567 = vmatprep.subr.bf16.mxu0 0
      %568 = vmatpush1.bf16.msra.mxu0 0
      %569 = vmatprep.subr.bf16.mxu0 0
      %570 = vmatpush1.bf16.msra.mxu0 0
      %571 = vmatprep.subr.bf16.mxu0 0
      %572 = vmatpush1.bf16.msra.mxu0 0
      %573 = vmatprep.subr.bf16.mxu0 0
      %574 = vmatpush1.bf16.msra.mxu0 0
      %575 = vmatprep.subr.bf16.mxu0 0
      %576 = vmatpush1.bf16.msra.mxu0 0
      %577 = vmatprep.subr.bf16.mxu0 0
      %578 = vmatpush1.bf16.msra.mxu0 0
      %579 = vmatprep.subr.bf16.mxu0 0
      %580 = vmatpush1.bf16.msra.mxu0 0
      %581 = vmatprep.mubr.bf16.mxu0 0
      %582 = vmatmul.mubr.bf16.gmra.mrb[0].mxu0 %v547
      %v583 = vpop.f32.mrb[0].mxu0
      %v584 = vadd.f32 0.0, %v583
      %v585 = vpop.f32.mrb[0].mxu0
      %v586 = vpop.f32.mrb[0].mxu0
      %v587 = vadd.f32 0.0, %v586
      %v588 = vpop.f32.mrb[0].mxu0
      %589 = vdwg.mxu0
      %v590 = vadd.f32 %v529, %v584
      %v591 = vadd.f32 %v530, %v587
      %v592 = vmax.f32 %v590, 0.0
      %v593 = vmax.f32 %v591, 0.0
      %v594 = vlaneseq
      %v595 = vshrl.u32 %v594, 7
      %v596 = vlaneseq
      %v597 = vand.u32 %v596, 127
      %v598 = vmul.u32 %v595, 2
      %vm599 = vcmp.eq.s32.totalorder %v597, %v598
      %v600 = vsel %vm599, 1, 0
      %v601 = vcvt.s32.f32 %v600
      %v602 = vadd.s32 %v598, 1
      %vm603 = vcmp.eq.s32.totalorder %v597, %v602
      %v604 = vsel %vm603, 1, 0
      %v605 = vcvt.s32.f32 %v604
      %v607 = vsel %vm416, %v601, 0
      %609 = vmatprep.subr.mxu0 0.0
      %610 = vmatpush1.msra.mxu0 %v592
      %611 = vmatprep.subr.mxu0 0.0
      %612 = vmatpush1.msra.mxu0 %v593
      %613 = vmatprep.subr.mxu0 0.0
      %614 = vmatpush1.msra.mxu0 0.0
      %615 = vmatprep.subr.mxu0 0.0
      %616 = vmatpush1.msra.mxu0 0.0
      %617 = vmatprep.subr.mxu0 0.0
      %618 = vmatpush1.msra.mxu0 0.0
      %619 = vmatprep.subr.mxu0 0.0
      %620 = vmatpush1.msra.mxu0 0.0
      %621 = vmatprep.subr.mxu0 0.0
      %622 = vmatpush1.msra.mxu0 0.0
      %623 = vmatprep.subr.mxu0 0.0
      %624 = vmatpush1.msra.mxu0 0.0
      %625 = vmatprep.subr.mxu0 0.0
      %626 = vmatpush1.msra.mxu0 0.0
      %627 = vmatprep.subr.mxu0 0.0
      %628 = vmatpush1.msra.mxu0 0.0
      %629 = vmatprep.subr.mxu0 0.0
      %630 = vmatpush1.msra.mxu0 0.0
      %631 = vmatprep.subr.mxu0 0.0
      %632 = vmatpush1.msra.mxu0 0.0
      %633 = vmatprep.subr.mxu0 0.0
      %634 = vmatpush1.msra.mxu0 0.0
      %635 = vmatprep.subr.mxu0 0.0
      %636 = vmatpush1.msra.mxu0 0.0
      %637 = vmatprep.subr.mxu0 0.0
      %638 = vmatpush1.msra.mxu0 0.0
      %639 = vmatprep.subr.mxu0 0.0
      %640 = vmatpush1.msra.mxu0 0.0
      %641 = vmatprep.subr.mxu0 0.0
      %642 = vmatpush1.msra.mxu0 0.0
      %643 = vmatprep.subr.mxu0 0.0
      %644 = vmatpush1.msra.mxu0 0.0
      %645 = vmatprep.subr.mxu0 0.0
      %646 = vmatpush1.msra.mxu0 0.0
      %647 = vmatprep.subr.mxu0 0.0
      %648 = vmatpush1.msra.mxu0 0.0
      %649 = vmatprep.subr.mxu0 0.0
      %650 = vmatpush1.msra.mxu0 0.0
      %651 = vmatprep.subr.mxu0 0.0
      %652 = vmatpush1.msra.mxu0 0.0
      %653 = vmatprep.subr.mxu0 0.0
      %654 = vmatpush1.msra.mxu0 0.0
      %655 = vmatprep.subr.mxu0 0.0
      %656 = vmatpush1.msra.mxu0 0.0
      %657 = vmatprep.subr.mxu0 0.0
      %658 = vmatpush1.msra.mxu0 0.0
      %659 = vmatprep.subr.mxu0 0.0
      %660 = vmatpush1.msra.mxu0 0.0
      %661 = vmatprep.subr.mxu0 0.0
      %662 = vmatpush1.msra.mxu0 0.0
      %663 = vmatprep.subr.mxu0 0.0
      %664 = vmatpush1.msra.mxu0 0.0
      %665 = vmatprep.subr.mxu0 0.0
      %666 = vmatpush1.msra.mxu0 0.0
      %667 = vmatprep.subr.mxu0 0.0
      %668 = vmatpush1.msra.mxu0 0.0
      %669 = vmatprep.subr.mxu0 0.0
      %670 = vmatpush1.msra.mxu0 0.0
      %671 = vmatprep.subr.mxu0 0.0
      %672 = vmatpush1.msra.mxu0 0.0
      %673 = vmatprep.mubr.f32.mxu0 0.0
      %674 = vmatmul.mubr.f32.gmra.mrb[0].mxu0 %v607
      %v675 = vpop.f32.mrb[0].mxu0
      %v676 = vadd.f32 0.0, %v675
      %v677 = vpop.f32.mrb[0].mxu0
      %678 = vdwg.mxu0
      %v680 = vsel %vm416, %v605, 0
      %682 = vmatprep.subr.mxu0 0.0
      %683 = vmatpush1.msra.mxu0 %v592
      %684 = vmatprep.subr.mxu0 0.0
      %685 = vmatpush1.msra.mxu0 %v593
      %686 = vmatprep.subr.mxu0 0.0
      %687 = vmatpush1.msra.mxu0 0.0
      %688 = vmatprep.subr.mxu0 0.0
      %689 = vmatpush1.msra.mxu0 0.0
      %690 = vmatprep.subr.mxu0 0.0
      %691 = vmatpush1.msra.mxu0 0.0
      %692 = vmatprep.subr.mxu0 0.0
      %693 = vmatpush1.msra.mxu0 0.0
      %694 = vmatprep.subr.mxu0 0.0
      %695 = vmatpush1.msra.mxu0 0.0
      %696 = vmatprep.subr.mxu0 0.0
      %697 = vmatpush1.msra.mxu0 0.0
      %698 = vmatprep.subr.mxu0 0.0
      %699 = vmatpush1.msra.mxu0 0.0
      %700 = vmatprep.subr.mxu0 0.0
      %701 = vmatpush1.msra.mxu0 0.0
      %702 = vmatprep.subr.mxu0 0.0
      %703 = vmatpush1.msra.mxu0 0.0
      %704 = vmatprep.subr.mxu0 0.0
      %705 = vmatpush1.msra.mxu0 0.0
      %706 = vmatprep.subr.mxu0 0.0
      %707 = vmatpush1.msra.mxu0 0.0
      %708 = vmatprep.subr.mxu0 0.0
      %709 = vmatpush1.msra.mxu0 0.0
      %710 = vmatprep.subr.mxu0 0.0
      %711 = vmatpush1.msra.mxu0 0.0
      %712 = vmatprep.subr.mxu0 0.0
      %713 = vmatpush1.msra.mxu0 0.0
      %714 = vmatprep.subr.mxu0 0.0
      %715 = vmatpush1.msra.mxu0 0.0
      %716 = vmatprep.subr.mxu0 0.0
      %717 = vmatpush1.msra.mxu0 0.0
      %718 = vmatprep.subr.mxu0 0.0
      %719 = vmatpush1.msra.mxu0 0.0
      %720 = vmatprep.subr.mxu0 0.0
      %721 = vmatpush1.msra.mxu0 0.0
      %722 = vmatprep.subr.mxu0 0.0
      %723 = vmatpush1.msra.mxu0 0.0
      %724 = vmatprep.subr.mxu0 0.0
      %725 = vmatpush1.msra.mxu0 0.0
      %726 = vmatprep.subr.mxu0 0.0
      %727 = vmatpush1.msra.mxu0 0.0
      %728 = vmatprep.subr.mxu0 0.0
      %729 = vmatpush1.msra.mxu0 0.0
      %730 = vmatprep.subr.mxu0 0.0
      %731 = vmatpush1.msra.mxu0 0.0
      %732 = vmatprep.subr.mxu0 0.0
      %733 = vmatpush1.msra.mxu0 0.0
      %734 = vmatprep.subr.mxu0 0.0
      %735 = vmatpush1.msra.mxu0 0.0
      %736 = vmatprep.subr.mxu0 0.0
      %737 = vmatpush1.msra.mxu0 0.0
      %738 = vmatprep.subr.mxu0 0.0
      %739 = vmatpush1.msra.mxu0 0.0
      %740 = vmatprep.subr.mxu0 0.0
      %741 = vmatpush1.msra.mxu0 0.0
      %742 = vmatprep.subr.mxu0 0.0
      %743 = vmatpush1.msra.mxu0 0.0
      %744 = vmatprep.subr.mxu0 0.0
      %745 = vmatpush1.msra.mxu0 0.0
      %746 = vmatprep.mubr.f32.mxu0 0.0
      %747 = vmatmul.mubr.f32.gmra.mrb[0].mxu0 %v680
      %v748 = vpop.f32.mrb[0].mxu0
      %v749 = vadd.f32 0.0, %v748
      %v750 = vpop.f32.mrb[0].mxu0
      %751 = vdwg.mxu0
      %v752 = vmax.f32 %v676, %v749
      %v753 = vld [vmem:[%s4] sm:$0x1]
      %v755 = vrot.slane %v752, 7
      %v757 = vsel %vm391, 0.0, %v755
      %v758 = vsel %vm391, %v755, 0.0
      %v760 = vlaneseq
      %v761 = vshrl.u32 %v760, 7
      %v762 = vsub.s32 0, %v761
      %v763 = vrot.slane %v753, %v762
      %v765 = vadd.f32 %v763, 0.0
      %v766 = vpack.c.bf16 %v757, %v757
      %v767 = vld [vmem:[%s3] sm:$0xf]
      %v768 = vld [vmem:[%s3 + $0x4] sm:$0xf]
      %v769 = vld [vmem:[%s3 + $0x8] sm:$0xf]
      %v770 = vld [vmem:[%s3 + $0xc] sm:$0xf]
      %v771 = vld [vmem:[%s3 + $0x10] sm:$0xf]
      %v772 = vld [vmem:[%s3 + $0x14] sm:$0xf]
      %v773 = vld [vmem:[%s3 + $0x18] sm:$0xf]
      %v774 = vld [vmem:[%s3 + $0x1c] sm:$0xf]
      %v775 = vld [vmem:[%s3 + $0x20] sm:$0xf]
      %v776 = vld [vmem:[%s3 + $0x24] sm:$0xf]
      %v777 = vld [vmem:[%s3 + $0x28] sm:$0xf]
      %v778 = vld [vmem:[%s3 + $0x2c] sm:$0xf]
      %v779 = vld [vmem:[%s3 + $0x30] sm:$0xf]
      %v780 = vld [vmem:[%s3 + $0x34] sm:$0xf]
      %v781 = vld [vmem:[%s3 + $0x38] sm:$0xf]
      %v782 = vld [vmem:[%s3 + $0x3c] sm:$0xf]
      %v799 = vunpack.c.l.b16 %v767
      %v800 = vunpack.c.l.b16 %v768
      %v801 = vunpack.c.l.b16 %v769
      %v802 = vunpack.c.l.b16 %v770
      %v803 = vunpack.c.l.b16 %v771
      %v804 = vunpack.c.l.b16 %v772
      %v805 = vunpack.c.l.b16 %v773
      %v806 = vunpack.c.l.b16 %v774
      %v807 = vunpack.c.l.b16 %v775
      %v808 = vunpack.c.l.b16 %v776
      %v809 = vunpack.c.l.b16 %v777
      %v810 = vunpack.c.l.b16 %v778
      %v811 = vunpack.c.l.b16 %v779
      %v812 = vunpack.c.l.b16 %v780
      %v813 = vunpack.c.l.b16 %v781
      %v814 = vunpack.c.l.b16 %v782
      %v815 = vpack.c.b16 %v800, %v799
      %v816 = vpack.c.b16 %v802, %v801
      %v817 = vpack.c.b16 %v804, %v803
      %v818 = vpack.c.b16 %v806, %v805
      %v819 = vpack.c.b16 %v808, %v807
      %v820 = vpack.c.b16 %v810, %v809
      %v821 = vpack.c.b16 %v812, %v811
      %v822 = vpack.c.b16 %v814, %v813
      %831 = vmatprep.subr.bf16.mxu0 0
      %832 = vmatpush1.bf16.msra.mxu0 %v815
      %833 = vmatprep.subr.bf16.mxu0 0
      %834 = vmatpush1.bf16.msra.mxu0 %v816
      %835 = vmatprep.subr.bf16.mxu0 0
      %836 = vmatpush1.bf16.msra.mxu0 %v817
      %837 = vmatprep.subr.bf16.mxu0 0
      %838 = vmatpush1.bf16.msra.mxu0 %v818
      %839 = vmatprep.subr.bf16.mxu0 0
      %840 = vmatpush1.bf16.msra.mxu0 %v819
      %841 = vmatprep.subr.bf16.mxu0 0
      %842 = vmatpush1.bf16.msra.mxu0 %v820
      %843 = vmatprep.subr.bf16.mxu0 0
      %844 = vmatpush1.bf16.msra.mxu0 %v821
      %845 = vmatprep.subr.bf16.mxu0 0
      %846 = vmatpush1.bf16.msra.mxu0 %v822
      %847 = vmatprep.subr.bf16.mxu0 0
      %848 = vmatpush1.bf16.msra.mxu0 0
      %849 = vmatprep.subr.bf16.mxu0 0
      %850 = vmatpush1.bf16.msra.mxu0 0
      %851 = vmatprep.subr.bf16.mxu0 0
      %852 = vmatpush1.bf16.msra.mxu0 0
      %853 = vmatprep.subr.bf16.mxu0 0
      %854 = vmatpush1.bf16.msra.mxu0 0
      %855 = vmatprep.subr.bf16.mxu0 0
      %856 = vmatpush1.bf16.msra.mxu0 0
      %857 = vmatprep.subr.bf16.mxu0 0
      %858 = vmatpush1.bf16.msra.mxu0 0
      %859 = vmatprep.subr.bf16.mxu0 0
      %860 = vmatpush1.bf16.msra.mxu0 0
      %861 = vmatprep.subr.bf16.mxu0 0
      %862 = vmatpush1.bf16.msra.mxu0 0
      %863 = vmatprep.mubr.bf16.mxu0 0
      %864 = vmatmul.mubr.bf16.gmra.mrb[0].mxu0 %v766
      %v865 = vpop.f32.mrb[0].mxu0
      %v866 = vadd.f32 0.0, %v865
      %v867 = vpop.f32.mrb[0].mxu0
      %v868 = vpop.f32.mrb[0].mxu0
      %v869 = vpop.f32.mrb[0].mxu0
      %870 = vdwg.mxu0
      %v871 = vadd.f32 %v765, %v866
      %v872 = vpack.c.bf16 %v758, %v757
      %s873 = scalar_lea.vmem %s3, 64
      %v874 = vld [vmem:[%s873] sm:$0xf]
      %v875 = vld [vmem:[%s873 + $0x4] sm:$0xf]
      %v876 = vld [vmem:[%s873 + $0x8] sm:$0xf]
      %v877 = vld [vmem:[%s873 + $0xc] sm:$0xf]
      %v878 = vld [vmem:[%s873 + $0x10] sm:$0xf]
      %v879 = vld [vmem:[%s873 + $0x14] sm:$0xf]
      %v880 = vld [vmem:[%s873 + $0x18] sm:$0xf]
      %v881 = vld [vmem:[%s873 + $0x1c] sm:$0xf]
      %v882 = vld [vmem:[%s873 + $0x20] sm:$0xf]
      %v883 = vld [vmem:[%s873 + $0x24] sm:$0xf]
      %v884 = vld [vmem:[%s873 + $0x28] sm:$0xf]
      %v885 = vld [vmem:[%s873 + $0x2c] sm:$0xf]
      %v886 = vld [vmem:[%s873 + $0x30] sm:$0xf]
      %v887 = vld [vmem:[%s873 + $0x34] sm:$0xf]
      %v888 = vld [vmem:[%s873 + $0x38] sm:$0xf]
      %v889 = vld [vmem:[%s873 + $0x3c] sm:$0xf]
      %v891 = vshrl.u32 %v872, 16
      %v893 = vshll.u32 %v872, 16
      %v895 = vrot.slane %v893, 1
      %v896 = vor.u32 %v891, %v895
      %v914 = vunpack.c.l.b16 %v874
      %v915 = vunpack.c.l.b16 %v875
      %v916 = vunpack.c.l.b16 %v876
      %v917 = vunpack.c.l.b16 %v877
      %v918 = vunpack.c.l.b16 %v878
      %v919 = vunpack.c.l.b16 %v879
      %v920 = vunpack.c.l.b16 %v880
      %v921 = vunpack.c.l.b16 %v881
      %v922 = vunpack.c.l.b16 %v882
      %v923 = vunpack.c.l.b16 %v883
      %v924 = vunpack.c.l.b16 %v884
      %v925 = vunpack.c.l.b16 %v885
      %v926 = vunpack.c.l.b16 %v886
      %v927 = vunpack.c.l.b16 %v887
      %v928 = vunpack.c.l.b16 %v888
      %v929 = vunpack.c.l.b16 %v889
      %v930 = vpack.c.b16 %v915, %v914
      %v931 = vpack.c.b16 %v917, %v916
      %v932 = vpack.c.b16 %v919, %v918
      %v933 = vpack.c.b16 %v921, %v920
      %v934 = vpack.c.b16 %v923, %v922
      %v935 = vpack.c.b16 %v925, %v924
      %v936 = vpack.c.b16 %v927, %v926
      %v937 = vpack.c.b16 %v929, %v928
      %946 = vmatprep.subr.bf16.mxu0 0
      %947 = vmatpush1.bf16.msra.mxu0 %v930
      %948 = vmatprep.subr.bf16.mxu0 0
      %949 = vmatpush1.bf16.msra.mxu0 %v931
      %950 = vmatprep.subr.bf16.mxu0 0
      %951 = vmatpush1.bf16.msra.mxu0 %v932
      %952 = vmatprep.subr.bf16.mxu0 0
      %953 = vmatpush1.bf16.msra.mxu0 %v933
      %954 = vmatprep.subr.bf16.mxu0 0
      %955 = vmatpush1.bf16.msra.mxu0 %v934
      %956 = vmatprep.subr.bf16.mxu0 0
      %957 = vmatpush1.bf16.msra.mxu0 %v935
      %958 = vmatprep.subr.bf16.mxu0 0
      %959 = vmatpush1.bf16.msra.mxu0 %v936
      %960 = vmatprep.subr.bf16.mxu0 0
      %961 = vmatpush1.bf16.msra.mxu0 %v937
      %962 = vmatprep.subr.bf16.mxu0 0
      %963 = vmatpush1.bf16.msra.mxu0 0
      %964 = vmatprep.subr.bf16.mxu0 0
      %965 = vmatpush1.bf16.msra.mxu0 0
      %966 = vmatprep.subr.bf16.mxu0 0
      %967 = vmatpush1.bf16.msra.mxu0 0
      %968 = vmatprep.subr.bf16.mxu0 0
      %969 = vmatpush1.bf16.msra.mxu0 0
      %970 = vmatprep.subr.bf16.mxu0 0
      %971 = vmatpush1.bf16.msra.mxu0 0
      %972 = vmatprep.subr.bf16.mxu0 0
      %973 = vmatpush1.bf16.msra.mxu0 0
      %974 = vmatprep.subr.bf16.mxu0 0
      %975 = vmatpush1.bf16.msra.mxu0 0
      %976 = vmatprep.subr.bf16.mxu0 0
      %977 = vmatpush1.bf16.msra.mxu0 0
      %978 = vmatprep.mubr.bf16.mxu0 0
      %979 = vmatmul.mubr.bf16.gmra.mrb[0].mxu0 %v896
      %v980 = vpop.f32.mrb[0].mxu0
      %v981 = vadd.f32 0.0, %v980
      %v982 = vpop.f32.mrb[0].mxu0
      %v983 = vpop.f32.mrb[0].mxu0
      %v984 = vpop.f32.mrb[0].mxu0
      %985 = vdwg.mxu0
      %v986 = vadd.f32 %v871, %v981
      %s987 = scalar_lea.vmem %s3, 128
      %v988 = vld [vmem:[%s987] sm:$0xf]
      %v989 = vld [vmem:[%s987 + $0x4] sm:$0xf]
      %v990 = vld [vmem:[%s987 + $0x8] sm:$0xf]
      %v991 = vld [vmem:[%s987 + $0xc] sm:$0xf]
      %v992 = vld [vmem:[%s987 + $0x10] sm:$0xf]
      %v993 = vld [vmem:[%s987 + $0x14] sm:$0xf]
      %v994 = vld [vmem:[%s987 + $0x18] sm:$0xf]
      %v995 = vld [vmem:[%s987 + $0x1c] sm:$0xf]
      %v996 = vld [vmem:[%s987 + $0x20] sm:$0xf]
      %v997 = vld [vmem:[%s987 + $0x24] sm:$0xf]
      %v998 = vld [vmem:[%s987 + $0x28] sm:$0xf]
      %v999 = vld [vmem:[%s987 + $0x2c] sm:$0xf]
      %v1000 = vld [vmem:[%s987 + $0x30] sm:$0xf]
      %v1001 = vld [vmem:[%s987 + $0x34] sm:$0xf]
      %v1002 = vld [vmem:[%s987 + $0x38] sm:$0xf]
      %v1003 = vld [vmem:[%s987 + $0x3c] sm:$0xf]
      %v1005 = vrot.slane %v872, 1
      %v1023 = vunpack.c.l.b16 %v988
      %v1024 = vunpack.c.l.b16 %v989
      %v1025 = vunpack.c.l.b16 %v990
      %v1026 = vunpack.c.l.b16 %v991
      %v1027 = vunpack.c.l.b16 %v992
      %v1028 = vunpack.c.l.b16 %v993
      %v1029 = vunpack.c.l.b16 %v994
      %v1030 = vunpack.c.l.b16 %v995
      %v1031 = vunpack.c.l.b16 %v996
      %v1032 = vunpack.c.l.b16 %v997
      %v1033 = vunpack.c.l.b16 %v998
      %v1034 = vunpack.c.l.b16 %v999
      %v1035 = vunpack.c.l.b16 %v1000
      %v1036 = vunpack.c.l.b16 %v1001
      %v1037 = vunpack.c.l.b16 %v1002
      %v1038 = vunpack.c.l.b16 %v1003
      %v1039 = vpack.c.b16 %v1024, %v1023
      %v1040 = vpack.c.b16 %v1026, %v1025
      %v1041 = vpack.c.b16 %v1028, %v1027
      %v1042 = vpack.c.b16 %v1030, %v1029
      %v1043 = vpack.c.b16 %v1032, %v1031
      %v1044 = vpack.c.b16 %v1034, %v1033
      %v1045 = vpack.c.b16 %v1036, %v1035
      %v1046 = vpack.c.b16 %v1038, %v1037
      %1055 = vmatprep.subr.bf16.mxu0 0
      %1056 = vmatpush1.bf16.msra.mxu0 %v1039
      %1057 = vmatprep.subr.bf16.mxu0 0
      %1058 = vmatpush1.bf16.msra.mxu0 %v1040
      %1059 = vmatprep.subr.bf16.mxu0 0
      %1060 = vmatpush1.bf16.msra.mxu0 %v1041
      %1061 = vmatprep.subr.bf16.mxu0 0
      %1062 = vmatpush1.bf16.msra.mxu0 %v1042
      %1063 = vmatprep.subr.bf16.mxu0 0
      %1064 = vmatpush1.bf16.msra.mxu0 %v1043
      %1065 = vmatprep.subr.bf16.mxu0 0
      %1066 = vmatpush1.bf16.msra.mxu0 %v1044
      %1067 = vmatprep.subr.bf16.mxu0 0
      %1068 = vmatpush1.bf16.msra.mxu0 %v1045
      %1069 = vmatprep.subr.bf16.mxu0 0
      %1070 = vmatpush1.bf16.msra.mxu0 %v1046
      %1071 = vmatprep.subr.bf16.mxu0 0
      %1072 = vmatpush1.bf16.msra.mxu0 0
      %1073 = vmatprep.subr.bf16.mxu0 0
      %1074 = vmatpush1.bf16.msra.mxu0 0
      %1075 = vmatprep.subr.bf16.mxu0 0
      %1076 = vmatpush1.bf16.msra.mxu0 0
      %1077 = vmatprep.subr.bf16.mxu0 0
      %1078 = vmatpush1.bf16.msra.mxu0 0
      %1079 = vmatprep.subr.bf16.mxu0 0
      %1080 = vmatpush1.bf16.msra.mxu0 0
      %1081 = vmatprep.subr.bf16.mxu0 0
      %1082 = vmatpush1.bf16.msra.mxu0 0
      %1083 = vmatprep.subr.bf16.mxu0 0
      %1084 = vmatpush1.bf16.msra.mxu0 0
      %1085 = vmatprep.subr.bf16.mxu0 0
      %1086 = vmatpush1.bf16.msra.mxu0 0
      %1087 = vmatprep.mubr.bf16.mxu0 0
      %1088 = vmatmul.mubr.bf16.gmra.mrb[0].mxu0 %v1005
      %v1089 = vpop.f32.mrb[0].mxu0
      %v1090 = vadd.f32 0.0, %v1089
      %v1091 = vpop.f32.mrb[0].mxu0
      %v1092 = vpop.f32.mrb[0].mxu0
      %v1093 = vpop.f32.mrb[0].mxu0
      %1094 = vdwg.mxu0
      %v1095 = vadd.f32 %v986, %v1090
      %v1096 = vmax.f32 %v1095, 0.0
      %v1097 = vld [vmem:[%s6] sm:$0x1]
      %v1099 = vrot.slane %v1096, 7
      %v1101 = vsel %vm391, 0.0, %v1099
      %v1102 = vsel %vm391, %v1099, 0.0
      %v1104 = vlaneseq
      %v1105 = vshrl.u32 %v1104, 7
      %v1106 = vsub.s32 0, %v1105
      %v1107 = vrot.slane %v1097, %v1106
      %v1109 = vadd.f32 %v1107, 0.0
      %v1110 = vpack.c.bf16 %v1101, %v1101
      %v1111 = vld [vmem:[%s5] sm:$0xf]
      %v1112 = vld [vmem:[%s5 + $0x4] sm:$0xf]
      %v1113 = vld [vmem:[%s5 + $0x8] sm:$0xf]
      %v1114 = vld [vmem:[%s5 + $0xc] sm:$0xf]
      %v1115 = vld [vmem:[%s5 + $0x10] sm:$0xf]
      %v1116 = vld [vmem:[%s5 + $0x14] sm:$0xf]
      %v1117 = vld [vmem:[%s5 + $0x18] sm:$0xf]
      %v1118 = vld [vmem:[%s5 + $0x1c] sm:$0xf]
      %v1119 = vld [vmem:[%s5 + $0x20] sm:$0xf]
      %v1120 = vld [vmem:[%s5 + $0x24] sm:$0xf]
      %v1121 = vld [vmem:[%s5 + $0x28] sm:$0xf]
      %v1122 = vld [vmem:[%s5 + $0x2c] sm:$0xf]
      %v1123 = vld [vmem:[%s5 + $0x30] sm:$0xf]
      %v1124 = vld [vmem:[%s5 + $0x34] sm:$0xf]
      %v1125 = vld [vmem:[%s5 + $0x38] sm:$0xf]
      %v1126 = vld [vmem:[%s5 + $0x3c] sm:$0xf]
      %v1143 = vunpack.c.l.b16 %v1111
      %v1144 = vunpack.c.l.b16 %v1112
      %v1145 = vunpack.c.l.b16 %v1113
      %v1146 = vunpack.c.l.b16 %v1114
      %v1147 = vunpack.c.l.b16 %v1115
      %v1148 = vunpack.c.l.b16 %v1116
      %v1149 = vunpack.c.l.b16 %v1117
      %v1150 = vunpack.c.l.b16 %v1118
      %v1151 = vunpack.c.l.b16 %v1119
      %v1152 = vunpack.c.l.b16 %v1120
      %v1153 = vunpack.c.l.b16 %v1121
      %v1154 = vunpack.c.l.b16 %v1122
      %v1155 = vunpack.c.l.b16 %v1123
      %v1156 = vunpack.c.l.b16 %v1124
      %v1157 = vunpack.c.l.b16 %v1125
      %v1158 = vunpack.c.l.b16 %v1126
      %v1159 = vpack.c.b16 %v1144, %v1143
      %v1160 = vpack.c.b16 %v1146, %v1145
      %v1161 = vpack.c.b16 %v1148, %v1147
      %v1162 = vpack.c.b16 %v1150, %v1149
      %v1163 = vpack.c.b16 %v1152, %v1151
      %v1164 = vpack.c.b16 %v1154, %v1153
      %v1165 = vpack.c.b16 %v1156, %v1155
      %v1166 = vpack.c.b16 %v1158, %v1157
      %1175 = vmatprep.subr.bf16.mxu0 0
      %1176 = vmatpush1.bf16.msra.mxu0 %v1159
      %1177 = vmatprep.subr.bf16.mxu0 0
      %1178 = vmatpush1.bf16.msra.mxu0 %v1160
      %1179 = vmatprep.subr.bf16.mxu0 0
      %1180 = vmatpush1.bf16.msra.mxu0 %v1161
      %1181 = vmatprep.subr.bf16.mxu0 0
      %1182 = vmatpush1.bf16.msra.mxu0 %v1162
      %1183 = vmatprep.subr.bf16.mxu0 0
      %1184 = vmatpush1.bf16.msra.mxu0 %v1163
      %1185 = vmatprep.subr.bf16.mxu0 0
      %1186 = vmatpush1.bf16.msra.mxu0 %v1164
      %1187 = vmatprep.subr.bf16.mxu0 0
      %1188 = vmatpush1.bf16.msra.mxu0 %v1165
      %1189 = vmatprep.subr.bf16.mxu0 0
      %1190 = vmatpush1.bf16.msra.mxu0 %v1166
      %1191 = vmatprep.subr.bf16.mxu0 0
      %1192 = vmatpush1.bf16.msra.mxu0 0
      %1193 = vmatprep.subr.bf16.mxu0 0
      %1194 = vmatpush1.bf16.msra.mxu0 0
      %1195 = vmatprep.subr.bf16.mxu0 0
      %1196 = vmatpush1.bf16.msra.mxu0 0
      %1197 = vmatprep.subr.bf16.mxu0 0
      %1198 = vmatpush1.bf16.msra.mxu0 0
      %1199 = vmatprep.subr.bf16.mxu0 0
      %1200 = vmatpush1.bf16.msra.mxu0 0
      %1201 = vmatprep.subr.bf16.mxu0 0
      %1202 = vmatpush1.bf16.msra.mxu0 0
      %1203 = vmatprep.subr.bf16.mxu0 0
      %1204 = vmatpush1.bf16.msra.mxu0 0
      %1205 = vmatprep.subr.bf16.mxu0 0
      %1206 = vmatpush1.bf16.msra.mxu0 0
      %1207 = vmatprep.mubr.bf16.mxu0 0
      %1208 = vmatmul.mubr.bf16.gmra.mrb[0].mxu0 %v1110
      %v1209 = vpop.f32.mrb[0].mxu0
      %v1210 = vadd.f32 0.0, %v1209
      %v1211 = vpop.f32.mrb[0].mxu0
      %v1212 = vpop.f32.mrb[0].mxu0
      %v1213 = vpop.f32.mrb[0].mxu0
      %1214 = vdwg.mxu0
      %v1215 = vadd.f32 %v1109, %v1210
      %v1216 = vpack.c.bf16 %v1102, %v1101
      %s1217 = scalar_lea.vmem %s5, 64
      %v1218 = vld [vmem:[%s1217] sm:$0xf]
      %v1219 = vld [vmem:[%s1217 + $0x4] sm:$0xf]
      %v1220 = vld [vmem:[%s1217 + $0x8] sm:$0xf]
      %v1221 = vld [vmem:[%s1217 + $0xc] sm:$0xf]
      %v1222 = vld [vmem:[%s1217 + $0x10] sm:$0xf]
      %v1223 = vld [vmem:[%s1217 + $0x14] sm:$0xf]
      %v1224 = vld [vmem:[%s1217 + $0x18] sm:$0xf]
      %v1225 = vld [vmem:[%s1217 + $0x1c] sm:$0xf]
      %v1226 = vld [vmem:[%s1217 + $0x20] sm:$0xf]
      %v1227 = vld [vmem:[%s1217 + $0x24] sm:$0xf]
      %v1228 = vld [vmem:[%s1217 + $0x28] sm:$0xf]
      %v1229 = vld [vmem:[%s1217 + $0x2c] sm:$0xf]
      %v1230 = vld [vmem:[%s1217 + $0x30] sm:$0xf]
      %v1231 = vld [vmem:[%s1217 + $0x34] sm:$0xf]
      %v1232 = vld [vmem:[%s1217 + $0x38] sm:$0xf]
      %v1233 = vld [vmem:[%s1217 + $0x3c] sm:$0xf]
      %v1235 = vshrl.u32 %v1216, 16
      %v1237 = vshll.u32 %v1216, 16
      %v1239 = vrot.slane %v1237, 1
      %v1240 = vor.u32 %v1235, %v1239
      %v1258 = vunpack.c.l.b16 %v1218
      %v1259 = vunpack.c.l.b16 %v1219
      %v1260 = vunpack.c.l.b16 %v1220
      %v1261 = vunpack.c.l.b16 %v1221
      %v1262 = vunpack.c.l.b16 %v1222
      %v1263 = vunpack.c.l.b16 %v1223
      %v1264 = vunpack.c.l.b16 %v1224
      %v1265 = vunpack.c.l.b16 %v1225
      %v1266 = vunpack.c.l.b16 %v1226
      %v1267 = vunpack.c.l.b16 %v1227
      %v1268 = vunpack.c.l.b16 %v1228
      %v1269 = vunpack.c.l.b16 %v1229
      %v1270 = vunpack.c.l.b16 %v1230
      %v1271 = vunpack.c.l.b16 %v1231
      %v1272 = vunpack.c.l.b16 %v1232
      %v1273 = vunpack.c.l.b16 %v1233
      %v1274 = vpack.c.b16 %v1259, %v1258
      %v1275 = vpack.c.b16 %v1261, %v1260
      %v1276 = vpack.c.b16 %v1263, %v1262
      %v1277 = vpack.c.b16 %v1265, %v1264
      %v1278 = vpack.c.b16 %v1267, %v1266
      %v1279 = vpack.c.b16 %v1269, %v1268
      %v1280 = vpack.c.b16 %v1271, %v1270
      %v1281 = vpack.c.b16 %v1273, %v1272
      %1290 = vmatprep.subr.bf16.mxu0 0
      %1291 = vmatpush1.bf16.msra.mxu0 %v1274
      %1292 = vmatprep.subr.bf16.mxu0 0
      %1293 = vmatpush1.bf16.msra.mxu0 %v1275
      %1294 = vmatprep.subr.bf16.mxu0 0
      %1295 = vmatpush1.bf16.msra.mxu0 %v1276
      %1296 = vmatprep.subr.bf16.mxu0 0
      %1297 = vmatpush1.bf16.msra.mxu0 %v1277
      %1298 = vmatprep.subr.bf16.mxu0 0
      %1299 = vmatpush1.bf16.msra.mxu0 %v1278
      %1300 = vmatprep.subr.bf16.mxu0 0
      %1301 = vmatpush1.bf16.msra.mxu0 %v1279
      %1302 = vmatprep.subr.bf16.mxu0 0
      %1303 = vmatpush1.bf16.msra.mxu0 %v1280
      %1304 = vmatprep.subr.bf16.mxu0 0
      %1305 = vmatpush1.bf16.msra.mxu0 %v1281
      %1306 = vmatprep.subr.bf16.mxu0 0
      %1307 = vmatpush1.bf16.msra.mxu0 0
      %1308 = vmatprep.subr.bf16.mxu0 0
      %1309 = vmatpush1.bf16.msra.mxu0 0
      %1310 = vmatprep.subr.bf16.mxu0 0
      %1311 = vmatpush1.bf16.msra.mxu0 0
      %1312 = vmatprep.subr.bf16.mxu0 0
      %1313 = vmatpush1.bf16.msra.mxu0 0
      %1314 = vmatprep.subr.bf16.mxu0 0
      %1315 = vmatpush1.bf16.msra.mxu0 0
      %1316 = vmatprep.subr.bf16.mxu0 0
      %1317 = vmatpush1.bf16.msra.mxu0 0
      %1318 = vmatprep.subr.bf16.mxu0 0
      %1319 = vmatpush1.bf16.msra.mxu0 0
      %1320 = vmatprep.subr.bf16.mxu0 0
      %1321 = vmatpush1.bf16.msra.mxu0 0
      %1322 = vmatprep.mubr.bf16.mxu0 0
      %1323 = vmatmul.mubr.bf16.gmra.mrb[0].mxu0 %v1240
      %v1324 = vpop.f32.mrb[0].mxu0
      %v1325 = vadd.f32 0.0, %v1324
      %v1326 = vpop.f32.mrb[0].mxu0
      %v1327 = vpop.f32.mrb[0].mxu0
      %v1328 = vpop.f32.mrb[0].mxu0
      %1329 = vdwg.mxu0
      %v1330 = vadd.f32 %v1215, %v1325
      %s1331 = scalar_lea.vmem %s5, 128
      %v1332 = vld [vmem:[%s1331] sm:$0xf]
      %v1333 = vld [vmem:[%s1331 + $0x4] sm:$0xf]
      %v1334 = vld [vmem:[%s1331 + $0x8] sm:$0xf]
      %v1335 = vld [vmem:[%s1331 + $0xc] sm:$0xf]
      %v1336 = vld [vmem:[%s1331 + $0x10] sm:$0xf]
      %v1337 = vld [vmem:[%s1331 + $0x14] sm:$0xf]
      %v1338 = vld [vmem:[%s1331 + $0x18] sm:$0xf]
      %v1339 = vld [vmem:[%s1331 + $0x1c] sm:$0xf]
      %v1340 = vld [vmem:[%s1331 + $0x20] sm:$0xf]
      %v1341 = vld [vmem:[%s1331 + $0x24] sm:$0xf]
      %v1342 = vld [vmem:[%s1331 + $0x28] sm:$0xf]
      %v1343 = vld [vmem:[%s1331 + $0x2c] sm:$0xf]
      %v1344 = vld [vmem:[%s1331 + $0x30] sm:$0xf]
      %v1345 = vld [vmem:[%s1331 + $0x34] sm:$0xf]
      %v1346 = vld [vmem:[%s1331 + $0x38] sm:$0xf]
      %v1347 = vld [vmem:[%s1331 + $0x3c] sm:$0xf]
      %v1349 = vrot.slane %v1216, 1
      %v1367 = vunpack.c.l.b16 %v1332
      %v1368 = vunpack.c.l.b16 %v1333
      %v1369 = vunpack.c.l.b16 %v1334
      %v1370 = vunpack.c.l.b16 %v1335
      %v1371 = vunpack.c.l.b16 %v1336
      %v1372 = vunpack.c.l.b16 %v1337
      %v1373 = vunpack.c.l.b16 %v1338
      %v1374 = vunpack.c.l.b16 %v1339
      %v1375 = vunpack.c.l.b16 %v1340
      %v1376 = vunpack.c.l.b16 %v1341
      %v1377 = vunpack.c.l.b16 %v1342
      %v1378 = vunpack.c.l.b16 %v1343
      %v1379 = vunpack.c.l.b16 %v1344
      %v1380 = vunpack.c.l.b16 %v1345
      %v1381 = vunpack.c.l.b16 %v1346
      %v1382 = vunpack.c.l.b16 %v1347
      %v1383 = vpack.c.b16 %v1368, %v1367
      %v1384 = vpack.c.b16 %v1370, %v1369
      %v1385 = vpack.c.b16 %v1372, %v1371
      %v1386 = vpack.c.b16 %v1374, %v1373
      %v1387 = vpack.c.b16 %v1376, %v1375
      %v1388 = vpack.c.b16 %v1378, %v1377
      %v1389 = vpack.c.b16 %v1380, %v1379
      %v1390 = vpack.c.b16 %v1382, %v1381
      %1399 = vmatprep.subr.bf16.mxu0 0
      %1400 = vmatpush1.bf16.msra.mxu0 %v1383
      %1401 = vmatprep.subr.bf16.mxu0 0
      %1402 = vmatpush1.bf16.msra.mxu0 %v1384
      %1403 = vmatprep.subr.bf16.mxu0 0
      %1404 = vmatpush1.bf16.msra.mxu0 %v1385
      %1405 = vmatprep.subr.bf16.mxu0 0
      %1406 = vmatpush1.bf16.msra.mxu0 %v1386
      %1407 = vmatprep.subr.bf16.mxu0 0
      %1408 = vmatpush1.bf16.msra.mxu0 %v1387
      %1409 = vmatprep.subr.bf16.mxu0 0
      %1410 = vmatpush1.bf16.msra.mxu0 %v1388
      %1411 = vmatprep.subr.bf16.mxu0 0
      %1412 = vmatpush1.bf16.msra.mxu0 %v1389
      %1413 = vmatprep.subr.bf16.mxu0 0
      %1414 = vmatpush1.bf16.msra.mxu0 %v1390
      %1415 = vmatprep.subr.bf16.mxu0 0
      %1416 = vmatpush1.bf16.msra.mxu0 0
      %1417 = vmatprep.subr.bf16.mxu0 0
      %1418 = vmatpush1.bf16.msra.mxu0 0
      %1419 = vmatprep.subr.bf16.mxu0 0
      %1420 = vmatpush1.bf16.msra.mxu0 0
      %1421 = vmatprep.subr.bf16.mxu0 0
      %1422 = vmatpush1.bf16.msra.mxu0 0
      %1423 = vmatprep.subr.bf16.mxu0 0
      %1424 = vmatpush1.bf16.msra.mxu0 0
      %1425 = vmatprep.subr.bf16.mxu0 0
      %1426 = vmatpush1.bf16.msra.mxu0 0
      %1427 = vmatprep.subr.bf16.mxu0 0
      %1428 = vmatpush1.bf16.msra.mxu0 0
      %1429 = vmatprep.subr.bf16.mxu0 0
      %1430 = vmatpush1.bf16.msra.mxu0 0
      %1431 = vmatprep.mubr.bf16.mxu0 0
      %1432 = vmatmul.mubr.bf16.gmra.mrb[0].mxu0 %v1349
      %v1433 = vpop.f32.mrb[0].mxu0
      %v1434 = vadd.f32 0.0, %v1433
      %v1435 = vpop.f32.mrb[0].mxu0
      %v1436 = vpop.f32.mrb[0].mxu0
      %v1437 = vpop.f32.mrb[0].mxu0
      %1438 = vdwg.mxu0
      %v1439 = vadd.f32 %v1330, %v1434
      %v1440 = vmax.f32 %v1439, 0.0
      %vm1441 = vcmask 64512
      %v1442 = vsel %vm1441, %v601, 0
      %1444 = vmatprep.subr.mxu0 0.0
      %1445 = vmatpush1.msra.mxu0 %v1440
      %1446 = vmatprep.subr.mxu0 0.0
      %1447 = vmatpush1.msra.mxu0 0.0
      %1448 = vmatprep.subr.mxu0 0.0
      %1449 = vmatpush1.msra.mxu0 0.0
      %1450 = vmatprep.subr.mxu0 0.0
      %1451 = vmatpush1.msra.mxu0 0.0
      %1452 = vmatprep.subr.mxu0 0.0
      %1453 = vmatpush1.msra.mxu0 0.0
      %1454 = vmatprep.subr.mxu0 0.0
      %1455 = vmatpush1.msra.mxu0 0.0
      %1456 = vmatprep.subr.mxu0 0.0
      %1457 = vmatpush1.msra.mxu0 0.0
      %1458 = vmatprep.subr.mxu0 0.0
      %1459 = vmatpush1.msra.mxu0 0.0
      %1460 = vmatprep.subr.mxu0 0.0
      %1461 = vmatpush1.msra.mxu0 0.0
      %1462 = vmatprep.subr.mxu0 0.0
      %1463 = vmatpush1.msra.mxu0 0.0
      %1464 = vmatprep.subr.mxu0 0.0
      %1465 = vmatpush1.msra.mxu0 0.0
      %1466 = vmatprep.subr.mxu0 0.0
      %1467 = vmatpush1.msra.mxu0 0.0
      %1468 = vmatprep.subr.mxu0 0.0
      %1469 = vmatpush1.msra.mxu0 0.0
      %1470 = vmatprep.subr.mxu0 0.0
      %1471 = vmatpush1.msra.mxu0 0.0
      %1472 = vmatprep.subr.mxu0 0.0
      %1473 = vmatpush1.msra.mxu0 0.0
      %1474 = vmatprep.subr.mxu0 0.0
      %1475 = vmatpush1.msra.mxu0 0.0
      %1476 = vmatprep.subr.mxu0 0.0
      %1477 = vmatpush1.msra.mxu0 0.0
      %1478 = vmatprep.subr.mxu0 0.0
      %1479 = vmatpush1.msra.mxu0 0.0
      %1480 = vmatprep.subr.mxu0 0.0
      %1481 = vmatpush1.msra.mxu0 0.0
      %1482 = vmatprep.subr.mxu0 0.0
      %1483 = vmatpush1.msra.mxu0 0.0
      %1484 = vmatprep.subr.mxu0 0.0
      %1485 = vmatpush1.msra.mxu0 0.0
      %1486 = vmatprep.subr.mxu0 0.0
      %1487 = vmatpush1.msra.mxu0 0.0
      %1488 = vmatprep.subr.mxu0 0.0
      %1489 = vmatpush1.msra.mxu0 0.0
      %1490 = vmatprep.subr.mxu0 0.0
      %1491 = vmatpush1.msra.mxu0 0.0
      %1492 = vmatprep.subr.mxu0 0.0
      %1493 = vmatpush1.msra.mxu0 0.0
      %1494 = vmatprep.subr.mxu0 0.0
      %1495 = vmatpush1.msra.mxu0 0.0
      %1496 = vmatprep.subr.mxu0 0.0
      %1497 = vmatpush1.msra.mxu0 0.0
      %1498 = vmatprep.subr.mxu0 0.0
      %1499 = vmatpush1.msra.mxu0 0.0
      %1500 = vmatprep.subr.mxu0 0.0
      %1501 = vmatpush1.msra.mxu0 0.0
      %1502 = vmatprep.subr.mxu0 0.0
      %1503 = vmatpush1.msra.mxu0 0.0
      %1504 = vmatprep.subr.mxu0 0.0
      %1505 = vmatpush1.msra.mxu0 0.0
      %1506 = vmatprep.subr.mxu0 0.0
      %1507 = vmatpush1.msra.mxu0 0.0
      %1508 = vmatprep.mubr.f32.mxu0 0.0
      %1509 = vmatmul.mubr.f32.gmra.mrb[0].mxu0 %v1442
      %v1510 = vpop.f32.mrb[0].mxu0
      %v1511 = vadd.f32 0.0, %v1510
      %v1512 = vpop.f32.mrb[0].mxu0
      %1513 = vdwg.mxu0
      %v1514 = vsel %vm1441, %v605, 0
      %1516 = vmatprep.subr.mxu0 0.0
      %1517 = vmatpush1.msra.mxu0 %v1440
      %1518 = vmatprep.subr.mxu0 0.0
      %1519 = vmatpush1.msra.mxu0 0.0
      %1520 = vmatprep.subr.mxu0 0.0
      %1521 = vmatpush1.msra.mxu0 0.0
      %1522 = vmatprep.subr.mxu0 0.0
      %1523 = vmatpush1.msra.mxu0 0.0
      %1524 = vmatprep.subr.mxu0 0.0
      %1525 = vmatpush1.msra.mxu0 0.0
      %1526 = vmatprep.subr.mxu0 0.0
      %1527 = vmatpush1.msra.mxu0 0.0
      %1528 = vmatprep.subr.mxu0 0.0
      %1529 = vmatpush1.msra.mxu0 0.0
      %1530 = vmatprep.subr.mxu0 0.0
      %1531 = vmatpush1.msra.mxu0 0.0
      %1532 = vmatprep.subr.mxu0 0.0
      %1533 = vmatpush1.msra.mxu0 0.0
      %1534 = vmatprep.subr.mxu0 0.0
      %1535 = vmatpush1.msra.mxu0 0.0
      %1536 = vmatprep.subr.mxu0 0.0
      %1537 = vmatpush1.msra.mxu0 0.0
      %1538 = vmatprep.subr.mxu0 0.0
      %1539 = vmatpush1.msra.mxu0 0.0
      %1540 = vmatprep.subr.mxu0 0.0
      %1541 = vmatpush1.msra.mxu0 0.0
      %1542 = vmatprep.subr.mxu0 0.0
      %1543 = vmatpush1.msra.mxu0 0.0
      %1544 = vmatprep.subr.mxu0 0.0
      %1545 = vmatpush1.msra.mxu0 0.0
      %1546 = vmatprep.subr.mxu0 0.0
      %1547 = vmatpush1.msra.mxu0 0.0
      %1548 = vmatprep.subr.mxu0 0.0
      %1549 = vmatpush1.msra.mxu0 0.0
      %1550 = vmatprep.subr.mxu0 0.0
      %1551 = vmatpush1.msra.mxu0 0.0
      %1552 = vmatprep.subr.mxu0 0.0
      %1553 = vmatpush1.msra.mxu0 0.0
      %1554 = vmatprep.subr.mxu0 0.0
      %1555 = vmatpush1.msra.mxu0 0.0
      %1556 = vmatprep.subr.mxu0 0.0
      %1557 = vmatpush1.msra.mxu0 0.0
      %1558 = vmatprep.subr.mxu0 0.0
      %1559 = vmatpush1.msra.mxu0 0.0
      %1560 = vmatprep.subr.mxu0 0.0
      %1561 = vmatpush1.msra.mxu0 0.0
      %1562 = vmatprep.subr.mxu0 0.0
      %1563 = vmatpush1.msra.mxu0 0.0
      %1564 = vmatprep.subr.mxu0 0.0
      %1565 = vmatpush1.msra.mxu0 0.0
      %1566 = vmatprep.subr.mxu0 0.0
      %1567 = vmatpush1.msra.mxu0 0.0
      %1568 = vmatprep.subr.mxu0 0.0
      %1569 = vmatpush1.msra.mxu0 0.0
      %1570 = vmatprep.subr.mxu0 0.0
      %1571 = vmatpush1.msra.mxu0 0.0
      %1572 = vmatprep.subr.mxu0 0.0
      %1573 = vmatpush1.msra.mxu0 0.0
      %1574 = vmatprep.subr.mxu0 0.0
      %1575 = vmatpush1.msra.mxu0 0.0
      %1576 = vmatprep.subr.mxu0 0.0
      %1577 = vmatpush1.msra.mxu0 0.0
      %1578 = vmatprep.subr.mxu0 0.0
      %1579 = vmatpush1.msra.mxu0 0.0
      %1580 = vmatprep.mubr.f32.mxu0 0.0
      %1581 = vmatmul.mubr.f32.gmra.mrb[0].mxu0 %v1514
      %v1582 = vpop.f32.mrb[0].mxu0
      %v1583 = vadd.f32 0.0, %v1582
      %v1584 = vpop.f32.mrb[0].mxu0
      %1585 = vdwg.mxu0
      %v1586 = vmax.f32 %v1511, %v1583
      %v1587 = vld [vmem:[%s8] sm:$0x1]
      %v1589 = vrot.slane %v1586, 7
      %v1591 = vsel %vm391, 0.0, %v1589
      %vm1592 = vcmask 1044480
      %v1593 = vsel %vm1592, %v1591, 0.0
      %v1595 = vlaneseq
      %v1596 = vshrl.u32 %v1595, 7
      %v1597 = vsub.s32 0, %v1596
      %v1598 = vrot.slane %v1587, %v1597
      %v1600 = vadd.f32 %v1598, 0.0
      %v1601 = vpack.c.bf16 %v1593, %v1593
      %v1602 = vld [vmem:[%s7] sm:$0xf]
      %v1603 = vld [vmem:[%s7 + $0x4] sm:$0xf]
      %v1604 = vld [vmem:[%s7 + $0x8] sm:$0xf]
      %v1605 = vld [vmem:[%s7 + $0xc] sm:$0xf]
      %v1606 = vld [vmem:[%s7 + $0x10] sm:$0xf]
      %v1607 = vld [vmem:[%s7 + $0x14] sm:$0xf]
      %v1608 = vld [vmem:[%s7 + $0x18] sm:$0xf]
      %v1609 = vld [vmem:[%s7 + $0x1c] sm:$0xf]
      %v1610 = vld [vmem:[%s7 + $0x20] sm:$0xf]
      %v1611 = vld [vmem:[%s7 + $0x24] sm:$0xf]
      %v1612 = vld [vmem:[%s7 + $0x28] sm:$0xf]
      %v1613 = vld [vmem:[%s7 + $0x2c] sm:$0xf]
      %v1614 = vld [vmem:[%s7 + $0x30] sm:$0xf]
      %v1615 = vld [vmem:[%s7 + $0x34] sm:$0xf]
      %v1616 = vld [vmem:[%s7 + $0x38] sm:$0xf]
      %v1617 = vld [vmem:[%s7 + $0x3c] sm:$0xf]
      %v1634 = vunpack.c.l.b16 %v1602
      %v1635 = vunpack.c.l.b16 %v1603
      %v1636 = vunpack.c.l.b16 %v1604
      %v1637 = vunpack.c.l.b16 %v1605
      %v1638 = vunpack.c.l.b16 %v1606
      %v1639 = vunpack.c.l.b16 %v1607
      %v1640 = vunpack.c.l.b16 %v1608
      %v1641 = vunpack.c.l.b16 %v1609
      %v1642 = vunpack.c.l.b16 %v1610
      %v1643 = vunpack.c.l.b16 %v1611
      %v1644 = vunpack.c.l.b16 %v1612
      %v1645 = vunpack.c.l.b16 %v1613
      %v1646 = vunpack.c.l.b16 %v1614
      %v1647 = vunpack.c.l.b16 %v1615
      %v1648 = vunpack.c.l.b16 %v1616
      %v1649 = vunpack.c.l.b16 %v1617
      %v1650 = vpack.c.b16 %v1635, %v1634
      %v1651 = vpack.c.b16 %v1637, %v1636
      %v1652 = vpack.c.b16 %v1639, %v1638
      %v1653 = vpack.c.b16 %v1641, %v1640
      %v1654 = vpack.c.b16 %v1643, %v1642
      %v1655 = vpack.c.b16 %v1645, %v1644
      %v1656 = vpack.c.b16 %v1647, %v1646
      %v1657 = vpack.c.b16 %v1649, %v1648
      %1666 = vmatprep.subr.bf16.mxu0 0
      %1667 = vmatpush1.bf16.msra.mxu0 %v1650
      %1668 = vmatprep.subr.bf16.mxu0 0
      %1669 = vmatpush1.bf16.msra.mxu0 %v1651
      %1670 = vmatprep.subr.bf16.mxu0 0
      %1671 = vmatpush1.bf16.msra.mxu0 %v1652
      %1672 = vmatprep.subr.bf16.mxu0 0
      %1673 = vmatpush1.bf16.msra.mxu0 %v1653
      %1674 = vmatprep.subr.bf16.mxu0 0
      %1675 = vmatpush1.bf16.msra.mxu0 %v1654
      %1676 = vmatprep.subr.bf16.mxu0 0
      %1677 = vmatpush1.bf16.msra.mxu0 %v1655
      %1678 = vmatprep.subr.bf16.mxu0 0
      %1679 = vmatpush1.bf16.msra.mxu0 %v1656
      %1680 = vmatprep.subr.bf16.mxu0 0
      %1681 = vmatpush1.bf16.msra.mxu0 %v1657
      %1682 = vmatprep.subr.bf16.mxu0 0
      %1683 = vmatpush1.bf16.msra.mxu0 0
      %1684 = vmatprep.subr.bf16.mxu0 0
      %1685 = vmatpush1.bf16.msra.mxu0 0
      %1686 = vmatprep.subr.bf16.mxu0 0
      %1687 = vmatpush1.bf16.msra.mxu0 0
      %1688 = vmatprep.subr.bf16.mxu0 0
      %1689 = vmatpush1.bf16.msra.mxu0 0
      %1690 = vmatprep.subr.bf16.mxu0 0
      %1691 = vmatpush1.bf16.msra.mxu0 0
      %1692 = vmatprep.subr.bf16.mxu0 0
      %1693 = vmatpush1.bf16.msra.mxu0 0
      %1694 = vmatprep.subr.bf16.mxu0 0
      %1695 = vmatpush1.bf16.msra.mxu0 0
      %1696 = vmatprep.subr.bf16.mxu0 0
      %1697 = vmatpush1.bf16.msra.mxu0 0
      %1698 = vmatprep.mubr.bf16.mxu0 0
      %1699 = vmatmul.mubr.bf16.gmra.mrb[0].mxu0 %v1601
      %v1700 = vpop.f32.mrb[0].mxu0
      %v1701 = vadd.f32 0.0, %v1700
      %v1702 = vpop.f32.mrb[0].mxu0
      %v1703 = vpop.f32.mrb[0].mxu0
      %v1704 = vpop.f32.mrb[0].mxu0
      %1705 = vdwg.mxu0
      %v1706 = vadd.f32 %v1600, %v1701
      %s1707 = scalar_lea.vmem %s7, 64
      %v1708 = vld [vmem:[%s1707] sm:$0xf]
      %v1709 = vld [vmem:[%s1707 + $0x4] sm:$0xf]
      %v1710 = vld [vmem:[%s1707 + $0x8] sm:$0xf]
      %v1711 = vld [vmem:[%s1707 + $0xc] sm:$0xf]
      %v1712 = vld [vmem:[%s1707 + $0x10] sm:$0xf]
      %v1713 = vld [vmem:[%s1707 + $0x14] sm:$0xf]
      %v1714 = vld [vmem:[%s1707 + $0x18] sm:$0xf]
      %v1715 = vld [vmem:[%s1707 + $0x1c] sm:$0xf]
      %v1716 = vld [vmem:[%s1707 + $0x20] sm:$0xf]
      %v1717 = vld [vmem:[%s1707 + $0x24] sm:$0xf]
      %v1718 = vld [vmem:[%s1707 + $0x28] sm:$0xf]
      %v1719 = vld [vmem:[%s1707 + $0x2c] sm:$0xf]
      %v1720 = vld [vmem:[%s1707 + $0x30] sm:$0xf]
      %v1721 = vld [vmem:[%s1707 + $0x34] sm:$0xf]
      %v1722 = vld [vmem:[%s1707 + $0x38] sm:$0xf]
      %v1723 = vld [vmem:[%s1707 + $0x3c] sm:$0xf]
      %v1725 = vshrl.u32 %v1601, 16
      %v1727 = vshll.u32 %v1601, 16
      %v1729 = vrot.slane %v1727, 1
      %v1730 = vor.u32 %v1725, %v1729
      %v1748 = vunpack.c.l.b16 %v1708
      %v1749 = vunpack.c.l.b16 %v1709
      %v1750 = vunpack.c.l.b16 %v1710
      %v1751 = vunpack.c.l.b16 %v1711
      %v1752 = vunpack.c.l.b16 %v1712
      %v1753 = vunpack.c.l.b16 %v1713
      %v1754 = vunpack.c.l.b16 %v1714
      %v1755 = vunpack.c.l.b16 %v1715
      %v1756 = vunpack.c.l.b16 %v1716
      %v1757 = vunpack.c.l.b16 %v1717
      %v1758 = vunpack.c.l.b16 %v1718
      %v1759 = vunpack.c.l.b16 %v1719
      %v1760 = vunpack.c.l.b16 %v1720
      %v1761 = vunpack.c.l.b16 %v1721
      %v1762 = vunpack.c.l.b16 %v1722
      %v1763 = vunpack.c.l.b16 %v1723
      %v1764 = vpack.c.b16 %v1749, %v1748
      %v1765 = vpack.c.b16 %v1751, %v1750
      %v1766 = vpack.c.b16 %v1753, %v1752
      %v1767 = vpack.c.b16 %v1755, %v1754
      %v1768 = vpack.c.b16 %v1757, %v1756
      %v1769 = vpack.c.b16 %v1759, %v1758
      %v1770 = vpack.c.b16 %v1761, %v1760
      %v1771 = vpack.c.b16 %v1763, %v1762
      %1780 = vmatprep.subr.bf16.mxu0 0
      %1781 = vmatpush1.bf16.msra.mxu0 %v1764
      %1782 = vmatprep.subr.bf16.mxu0 0
      %1783 = vmatpush1.bf16.msra.mxu0 %v1765
      %1784 = vmatprep.subr.bf16.mxu0 0
      %1785 = vmatpush1.bf16.msra.mxu0 %v1766
      %1786 = vmatprep.subr.bf16.mxu0 0
      %1787 = vmatpush1.bf16.msra.mxu0 %v1767
      %1788 = vmatprep.subr.bf16.mxu0 0
      %1789 = vmatpush1.bf16.msra.mxu0 %v1768
      %1790 = vmatprep.subr.bf16.mxu0 0
      %1791 = vmatpush1.bf16.msra.mxu0 %v1769
      %1792 = vmatprep.subr.bf16.mxu0 0
      %1793 = vmatpush1.bf16.msra.mxu0 %v1770
      %1794 = vmatprep.subr.bf16.mxu0 0
      %1795 = vmatpush1.bf16.msra.mxu0 %v1771
      %1796 = vmatprep.subr.bf16.mxu0 0
      %1797 = vmatpush1.bf16.msra.mxu0 0
      %1798 = vmatprep.subr.bf16.mxu0 0
      %1799 = vmatpush1.bf16.msra.mxu0 0
      %1800 = vmatprep.subr.bf16.mxu0 0
      %1801 = vmatpush1.bf16.msra.mxu0 0
      %1802 = vmatprep.subr.bf16.mxu0 0
      %1803 = vmatpush1.bf16.msra.mxu0 0
      %1804 = vmatprep.subr.bf16.mxu0 0
      %1805 = vmatpush1.bf16.msra.mxu0 0
      %1806 = vmatprep.subr.bf16.mxu0 0
      %1807 = vmatpush1.bf16.msra.mxu0 0
      %1808 = vmatprep.subr.bf16.mxu0 0
      %1809 = vmatpush1.bf16.msra.mxu0 0
      %1810 = vmatprep.subr.bf16.mxu0 0
      %1811 = vmatpush1.bf16.msra.mxu0 0
      %1812 = vmatprep.mubr.bf16.mxu0 0
      %1813 = vmatmul.mubr.bf16.gmra.mrb[0].mxu0 %v1730
      %v1814 = vpop.f32.mrb[0].mxu0
      %v1815 = vadd.f32 0.0, %v1814
      %v1816 = vpop.f32.mrb[0].mxu0
      %v1817 = vpop.f32.mrb[0].mxu0
      %v1818 = vpop.f32.mrb[0].mxu0
      %1819 = vdwg.mxu0
      %v1820 = vadd.f32 %v1706, %v1815
      %s1821 = scalar_lea.vmem %s7, 128
      %v1822 = vld [vmem:[%s1821] sm:$0xf]
      %v1823 = vld [vmem:[%s1821 + $0x4] sm:$0xf]
      %v1824 = vld [vmem:[%s1821 + $0x8] sm:$0xf]
      %v1825 = vld [vmem:[%s1821 + $0xc] sm:$0xf]
      %v1826 = vld [vmem:[%s1821 + $0x10] sm:$0xf]
      %v1827 = vld [vmem:[%s1821 + $0x14] sm:$0xf]
      %v1828 = vld [vmem:[%s1821 + $0x18] sm:$0xf]
      %v1829 = vld [vmem:[%s1821 + $0x1c] sm:$0xf]
      %v1830 = vld [vmem:[%s1821 + $0x20] sm:$0xf]
      %v1831 = vld [vmem:[%s1821 + $0x24] sm:$0xf]
      %v1832 = vld [vmem:[%s1821 + $0x28] sm:$0xf]
      %v1833 = vld [vmem:[%s1821 + $0x2c] sm:$0xf]
      %v1834 = vld [vmem:[%s1821 + $0x30] sm:$0xf]
      %v1835 = vld [vmem:[%s1821 + $0x34] sm:$0xf]
      %v1836 = vld [vmem:[%s1821 + $0x38] sm:$0xf]
      %v1837 = vld [vmem:[%s1821 + $0x3c] sm:$0xf]
      %v1839 = vrot.slane %v1601, 1
      %v1857 = vunpack.c.l.b16 %v1822
      %v1858 = vunpack.c.l.b16 %v1823
      %v1859 = vunpack.c.l.b16 %v1824
      %v1860 = vunpack.c.l.b16 %v1825
      %v1861 = vunpack.c.l.b16 %v1826
      %v1862 = vunpack.c.l.b16 %v1827
      %v1863 = vunpack.c.l.b16 %v1828
      %v1864 = vunpack.c.l.b16 %v1829
      %v1865 = vunpack.c.l.b16 %v1830
      %v1866 = vunpack.c.l.b16 %v1831
      %v1867 = vunpack.c.l.b16 %v1832
      %v1868 = vunpack.c.l.b16 %v1833
      %v1869 = vunpack.c.l.b16 %v1834
      %v1870 = vunpack.c.l.b16 %v1835
      %v1871 = vunpack.c.l.b16 %v1836
      %v1872 = vunpack.c.l.b16 %v1837
      %v1873 = vpack.c.b16 %v1858, %v1857
      %v1874 = vpack.c.b16 %v1860, %v1859
      %v1875 = vpack.c.b16 %v1862, %v1861
      %v1876 = vpack.c.b16 %v1864, %v1863
      %v1877 = vpack.c.b16 %v1866, %v1865
      %v1878 = vpack.c.b16 %v1868, %v1867
      %v1879 = vpack.c.b16 %v1870, %v1869
      %v1880 = vpack.c.b16 %v1872, %v1871
      %1889 = vmatprep.subr.bf16.mxu0 0
      %1890 = vmatpush1.bf16.msra.mxu0 %v1873
      %1891 = vmatprep.subr.bf16.mxu0 0
      %1892 = vmatpush1.bf16.msra.mxu0 %v1874
      %1893 = vmatprep.subr.bf16.mxu0 0
      %1894 = vmatpush1.bf16.msra.mxu0 %v1875
      %1895 = vmatprep.subr.bf16.mxu0 0
      %1896 = vmatpush1.bf16.msra.mxu0 %v1876
      %1897 = vmatprep.subr.bf16.mxu0 0
      %1898 = vmatpush1.bf16.msra.mxu0 %v1877
      %1899 = vmatprep.subr.bf16.mxu0 0
      %1900 = vmatpush1.bf16.msra.mxu0 %v1878
      %1901 = vmatprep.subr.bf16.mxu0 0
      %1902 = vmatpush1.bf16.msra.mxu0 %v1879
      %1903 = vmatprep.subr.bf16.mxu0 0
      %1904 = vmatpush1.bf16.msra.mxu0 %v1880
      %1905 = vmatprep.subr.bf16.mxu0 0
      %1906 = vmatpush1.bf16.msra.mxu0 0
      %1907 = vmatprep.subr.bf16.mxu0 0
      %1908 = vmatpush1.bf16.msra.mxu0 0
      %1909 = vmatprep.subr.bf16.mxu0 0
      %1910 = vmatpush1.bf16.msra.mxu0 0
      %1911 = vmatprep.subr.bf16.mxu0 0
      %1912 = vmatpush1.bf16.msra.mxu0 0
      %1913 = vmatprep.subr.bf16.mxu0 0
      %1914 = vmatpush1.bf16.msra.mxu0 0
      %1915 = vmatprep.subr.bf16.mxu0 0
      %1916 = vmatpush1.bf16.msra.mxu0 0
      %1917 = vmatprep.subr.bf16.mxu0 0
      %1918 = vmatpush1.bf16.msra.mxu0 0
      %1919 = vmatprep.subr.bf16.mxu0 0
      %1920 = vmatpush1.bf16.msra.mxu0 0
      %1921 = vmatprep.mubr.bf16.mxu0 0
      %1922 = vmatmul.mubr.bf16.gmra.mrb[0].mxu0 %v1839
      %v1923 = vpop.f32.mrb[0].mxu0
      %v1924 = vadd.f32 0.0, %v1923
      %v1925 = vpop.f32.mrb[0].mxu0
      %v1926 = vpop.f32.mrb[0].mxu0
      %v1927 = vpop.f32.mrb[0].mxu0
      %1928 = vdwg.mxu0
      %v1929 = vadd.f32 %v1820, %v1924
      %v1930 = vmax.f32 %v1929, 0.0
      %v1931 = vpack.c.bf16 %v1930, %v1930
      %v1932 = vld [vmem:[%s9] sm:$0xf]
      %v1933 = vld [vmem:[%s9 + $0x4] sm:$0xf]
      %v1934 = vld [vmem:[%s9 + $0x8] sm:$0xf]
      %v1935 = vld [vmem:[%s9 + $0xc] sm:$0xf]
      %v1936 = vld [vmem:[%s9 + $0x10] sm:$0xf]
      %v1937 = vld [vmem:[%s9 + $0x14] sm:$0xf]
      %v1938 = vld [vmem:[%s9 + $0x18] sm:$0xf]
      %v1939 = vld [vmem:[%s9 + $0x1c] sm:$0xf]
      %v1940 = vld [vmem:[%s9 + $0x20] sm:$0xf]
      %v1941 = vld [vmem:[%s9 + $0x24] sm:$0xf]
      %v1942 = vld [vmem:[%s9 + $0x28] sm:$0xf]
      %v1943 = vld [vmem:[%s9 + $0x2c] sm:$0xf]
      %v1944 = vld [vmem:[%s9 + $0x30] sm:$0xf]
      %v1945 = vld [vmem:[%s9 + $0x34] sm:$0xf]
      %v1946 = vld [vmem:[%s9 + $0x38] sm:$0xf]
      %v1947 = vld [vmem:[%s9 + $0x3c] sm:$0xf]
      %v1948 = vld [vmem:[%s10] sm:$0x1]
      %v1950 = vlaneseq
      %v1951 = vshrl.u32 %v1950, 7
      %v1952 = vsub.s32 0, %v1951
      %v1953 = vrot.slane %v1948, %v1952
      %v1971 = vunpack.c.l.b16 %v1932
      %v1972 = vunpack.c.l.b16 %v1933
      %v1973 = vunpack.c.l.b16 %v1934
      %v1974 = vunpack.c.l.b16 %v1935
      %v1975 = vunpack.c.l.b16 %v1936
      %v1976 = vunpack.c.l.b16 %v1937
      %v1977 = vunpack.c.l.b16 %v1938
      %v1978 = vunpack.c.l.b16 %v1939
      %v1979 = vunpack.c.l.b16 %v1940
      %v1980 = vunpack.c.l.b16 %v1941
      %v1981 = vunpack.c.l.b16 %v1942
      %v1982 = vunpack.c.l.b16 %v1943
      %v1983 = vunpack.c.l.b16 %v1944
      %v1984 = vunpack.c.l.b16 %v1945
      %v1985 = vunpack.c.l.b16 %v1946
      %v1986 = vunpack.c.l.b16 %v1947
      %v1987 = vpack.c.b16 %v1972, %v1971
      %v1988 = vpack.c.b16 %v1974, %v1973
      %v1989 = vpack.c.b16 %v1976, %v1975
      %v1990 = vpack.c.b16 %v1978, %v1977
      %v1991 = vpack.c.b16 %v1980, %v1979
      %v1992 = vpack.c.b16 %v1982, %v1981
      %v1993 = vpack.c.b16 %v1984, %v1983
      %v1994 = vpack.c.b16 %v1986, %v1985
      %2003 = vmatprep.subr.bf16.mxu0 0
      %2004 = vmatpush1.bf16.msra.mxu0 %v1987
      %2005 = vmatprep.subr.bf16.mxu0 0
      %2006 = vmatpush1.bf16.msra.mxu0 %v1988
      %2007 = vmatprep.subr.bf16.mxu0 0
      %2008 = vmatpush1.bf16.msra.mxu0 %v1989
      %2009 = vmatprep.subr.bf16.mxu0 0
      %2010 = vmatpush1.bf16.msra.mxu0 %v1990
      %2011 = vmatprep.subr.bf16.mxu0 0
      %2012 = vmatpush1.bf16.msra.mxu0 %v1991
      %2013 = vmatprep.subr.bf16.mxu0 0
      %2014 = vmatpush1.bf16.msra.mxu0 %v1992
      %2015 = vmatprep.subr.bf16.mxu0 0
      %2016 = vmatpush1.bf16.msra.mxu0 %v1993
      %2017 = vmatprep.subr.bf16.mxu0 0
      %2018 = vmatpush1.bf16.msra.mxu0 %v1994
      %2019 = vmatprep.subr.bf16.mxu0 0
      %2020 = vmatpush1.bf16.msra.mxu0 0
      %2021 = vmatprep.subr.bf16.mxu0 0
      %2022 = vmatpush1.bf16.msra.mxu0 0
      %2023 = vmatprep.subr.bf16.mxu0 0
      %2024 = vmatpush1.bf16.msra.mxu0 0
      %2025 = vmatprep.subr.bf16.mxu0 0
      %2026 = vmatpush1.bf16.msra.mxu0 0
      %2027 = vmatprep.subr.bf16.mxu0 0
      %2028 = vmatpush1.bf16.msra.mxu0 0
      %2029 = vmatprep.subr.bf16.mxu0 0
      %2030 = vmatpush1.bf16.msra.mxu0 0
      %2031 = vmatprep.subr.bf16.mxu0 0
      %2032 = vmatpush1.bf16.msra.mxu0 0
      %2033 = vmatprep.subr.bf16.mxu0 0
      %2034 = vmatpush1.bf16.msra.mxu0 0
      %2035 = vmatprep.mubr.bf16.mxu0 0
      %2036 = vmatmul.mubr.bf16.gmra.mrb[0].mxu0 %v1931
      %v2037 = vpop.f32.mrb[0].mxu0
      %v2038 = vadd.f32 %v1953, %v2037
      %v2039 = vpop.f32.mrb[0].mxu0
      %v2040 = vpop.f32.mrb[0].mxu0
      %v2041 = vpop.f32.mrb[0].mxu0
      %2042 = vdwg.mxu0
      %vm2043 = vcmask 257024
      %2044 = vst.msk [vmem:[%s384] sm:$0xf] %vm2043, %v2038
      %p2045 = scmp.lt.s32.totalorder %s22, 9
      %s2046 = scalar_select %p2045, %s22, 9
      %s2047 = smul.addr %s2046, 4
      %s2048 = scalar_lea.vmem %s11, %s2047
      // Predicated region
      $region65: #{model_forward.14} parent=63 // pred_check
        %p2049 = pneg %p276
      $region66: #{model_forward.14} parent=63 // pred_check_branch
        %2051 = sbr.rel (%p2049) target = $region68
      $region67: #{model_forward.14} parent=63 // pred_region
        _
      $region68: #{model_forward.14} parent=63 // pred_fallthru
        _
    $region64: #{model_forward.14} parent=5 // pred_fallthru
      _
    %p2052 = scmp.le.s32.totalorder 2, %s17
    // Predicated region
    $region69: #{model_forward.14} parent=5 // pred_check
      %p2053 = pneg %p2052
    $region70: #{model_forward.14} parent=5 // pred_check_branch
      %2055 = sbr.rel (%p2053) target = $region72
    $region71: #{model_forward.14} parent=5 // pred_region
      %s2056 = ssub.s32 %s17, 2
      // Predicated region
      $region73: #{model_forward.14} parent=71 // pred_check
        %p2057 = pneg %p282
      $region74: #{model_forward.14} parent=71 // pred_check_branch
        %2059 = sbr.rel (%p2057) target = $region76
      $region75: #{model_forward.14} parent=71 // pred_region
        %p2060 = scmp.lt.s32.totalorder %s23, 9
        %s2061 = scalar_select %p2060, %s23, 9
        %s2062 = smul.addr %s2061, 4
        %s2063 = scalar_lea.vmem %s11, %s2062
      $region76: #{model_forward.14} parent=71 // pred_fallthru
        _
    $region72: #{model_forward.14} parent=5 // pred_fallthru
      _
  $region6: #{model_forward.14} parent=0 // loop_footer
    %s21 = sadd.s32 1, %s17
  $region7: #{model_forward.14} parent=0 // loop_footer_branch
    %16 = sbr.rel target = $region3
  $region8: #{model_forward.14} parent=0 // loop_exit
    _

// kernel: model_forward.16
$region0: #{model_forward.16}
  #allocation0 [shape = 'u32[]', space=smem, size = 0x4, offset = 0x4, fixed_abs, tag = 'smem constant byte address 0x4 - core index']
  #allocation1 [shape = 'u32[144,128]{1,0:T(1,128)}', space=vmem, size = 0x12000, scoped, tag = 'internal scratch']
  %s0 = inlined_call_operand.vmem [shape: f32[56,32], index: 0, kind: input, shape index: {}]
  %s1 = inlined_call_operand.vmem [shape: f32[1,32], index: 1, kind: input, shape index: {}]
  %s2 = inlined_call_operand.vmem [shape: f32[1,32], index: 2, kind: input, shape index: {}]
  %s3 = inlined_call_operand.vmem [shape: bf16[32,96], index: 3, kind: input, shape index: {}]
  %s4 = inlined_call_operand.vmem [shape: f32[1,96], index: 4, kind: input, shape index: {}]
  %s5 = inlined_call_operand.vmem [shape: f32[56,96], index: 5, kind: output, shape index: {}]
  %s6 = sld [smem:[#allocation0]]
  $region30: #{model_forward.16} parent=0
    _
  %s8 = ssub.s32 1, %s6
  %s9 = scalar_select 0, %s8, %s6
  // Predicated region
  $region2: #{model_forward.16} parent=0 // pred_check
    _
  $region3: #{model_forward.16} parent=0 // pred_check_branch
    %11 = sbr.rel (0) target = $region5
  $region4: #{model_forward.16} parent=0 // pred_region
    _
  $region5: #{model_forward.16} parent=0 // pred_fallthru
    _
  // Predicated region
  $region6: #{model_forward.16} parent=0 // pred_check
    _
  $region7: #{model_forward.16} parent=0 // pred_check_branch
    %13 = sbr.rel (0) target = $region9
  $region8: #{model_forward.16} parent=0 // pred_region
    _
  $region9: #{model_forward.16} parent=0 // pred_fallthru
    _
  // Predicated region
  $region10: #{model_forward.16} parent=0 // pred_check
    _
  $region11: #{model_forward.16} parent=0 // pred_check_branch
    %15 = sbr.rel (0) target = $region13
  $region12: #{model_forward.16} parent=0 // pred_region
    _
  $region13: #{model_forward.16} parent=0 // pred_fallthru
    _
  // Predicated region
  $region14: #{model_forward.16} parent=0 // pred_check
    _
  $region15: #{model_forward.16} parent=0 // pred_check_branch
    %17 = sbr.rel (0) target = $region17
  $region16: #{model_forward.16} parent=0 // pred_region
    _
  $region17: #{model_forward.16} parent=0 // pred_fallthru
    _
  // Predicated region
  $region18: #{model_forward.16} parent=0 // pred_check
    _
  $region19: #{model_forward.16} parent=0 // pred_check_branch
    %19 = sbr.rel (0) target = $region21
  $region20: #{model_forward.16} parent=0 // pred_region
    _
  $region21: #{model_forward.16} parent=0 // pred_fallthru
    _
  %v21 = vld [vmem:[%s0] sm:$0xff]
  %v22 = vld [vmem:[%s0 + $0x8] sm:$0xff]
  %v23 = vld [vmem:[%s0 + $0x10] sm:$0xff]
  %v24 = vld [vmem:[%s0 + $0x18] sm:$0xff]
  %v25 = vld [vmem:[%s0 + $0x20] sm:$0xff]
  %v26 = vld [vmem:[%s0 + $0x28] sm:$0xff]
  %v27 = vld [vmem:[%s0 + $0x30] sm:$0xff]
  %v28 = vld [vmem:[%s1] sm:$0x1]
  %v29 = vld [vmem:[%s2] sm:$0x1]
  %vm30 = vcmask 261120
  %v31 = vsel %vm30, %v21, 0.0
  %32 = vadd.xlane.f32.xlu0 %v31
  %v33 = vpop.xlane.xlu0 %32
  %v34 = vsel %vm30, %v22, 0.0
  %35 = vadd.xlane.f32.xlu0 %v34
  %v36 = vpop.xlane.xlu0 %35
  %v37 = vsel %vm30, %v23, 0.0
  %38 = vadd.xlane.f32.xlu0 %v37
  %v39 = vpop.xlane.xlu0 %38
  %v40 = vsel %vm30, %v24, 0.0
  %41 = vadd.xlane.f32.xlu0 %v40
  %v42 = vpop.xlane.xlu0 %41
  %v43 = vsel %vm30, %v25, 0.0
  %44 = vadd.xlane.f32.xlu0 %v43
  %v45 = vpop.xlane.xlu0 %44
  %v46 = vsel %vm30, %v26, 0.0
  %47 = vadd.xlane.f32.xlu0 %v46
  %v48 = vpop.xlane.xlu0 %47
  %v49 = vsel %vm30, %v27, 0.0
  %50 = vadd.xlane.f32.xlu0 %v49
  %v51 = vpop.xlane.xlu0 %50
  %v52 = vrcp.pop 32.0
  %v53 = vmul.f32 %v33, %v52
  %v54 = vmul.f32 %v36, %v52
  %v55 = vmul.f32 %v39, %v52
  %v56 = vmul.f32 %v42, %v52
  %v57 = vmul.f32 %v45, %v52
  %v58 = vmul.f32 %v48, %v52
  %v59 = vmul.f32 %v51, %v52
  %v60 = vsub.f32 %v21, %v53
  %v61 = vsub.f32 %v22, %v54
  %v62 = vsub.f32 %v23, %v55
  %v63 = vsub.f32 %v24, %v56
  %v64 = vsub.f32 %v25, %v57
  %v65 = vsub.f32 %v26, %v58
  %v66 = vsub.f32 %v27, %v59
  %v67 = vmul.f32 %v60, %v60
  %v68 = vmul.f32 %v61, %v61
  %v69 = vmul.f32 %v62, %v62
  %v70 = vmul.f32 %v63, %v63
  %v71 = vmul.f32 %v64, %v64
  %v72 = vmul.f32 %v65, %v65
  %v73 = vmul.f32 %v66, %v66
  %v74 = vsel %vm30, %v67, 0.0
  %75 = vadd.xlane.f32.xlu0 %v74
  %v76 = vpop.xlane.xlu0 %75
  %v77 = vsel %vm30, %v68, 0.0
  %78 = vadd.xlane.f32.xlu0 %v77
  %v79 = vpop.xlane.xlu0 %78
  %v80 = vsel %vm30, %v69, 0.0
  %81 = vadd.xlane.f32.xlu0 %v80
  %v82 = vpop.xlane.xlu0 %81
  %v83 = vsel %vm30, %v70, 0.0
  %84 = vadd.xlane.f32.xlu0 %v83
  %v85 = vpop.xlane.xlu0 %84
  %v86 = vsel %vm30, %v71, 0.0
  %87 = vadd.xlane.f32.xlu0 %v86
  %v88 = vpop.xlane.xlu0 %87
  %v89 = vsel %vm30, %v72, 0.0
  %90 = vadd.xlane.f32.xlu0 %v89
  %v91 = vpop.xlane.xlu0 %90
  %v92 = vsel %vm30, %v73, 0.0
  %93 = vadd.xlane.f32.xlu0 %v92
  %v94 = vpop.xlane.xlu0 %93
  %v95 = vmul.f32 %v76, %v52
  %v96 = vmul.f32 %v79, %v52
  %v97 = vmul.f32 %v82, %v52
  %v98 = vmul.f32 %v85, %v52
  %v99 = vmul.f32 %v88, %v52
  %v100 = vmul.f32 %v91, %v52
  %v101 = vmul.f32 %v94, %v52
  %v102 = vadd.f32 %v95, 1e-05
  %v103 = vadd.f32 %v96, 1e-05
  %v104 = vadd.f32 %v97, 1e-05
  %v105 = vadd.f32 %v98, 1e-05
  %v106 = vadd.f32 %v99, 1e-05
  %v107 = vadd.f32 %v100, 1e-05
  %v108 = vadd.f32 %v101, 1e-05
  %v109 = vrsqrt.pop %v102
  %v110 = vrsqrt.pop %v103
  %v111 = vrsqrt.pop %v104
  %v112 = vrsqrt.pop %v105
  %v113 = vrsqrt.pop %v106
  %v114 = vrsqrt.pop %v107
  %v115 = vrsqrt.pop %v108
  %v116 = vmul.f32 %v60, %v109
  %v117 = vmul.f32 %v61, %v110
  %v118 = vmul.f32 %v62, %v111
  %v119 = vmul.f32 %v63, %v112
  %v120 = vmul.f32 %v64, %v113
  %v121 = vmul.f32 %v65, %v114
  %v122 = vmul.f32 %v66, %v115
  %v124 = vlaneseq
  %v125 = vshrl.u32 %v124, 7
  %v126 = vsub.s32 0, %v125
  %v127 = vrot.slane %v28, %v126
  %v129 = vmul.f32 %v116, %v127
  %v130 = vmul.f32 %v117, %v127
  %v131 = vmul.f32 %v118, %v127
  %v132 = vmul.f32 %v119, %v127
  %v133 = vmul.f32 %v120, %v127
  %v134 = vmul.f32 %v121, %v127
  %v135 = vmul.f32 %v122, %v127
  %v137 = vlaneseq
  %v138 = vshrl.u32 %v137, 7
  %v139 = vsub.s32 0, %v138
  %v140 = vrot.slane %v29, %v139
  %v142 = vadd.f32 %v129, %v140
  %v143 = vadd.f32 %v130, %v140
  %v144 = vadd.f32 %v131, %v140
  %v145 = vadd.f32 %v132, %v140
  %v146 = vadd.f32 %v133, %v140
  %v147 = vadd.f32 %v134, %v140
  %v148 = vadd.f32 %v135, %v140
  %v149 = vpack.c.bf16 %v143, %v142
  %v150 = vpack.c.bf16 %v145, %v144
  %v151 = vpack.c.bf16 %v147, %v146
  %v152 = vpack.c.bf16 %v148, %v148
  %v153 = vld [vmem:[%s3] sm:$0xf]
  %v154 = vld [vmem:[%s3 + $0x4] sm:$0xf]
  %v155 = vld [vmem:[%s3 + $0x8] sm:$0xf]
  %v156 = vld [vmem:[%s3 + $0xc] sm:$0xf]
  %v157 = vld [vmem:[%s4] sm:$0x1]
  %v159 = vlaneseq
  %v160 = vshrl.u32 %v159, 7
  %v161 = vsub.s32 0, %v160
  %v162 = vrot.slane %v157, %v161
  %v168 = vunpack.c.l.b16 %v153
  %v169 = vunpack.c.l.b16 %v154
  %v170 = vunpack.c.l.b16 %v155
  %v171 = vunpack.c.l.b16 %v156
  %v172 = vpack.c.b16 %v169, %v168
  %v173 = vpack.c.b16 %v171, %v170
  %v177 = vsel %vm30, %v149, 0
  %v180 = vsel %vm30, %v150, 0
  %v183 = vsel %vm30, %v151, 0
  %v186 = vsel %vm30, %v152, 0
  %188 = vmatprep.subr.bf16.mxu0 0
  %189 = vmatpush1.bf16.msra.mxu0 %v172
  %190 = vmatprep.subr.bf16.mxu0 0
  %191 = vmatpush1.bf16.msra.mxu0 %v173
  %192 = vmatprep.subr.bf16.mxu0 0
  %193 = vmatpush1.bf16.msra.mxu0 0
  %194 = vmatprep.subr.bf16.mxu0 0
  %195 = vmatpush1.bf16.msra.mxu0 0
  %196 = vmatprep.subr.bf16.mxu0 0
  %197 = vmatpush1.bf16.msra.mxu0 0
  %198 = vmatprep.subr.bf16.mxu0 0
  %199 = vmatpush1.bf16.msra.mxu0 0
  %200 = vmatprep.subr.bf16.mxu0 0
  %201 = vmatpush1.bf16.msra.mxu0 0
  %202 = vmatprep.subr.bf16.mxu0 0
  %203 = vmatpush1.bf16.msra.mxu0 0
  %204 = vmatprep.subr.bf16.mxu0 0
  %205 = vmatpush1.bf16.msra.mxu0 0
  %206 = vmatprep.subr.bf16.mxu0 0
  %207 = vmatpush1.bf16.msra.mxu0 0
  %208 = vmatprep.subr.bf16.mxu0 0
  %209 = vmatpush1.bf16.msra.mxu0 0
  %210 = vmatprep.subr.bf16.mxu0 0
  %211 = vmatpush1.bf16.msra.mxu0 0
  %212 = vmatprep.subr.bf16.mxu0 0
  %213 = vmatpush1.bf16.msra.mxu0 0
  %214 = vmatprep.subr.bf16.mxu0 0
  %215 = vmatpush1.bf16.msra.mxu0 0
  %216 = vmatprep.subr.bf16.mxu0 0
  %217 = vmatpush1.bf16.msra.mxu0 0
  %218 = vmatprep.subr.bf16.mxu0 0
  %219 = vmatpush1.bf16.msra.mxu0 0
  %220 = vmatprep.mubr.bf16.mxu0 0
  %221 = vmatmul.mubr.bf16.gmra.mrb[0].mxu0 %v177
  %v222 = vpop.f32.mrb[0].mxu0
  %v223 = vadd.f32 %v162, %v222
  %v224 = vpop.f32.mrb[0].mxu0
  %v225 = vpop.f32.mrb[0].mxu0
  %v226 = vadd.f32 %v162, %v225
  %v227 = vpop.f32.mrb[0].mxu0
  %228 = vmatprep.mubr.bf16.mxu0 0
  %229 = vmatmul.mubr.bf16.gmra.mrb[0].mxu0 %v180
  %v230 = vpop.f32.mrb[0].mxu0
  %v231 = vadd.f32 %v162, %v230
  %v232 = vpop.f32.mrb[0].mxu0
  %v233 = vpop.f32.mrb[0].mxu0
  %v234 = vadd.f32 %v162, %v233
  %v235 = vpop.f32.mrb[0].mxu0
  %236 = vmatprep.mubr.bf16.mxu0 0
  %237 = vmatmul.mubr.bf16.gmra.mrb[0].mxu0 %v183
  %v238 = vpop.f32.mrb[0].mxu0
  %v239 = vadd.f32 %v162, %v238
  %v240 = vpop.f32.mrb[0].mxu0
  %v241 = vpop.f32.mrb[0].mxu0
  %v242 = vadd.f32 %v162, %v241
  %v243 = vpop.f32.mrb[0].mxu0
  %244 = vmatprep.mubr.bf16.mxu0 0
  %245 = vmatmul.mubr.bf16.gmra.mrb[0].mxu0 %v186
  %v246 = vpop.f32.mrb[0].mxu0
  %v247 = vadd.f32 %v162, %v246
  %v248 = vpop.f32.mrb[0].mxu0
  %v249 = vpop.f32.mrb[0].mxu0
  %v250 = vpop.f32.mrb[0].mxu0
  %251 = vdwg.mxu0
  %vm252 = vcmask 785408
  %253 = vst.msk [vmem:[%s5] sm:$0xff] %vm252, %v223
  %254 = vst.msk [vmem:[%s5 + $0x8] sm:$0xff] %vm252, %v226
  %255 = vst.msk [vmem:[%s5 + $0x10] sm:$0xff] %vm252, %v231
  %256 = vst.msk [vmem:[%s5 + $0x18] sm:$0xff] %vm252, %v234
  %257 = vst.msk [vmem:[%s5 + $0x20] sm:$0xff] %vm252, %v239
  %258 = vst.msk [vmem:[%s5 + $0x28] sm:$0xff] %vm252, %v242
  %259 = vst.msk [vmem:[%s5 + $0x30] sm:$0xff] %vm252, %v247
  // Predicated region
  $region22: #{model_forward.16} parent=0 // pred_check
    _
  $region23: #{model_forward.16} parent=0 // pred_check_branch
    %261 = sbr.rel (0) target = $region25
  $region24: #{model_forward.16} parent=0 // pred_region
    _
  $region25: #{model_forward.16} parent=0 // pred_fallthru
    _
  // Predicated region
  $region26: #{model_forward.16} parent=0 // pred_check
    _
  $region27: #{model_forward.16} parent=0 // pred_check_branch
    %263 = sbr.rel (0) target = $region29
  $region28: #{model_forward.16} parent=0 // pred_region
    _
  $region29: #{model_forward.16} parent=0 // pred_fallthru
    _

// kernel: model_forward.18
$region0: #{model_forward.18}
  #allocation0 [shape = 'u32[]', space=smem, size = 0x4, offset = 0x4, fixed_abs, tag = 'smem constant byte address 0x4 - core index']
  #allocation1 [shape = 'u32[144,128]{1,0:T(1,128)}', space=vmem, size = 0x12000, scoped, tag = 'internal scratch']
  %s0 = inlined_call_operand.vmem [shape: f32[10,5,32], index: 0, kind: input, shape index: {}]
  %s1 = inlined_call_operand.vmem [shape: f32[1,32], index: 1, kind: input, shape index: {}]
  %s2 = inlined_call_operand.vmem [shape: f32[1,32], index: 2, kind: input, shape index: {}]
  %s3 = inlined_call_operand.vmem [shape: bf16[32,64], index: 3, kind: input, shape index: {}]
  %s4 = inlined_call_operand.vmem [shape: f32[1,64], index: 4, kind: input, shape index: {}]
  %s5 = inlined_call_operand.vmem [shape: f32[7,32], index: 5, kind: input, shape index: {}]
  %s6 = inlined_call_operand.vmem [shape: f32[1,32], index: 6, kind: input, shape index: {}]
  %s7 = inlined_call_operand.vmem [shape: f32[1,32], index: 7, kind: input, shape index: {}]
  %s8 = inlined_call_operand.vmem [shape: f32[1,32], index: 8, kind: input, shape index: {}]
  %s9 = inlined_call_operand.vmem [shape: bf16[32,32], index: 9, kind: input, shape index: {}]
  %s10 = inlined_call_operand.vmem [shape: f32[1,32], index: 10, kind: input, shape index: {}]
  %s11 = inlined_call_operand.vmem [shape: f32[10,5,32], index: 11, kind: output, shape index: {}]
  %s12 = sld [smem:[#allocation0]]
  $region77: #{model_forward.18} parent=0
    _
  %s14 = ssub.s32 1, %s12
  %s15 = scalar_select 0, %s14, %s12
  loop: start=0, step=1, limit=12
  $region2: #{model_forward.18} parent=0 // loop_pre_header
    _
  $region3: #{model_forward.18} parent=0 // loop_header
    %s17 = sphi 0, %s21
    %p18 = scmp.ge.s32.totalorder %s17, 12
    %s27 = sphi 0, %s29
    %s30 = sphi 0, %s27
    %s31 = sphi 0, %s30
    %s47 = sphi 0, %s31
    %s51 = sphi 0, %s51
    %s53 = sphi 0, %s51
    %s54 = sphi 0, %s53
    %s68 = sphi 0, %s54
    %s72 = sphi 0, %s72
    %s74 = sphi 0, %s72
    %s75 = sphi 0, %s74
    %s89 = sphi 0, %s75
    %s93 = sphi 0, %s93
    %s95 = sphi 0, %s93
    %s96 = sphi 0, %s95
    %s110 = sphi 0, %s96
    %s114 = sphi 0, %s114
    %s116 = sphi 0, %s114
    %s117 = sphi 0, %s116
    %s131 = sphi 0, %s117
    %s135 = sphi 0, %s135
    %s137 = sphi 0, %s135
    %s138 = sphi 0, %s137
    %s152 = sphi 0, %s138
    %s156 = sphi 0, %s156
    %s158 = sphi 0, %s156
    %s159 = sphi 0, %s158
    %s173 = sphi 0, %s159
    %s177 = sphi 0, %s177
    %s179 = sphi 0, %s177
    %s180 = sphi 0, %s179
    %s194 = sphi 0, %s180
    %s198 = sphi 0, %s198
    %s200 = sphi 0, %s198
    %s201 = sphi 0, %s200
    %s215 = sphi 0, %s201
    %s219 = sphi 0, %s219
    %s221 = sphi 0, %s219
    %s222 = sphi 0, %s221
    %s236 = sphi 0, %s222
    %s240 = sphi 0, %s240
    %s242 = sphi 0, %s240
    %s243 = sphi 0, %s242
    %s257 = sphi 0, %s243
    %s263 = sphi 0, %s265
    %s266 = sphi 0, %s263
    %s267 = sphi 0, %s266
    %s283 = sphi 0, %s267
  $region4: #{model_forward.18} parent=0 // loop_header_branch
    %20 = sbr.rel (%p18) target = $region8
  $region5: #{model_forward.18} parent=0 // loop_body
    %s22 = ssub.s32 %s17, 1
    %s23 = ssub.s32 %s17, 2
    %s24 = sadd.s32 %s17, 1
    %s25 = ssub.s32 %s17, %s24
    %p26 = scmp.eq.s32.totalorder %s25, 0
    %s28 = sadd.s32 %s27, 1
    %s29 = scalar_select %p26, %s27, %s28
    %p32 = pneg %p26
    %p33 = scmp.eq.s32.totalorder %s17, 9
    %p34 = por %p32, %p33
    %p35 = scmp.ne.s32.totalorder %s27, %s30
    %p36 = scmp.eq.s32.totalorder %s17, 0
    %p37 = por %p35, %p36
    %p38 = scmp.ne.s32.totalorder %s27, %s30
    %p39 = scmp.eq.s32.totalorder %s22, 9
    %p40 = por %p38, %p39
    %p41 = scmp.ne.s32.totalorder %s30, %s31
    %p42 = scmp.eq.s32.totalorder %s22, 0
    %p43 = por %p41, %p42
    %p44 = scmp.ne.s32.totalorder %s30, %s31
    %p45 = scmp.eq.s32.totalorder %s23, 9
    %p46 = por %p44, %p45
    %p48 = scmp.ne.s32.totalorder %s31, %s47
    %p49 = scmp.eq.s32.totalorder %s23, 0
    %p50 = por %p48, %p49
    %s52 = sadd.s32 %s51, 1
    %p55 = scmp.eq.s32.totalorder %s17, 9
    %p56 = scmp.ne.s32.totalorder %s51, %s53
    %p57 = scmp.eq.s32.totalorder %s17, 0
    %p58 = por %p56, %p57
    %p59 = scmp.ne.s32.totalorder %s51, %s53
    %p60 = scmp.eq.s32.totalorder %s22, 9
    %p61 = por %p59, %p60
    %p62 = scmp.ne.s32.totalorder %s53, %s54
    %p63 = scmp.eq.s32.totalorder %s22, 0
    %p64 = por %p62, %p63
    %p65 = scmp.ne.s32.totalorder %s53, %s54
    %p66 = scmp.eq.s32.totalorder %s23, 9
    %p67 = por %p65, %p66
    %p69 = scmp.ne.s32.totalorder %s54, %s68
    %p70 = scmp.eq.s32.totalorder %s23, 0
    %p71 = por %p69, %p70
    %s73 = sadd.s32 %s72, 1
    %p76 = scmp.eq.s32.totalorder %s17, 9
    %p77 = scmp.ne.s32.totalorder %s72, %s74
    %p78 = scmp.eq.s32.totalorder %s17, 0
    %p79 = por %p77, %p78
    %p80 = scmp.ne.s32.totalorder %s72, %s74
    %p81 = scmp.eq.s32.totalorder %s22, 9
    %p82 = por %p80, %p81
    %p83 = scmp.ne.s32.totalorder %s74, %s75
    %p84 = scmp.eq.s32.totalorder %s22, 0
    %p85 = por %p83, %p84
    %p86 = scmp.ne.s32.totalorder %s74, %s75
    %p87 = scmp.eq.s32.totalorder %s23, 9
    %p88 = por %p86, %p87
    %p90 = scmp.ne.s32.totalorder %s75, %s89
    %p91 = scmp.eq.s32.totalorder %s23, 0
    %p92 = por %p90, %p91
    %s94 = sadd.s32 %s93, 1
    %p97 = scmp.eq.s32.totalorder %s17, 9
    %p98 = scmp.ne.s32.totalorder %s93, %s95
    %p99 = scmp.eq.s32.totalorder %s17, 0
    %p100 = por %p98, %p99
    %p101 = scmp.ne.s32.totalorder %s93, %s95
    %p102 = scmp.eq.s32.totalorder %s22, 9
    %p103 = por %p101, %p102
    %p104 = scmp.ne.s32.totalorder %s95, %s96
    %p105 = scmp.eq.s32.totalorder %s22, 0
    %p106 = por %p104, %p105
    %p107 = scmp.ne.s32.totalorder %s95, %s96
    %p108 = scmp.eq.s32.totalorder %s23, 9
    %p109 = por %p107, %p108
    %p111 = scmp.ne.s32.totalorder %s96, %s110
    %p112 = scmp.eq.s32.totalorder %s23, 0
    %p113 = por %p111, %p112
    %s115 = sadd.s32 %s114, 1
    %p118 = scmp.eq.s32.totalorder %s17, 9
    %p119 = scmp.ne.s32.totalorder %s114, %s116
    %p120 = scmp.eq.s32.totalorder %s17, 0
    %p121 = por %p119, %p120
    %p122 = scmp.ne.s32.totalorder %s114, %s116
    %p123 = scmp.eq.s32.totalorder %s22, 9
    %p124 = por %p122, %p123
    %p125 = scmp.ne.s32.totalorder %s116, %s117
    %p126 = scmp.eq.s32.totalorder %s22, 0
    %p127 = por %p125, %p126
    %p128 = scmp.ne.s32.totalorder %s116, %s117
    %p129 = scmp.eq.s32.totalorder %s23, 9
    %p130 = por %p128, %p129
    %p132 = scmp.ne.s32.totalorder %s117, %s131
    %p133 = scmp.eq.s32.totalorder %s23, 0
    %p134 = por %p132, %p133
    %s136 = sadd.s32 %s135, 1
    %p139 = scmp.eq.s32.totalorder %s17, 9
    %p140 = scmp.ne.s32.totalorder %s135, %s137
    %p141 = scmp.eq.s32.totalorder %s17, 0
    %p142 = por %p140, %p141
    %p143 = scmp.ne.s32.totalorder %s135, %s137
    %p144 = scmp.eq.s32.totalorder %s22, 9
    %p145 = por %p143, %p144
    %p146 = scmp.ne.s32.totalorder %s137, %s138
    %p147 = scmp.eq.s32.totalorder %s22, 0
    %p148 = por %p146, %p147
    %p149 = scmp.ne.s32.totalorder %s137, %s138
    %p150 = scmp.eq.s32.totalorder %s23, 9
    %p151 = por %p149, %p150
    %p153 = scmp.ne.s32.totalorder %s138, %s152
    %p154 = scmp.eq.s32.totalorder %s23, 0
    %p155 = por %p153, %p154
    %s157 = sadd.s32 %s156, 1
    %p160 = scmp.eq.s32.totalorder %s17, 9
    %p161 = scmp.ne.s32.totalorder %s156, %s158
    %p162 = scmp.eq.s32.totalorder %s17, 0
    %p163 = por %p161, %p162
    %p164 = scmp.ne.s32.totalorder %s156, %s158
    %p165 = scmp.eq.s32.totalorder %s22, 9
    %p166 = por %p164, %p165
    %p167 = scmp.ne.s32.totalorder %s158, %s159
    %p168 = scmp.eq.s32.totalorder %s22, 0
    %p169 = por %p167, %p168
    %p170 = scmp.ne.s32.totalorder %s158, %s159
    %p171 = scmp.eq.s32.totalorder %s23, 9
    %p172 = por %p170, %p171
    %p174 = scmp.ne.s32.totalorder %s159, %s173
    %p175 = scmp.eq.s32.totalorder %s23, 0
    %p176 = por %p174, %p175
    %s178 = sadd.s32 %s177, 1
    %p181 = scmp.eq.s32.totalorder %s17, 9
    %p182 = scmp.ne.s32.totalorder %s177, %s179
    %p183 = scmp.eq.s32.totalorder %s17, 0
    %p184 = por %p182, %p183
    %p185 = scmp.ne.s32.totalorder %s177, %s179
    %p186 = scmp.eq.s32.totalorder %s22, 9
    %p187 = por %p185, %p186
    %p188 = scmp.ne.s32.totalorder %s179, %s180
    %p189 = scmp.eq.s32.totalorder %s22, 0
    %p190 = por %p188, %p189
    %p191 = scmp.ne.s32.totalorder %s179, %s180
    %p192 = scmp.eq.s32.totalorder %s23, 9
    %p193 = por %p191, %p192
    %p195 = scmp.ne.s32.totalorder %s180, %s194
    %p196 = scmp.eq.s32.totalorder %s23, 0
    %p197 = por %p195, %p196
    %s199 = sadd.s32 %s198, 1
    %p202 = scmp.eq.s32.totalorder %s17, 9
    %p203 = scmp.ne.s32.totalorder %s198, %s200
    %p204 = scmp.eq.s32.totalorder %s17, 0
    %p205 = por %p203, %p204
    %p206 = scmp.ne.s32.totalorder %s198, %s200
    %p207 = scmp.eq.s32.totalorder %s22, 9
    %p208 = por %p206, %p207
    %p209 = scmp.ne.s32.totalorder %s200, %s201
    %p210 = scmp.eq.s32.totalorder %s22, 0
    %p211 = por %p209, %p210
    %p212 = scmp.ne.s32.totalorder %s200, %s201
    %p213 = scmp.eq.s32.totalorder %s23, 9
    %p214 = por %p212, %p213
    %p216 = scmp.ne.s32.totalorder %s201, %s215
    %p217 = scmp.eq.s32.totalorder %s23, 0
    %p218 = por %p216, %p217
    %s220 = sadd.s32 %s219, 1
    %p223 = scmp.eq.s32.totalorder %s17, 9
    %p224 = scmp.ne.s32.totalorder %s219, %s221
    %p225 = scmp.eq.s32.totalorder %s17, 0
    %p226 = por %p224, %p225
    %p227 = scmp.ne.s32.totalorder %s219, %s221
    %p228 = scmp.eq.s32.totalorder %s22, 9
    %p229 = por %p227, %p228
    %p230 = scmp.ne.s32.totalorder %s221, %s222
    %p231 = scmp.eq.s32.totalorder %s22, 0
    %p232 = por %p230, %p231
    %p233 = scmp.ne.s32.totalorder %s221, %s222
    %p234 = scmp.eq.s32.totalorder %s23, 9
    %p235 = por %p233, %p234
    %p237 = scmp.ne.s32.totalorder %s222, %s236
    %p238 = scmp.eq.s32.totalorder %s23, 0
    %p239 = por %p237, %p238
    %s241 = sadd.s32 %s240, 1
    %p244 = scmp.eq.s32.totalorder %s17, 9
    %p245 = scmp.ne.s32.totalorder %s240, %s242
    %p246 = scmp.eq.s32.totalorder %s17, 0
    %p247 = por %p245, %p246
    %p248 = scmp.ne.s32.totalorder %s240, %s242
    %p249 = scmp.eq.s32.totalorder %s22, 9
    %p250 = por %p248, %p249
    %p251 = scmp.ne.s32.totalorder %s242, %s243
    %p252 = scmp.eq.s32.totalorder %s22, 0
    %p253 = por %p251, %p252
    %p254 = scmp.ne.s32.totalorder %s242, %s243
    %p255 = scmp.eq.s32.totalorder %s23, 9
    %p256 = por %p254, %p255
    %p258 = scmp.ne.s32.totalorder %s243, %s257
    %p259 = scmp.eq.s32.totalorder %s23, 0
    %p260 = por %p258, %p259
    %s261 = ssub.s32 %s17, %s24
    %p262 = scmp.eq.s32.totalorder %s261, 0
    %s264 = sadd.s32 %s263, 1
    %s265 = scalar_select %p262, %s263, %s264
    %p268 = pneg %p262
    %p269 = scmp.eq.s32.totalorder %s17, 9
    %p270 = por %p268, %p269
    %p271 = scmp.ne.s32.totalorder %s263, %s266
    %p272 = scmp.eq.s32.totalorder %s17, 0
    %p273 = por %p271, %p272
    %p274 = scmp.ne.s32.totalorder %s263, %s266
    %p275 = scmp.eq.s32.totalorder %s22, 9
    %p276 = por %p274, %p275
    %p277 = scmp.ne.s32.totalorder %s266, %s267
    %p278 = scmp.eq.s32.totalorder %s22, 0
    %p279 = por %p277, %p278
    %p280 = scmp.ne.s32.totalorder %s266, %s267
    %p281 = scmp.eq.s32.totalorder %s23, 9
    %p282 = por %p280, %p281
    %p284 = scmp.ne.s32.totalorder %s267, %s283
    %p285 = scmp.eq.s32.totalorder %s23, 0
    %p286 = por %p284, %p285
    %p287 = scmp.le.s32.totalorder 1, %s17
    %p288 = scmp.lt.s32.totalorder %s17, 11
    %p289 = pnand %p287, %p288
    %p290 = pneg %p289
    // Predicated region
    $region9: #{model_forward.18} parent=5 // pred_check
      _
    $region10: #{model_forward.18} parent=5 // pred_check_branch
      %292 = sbr.rel (%p289) target = $region12
    $region11: #{model_forward.18} parent=5 // pred_region
      %s293 = ssub.s32 %s17, 1
      // Predicated region
      $region13: #{model_forward.18} parent=11 // pred_check
        %p294 = pneg %p64
      $region14: #{model_forward.18} parent=11 // pred_check_branch
        %296 = sbr.rel (%p294) target = $region16
      $region15: #{model_forward.18} parent=11 // pred_region
        _
      $region16: #{model_forward.18} parent=11 // pred_fallthru
        _
      // Predicated region
      $region17: #{model_forward.18} parent=11 // pred_check
        %p297 = pneg %p85
      $region18: #{model_forward.18} parent=11 // pred_check_branch
        %299 = sbr.rel (%p297) target = $region20
      $region19: #{model_forward.18} parent=11 // pred_region
        _
      $region20: #{model_forward.18} parent=11 // pred_fallthru
        _
      // Predicated region
      $region21: #{model_forward.18} parent=11 // pred_check
        %p300 = pneg %p106
      $region22: #{model_forward.18} parent=11 // pred_check_branch
        %302 = sbr.rel (%p300) target = $region24
      $region23: #{model_forward.18} parent=11 // pred_region
        _
      $region24: #{model_forward.18} parent=11 // pred_fallthru
        _
      // Predicated region
      $region25: #{model_forward.18} parent=11 // pred_check
        %p303 = pneg %p127
      $region26: #{model_forward.18} parent=11 // pred_check_branch
        %305 = sbr.rel (%p303) target = $region28
      $region27: #{model_forward.18} parent=11 // pred_region
        _
      $region28: #{model_forward.18} parent=11 // pred_fallthru
        _
      // Predicated region
      $region29: #{model_forward.18} parent=11 // pred_check
        %p306 = pneg %p148
      $region30: #{model_forward.18} parent=11 // pred_check_branch
        %308 = sbr.rel (%p306) target = $region32
      $region31: #{model_forward.18} parent=11 // pred_region
        _
      $region32: #{model_forward.18} parent=11 // pred_fallthru
        _
      // Predicated region
      $region33: #{model_forward.18} parent=11 // pred_check
        %p309 = pneg %p169
      $region34: #{model_forward.18} parent=11 // pred_check_branch
        %311 = sbr.rel (%p309) target = $region36
      $region35: #{model_forward.18} parent=11 // pred_region
        _
      $region36: #{model_forward.18} parent=11 // pred_fallthru
        _
      // Predicated region
      $region37: #{model_forward.18} parent=11 // pred_check
        %p312 = pneg %p190
      $region38: #{model_forward.18} parent=11 // pred_check_branch
        %314 = sbr.rel (%p312) target = $region40
      $region39: #{model_forward.18} parent=11 // pred_region
        _
      $region40: #{model_forward.18} parent=11 // pred_fallthru
        _
      // Predicated region
      $region41: #{model_forward.18} parent=11 // pred_check
        %p315 = pneg %p211
      $region42: #{model_forward.18} parent=11 // pred_check_branch
        %317 = sbr.rel (%p315) target = $region44
      $region43: #{model_forward.18} parent=11 // pred_region
        _
      $region44: #{model_forward.18} parent=11 // pred_fallthru
        _
      // Predicated region
      $region45: #{model_forward.18} parent=11 // pred_check
        %p318 = pneg %p232
      $region46: #{model_forward.18} parent=11 // pred_check_branch
        %320 = sbr.rel (%p318) target = $region48
      $region47: #{model_forward.18} parent=11 // pred_region
        _
      $region48: #{model_forward.18} parent=11 // pred_fallthru
        _
      // Predicated region
      $region49: #{model_forward.18} parent=11 // pred_check
        %p321 = pneg %p253
      $region50: #{model_forward.18} parent=11 // pred_check_branch
        %323 = sbr.rel (%p321) target = $region52
      $region51: #{model_forward.18} parent=11 // pred_region
        _
      $region52: #{model_forward.18} parent=11 // pred_fallthru
        _
    $region12: #{model_forward.18} parent=5 // pred_fallthru
      _
    %p324 = scmp.lt.s32.totalorder %s17, 10
    // Predicated region
    $region53: #{model_forward.18} parent=5 // pred_check
      %p325 = pneg %p324
    $region54: #{model_forward.18} parent=5 // pred_check_branch
      %327 = sbr.rel (%p325) target = $region56
    $region55: #{model_forward.18} parent=5 // pred_region
      // Predicated region
      $region57: #{model_forward.18} parent=55 // pred_check
        %p328 = pneg %p37
      $region58: #{model_forward.18} parent=55 // pred_check_branch
        %330 = sbr.rel (%p328) target = $region60
      $region59: #{model_forward.18} parent=55 // pred_region
        %p331 = scmp.lt.s32.totalorder %s17, 9
        %s332 = scalar_select %p331, %s17, 9
        %s333 = smul.addr %s332, 8
        %s334 = scalar_lea.vmem %s0, %s333
      $region60: #{model_forward.18} parent=55 // pred_fallthru
        _
    $region56: #{model_forward.18} parent=5 // pred_fallthru
      _
    %p335 = scmp.le.s32.totalorder 1, %s17
    %p336 = scmp.lt.s32.totalorder %s17, 11
    %p337 = pnand %p335, %p336
    %p338 = pneg %p337
    // Predicated region
    $region61: #{model_forward.18} parent=5 // pred_check
      _
    $region62: #{model_forward.18} parent=5 // pred_check_branch
      %340 = sbr.rel (%p337) target = $region64
    $region63: #{model_forward.18} parent=5 // pred_region
      %s341 = ssub.s32 %s17, 1
      %p342 = scmp.lt.s32.totalorder %s22, 9
      %s343 = scalar_select %p342, %s22, 9
      %s344 = smul.addr %s343, 8
      %s345 = scalar_lea.vmem %s0, %s344
      %p346 = pneg %p43
      %p347 = pneg %p40
      %p348 = pneg %p64
      %p349 = pneg %p61
      %p350 = pneg %p85
      %p351 = pneg %p82
      %p352 = pneg %p106
      %p353 = pneg %p103
      %p354 = pneg %p127
      %p355 = pneg %p124
      %p356 = pneg %p148
      %p357 = pneg %p145
      %p358 = pneg %p169
      %p359 = pneg %p166
      %p360 = pneg %p190
      %p361 = pneg %p187
      %p362 = pneg %p211
      %p363 = pneg %p208
      %p364 = pneg %p232
      %p365 = pneg %p229
      %p366 = pneg %p253
      %p367 = pneg %p250
      %p368 = pneg %p279
      %p369 = pneg %p276
      %p370 = scmp.lt.s32.totalorder %s22, 9
      %s371 = scalar_select %p370, %s22, 9
      %s372 = smul.addr %s371, 8
      %s373 = scalar_lea.vmem %s11, %s372
      %p374 = scmp.lt.s32.totalorder %s22, 9
      %s375 = scalar_select %p374, %s22, 9
      %s376 = smul.addr %s375, 8
      %s377 = scalar_lea.vmem %s0, %s376
      %p378 = scmp.lt.s32.totalorder %s22, 9
      %s379 = scalar_select %p378, %s22, 9
      %s380 = smul.addr %s379, 8
      %s381 = scalar_lea.vmem %s11, %s380
      %v383 = vld [vmem:[%s377] sm:$0x1f]
      %v384 = vld [vmem:[%s1] sm:$0x1]
      %v385 = vld [vmem:[%s2] sm:$0x1]
      %vm386 = vcmask 258048
      %v387 = vsel %vm386, %v383, 0.0
      %388 = vadd.xlane.f32.xlu0 %v387
      %v389 = vpop.xlane.xlu0 %388
      %v390 = vrcp.pop 32.0
      %v391 = vmul.f32 %v389, %v390
      %v392 = vsub.f32 %v383, %v391
      %v393 = vmul.f32 %v392, %v392
      %v394 = vsel %vm386, %v393, 0.0
      %395 = vadd.xlane.f32.xlu0 %v394
      %v396 = vpop.xlane.xlu0 %395
      %v397 = vmul.f32 %v396, %v390
      %v398 = vadd.f32 %v397, 1e-05
      %v399 = vrsqrt.pop %v398
      %v400 = vmul.f32 %v392, %v399
      %v402 = vlaneseq
      %v403 = vshrl.u32 %v402, 7
      %v404 = vsub.s32 0, %v403
      %v405 = vrot.slane %v384, %v404
      %v407 = vmul.f32 %v400, %v405
      %v409 = vlaneseq
      %v410 = vshrl.u32 %v409, 7
      %v411 = vsub.s32 0, %v410
      %v412 = vrot.slane %v385, %v411
      %v414 = vadd.f32 %v407, %v412
      %v415 = vpack.c.bf16 %v414, %v414
      %v416 = vld [vmem:[%s3] sm:$0xf]
      %v417 = vld [vmem:[%s3 + $0x4] sm:$0xf]
      %v418 = vld [vmem:[%s3 + $0x8] sm:$0xf]
      %v419 = vld [vmem:[%s3 + $0xc] sm:$0xf]
      %v420 = vld [vmem:[%s4] sm:$0x1]
      %v422 = vlaneseq
      %v423 = vshrl.u32 %v422, 7
      %v424 = vsub.s32 0, %v423
      %v425 = vrot.slane %v420, %v424
      %v431 = vunpack.c.l.b16 %v416
      %v432 = vunpack.c.l.b16 %v417
      %v433 = vunpack.c.l.b16 %v418
      %v434 = vunpack.c.l.b16 %v419
      %v435 = vpack.c.b16 %v432, %v431
      %v436 = vpack.c.b16 %v434, %v433
      %vm439 = vcmask 261120
      %v441 = vsel %vm439, %v415, 0
      %443 = vmatprep.subr.bf16.mxu0 0
      %444 = vmatpush1.bf16.msra.mxu0 %v435
      %445 = vmatprep.subr.bf16.mxu0 0
      %446 = vmatpush1.bf16.msra.mxu0 %v436
      %447 = vmatprep.subr.bf16.mxu0 0
      %448 = vmatpush1.bf16.msra.mxu0 0
      %449 = vmatprep.subr.bf16.mxu0 0
      %450 = vmatpush1.bf16.msra.mxu0 0
      %451 = vmatprep.subr.bf16.mxu0 0
      %452 = vmatpush1.bf16.msra.mxu0 0
      %453 = vmatprep.subr.bf16.mxu0 0
      %454 = vmatpush1.bf16.msra.mxu0 0
      %455 = vmatprep.subr.bf16.mxu0 0
      %456 = vmatpush1.bf16.msra.mxu0 0
      %457 = vmatprep.subr.bf16.mxu0 0
      %458 = vmatpush1.bf16.msra.mxu0 0
      %459 = vmatprep.subr.bf16.mxu0 0
      %460 = vmatpush1.bf16.msra.mxu0 0
      %461 = vmatprep.subr.bf16.mxu0 0
      %462 = vmatpush1.bf16.msra.mxu0 0
      %463 = vmatprep.subr.bf16.mxu0 0
      %464 = vmatpush1.bf16.msra.mxu0 0
      %465 = vmatprep.subr.bf16.mxu0 0
      %466 = vmatpush1.bf16.msra.mxu0 0
      %467 = vmatprep.subr.bf16.mxu0 0
      %468 = vmatpush1.bf16.msra.mxu0 0
      %469 = vmatprep.subr.bf16.mxu0 0
      %470 = vmatpush1.bf16.msra.mxu0 0
      %471 = vmatprep.subr.bf16.mxu0 0
      %472 = vmatpush1.bf16.msra.mxu0 0
      %473 = vmatprep.subr.bf16.mxu0 0
      %474 = vmatpush1.bf16.msra.mxu0 0
      %475 = vmatprep.mubr.bf16.mxu0 0
      %476 = vmatmul.mubr.bf16.gmra.mrb[0].mxu0 %v441
      %v477 = vpop.f32.mrb[0].mxu0
      %v478 = vadd.f32 %v425, %v477
      %v479 = vpop.f32.mrb[0].mxu0
      %v480 = vpop.f32.mrb[0].mxu0
      %v481 = vpop.f32.mrb[0].mxu0
      %482 = vdwg.mxu0
      %v483 = vsub.f32 0.0, %v478
      %v484 = vmul.f32 %v483, 1.442695
      %v485 = vpow.pop %v484
      %v486 = vadd.f32 %v485, 1.0
      %v487 = vrcp.pop %v486
      %v488 = vmul.f32 1.0, %v487
      %490 = vrot.lane.b32.xlu0 %v488, 96
      %v491 = vpop.permute.xlu0 %490
      %v493 = vmul.f32 %v478, %v491
      %v495 = vrot.slane %v493, 5
      %vm497 = vcmask 1042432
      %v498 = vsel %vm497, 0.0, %v495
      %v499 = vld [vmem:[%s5] sm:$0x7f]
      %v500 = vld [vmem:[%s6] sm:$0x1]
      %v502 = vlaneseq
      %v503 = vshrl.u32 %v502, 7
      %v504 = vsub.s32 0, %v503
      %v505 = vrot.slane %v500, %v504
      %v507 = vadd.f32 %v505, 0.0
      %v508 = vlaneseq
      %v509 = vshrl.u32 %v508, 7
      %v510 = vsub.s32 0, %v509
      %v511 = vrot.slane %v499, %v510
      %v512 = vmul.f32 %v498, %v511
      %v513 = vadd.f32 %v507, %v512
      %v514 = vlaneseq
      %v515 = vshrl.u32 %v514, 7
      %v516 = vsub.s32 1, %v515
      %v517 = vrot.slane %v499, %v516
      %v518 = vmul.f32 %v498, %v517
      %v520 = vrot.slane %v518, 1
      %v522 = vadd.f32 %v513, %v520
      %v523 = vlaneseq
      %v524 = vshrl.u32 %v523, 7
      %v525 = vsub.s32 2, %v524
      %v526 = vrot.slane %v499, %v525
      %v527 = vmul.f32 %v498, %v526
      %v529 = vrot.slane %v527, 2
      %v531 = vadd.f32 %v522, %v529
      %v532 = vlaneseq
      %v533 = vshrl.u32 %v532, 7
      %v534 = vsub.s32 3, %v533
      %v535 = vrot.slane %v499, %v534
      %v536 = vmul.f32 %v498, %v535
      %v538 = vrot.slane %v536, 3
      %v540 = vadd.f32 %v531, %v538
      %v541 = vlaneseq
      %v542 = vshrl.u32 %v541, 7
      %v543 = vsub.s32 4, %v542
      %v544 = vrot.slane %v499, %v543
      %v545 = vmul.f32 %v498, %v544
      %v546 = vmul.f32 %v544, 0.0
      %vm549 = vcmask 1043456
      %v550 = vrot.slane %v545, 4
      %v551 = vrot.slane %v546, 4
      %v552 = vsel %vm549, %v550, %v551
      %v554 = vadd.f32 %v540, %v552
      %v555 = vlaneseq
      %v556 = vshrl.u32 %v555, 7
      %v557 = vsub.s32 5, %v556
      %v558 = vrot.slane %v499, %v557
      %v559 = vmul.f32 %v498, %v558
      %v560 = vmul.f32 %v558, 0.0
      %v563 = vrot.slane %v559, 5
      %v564 = vrot.slane %v560, 5
      %v565 = vsel %vm497, %v563, %v564
      %v567 = vadd.f32 %v554, %v565
      %v568 = vlaneseq
      %v569 = vshrl.u32 %v568, 7
      %v570 = vsub.s32 6, %v569
      %v571 = vrot.slane %v499, %v570
      %v572 = vmul.f32 %v498, %v571
      %v573 = vmul.f32 %v571, 0.0
      %vm576 = vcmask 1041408
      %v577 = vrot.slane %v572, 6
      %v578 = vrot.slane %v573, 6
      %v579 = vsel %vm576, %v577, %v578
      %v581 = vadd.f32 %v567, %v579
      %v582 = vld [vmem:[%s7] sm:$0x1]
      %v583 = vld [vmem:[%s8] sm:$0x1]
      %v584 = vsel %vm386, %v581, 0.0
      %585 = vadd.xlane.f32.xlu0 %v584
      %v586 = vpop.xlane.xlu0 %585
      %v587 = vmul.f32 %v586, %v390
      %v588 = vsub.f32 %v581, %v587
      %v589 = vmul.f32 %v588, %v588
      %v590 = vsel %vm386, %v589, 0.0
      %591 = vadd.xlane.f32.xlu0 %v590
      %v592 = vpop.xlane.xlu0 %591
      %v593 = vmul.f32 %v592, %v390
      %v594 = vadd.f32 %v593, 1e-05
      %v595 = vrsqrt.pop %v594
      %v596 = vmul.f32 %v588, %v595
      %v598 = vlaneseq
      %v599 = vshrl.u32 %v598, 7
      %v600 = vsub.s32 0, %v599
      %v601 = vrot.slane %v582, %v600
      %v603 = vmul.f32 %v596, %v601
      %v605 = vlaneseq
      %v606 = vshrl.u32 %v605, 7
      %v607 = vsub.s32 0, %v606
      %v608 = vrot.slane %v583, %v607
      %v610 = vadd.f32 %v603, %v608
      %v611 = vsub.f32 0.0, %v610
      %v612 = vmul.f32 %v611, 1.442695
      %v613 = vpow.pop %v612
      %v614 = vadd.f32 %v613, 1.0
      %v615 = vrcp.pop %v614
      %v616 = vmul.f32 1.0, %v615
      %v617 = vmul.f32 %v610, %v616
      %v618 = vpack.c.bf16 %v617, %v617
      %v619 = vld [vmem:[%s9] sm:$0xf]
      %v620 = vld [vmem:[%s9 + $0x4] sm:$0xf]
      %v621 = vld [vmem:[%s9 + $0x8] sm:$0xf]
      %v622 = vld [vmem:[%s9 + $0xc] sm:$0xf]
      %v623 = vld [vmem:[%s10] sm:$0x1]
      %v625 = vlaneseq
      %v626 = vshrl.u32 %v625, 7
      %v627 = vsub.s32 0, %v626
      %v628 = vrot.slane %v623, %v627
      %v634 = vunpack.c.l.b16 %v619
      %v635 = vunpack.c.l.b16 %v620
      %v636 = vunpack.c.l.b16 %v621
      %v637 = vunpack.c.l.b16 %v622
      %v638 = vpack.c.b16 %v635, %v634
      %v639 = vpack.c.b16 %v637, %v636
      %v643 = vsel %vm439, %v618, 0
      %645 = vmatprep.subr.bf16.mxu0 0
      %646 = vmatpush1.bf16.msra.mxu0 %v638
      %647 = vmatprep.subr.bf16.mxu0 0
      %648 = vmatpush1.bf16.msra.mxu0 %v639
      %649 = vmatprep.subr.bf16.mxu0 0
      %650 = vmatpush1.bf16.msra.mxu0 0
      %651 = vmatprep.subr.bf16.mxu0 0
      %652 = vmatpush1.bf16.msra.mxu0 0
      %653 = vmatprep.subr.bf16.mxu0 0
      %654 = vmatpush1.bf16.msra.mxu0 0
      %655 = vmatprep.subr.bf16.mxu0 0
      %656 = vmatpush1.bf16.msra.mxu0 0
      %657 = vmatprep.subr.bf16.mxu0 0
      %658 = vmatpush1.bf16.msra.mxu0 0
      %659 = vmatprep.subr.bf16.mxu0 0
      %660 = vmatpush1.bf16.msra.mxu0 0
      %661 = vmatprep.subr.bf16.mxu0 0
      %662 = vmatpush1.bf16.msra.mxu0 0
      %663 = vmatprep.subr.bf16.mxu0 0
      %664 = vmatpush1.bf16.msra.mxu0 0
      %665 = vmatprep.subr.bf16.mxu0 0
      %666 = vmatpush1.bf16.msra.mxu0 0
      %667 = vmatprep.subr.bf16.mxu0 0
      %668 = vmatpush1.bf16.msra.mxu0 0
      %669 = vmatprep.subr.bf16.mxu0 0
      %670 = vmatpush1.bf16.msra.mxu0 0
      %671 = vmatprep.subr.bf16.mxu0 0
      %672 = vmatpush1.bf16.msra.mxu0 0
      %673 = vmatprep.subr.bf16.mxu0 0
      %674 = vmatpush1.bf16.msra.mxu0 0
      %675 = vmatprep.subr.bf16.mxu0 0
      %676 = vmatpush1.bf16.msra.mxu0 0
      %677 = vmatprep.mubr.bf16.mxu0 0
      %678 = vmatmul.mubr.bf16.gmra.mrb[0].mxu0 %v643
      %v679 = vpop.f32.mrb[0].mxu0
      %v680 = vadd.f32 %v628, %v679
      %v681 = vpop.f32.mrb[0].mxu0
      %v682 = vpop.f32.mrb[0].mxu0
      %v683 = vpop.f32.mrb[0].mxu0
      %684 = vdwg.mxu0
      %v685 = vadd.f32 %v383, %v680
      %686 = vst.msk [vmem:[%s381] sm:$0x1f] %vm386, %v685
      %p687 = scmp.lt.s32.totalorder %s22, 9
      %s688 = scalar_select %p687, %s22, 9
      %s689 = smul.addr %s688, 8
      %s690 = scalar_lea.vmem %s11, %s689
      // Predicated region
      $region65: #{model_forward.18} parent=63 // pred_check
        %p691 = pneg %p276
      $region66: #{model_forward.18} parent=63 // pred_check_branch
        %693 = sbr.rel (%p691) target = $region68
      $region67: #{model_forward.18} parent=63 // pred_region
        _
      $region68: #{model_forward.18} parent=63 // pred_fallthru
        _
    $region64: #{model_forward.18} parent=5 // pred_fallthru
      _
    %p694 = scmp.le.s32.totalorder 2, %s17
    // Predicated region
    $region69: #{model_forward.18} parent=5 // pred_check
      %p695 = pneg %p694
    $region70: #{model_forward.18} parent=5 // pred_check_branch
      %697 = sbr.rel (%p695) target = $region72
    $region71: #{model_forward.18} parent=5 // pred_region
      %s698 = ssub.s32 %s17, 2
      // Predicated region
      $region73: #{model_forward.18} parent=71 // pred_check
        %p699 = pneg %p282
      $region74: #{model_forward.18} parent=71 // pred_check_branch
        %701 = sbr.rel (%p699) target = $region76
      $region75: #{model_forward.18} parent=71 // pred_region
        %p702 = scmp.lt.s32.totalorder %s23, 9
        %s703 = scalar_select %p702, %s23, 9
        %s704 = smul.addr %s703, 8
        %s705 = scalar_lea.vmem %s11, %s704
      $region76: #{model_forward.18} parent=71 // pred_fallthru
        _
    $region72: #{model_forward.18} parent=5 // pred_fallthru
      _
  $region6: #{model_forward.18} parent=0 // loop_footer
    %s21 = sadd.s32 1, %s17
  $region7: #{model_forward.18} parent=0 // loop_footer_branch
    %16 = sbr.rel target = $region3
  $region8: #{model_forward.18} parent=0 // loop_exit
    _

// kernel: model_forward.17
$region0: #{model_forward.17}
  #allocation0 [shape = 'u32[]', space=smem, size = 0x4, offset = 0x4, fixed_abs, tag = 'smem constant byte address 0x4 - core index']
  #allocation1 [shape = 'u32[144,128]{1,0:T(1,128)}', space=vmem, size = 0x12000, scoped, tag = 'internal scratch']
  %s0 = inlined_call_operand.vmem [shape: f32[10,5,32], index: 0, kind: input, shape index: {}]
  %s1 = inlined_call_operand.vmem [shape: f32[10,13,32], index: 1, kind: input, shape index: {}]
  %s2 = inlined_call_operand.vmem [shape: f32[10,13,32], index: 2, kind: input, shape index: {}]
  %s3 = inlined_call_operand.vmem [shape: f32[10,1,13], index: 3, kind: input, shape index: {}]
  %s4 = inlined_call_operand.vmem [shape: f32[32,32], index: 4, kind: input, shape index: {}]
  %s5 = inlined_call_operand.vmem [shape: f32[1,32], index: 5, kind: input, shape index: {}]
  %s6 = inlined_call_operand.vmem [shape: f32[10,5,32], index: 6, kind: input, shape index: {}]
  %s7 = inlined_call_operand.vmem [shape: f32[10,5,32], index: 7, kind: output, shape index: {}]
  %s8 = sld [smem:[#allocation0]]
  $region61: #{model_forward.17} parent=0
    _
  %s10 = ssub.s32 1, %s8
  %s11 = scalar_select 0, %s10, %s8
  loop: start=0, step=1, limit=12
  $region2: #{model_forward.17} parent=0 // loop_pre_header
    _
  $region3: #{model_forward.17} parent=0 // loop_header
    %s13 = sphi 0, %s17
    %p14 = scmp.ge.s32.totalorder %s13, 12
    %s23 = sphi 0, %s25
    %s26 = sphi 0, %s23
    %s27 = sphi 0, %s26
    %s43 = sphi 0, %s27
    %s49 = sphi 0, %s51
    %s52 = sphi 0, %s49
    %s53 = sphi 0, %s52
    %s69 = sphi 0, %s53
    %s75 = sphi 0, %s77
    %s78 = sphi 0, %s75
    %s79 = sphi 0, %s78
    %s95 = sphi 0, %s79
    %s101 = sphi 0, %s103
    %s104 = sphi 0, %s101
    %s105 = sphi 0, %s104
    %s121 = sphi 0, %s105
    %s125 = sphi 0, %s125
    %s127 = sphi 0, %s125
    %s128 = sphi 0, %s127
    %s142 = sphi 0, %s128
    %s146 = sphi 0, %s146
    %s148 = sphi 0, %s146
    %s149 = sphi 0, %s148
    %s163 = sphi 0, %s149
    %s169 = sphi 0, %s171
    %s172 = sphi 0, %s169
    %s173 = sphi 0, %s172
    %s189 = sphi 0, %s173
    %s195 = sphi 0, %s197
    %s198 = sphi 0, %s195
    %s199 = sphi 0, %s198
    %s215 = sphi 0, %s199
  $region4: #{model_forward.17} parent=0 // loop_header_branch
    %16 = sbr.rel (%p14) target = $region8
  $region5: #{model_forward.17} parent=0 // loop_body
    %s18 = ssub.s32 %s13, 1
    %s19 = ssub.s32 %s13, 2
    %s20 = sadd.s32 %s13, 1
    %s21 = ssub.s32 %s13, %s20
    %p22 = scmp.eq.s32.totalorder %s21, 0
    %s24 = sadd.s32 %s23, 1
    %s25 = scalar_select %p22, %s23, %s24
    %p28 = pneg %p22
    %p29 = scmp.eq.s32.totalorder %s13, 9
    %p30 = por %p28, %p29
    %p31 = scmp.ne.s32.totalorder %s23, %s26
    %p32 = scmp.eq.s32.totalorder %s13, 0
    %p33 = por %p31, %p32
    %p34 = scmp.ne.s32.totalorder %s23, %s26
    %p35 = scmp.eq.s32.totalorder %s18, 9
    %p36 = por %p34, %p35
    %p37 = scmp.ne.s32.totalorder %s26, %s27
    %p38 = scmp.eq.s32.totalorder %s18, 0
    %p39 = por %p37, %p38
    %p40 = scmp.ne.s32.totalorder %s26, %s27
    %p41 = scmp.eq.s32.totalorder %s19, 9
    %p42 = por %p40, %p41
    %p44 = scmp.ne.s32.totalorder %s27, %s43
    %p45 = scmp.eq.s32.totalorder %s19, 0
    %p46 = por %p44, %p45
    %s47 = ssub.s32 %s13, %s20
    %p48 = scmp.eq.s32.totalorder %s47, 0
    %s50 = sadd.s32 %s49, 1
    %s51 = scalar_select %p48, %s49, %s50
    %p54 = pneg %p48
    %p55 = scmp.eq.s32.totalorder %s13, 9
    %p56 = por %p54, %p55
    %p57 = scmp.ne.s32.totalorder %s49, %s52
    %p58 = scmp.eq.s32.totalorder %s13, 0
    %p59 = por %p57, %p58
    %p60 = scmp.ne.s32.totalorder %s49, %s52
    %p61 = scmp.eq.s32.totalorder %s18, 9
    %p62 = por %p60, %p61
    %p63 = scmp.ne.s32.totalorder %s52, %s53
    %p64 = scmp.eq.s32.totalorder %s18, 0
    %p65 = por %p63, %p64
    %p66 = scmp.ne.s32.totalorder %s52, %s53
    %p67 = scmp.eq.s32.totalorder %s19, 9
    %p68 = por %p66, %p67
    %p70 = scmp.ne.s32.totalorder %s53, %s69
    %p71 = scmp.eq.s32.totalorder %s19, 0
    %p72 = por %p70, %p71
    %s73 = ssub.s32 %s13, %s20
    %p74 = scmp.eq.s32.totalorder %s73, 0
    %s76 = sadd.s32 %s75, 1
    %s77 = scalar_select %p74, %s75, %s76
    %p80 = pneg %p74
    %p81 = scmp.eq.s32.totalorder %s13, 9
    %p82 = por %p80, %p81
    %p83 = scmp.ne.s32.totalorder %s75, %s78
    %p84 = scmp.eq.s32.totalorder %s13, 0
    %p85 = por %p83, %p84
    %p86 = scmp.ne.s32.totalorder %s75, %s78
    %p87 = scmp.eq.s32.totalorder %s18, 9
    %p88 = por %p86, %p87
    %p89 = scmp.ne.s32.totalorder %s78, %s79
    %p90 = scmp.eq.s32.totalorder %s18, 0
    %p91 = por %p89, %p90
    %p92 = scmp.ne.s32.totalorder %s78, %s79
    %p93 = scmp.eq.s32.totalorder %s19, 9
    %p94 = por %p92, %p93
    %p96 = scmp.ne.s32.totalorder %s79, %s95
    %p97 = scmp.eq.s32.totalorder %s19, 0
    %p98 = por %p96, %p97
    %s99 = ssub.s32 %s13, %s20
    %p100 = scmp.eq.s32.totalorder %s99, 0
    %s102 = sadd.s32 %s101, 1
    %s103 = scalar_select %p100, %s101, %s102
    %p106 = pneg %p100
    %p107 = scmp.eq.s32.totalorder %s13, 9
    %p108 = por %p106, %p107
    %p109 = scmp.ne.s32.totalorder %s101, %s104
    %p110 = scmp.eq.s32.totalorder %s13, 0
    %p111 = por %p109, %p110
    %p112 = scmp.ne.s32.totalorder %s101, %s104
    %p113 = scmp.eq.s32.totalorder %s18, 9
    %p114 = por %p112, %p113
    %p115 = scmp.ne.s32.totalorder %s104, %s105
    %p116 = scmp.eq.s32.totalorder %s18, 0
    %p117 = por %p115, %p116
    %p118 = scmp.ne.s32.totalorder %s104, %s105
    %p119 = scmp.eq.s32.totalorder %s19, 9
    %p120 = por %p118, %p119
    %p122 = scmp.ne.s32.totalorder %s105, %s121
    %p123 = scmp.eq.s32.totalorder %s19, 0
    %p124 = por %p122, %p123
    %s126 = sadd.s32 %s125, 1
    %p129 = scmp.eq.s32.totalorder %s13, 9
    %p130 = scmp.ne.s32.totalorder %s125, %s127
    %p131 = scmp.eq.s32.totalorder %s13, 0
    %p132 = por %p130, %p131
    %p133 = scmp.ne.s32.totalorder %s125, %s127
    %p134 = scmp.eq.s32.totalorder %s18, 9
    %p135 = por %p133, %p134
    %p136 = scmp.ne.s32.totalorder %s127, %s128
    %p137 = scmp.eq.s32.totalorder %s18, 0
    %p138 = por %p136, %p137
    %p139 = scmp.ne.s32.totalorder %s127, %s128
    %p140 = scmp.eq.s32.totalorder %s19, 9
    %p141 = por %p139, %p140
    %p143 = scmp.ne.s32.totalorder %s128, %s142
    %p144 = scmp.eq.s32.totalorder %s19, 0
    %p145 = por %p143, %p144
    %s147 = sadd.s32 %s146, 1
    %p150 = scmp.eq.s32.totalorder %s13, 9
    %p151 = scmp.ne.s32.totalorder %s146, %s148
    %p152 = scmp.eq.s32.totalorder %s13, 0
    %p153 = por %p151, %p152
    %p154 = scmp.ne.s32.totalorder %s146, %s148
    %p155 = scmp.eq.s32.totalorder %s18, 9
    %p156 = por %p154, %p155
    %p157 = scmp.ne.s32.totalorder %s148, %s149
    %p158 = scmp.eq.s32.totalorder %s18, 0
    %p159 = por %p157, %p158
    %p160 = scmp.ne.s32.totalorder %s148, %s149
    %p161 = scmp.eq.s32.totalorder %s19, 9
    %p162 = por %p160, %p161
    %p164 = scmp.ne.s32.totalorder %s149, %s163
    %p165 = scmp.eq.s32.totalorder %s19, 0
    %p166 = por %p164, %p165
    %s167 = ssub.s32 %s13, %s20
    %p168 = scmp.eq.s32.totalorder %s167, 0
    %s170 = sadd.s32 %s169, 1
    %s171 = scalar_select %p168, %s169, %s170
    %p174 = pneg %p168
    %p175 = scmp.eq.s32.totalorder %s13, 9
    %p176 = por %p174, %p175
    %p177 = scmp.ne.s32.totalorder %s169, %s172
    %p178 = scmp.eq.s32.totalorder %s13, 0
    %p179 = por %p177, %p178
    %p180 = scmp.ne.s32.totalorder %s169, %s172
    %p181 = scmp.eq.s32.totalorder %s18, 9
    %p182 = por %p180, %p181
    %p183 = scmp.ne.s32.totalorder %s172, %s173
    %p184 = scmp.eq.s32.totalorder %s18, 0
    %p185 = por %p183, %p184
    %p186 = scmp.ne.s32.totalorder %s172, %s173
    %p187 = scmp.eq.s32.totalorder %s19, 9
    %p188 = por %p186, %p187
    %p190 = scmp.ne.s32.totalorder %s173, %s189
    %p191 = scmp.eq.s32.totalorder %s19, 0
    %p192 = por %p190, %p191
    %s193 = ssub.s32 %s13, %s20
    %p194 = scmp.eq.s32.totalorder %s193, 0
    %s196 = sadd.s32 %s195, 1
    %s197 = scalar_select %p194, %s195, %s196
    %p200 = pneg %p194
    %p201 = scmp.eq.s32.totalorder %s13, 9
    %p202 = por %p200, %p201
    %p203 = scmp.ne.s32.totalorder %s195, %s198
    %p204 = scmp.eq.s32.totalorder %s13, 0
    %p205 = por %p203, %p204
    %p206 = scmp.ne.s32.totalorder %s195, %s198
    %p207 = scmp.eq.s32.totalorder %s18, 9
    %p208 = por %p206, %p207
    %p209 = scmp.ne.s32.totalorder %s198, %s199
    %p210 = scmp.eq.s32.totalorder %s18, 0
    %p211 = por %p209, %p210
    %p212 = scmp.ne.s32.totalorder %s198, %s199
    %p213 = scmp.eq.s32.totalorder %s19, 9
    %p214 = por %p212, %p213
    %p216 = scmp.ne.s32.totalorder %s199, %s215
    %p217 = scmp.eq.s32.totalorder %s19, 0
    %p218 = por %p216, %p217
    %p219 = scmp.le.s32.totalorder 1, %s13
    %p220 = scmp.lt.s32.totalorder %s13, 11
    %p221 = pnand %p219, %p220
    %p222 = pneg %p221
    // Predicated region
    $region9: #{model_forward.17} parent=5 // pred_check
      _
    $region10: #{model_forward.17} parent=5 // pred_check_branch
      %224 = sbr.rel (%p221) target = $region12
    $region11: #{model_forward.17} parent=5 // pred_region
      %s225 = ssub.s32 %s13, 1
      // Predicated region
      $region13: #{model_forward.17} parent=11 // pred_check
        %p226 = pneg %p138
      $region14: #{model_forward.17} parent=11 // pred_check_branch
        %228 = sbr.rel (%p226) target = $region16
      $region15: #{model_forward.17} parent=11 // pred_region
        _
      $region16: #{model_forward.17} parent=11 // pred_fallthru
        _
      // Predicated region
      $region17: #{model_forward.17} parent=11 // pred_check
        %p229 = pneg %p159
      $region18: #{model_forward.17} parent=11 // pred_check_branch
        %231 = sbr.rel (%p229) target = $region20
      $region19: #{model_forward.17} parent=11 // pred_region
        _
      $region20: #{model_forward.17} parent=11 // pred_fallthru
        _
    $region12: #{model_forward.17} parent=5 // pred_fallthru
      _
    %p232 = scmp.lt.s32.totalorder %s13, 10
    // Predicated region
    $region21: #{model_forward.17} parent=5 // pred_check
      %p233 = pneg %p232
    $region22: #{model_forward.17} parent=5 // pred_check_branch
      %235 = sbr.rel (%p233) target = $region24
    $region23: #{model_forward.17} parent=5 // pred_region
      // Predicated region
      $region25: #{model_forward.17} parent=23 // pred_check
        %p236 = pneg %p33
      $region26: #{model_forward.17} parent=23 // pred_check_branch
        %238 = sbr.rel (%p236) target = $region28
      $region27: #{model_forward.17} parent=23 // pred_region
        %p239 = scmp.lt.s32.totalorder %s13, 9
        %s240 = scalar_select %p239, %s13, 9
        %s241 = smul.addr %s240, 8
        %s242 = scalar_lea.vmem %s0, %s241
      $region28: #{model_forward.17} parent=23 // pred_fallthru
        _
      // Predicated region
      $region29: #{model_forward.17} parent=23 // pred_check
        %p243 = pneg %p59
      $region30: #{model_forward.17} parent=23 // pred_check_branch
        %245 = sbr.rel (%p243) target = $region32
      $region31: #{model_forward.17} parent=23 // pred_region
        %p246 = scmp.lt.s32.totalorder %s13, 9
        %s247 = scalar_select %p246, %s13, 9
        %s248 = smul.addr %s247, 2
        %s249 = smul.addr %s248, 8
        %s250 = scalar_lea.vmem %s1, %s249
      $region32: #{model_forward.17} parent=23 // pred_fallthru
        _
      // Predicated region
      $region33: #{model_forward.17} parent=23 // pred_check
        %p251 = pneg %p85
      $region34: #{model_forward.17} parent=23 // pred_check_branch
        %253 = sbr.rel (%p251) target = $region36
      $region35: #{model_forward.17} parent=23 // pred_region
        %p254 = scmp.lt.s32.totalorder %s13, 9
        %s255 = scalar_select %p254, %s13, 9
        %s256 = smul.addr %s255, 2
        %s257 = smul.addr %s256, 8
        %s258 = scalar_lea.vmem %s2, %s257
      $region36: #{model_forward.17} parent=23 // pred_fallthru
        _
      // Predicated region
      $region37: #{model_forward.17} parent=23 // pred_check
        %p259 = pneg %p111
      $region38: #{model_forward.17} parent=23 // pred_check_branch
        %261 = sbr.rel (%p259) target = $region40
      $region39: #{model_forward.17} parent=23 // pred_region
        %p262 = scmp.lt.s32.totalorder %s13, 9
        %s263 = scalar_select %p262, %s13, 9
        %s264 = scalar_lea.vmem %s3, %s263
      $region40: #{model_forward.17} parent=23 // pred_fallthru
        _
      // Predicated region
      $region41: #{model_forward.17} parent=23 // pred_check
        %p265 = pneg %p179
      $region42: #{model_forward.17} parent=23 // pred_check_branch
        %267 = sbr.rel (%p265) target = $region44
      $region43: #{model_forward.17} parent=23 // pred_region
        %p268 = scmp.lt.s32.totalorder %s13, 9
        %s269 = scalar_select %p268, %s13, 9
        %s270 = smul.addr %s269, 8
        %s271 = scalar_lea.vmem %s6, %s270
      $region44: #{model_forward.17} parent=23 // pred_fallthru
        _
    $region24: #{model_forward.17} parent=5 // pred_fallthru
      _
    %p272 = scmp.le.s32.totalorder 1, %s13
    %p273 = scmp.lt.s32.totalorder %s13, 11
    %p274 = pnand %p272, %p273
    %p275 = pneg %p274
    // Predicated region
    $region45: #{model_forward.17} parent=5 // pred_check
      _
    $region46: #{model_forward.17} parent=5 // pred_check_branch
      %277 = sbr.rel (%p274) target = $region48
    $region47: #{model_forward.17} parent=5 // pred_region
      %s278 = ssub.s32 %s13, 1
      %p279 = scmp.lt.s32.totalorder %s18, 9
      %s280 = scalar_select %p279, %s18, 9
      %s281 = smul.addr %s280, 8
      %s282 = scalar_lea.vmem %s0, %s281
      %p283 = pneg %p39
      %p284 = pneg %p36
      %p285 = scmp.lt.s32.totalorder %s18, 9
      %s286 = scalar_select %p285, %s18, 9
      %s287 = smul.addr %s286, 2
      %s288 = smul.addr %s287, 8
      %s289 = scalar_lea.vmem %s1, %s288
      %p290 = pneg %p65
      %p291 = pneg %p62
      %p292 = scmp.lt.s32.totalorder %s18, 9
      %s293 = scalar_select %p292, %s18, 9
      %s294 = smul.addr %s293, 2
      %s295 = smul.addr %s294, 8
      %s296 = scalar_lea.vmem %s2, %s295
      %p297 = pneg %p91
      %p298 = pneg %p88
      %p299 = scmp.lt.s32.totalorder %s18, 9
      %s300 = scalar_select %p299, %s18, 9
      %s301 = scalar_lea.vmem %s3, %s300
      %p302 = pneg %p117
      %p303 = pneg %p114
      %p304 = pneg %p138
      %p305 = pneg %p135
      %p306 = pneg %p159
      %p307 = pneg %p156
      %p308 = scmp.lt.s32.totalorder %s18, 9
      %s309 = scalar_select %p308, %s18, 9
      %s310 = smul.addr %s309, 8
      %s311 = scalar_lea.vmem %s6, %s310
      %p312 = pneg %p185
      %p313 = pneg %p182
      %p314 = pneg %p211
      %p315 = pneg %p208
      %p316 = scmp.lt.s32.totalorder %s18, 9
      %s317 = scalar_select %p316, %s18, 9
      %s318 = smul.addr %s317, 8
      %s319 = scalar_lea.vmem %s7, %s318
      %p320 = scmp.lt.s32.totalorder %s18, 9
      %s321 = scalar_select %p320, %s18, 9
      %s322 = smul.addr %s321, 8
      %s323 = scalar_lea.vmem %s0, %s322
      %p324 = scmp.lt.s32.totalorder %s18, 9
      %s325 = scalar_select %p324, %s18, 9
      %s326 = smul.addr %s325, 2
      %s327 = smul.addr %s326, 8
      %s328 = scalar_lea.vmem %s1, %s327
      %p329 = scmp.lt.s32.totalorder %s18, 9
      %s330 = scalar_select %p329, %s18, 9
      %s331 = smul.addr %s330, 2
      %s332 = smul.addr %s331, 8
      %s333 = scalar_lea.vmem %s2, %s332
      %p334 = scmp.lt.s32.totalorder %s18, 9
      %s335 = scalar_select %p334, %s18, 9
      %s336 = scalar_lea.vmem %s3, %s335
      %p337 = scmp.lt.s32.totalorder %s18, 9
      %s338 = scalar_select %p337, %s18, 9
      %s339 = smul.addr %s338, 8
      %s340 = scalar_lea.vmem %s6, %s339
      %p341 = scmp.lt.s32.totalorder %s18, 9
      %s342 = scalar_select %p341, %s18, 9
      %s343 = smul.addr %s342, 8
      %s344 = scalar_lea.vmem %s7, %s343
      %v346 = vld [vmem:[%s323] sm:$0x1f]
      %v347 = vld [vmem:[%s328] sm:$0xff]
      %v348 = vld [vmem:[%s328 + $0x8] sm:$0x1f]
      %v349 = vld [vmem:[%s333] sm:$0xff]
      %v350 = vld [vmem:[%s333 + $0x8] sm:$0x1f]
      %v351 = vld [vmem:[%s336] sm:$0x1]
      %v352 = vld [vmem:[%s4] sm:$0xff]
      %v353 = vld [vmem:[%s4 + $0x8] sm:$0xff]
      %v354 = vld [vmem:[%s4 + $0x10] sm:$0xff]
      %v355 = vld [vmem:[%s4 + $0x18] sm:$0xff]
      %v356 = vpack.c.bf16 %v346, %v346
      %v357 = vpack.c.bf16 %v348, %v347
      %vm358 = vcmask 64512
      %v360 = vsel %vm358, %v356, 0
      %v363 = vsel %vm358, %v357, 0
      %365 = vmatprep.subr.bf16.mxu0 0
      %366 = vmatpush1.bf16.xpose.msra.mxu0 %v363
      %367 = vmatprep.subr.bf16.mxu0 0
      %368 = vmatpush1.bf16.xpose.msra.mxu0 0
      %369 = vmatprep.subr.bf16.mxu0 0
      %370 = vmatpush1.bf16.xpose.msra.mxu0 0
      %371 = vmatprep.subr.bf16.mxu0 0
      %372 = vmatpush1.bf16.xpose.msra.mxu0 0
      %373 = vmatprep.subr.bf16.mxu0 0
      %374 = vmatpush1.bf16.xpose.msra.mxu0 0
      %375 = vmatprep.subr.bf16.mxu0 0
      %376 = vmatpush1.bf16.xpose.msra.mxu0 0
      %377 = vmatprep.subr.bf16.mxu0 0
      %378 = vmatpush1.bf16.xpose.msra.mxu0 0
      %379 = vmatprep.subr.bf16.mxu0 0
      %380 = vmatpush1.bf16.xpose.msra.mxu0 0
      %381 = vmatprep.subr.bf16.mxu0 0
      %382 = vmatpush1.bf16.xpose.msra.mxu0 0
      %383 = vmatprep.subr.bf16.mxu0 0
      %384 = vmatpush1.bf16.xpose.msra.mxu0 0
      %385 = vmatprep.subr.bf16.mxu0 0
      %386 = vmatpush1.bf16.xpose.msra.mxu0 0
      %387 = vmatprep.subr.bf16.mxu0 0
      %388 = vmatpush1.bf16.xpose.msra.mxu0 0
      %389 = vmatprep.subr.bf16.mxu0 0
      %390 = vmatpush1.bf16.xpose.msra.mxu0 0
      %391 = vmatprep.subr.bf16.mxu0 0
      %392 = vmatpush1.bf16.xpose.msra.mxu0 0
      %393 = vmatprep.subr.bf16.mxu0 0
      %394 = vmatpush1.bf16.xpose.msra.mxu0 0
      %395 = vmatprep.subr.bf16.mxu0 0
      %396 = vmatpush1.bf16.xpose.msra.mxu0 0
      %397 = vmatprep.mubr.bf16.mxu0 0
      %398 = vmatmul.mubr.bf16.gmra.mrb[0].mxu0 %v360
      %v399 = vpop.f32.mrb[0].mxu0
      %v400 = vadd.f32 0.0, %v399
      %v401 = vpop.f32.mrb[0].mxu0
      %v402 = vpop.f32.mrb[0].mxu0
      %v403 = vpop.f32.mrb[0].mxu0
      %404 = vdwg.mxu0
      %v405 = vmul.f32 %v400, 0.35355338
      %v407 = vlaneseq
      %v408 = vshrl.u32 %v407, 7
      %v409 = vsub.s32 0, %v408
      %v410 = vrot.slane %v351, %v409
      %v412 = vadd.f32 %v405, %v410
      %vm413 = vcmask 102400
      %v414 = vsel %vm413, %v412, -inf
      %415 = vmax.xlane.f32.xlu0 %v414
      %v416 = vpop.xlane.xlu0 %415
      %v417 = vsub.f32 %v412, %v416
      %v418 = vmul.f32 %v417, 1.442695
      %v419 = vpow.pop %v418
      %v420 = vsel %vm413, %v419, 0.0
      %421 = vadd.xlane.f32.xlu0 %v420
      %v422 = vpop.xlane.xlu0 %421
      %v423 = vrcp.pop %v422
      %v424 = vmul.f32 %v419, %v423
      %v425 = vpack.c.bf16 %v424, %v424
      %v426 = vpack.c.bf16 %v350, %v349
      %vm427 = vcmask 105472
      %v429 = vsel %vm427, %v425, 0
      %vm431 = vcmask 1045504
      %vm432 = vcmask 1046528
      %v433 = vsel %vm431, 4294967295, 65535
      %v434 = vsel %vm432, %v433, 0
      %v436 = vand.u32 %v426, %v434
      %438 = vmatprep.subr.bf16.mxu0 0
      %439 = vmatpush1.bf16.msra.mxu0 %v436
      %440 = vmatprep.subr.bf16.mxu0 0
      %441 = vmatpush1.bf16.msra.mxu0 0
      %442 = vmatprep.subr.bf16.mxu0 0
      %443 = vmatpush1.bf16.msra.mxu0 0
      %444 = vmatprep.subr.bf16.mxu0 0
      %445 = vmatpush1.bf16.msra.mxu0 0
      %446 = vmatprep.subr.bf16.mxu0 0
      %447 = vmatpush1.bf16.msra.mxu0 0
      %448 = vmatprep.subr.bf16.mxu0 0
      %449 = vmatpush1.bf16.msra.mxu0 0
      %450 = vmatprep.subr.bf16.mxu0 0
      %451 = vmatpush1.bf16.msra.mxu0 0
      %452 = vmatprep.subr.bf16.mxu0 0
      %453 = vmatpush1.bf16.msra.mxu0 0
      %454 = vmatprep.subr.bf16.mxu0 0
      %455 = vmatpush1.bf16.msra.mxu0 0
      %456 = vmatprep.subr.bf16.mxu0 0
      %457 = vmatpush1.bf16.msra.mxu0 0
      %458 = vmatprep.subr.bf16.mxu0 0
      %459 = vmatpush1.bf16.msra.mxu0 0
      %460 = vmatprep.subr.bf16.mxu0 0
      %461 = vmatpush1.bf16.msra.mxu0 0
      %462 = vmatprep.subr.bf16.mxu0 0
      %463 = vmatpush1.bf16.msra.mxu0 0
      %464 = vmatprep.subr.bf16.mxu0 0
      %465 = vmatpush1.bf16.msra.mxu0 0
      %466 = vmatprep.subr.bf16.mxu0 0
      %467 = vmatpush1.bf16.msra.mxu0 0
      %468 = vmatprep.subr.bf16.mxu0 0
      %469 = vmatpush1.bf16.msra.mxu0 0
      %470 = vmatprep.mubr.bf16.mxu0 0
      %471 = vmatmul.mubr.bf16.gmra.mrb[0].mxu0 %v429
      %v472 = vpop.f32.mrb[0].mxu0
      %v473 = vadd.f32 0.0, %v472
      %v474 = vpop.f32.mrb[0].mxu0
      %v475 = vpop.f32.mrb[0].mxu0
      %v476 = vpop.f32.mrb[0].mxu0
      %477 = vdwg.mxu0
      %v478 = vpack.c.bf16 %v473, %v473
      %v479 = vpack.c.bf16 %v352, %v352
      %481 = vrot.lane.b32.xlu0 %v356, 120
      %v482 = vpop.permute.xlu0 %481
      %484 = vrot.lane.b32.xlu0 %v357, 120
      %v485 = vpop.permute.xlu0 %484
      %v487 = vsel %vm358, %v482, 0
      %v490 = vsel %vm358, %v485, 0
      %492 = vmatprep.subr.bf16.mxu0 0
      %493 = vmatpush1.bf16.xpose.msra.mxu0 %v490
      %494 = vmatprep.subr.bf16.mxu0 0
      %495 = vmatpush1.bf16.xpose.msra.mxu0 0
      %496 = vmatprep.subr.bf16.mxu0 0
      %497 = vmatpush1.bf16.xpose.msra.mxu0 0
      %498 = vmatprep.subr.bf16.mxu0 0
      %499 = vmatpush1.bf16.xpose.msra.mxu0 0
      %500 = vmatprep.subr.bf16.mxu0 0
      %501 = vmatpush1.bf16.xpose.msra.mxu0 0
      %502 = vmatprep.subr.bf16.mxu0 0
      %503 = vmatpush1.bf16.xpose.msra.mxu0 0
      %504 = vmatprep.subr.bf16.mxu0 0
      %505 = vmatpush1.bf16.xpose.msra.mxu0 0
      %506 = vmatprep.subr.bf16.mxu0 0
      %507 = vmatpush1.bf16.xpose.msra.mxu0 0
      %508 = vmatprep.subr.bf16.mxu0 0
      %509 = vmatpush1.bf16.xpose.msra.mxu0 0
      %510 = vmatprep.subr.bf16.mxu0 0
      %511 = vmatpush1.bf16.xpose.msra.mxu0 0
      %512 = vmatprep.subr.bf16.mxu0 0
      %513 = vmatpush1.bf16.xpose.msra.mxu0 0
      %514 = vmatprep.subr.bf16.mxu0 0
      %515 = vmatpush1.bf16.xpose.msra.mxu0 0
      %516 = vmatprep.subr.bf16.mxu0 0
      %517 = vmatpush1.bf16.xpose.msra.mxu0 0
      %518 = vmatprep.subr.bf16.mxu0 0
      %519 = vmatpush1.bf16.xpose.msra.mxu0 0
      %520 = vmatprep.subr.bf16.mxu0 0
      %521 = vmatpush1.bf16.xpose.msra.mxu0 0
      %522 = vmatprep.subr.bf16.mxu0 0
      %523 = vmatpush1.bf16.xpose.msra.mxu0 0
      %524 = vmatprep.mubr.bf16.mxu0 0
      %525 = vmatmul.mubr.bf16.gmra.mrb[0].mxu0 %v487
      %v526 = vpop.f32.mrb[0].mxu0
      %v527 = vadd.f32 0.0, %v526
      %v528 = vpop.f32.mrb[0].mxu0
      %v529 = vpop.f32.mrb[0].mxu0
      %v530 = vpop.f32.mrb[0].mxu0
      %531 = vdwg.mxu0
      %v532 = vmul.f32 %v527, 0.35355338
      %v533 = vadd.f32 %v532, %v410
      %v534 = vsel %vm413, %v533, -inf
      %535 = vmax.xlane.f32.xlu0 %v534
      %v536 = vpop.xlane.xlu0 %535
      %v537 = vsub.f32 %v533, %v536
      %v538 = vmul.f32 %v537, 1.442695
      %v539 = vpow.pop %v538
      %v540 = vsel %vm413, %v539, 0.0
      %541 = vadd.xlane.f32.xlu0 %v540
      %v542 = vpop.xlane.xlu0 %541
      %v543 = vrcp.pop %v542
      %v544 = vmul.f32 %v539, %v543
      %v545 = vpack.c.bf16 %v544, %v544
      %547 = vrot.lane.b32.xlu0 %v426, 120
      %v548 = vpop.permute.xlu0 %547
      %v550 = vsel %vm427, %v545, 0
      %v553 = vand.u32 %v548, %v434
      %555 = vmatprep.subr.bf16.mxu0 0
      %556 = vmatpush1.bf16.msra.mxu0 %v553
      %557 = vmatprep.subr.bf16.mxu0 0
      %558 = vmatpush1.bf16.msra.mxu0 0
      %559 = vmatprep.subr.bf16.mxu0 0
      %560 = vmatpush1.bf16.msra.mxu0 0
      %561 = vmatprep.subr.bf16.mxu0 0
      %562 = vmatpush1.bf16.msra.mxu0 0
      %563 = vmatprep.subr.bf16.mxu0 0
      %564 = vmatpush1.bf16.msra.mxu0 0
      %565 = vmatprep.subr.bf16.mxu0 0
      %566 = vmatpush1.bf16.msra.mxu0 0
      %567 = vmatprep.subr.bf16.mxu0 0
      %568 = vmatpush1.bf16.msra.mxu0 0
      %569 = vmatprep.subr.bf16.mxu0 0
      %570 = vmatpush1.bf16.msra.mxu0 0
      %571 = vmatprep.subr.bf16.mxu0 0
      %572 = vmatpush1.bf16.msra.mxu0 0
      %573 = vmatprep.subr.bf16.mxu0 0
      %574 = vmatpush1.bf16.msra.mxu0 0
      %575 = vmatprep.subr.bf16.mxu0 0
      %576 = vmatpush1.bf16.msra.mxu0 0
      %577 = vmatprep.subr.bf16.mxu0 0
      %578 = vmatpush1.bf16.msra.mxu0 0
      %579 = vmatprep.subr.bf16.mxu0 0
      %580 = vmatpush1.bf16.msra.mxu0 0
      %581 = vmatprep.subr.bf16.mxu0 0
      %582 = vmatpush1.bf16.msra.mxu0 0
      %583 = vmatprep.subr.bf16.mxu0 0
      %584 = vmatpush1.bf16.msra.mxu0 0
      %585 = vmatprep.subr.bf16.mxu0 0
      %586 = vmatpush1.bf16.msra.mxu0 0
      %587 = vmatprep.mubr.bf16.mxu0 0
      %588 = vmatmul.mubr.bf16.gmra.mrb[0].mxu0 %v550
      %v589 = vpop.f32.mrb[0].mxu0
      %v590 = vadd.f32 0.0, %v589
      %v591 = vpop.f32.mrb[0].mxu0
      %v592 = vpop.f32.mrb[0].mxu0
      %v593 = vpop.f32.mrb[0].mxu0
      %594 = vdwg.mxu0
      %v595 = vpack.c.bf16 %v590, %v590
      %v596 = vpack.c.bf16 %v353, %v353
      %v598 = vsel %vm358, %v595, 0
      %vm600 = vcmask 1043456
      %v602 = vsel %vm600, %v596, 0
      %604 = vmatprep.subr.bf16.mxu0 0
      %605 = vmatpush1.bf16.msra.mxu0 %v602
      %606 = vmatprep.subr.bf16.mxu0 0
      %607 = vmatpush1.bf16.msra.mxu0 0
      %608 = vmatprep.subr.bf16.mxu0 0
      %609 = vmatpush1.bf16.msra.mxu0 0
      %610 = vmatprep.subr.bf16.mxu0 0
      %611 = vmatpush1.bf16.msra.mxu0 0
      %612 = vmatprep.subr.bf16.mxu0 0
      %613 = vmatpush1.bf16.msra.mxu0 0
      %614 = vmatprep.subr.bf16.mxu0 0
      %615 = vmatpush1.bf16.msra.mxu0 0
      %616 = vmatprep.subr.bf16.mxu0 0
      %617 = vmatpush1.bf16.msra.mxu0 0
      %618 = vmatprep.subr.bf16.mxu0 0
      %619 = vmatpush1.bf16.msra.mxu0 0
      %620 = vmatprep.subr.bf16.mxu0 0
      %621 = vmatpush1.bf16.msra.mxu0 0
      %622 = vmatprep.subr.bf16.mxu0 0
      %623 = vmatpush1.bf16.msra.mxu0 0
      %624 = vmatprep.subr.bf16.mxu0 0
      %625 = vmatpush1.bf16.msra.mxu0 0
      %626 = vmatprep.subr.bf16.mxu0 0
      %627 = vmatpush1.bf16.msra.mxu0 0
      %628 = vmatprep.subr.bf16.mxu0 0
      %629 = vmatpush1.bf16.msra.mxu0 0
      %630 = vmatprep.subr.bf16.mxu0 0
      %631 = vmatpush1.bf16.msra.mxu0 0
      %632 = vmatprep.subr.bf16.mxu0 0
      %633 = vmatpush1.bf16.msra.mxu0 0
      %634 = vmatprep.subr.bf16.mxu0 0
      %635 = vmatpush1.bf16.msra.mxu0 0
      %636 = vmatprep.mubr.bf16.mxu0 0
      %637 = vmatmul.mubr.bf16.gmra.mrb[0].mxu0 %v598
      %v638 = vpop.f32.mrb[0].mxu0
      %v639 = vadd.f32 0.0, %v638
      %v640 = vpop.f32.mrb[0].mxu0
      %v641 = vpop.f32.mrb[0].mxu0
      %v642 = vpop.f32.mrb[0].mxu0
      %643 = vdwg.mxu0
      %v645 = vsel %vm358, %v478, 0
      %v648 = vsel %vm600, %v479, 0
      %650 = vmatprep.subr.bf16.mxu0 0
      %651 = vmatpush1.bf16.msra.mxu0 %v648
      %652 = vmatprep.subr.bf16.mxu0 0
      %653 = vmatpush1.bf16.msra.mxu0 0
      %654 = vmatprep.subr.bf16.mxu0 0
      %655 = vmatpush1.bf16.msra.mxu0 0
      %656 = vmatprep.subr.bf16.mxu0 0
      %657 = vmatpush1.bf16.msra.mxu0 0
      %658 = vmatprep.subr.bf16.mxu0 0
      %659 = vmatpush1.bf16.msra.mxu0 0
      %660 = vmatprep.subr.bf16.mxu0 0
      %661 = vmatpush1.bf16.msra.mxu0 0
      %662 = vmatprep.subr.bf16.mxu0 0
      %663 = vmatpush1.bf16.msra.mxu0 0
      %664 = vmatprep.subr.bf16.mxu0 0
      %665 = vmatpush1.bf16.msra.mxu0 0
      %666 = vmatprep.subr.bf16.mxu0 0
      %667 = vmatpush1.bf16.msra.mxu0 0
      %668 = vmatprep.subr.bf16.mxu0 0
      %669 = vmatpush1.bf16.msra.mxu0 0
      %670 = vmatprep.subr.bf16.mxu0 0
      %671 = vmatpush1.bf16.msra.mxu0 0
      %672 = vmatprep.subr.bf16.mxu0 0
      %673 = vmatpush1.bf16.msra.mxu0 0
      %674 = vmatprep.subr.bf16.mxu0 0
      %675 = vmatpush1.bf16.msra.mxu0 0
      %676 = vmatprep.subr.bf16.mxu0 0
      %677 = vmatpush1.bf16.msra.mxu0 0
      %678 = vmatprep.subr.bf16.mxu0 0
      %679 = vmatpush1.bf16.msra.mxu0 0
      %680 = vmatprep.subr.bf16.mxu0 0
      %681 = vmatpush1.bf16.msra.mxu0 0
      %682 = vmatprep.mubr.bf16.mxu0 0
      %683 = vmatmul.mubr.bf16.gmra.mrb[0].mxu0 %v645
      %v684 = vpop.f32.mrb[0].mxu0
      %v685 = vadd.f32 %v639, %v684
      %v686 = vpop.f32.mrb[0].mxu0
      %v687 = vpop.f32.mrb[0].mxu0
      %v688 = vpop.f32.mrb[0].mxu0
      %689 = vdwg.mxu0
      %690 = vrot.lane.b32.xlu0 %v356, 112
      %v691 = vpop.permute.xlu0 %690
      %692 = vrot.lane.b32.xlu0 %v357, 112
      %v693 = vpop.permute.xlu0 %692
      %v695 = vsel %vm358, %v691, 0
      %v698 = vsel %vm358, %v693, 0
      %700 = vmatprep.subr.bf16.mxu0 0
      %701 = vmatpush1.bf16.xpose.msra.mxu0 %v698
      %702 = vmatprep.subr.bf16.mxu0 0
      %703 = vmatpush1.bf16.xpose.msra.mxu0 0
      %704 = vmatprep.subr.bf16.mxu0 0
      %705 = vmatpush1.bf16.xpose.msra.mxu0 0
      %706 = vmatprep.subr.bf16.mxu0 0
      %707 = vmatpush1.bf16.xpose.msra.mxu0 0
      %708 = vmatprep.subr.bf16.mxu0 0
      %709 = vmatpush1.bf16.xpose.msra.mxu0 0
      %710 = vmatprep.subr.bf16.mxu0 0
      %711 = vmatpush1.bf16.xpose.msra.mxu0 0
      %712 = vmatprep.subr.bf16.mxu0 0
      %713 = vmatpush1.bf16.xpose.msra.mxu0 0
      %714 = vmatprep.subr.bf16.mxu0 0
      %715 = vmatpush1.bf16.xpose.msra.mxu0 0
      %716 = vmatprep.subr.bf16.mxu0 0
      %717 = vmatpush1.bf16.xpose.msra.mxu0 0
      %718 = vmatprep.subr.bf16.mxu0 0
      %719 = vmatpush1.bf16.xpose.msra.mxu0 0
      %720 = vmatprep.subr.bf16.mxu0 0
      %721 = vmatpush1.bf16.xpose.msra.mxu0 0
      %722 = vmatprep.subr.bf16.mxu0 0
      %723 = vmatpush1.bf16.xpose.msra.mxu0 0
      %724 = vmatprep.subr.bf16.mxu0 0
      %725 = vmatpush1.bf16.xpose.msra.mxu0 0
      %726 = vmatprep.subr.bf16.mxu0 0
      %727 = vmatpush1.bf16.xpose.msra.mxu0 0
      %728 = vmatprep.subr.bf16.mxu0 0
      %729 = vmatpush1.bf16.xpose.msra.mxu0 0
      %730 = vmatprep.subr.bf16.mxu0 0
      %731 = vmatpush1.bf16.xpose.msra.mxu0 0
      %732 = vmatprep.mubr.bf16.mxu0 0
      %733 = vmatmul.mubr.bf16.gmra.mrb[0].mxu0 %v695
      %v734 = vpop.f32.mrb[0].mxu0
      %v735 = vadd.f32 0.0, %v734
      %v736 = vpop.f32.mrb[0].mxu0
      %v737 = vpop.f32.mrb[0].mxu0
      %v738 = vpop.f32.mrb[0].mxu0
      %739 = vdwg.mxu0
      %v740 = vmul.f32 %v735, 0.35355338
      %v741 = vadd.f32 %v740, %v410
      %v742 = vsel %vm413, %v741, -inf
      %743 = vmax.xlane.f32.xlu0 %v742
      %v744 = vpop.xlane.xlu0 %743
      %v745 = vsub.f32 %v741, %v744
      %v746 = vmul.f32 %v745, 1.442695
      %v747 = vpow.pop %v746
      %v748 = vsel %vm413, %v747, 0.0
      %749 = vadd.xlane.f32.xlu0 %v748
      %v750 = vpop.xlane.xlu0 %749
      %v751 = vrcp.pop %v750
      %v752 = vmul.f32 %v747, %v751
      %v753 = vpack.c.bf16 %v752, %v752
      %754 = vrot.lane.b32.xlu0 %v426, 112
      %v755 = vpop.permute.xlu0 %754
      %v757 = vsel %vm427, %v753, 0
      %v760 = vand.u32 %v755, %v434
      %762 = vmatprep.subr.bf16.mxu0 0
      %763 = vmatpush1.bf16.msra.mxu0 %v760
      %764 = vmatprep.subr.bf16.mxu0 0
      %765 = vmatpush1.bf16.msra.mxu0 0
      %766 = vmatprep.subr.bf16.mxu0 0
      %767 = vmatpush1.bf16.msra.mxu0 0
      %768 = vmatprep.subr.bf16.mxu0 0
      %769 = vmatpush1.bf16.msra.mxu0 0
      %770 = vmatprep.subr.bf16.mxu0 0
      %771 = vmatpush1.bf16.msra.mxu0 0
      %772 = vmatprep.subr.bf16.mxu0 0
      %773 = vmatpush1.bf16.msra.mxu0 0
      %774 = vmatprep.subr.bf16.mxu0 0
      %775 = vmatpush1.bf16.msra.mxu0 0
      %776 = vmatprep.subr.bf16.mxu0 0
      %777 = vmatpush1.bf16.msra.mxu0 0
      %778 = vmatprep.subr.bf16.mxu0 0
      %779 = vmatpush1.bf16.msra.mxu0 0
      %780 = vmatprep.subr.bf16.mxu0 0
      %781 = vmatpush1.bf16.msra.mxu0 0
      %782 = vmatprep.subr.bf16.mxu0 0
      %783 = vmatpush1.bf16.msra.mxu0 0
      %784 = vmatprep.subr.bf16.mxu0 0
      %785 = vmatpush1.bf16.msra.mxu0 0
      %786 = vmatprep.subr.bf16.mxu0 0
      %787 = vmatpush1.bf16.msra.mxu0 0
      %788 = vmatprep.subr.bf16.mxu0 0
      %789 = vmatpush1.bf16.msra.mxu0 0
      %790 = vmatprep.subr.bf16.mxu0 0
      %791 = vmatpush1.bf16.msra.mxu0 0
      %792 = vmatprep.subr.bf16.mxu0 0
      %793 = vmatpush1.bf16.msra.mxu0 0
      %794 = vmatprep.mubr.bf16.mxu0 0
      %795 = vmatmul.mubr.bf16.gmra.mrb[0].mxu0 %v757
      %v796 = vpop.f32.mrb[0].mxu0
      %v797 = vadd.f32 0.0, %v796
      %v798 = vpop.f32.mrb[0].mxu0
      %v799 = vpop.f32.mrb[0].mxu0
      %v800 = vpop.f32.mrb[0].mxu0
      %801 = vdwg.mxu0
      %v802 = vpack.c.bf16 %v797, %v797
      %v803 = vpack.c.bf16 %v354, %v354
      %v805 = vsel %vm358, %v802, 0
      %v808 = vsel %vm600, %v803, 0
      %810 = vmatprep.subr.bf16.mxu0 0
      %811 = vmatpush1.bf16.msra.mxu0 %v808
      %812 = vmatprep.subr.bf16.mxu0 0
      %813 = vmatpush1.bf16.msra.mxu0 0
      %814 = vmatprep.subr.bf16.mxu0 0
      %815 = vmatpush1.bf16.msra.mxu0 0
      %816 = vmatprep.subr.bf16.mxu0 0
      %817 = vmatpush1.bf16.msra.mxu0 0
      %818 = vmatprep.subr.bf16.mxu0 0
      %819 = vmatpush1.bf16.msra.mxu0 0
      %820 = vmatprep.subr.bf16.mxu0 0
      %821 = vmatpush1.bf16.msra.mxu0 0
      %822 = vmatprep.subr.bf16.mxu0 0
      %823 = vmatpush1.bf16.msra.mxu0 0
      %824 = vmatprep.subr.bf16.mxu0 0
      %825 = vmatpush1.bf16.msra.mxu0 0
      %826 = vmatprep.subr.bf16.mxu0 0
      %827 = vmatpush1.bf16.msra.mxu0 0
      %828 = vmatprep.subr.bf16.mxu0 0
      %829 = vmatpush1.bf16.msra.mxu0 0
      %830 = vmatprep.subr.bf16.mxu0 0
      %831 = vmatpush1.bf16.msra.mxu0 0
      %832 = vmatprep.subr.bf16.mxu0 0
      %833 = vmatpush1.bf16.msra.mxu0 0
      %834 = vmatprep.subr.bf16.mxu0 0
      %835 = vmatpush1.bf16.msra.mxu0 0
      %836 = vmatprep.subr.bf16.mxu0 0
      %837 = vmatpush1.bf16.msra.mxu0 0
      %838 = vmatprep.subr.bf16.mxu0 0
      %839 = vmatpush1.bf16.msra.mxu0 0
      %840 = vmatprep.subr.bf16.mxu0 0
      %841 = vmatpush1.bf16.msra.mxu0 0
      %842 = vmatprep.mubr.bf16.mxu0 0
      %843 = vmatmul.mubr.bf16.gmra.mrb[0].mxu0 %v805
      %v844 = vpop.f32.mrb[0].mxu0
      %v845 = vadd.f32 0.0, %v844
      %v846 = vpop.f32.mrb[0].mxu0
      %v847 = vpop.f32.mrb[0].mxu0
      %v848 = vpop.f32.mrb[0].mxu0
      %849 = vdwg.mxu0
      %v850 = vadd.f32 %v685, %v845
      %851 = vrot.lane.b32.xlu0 %v356, 104
      %v852 = vpop.permute.xlu0 %851
      %853 = vrot.lane.b32.xlu0 %v357, 104
      %v854 = vpop.permute.xlu0 %853
      %v856 = vsel %vm358, %v852, 0
      %v859 = vsel %vm358, %v854, 0
      %861 = vmatprep.subr.bf16.mxu0 0
      %862 = vmatpush1.bf16.xpose.msra.mxu0 %v859
      %863 = vmatprep.subr.bf16.mxu0 0
      %864 = vmatpush1.bf16.xpose.msra.mxu0 0
      %865 = vmatprep.subr.bf16.mxu0 0
      %866 = vmatpush1.bf16.xpose.msra.mxu0 0
      %867 = vmatprep.subr.bf16.mxu0 0
      %868 = vmatpush1.bf16.xpose.msra.mxu0 0
      %869 = vmatprep.subr.bf16.mxu0 0
      %870 = vmatpush1.bf16.xpose.msra.mxu0 0
      %871 = vmatprep.subr.bf16.mxu0 0
      %872 = vmatpush1.bf16.xpose.msra.mxu0 0
      %873 = vmatprep.subr.bf16.mxu0 0
      %874 = vmatpush1.bf16.xpose.msra.mxu0 0
      %875 = vmatprep.subr.bf16.mxu0 0
      %876 = vmatpush1.bf16.xpose.msra.mxu0 0
      %877 = vmatprep.subr.bf16.mxu0 0
      %878 = vmatpush1.bf16.xpose.msra.mxu0 0
      %879 = vmatprep.subr.bf16.mxu0 0
      %880 = vmatpush1.bf16.xpose.msra.mxu0 0
      %881 = vmatprep.subr.bf16.mxu0 0
      %882 = vmatpush1.bf16.xpose.msra.mxu0 0
      %883 = vmatprep.subr.bf16.mxu0 0
      %884 = vmatpush1.bf16.xpose.msra.mxu0 0
      %885 = vmatprep.subr.bf16.mxu0 0
      %886 = vmatpush1.bf16.xpose.msra.mxu0 0
      %887 = vmatprep.subr.bf16.mxu0 0
      %888 = vmatpush1.bf16.xpose.msra.mxu0 0
      %889 = vmatprep.subr.bf16.mxu0 0
      %890 = vmatpush1.bf16.xpose.msra.mxu0 0
      %891 = vmatprep.subr.bf16.mxu0 0
      %892 = vmatpush1.bf16.xpose.msra.mxu0 0
      %893 = vmatprep.mubr.bf16.mxu0 0
      %894 = vmatmul.mubr.bf16.gmra.mrb[0].mxu0 %v856
      %v895 = vpop.f32.mrb[0].mxu0
      %v896 = vadd.f32 0.0, %v895
      %v897 = vpop.f32.mrb[0].mxu0
      %v898 = vpop.f32.mrb[0].mxu0
      %v899 = vpop.f32.mrb[0].mxu0
      %900 = vdwg.mxu0
      %v901 = vmul.f32 %v896, 0.35355338
      %v902 = vadd.f32 %v901, %v410
      %v903 = vsel %vm413, %v902, -inf
      %904 = vmax.xlane.f32.xlu0 %v903
      %v905 = vpop.xlane.xlu0 %904
      %v906 = vsub.f32 %v902, %v905
      %v907 = vmul.f32 %v906, 1.442695
      %v908 = vpow.pop %v907
      %v909 = vsel %vm413, %v908, 0.0
      %910 = vadd.xlane.f32.xlu0 %v909
      %v911 = vpop.xlane.xlu0 %910
      %v912 = vrcp.pop %v911
      %v913 = vmul.f32 %v908, %v912
      %v914 = vpack.c.bf16 %v913, %v913
      %915 = vrot.lane.b32.xlu0 %v426, 104
      %v916 = vpop.permute.xlu0 %915
      %v918 = vsel %vm427, %v914, 0
      %v921 = vand.u32 %v916, %v434
      %923 = vmatprep.subr.bf16.mxu0 0
      %924 = vmatpush1.bf16.msra.mxu0 %v921
      %925 = vmatprep.subr.bf16.mxu0 0
      %926 = vmatpush1.bf16.msra.mxu0 0
      %927 = vmatprep.subr.bf16.mxu0 0
      %928 = vmatpush1.bf16.msra.mxu0 0
      %929 = vmatprep.subr.bf16.mxu0 0
      %930 = vmatpush1.bf16.msra.mxu0 0
      %931 = vmatprep.subr.bf16.mxu0 0
      %932 = vmatpush1.bf16.msra.mxu0 0
      %933 = vmatprep.subr.bf16.mxu0 0
      %934 = vmatpush1.bf16.msra.mxu0 0
      %935 = vmatprep.subr.bf16.mxu0 0
      %936 = vmatpush1.bf16.msra.mxu0 0
      %937 = vmatprep.subr.bf16.mxu0 0
      %938 = vmatpush1.bf16.msra.mxu0 0
      %939 = vmatprep.subr.bf16.mxu0 0
      %940 = vmatpush1.bf16.msra.mxu0 0
      %941 = vmatprep.subr.bf16.mxu0 0
      %942 = vmatpush1.bf16.msra.mxu0 0
      %943 = vmatprep.subr.bf16.mxu0 0
      %944 = vmatpush1.bf16.msra.mxu0 0
      %945 = vmatprep.subr.bf16.mxu0 0
      %946 = vmatpush1.bf16.msra.mxu0 0
      %947 = vmatprep.subr.bf16.mxu0 0
      %948 = vmatpush1.bf16.msra.mxu0 0
      %949 = vmatprep.subr.bf16.mxu0 0
      %950 = vmatpush1.bf16.msra.mxu0 0
      %951 = vmatprep.subr.bf16.mxu0 0
      %952 = vmatpush1.bf16.msra.mxu0 0
      %953 = vmatprep.subr.bf16.mxu0 0
      %954 = vmatpush1.bf16.msra.mxu0 0
      %955 = vmatprep.mubr.bf16.mxu0 0
      %956 = vmatmul.mubr.bf16.gmra.mrb[0].mxu0 %v918
      %v957 = vpop.f32.mrb[0].mxu0
      %v958 = vadd.f32 0.0, %v957
      %v959 = vpop.f32.mrb[0].mxu0
      %v960 = vpop.f32.mrb[0].mxu0
      %v961 = vpop.f32.mrb[0].mxu0
      %962 = vdwg.mxu0
      %v963 = vpack.c.bf16 %v958, %v958
      %v964 = vpack.c.bf16 %v355, %v355
      %v966 = vsel %vm358, %v963, 0
      %v969 = vsel %vm600, %v964, 0
      %971 = vmatprep.subr.bf16.mxu0 0
      %972 = vmatpush1.bf16.msra.mxu0 %v969
      %973 = vmatprep.subr.bf16.mxu0 0
      %974 = vmatpush1.bf16.msra.mxu0 0
      %975 = vmatprep.subr.bf16.mxu0 0
      %976 = vmatpush1.bf16.msra.mxu0 0
      %977 = vmatprep.subr.bf16.mxu0 0
      %978 = vmatpush1.bf16.msra.mxu0 0
      %979 = vmatprep.subr.bf16.mxu0 0
      %980 = vmatpush1.bf16.msra.mxu0 0
      %981 = vmatprep.subr.bf16.mxu0 0
      %982 = vmatpush1.bf16.msra.mxu0 0
      %983 = vmatprep.subr.bf16.mxu0 0
      %984 = vmatpush1.bf16.msra.mxu0 0
      %985 = vmatprep.subr.bf16.mxu0 0
      %986 = vmatpush1.bf16.msra.mxu0 0
      %987 = vmatprep.subr.bf16.mxu0 0
      %988 = vmatpush1.bf16.msra.mxu0 0
      %989 = vmatprep.subr.bf16.mxu0 0
      %990 = vmatpush1.bf16.msra.mxu0 0
      %991 = vmatprep.subr.bf16.mxu0 0
      %992 = vmatpush1.bf16.msra.mxu0 0
      %993 = vmatprep.subr.bf16.mxu0 0
      %994 = vmatpush1.bf16.msra.mxu0 0
      %995 = vmatprep.subr.bf16.mxu0 0
      %996 = vmatpush1.bf16.msra.mxu0 0
      %997 = vmatprep.subr.bf16.mxu0 0
      %998 = vmatpush1.bf16.msra.mxu0 0
      %999 = vmatprep.subr.bf16.mxu0 0
      %1000 = vmatpush1.bf16.msra.mxu0 0
      %1001 = vmatprep.subr.bf16.mxu0 0
      %1002 = vmatpush1.bf16.msra.mxu0 0
      %1003 = vmatprep.mubr.bf16.mxu0 0
      %1004 = vmatmul.mubr.bf16.gmra.mrb[0].mxu0 %v966
      %v1005 = vpop.f32.mrb[0].mxu0
      %v1006 = vadd.f32 0.0, %v1005
      %v1007 = vpop.f32.mrb[0].mxu0
      %v1008 = vpop.f32.mrb[0].mxu0
      %v1009 = vpop.f32.mrb[0].mxu0
      %1010 = vdwg.mxu0
      %v1011 = vadd.f32 %v850, %v1006
      %v1012 = vld [vmem:[%s340] sm:$0x1f]
      %v1013 = vadd.f32 %v1012, %v1011
      %v1014 = vld [vmem:[%s5] sm:$0x1]
      %v1016 = vlaneseq
      %v1017 = vshrl.u32 %v1016, 7
      %v1018 = vsub.s32 0, %v1017
      %v1019 = vrot.slane %v1014, %v1018
      %v1021 = vadd.f32 %v1013, %v1019
      %vm1022 = vcmask 258048
      %1023 = vst.msk [vmem:[%s344] sm:$0x1f] %vm1022, %v1021
      %p1024 = scmp.lt.s32.totalorder %s18, 9
      %s1025 = scalar_select %p1024, %s18, 9
      %s1026 = smul.addr %s1025, 8
      %s1027 = scalar_lea.vmem %s7, %s1026
      // Predicated region
      $region49: #{model_forward.17} parent=47 // pred_check
        %p1028 = pneg %p208
      $region50: #{model_forward.17} parent=47 // pred_check_branch
        %1030 = sbr.rel (%p1028) target = $region52
      $region51: #{model_forward.17} parent=47 // pred_region
        _
      $region52: #{model_forward.17} parent=47 // pred_fallthru
        _
    $region48: #{model_forward.17} parent=5 // pred_fallthru
      _
    %p1031 = scmp.le.s32.totalorder 2, %s13
    // Predicated region
    $region53: #{model_forward.17} parent=5 // pred_check
      %p1032 = pneg %p1031
    $region54: #{model_forward.17} parent=5 // pred_check_branch
      %1034 = sbr.rel (%p1032) target = $region56
    $region55: #{model_forward.17} parent=5 // pred_region
      %s1035 = ssub.s32 %s13, 2
      // Predicated region
      $region57: #{model_forward.17} parent=55 // pred_check
        %p1036 = pneg %p214
      $region58: #{model_forward.17} parent=55 // pred_check_branch
        %1038 = sbr.rel (%p1036) target = $region60
      $region59: #{model_forward.17} parent=55 // pred_region
        %p1039 = scmp.lt.s32.totalorder %s19, 9
        %s1040 = scalar_select %p1039, %s19, 9
        %s1041 = smul.addr %s1040, 8
        %s1042 = scalar_lea.vmem %s7, %s1041
      $region60: #{model_forward.17} parent=55 // pred_fallthru
        _
    $region56: #{model_forward.17} parent=5 // pred_fallthru
      _
  $region6: #{model_forward.17} parent=0 // loop_footer
    %s17 = sadd.s32 1, %s13
  $region7: #{model_forward.17} parent=0 // loop_footer_branch
    %12 = sbr.rel target = $region3
  $region8: #{model_forward.17} parent=0 // loop_exit
    _

// kernel: model_forward.19
$region0: #{model_forward.19}
  #allocation0 [shape = 'u32[]', space=smem, size = 0x4, offset = 0x4, fixed_abs, tag = 'smem constant byte address 0x4 - core index']
  #allocation1 [shape = 'u32[144,128]{1,0:T(1,128)}', space=vmem, size = 0x12000, scoped, tag = 'internal scratch']
  %s0 = inlined_call_operand.vmem [shape: f32[56,32], index: 0, kind: input, shape index: {}]
  %s1 = inlined_call_operand.vmem [shape: f32[1,32], index: 1, kind: input, shape index: {}]
  %s2 = inlined_call_operand.vmem [shape: f32[1,32], index: 2, kind: input, shape index: {}]
  %s3 = inlined_call_operand.vmem [shape: bf16[32,64], index: 3, kind: input, shape index: {}]
  %s4 = inlined_call_operand.vmem [shape: f32[1,64], index: 4, kind: input, shape index: {}]
  %s5 = inlined_call_operand.vmem [shape: bf16[64,32], index: 5, kind: input, shape index: {}]
  %s6 = inlined_call_operand.vmem [shape: f32[1,32], index: 6, kind: input, shape index: {}]
  %s7 = inlined_call_operand.vmem [shape: f32[1,32], index: 7, kind: input, shape index: {}]
  %s8 = inlined_call_operand.vmem [shape: f32[1,32], index: 8, kind: input, shape index: {}]
  %s9 = inlined_call_operand.vmem [shape: f32[56,32], index: 9, kind: output, shape index: {}]
  %s10 = sld [smem:[#allocation0]]
  $region46: #{model_forward.19} parent=0
    _
  %s12 = ssub.s32 1, %s10
  %s13 = scalar_select 0, %s12, %s10
  // Predicated region
  $region2: #{model_forward.19} parent=0 // pred_check
    _
  $region3: #{model_forward.19} parent=0 // pred_check_branch
    %15 = sbr.rel (0) target = $region5
  $region4: #{model_forward.19} parent=0 // pred_region
    _
  $region5: #{model_forward.19} parent=0 // pred_fallthru
    _
  // Predicated region
  $region6: #{model_forward.19} parent=0 // pred_check
    _
  $region7: #{model_forward.19} parent=0 // pred_check_branch
    %17 = sbr.rel (0) target = $region9
  $region8: #{model_forward.19} parent=0 // pred_region
    _
  $region9: #{model_forward.19} parent=0 // pred_fallthru
    _
  // Predicated region
  $region10: #{model_forward.19} parent=0 // pred_check
    _
  $region11: #{model_forward.19} parent=0 // pred_check_branch
    %19 = sbr.rel (0) target = $region13
  $region12: #{model_forward.19} parent=0 // pred_region
    _
  $region13: #{model_forward.19} parent=0 // pred_fallthru
    _
  // Predicated region
  $region14: #{model_forward.19} parent=0 // pred_check
    _
  $region15: #{model_forward.19} parent=0 // pred_check_branch
    %21 = sbr.rel (0) target = $region17
  $region16: #{model_forward.19} parent=0 // pred_region
    _
  $region17: #{model_forward.19} parent=0 // pred_fallthru
    _
  // Predicated region
  $region18: #{model_forward.19} parent=0 // pred_check
    _
  $region19: #{model_forward.19} parent=0 // pred_check_branch
    %23 = sbr.rel (0) target = $region21
  $region20: #{model_forward.19} parent=0 // pred_region
    _
  $region21: #{model_forward.19} parent=0 // pred_fallthru
    _
  // Predicated region
  $region22: #{model_forward.19} parent=0 // pred_check
    _
  $region23: #{model_forward.19} parent=0 // pred_check_branch
    %25 = sbr.rel (0) target = $region25
  $region24: #{model_forward.19} parent=0 // pred_region
    _
  $region25: #{model_forward.19} parent=0 // pred_fallthru
    _
  // Predicated region
  $region26: #{model_forward.19} parent=0 // pred_check
    _
  $region27: #{model_forward.19} parent=0 // pred_check_branch
    %27 = sbr.rel (0) target = $region29
  $region28: #{model_forward.19} parent=0 // pred_region
    _
  $region29: #{model_forward.19} parent=0 // pred_fallthru
    _
  // Predicated region
  $region30: #{model_forward.19} parent=0 // pred_check
    _
  $region31: #{model_forward.19} parent=0 // pred_check_branch
    %29 = sbr.rel (0) target = $region33
  $region32: #{model_forward.19} parent=0 // pred_region
    _
  $region33: #{model_forward.19} parent=0 // pred_fallthru
    _
  // Predicated region
  $region34: #{model_forward.19} parent=0 // pred_check
    _
  $region35: #{model_forward.19} parent=0 // pred_check_branch
    %31 = sbr.rel (0) target = $region37
  $region36: #{model_forward.19} parent=0 // pred_region
    _
  $region37: #{model_forward.19} parent=0 // pred_fallthru
    _
  %v33 = vld [vmem:[%s0] sm:$0xff]
  %v34 = vld [vmem:[%s0 + $0x8] sm:$0xff]
  %v35 = vld [vmem:[%s0 + $0x10] sm:$0xff]
  %v36 = vld [vmem:[%s0 + $0x18] sm:$0xff]
  %v37 = vld [vmem:[%s0 + $0x20] sm:$0xff]
  %v38 = vld [vmem:[%s0 + $0x28] sm:$0xff]
  %v39 = vld [vmem:[%s0 + $0x30] sm:$0xff]
  %v40 = vld [vmem:[%s1] sm:$0x1]
  %v41 = vld [vmem:[%s2] sm:$0x1]
  %vm42 = vcmask 261120
  %v43 = vsel %vm42, %v33, 0.0
  %44 = vadd.xlane.f32.xlu0 %v43
  %v45 = vpop.xlane.xlu0 %44
  %v46 = vsel %vm42, %v34, 0.0
  %47 = vadd.xlane.f32.xlu0 %v46
  %v48 = vpop.xlane.xlu0 %47
  %v49 = vsel %vm42, %v35, 0.0
  %50 = vadd.xlane.f32.xlu0 %v49
  %v51 = vpop.xlane.xlu0 %50
  %v52 = vsel %vm42, %v36, 0.0
  %53 = vadd.xlane.f32.xlu0 %v52
  %v54 = vpop.xlane.xlu0 %53
  %v55 = vsel %vm42, %v37, 0.0
  %56 = vadd.xlane.f32.xlu0 %v55
  %v57 = vpop.xlane.xlu0 %56
  %v58 = vsel %vm42, %v38, 0.0
  %59 = vadd.xlane.f32.xlu0 %v58
  %v60 = vpop.xlane.xlu0 %59
  %v61 = vsel %vm42, %v39, 0.0
  %62 = vadd.xlane.f32.xlu0 %v61
  %v63 = vpop.xlane.xlu0 %62
  %v64 = vrcp.pop 32.0
  %v65 = vmul.f32 %v45, %v64
  %v66 = vmul.f32 %v48, %v64
  %v67 = vmul.f32 %v51, %v64
  %v68 = vmul.f32 %v54, %v64
  %v69 = vmul.f32 %v57, %v64
  %v70 = vmul.f32 %v60, %v64
  %v71 = vmul.f32 %v63, %v64
  %v72 = vsub.f32 %v33, %v65
  %v73 = vsub.f32 %v34, %v66
  %v74 = vsub.f32 %v35, %v67
  %v75 = vsub.f32 %v36, %v68
  %v76 = vsub.f32 %v37, %v69
  %v77 = vsub.f32 %v38, %v70
  %v78 = vsub.f32 %v39, %v71
  %v79 = vmul.f32 %v72, %v72
  %v80 = vmul.f32 %v73, %v73
  %v81 = vmul.f32 %v74, %v74
  %v82 = vmul.f32 %v75, %v75
  %v83 = vmul.f32 %v76, %v76
  %v84 = vmul.f32 %v77, %v77
  %v85 = vmul.f32 %v78, %v78
  %v86 = vsel %vm42, %v79, 0.0
  %87 = vadd.xlane.f32.xlu0 %v86
  %v88 = vpop.xlane.xlu0 %87
  %v89 = vsel %vm42, %v80, 0.0
  %90 = vadd.xlane.f32.xlu0 %v89
  %v91 = vpop.xlane.xlu0 %90
  %v92 = vsel %vm42, %v81, 0.0
  %93 = vadd.xlane.f32.xlu0 %v92
  %v94 = vpop.xlane.xlu0 %93
  %v95 = vsel %vm42, %v82, 0.0
  %96 = vadd.xlane.f32.xlu0 %v95
  %v97 = vpop.xlane.xlu0 %96
  %v98 = vsel %vm42, %v83, 0.0
  %99 = vadd.xlane.f32.xlu0 %v98
  %v100 = vpop.xlane.xlu0 %99
  %v101 = vsel %vm42, %v84, 0.0
  %102 = vadd.xlane.f32.xlu0 %v101
  %v103 = vpop.xlane.xlu0 %102
  %v104 = vsel %vm42, %v85, 0.0
  %105 = vadd.xlane.f32.xlu0 %v104
  %v106 = vpop.xlane.xlu0 %105
  %v107 = vmul.f32 %v88, %v64
  %v108 = vmul.f32 %v91, %v64
  %v109 = vmul.f32 %v94, %v64
  %v110 = vmul.f32 %v97, %v64
  %v111 = vmul.f32 %v100, %v64
  %v112 = vmul.f32 %v103, %v64
  %v113 = vmul.f32 %v106, %v64
  %v114 = vadd.f32 %v107, 1e-05
  %v115 = vadd.f32 %v108, 1e-05
  %v116 = vadd.f32 %v109, 1e-05
  %v117 = vadd.f32 %v110, 1e-05
  %v118 = vadd.f32 %v111, 1e-05
  %v119 = vadd.f32 %v112, 1e-05
  %v120 = vadd.f32 %v113, 1e-05
  %v121 = vrsqrt.pop %v114
  %v122 = vrsqrt.pop %v115
  %v123 = vrsqrt.pop %v116
  %v124 = vrsqrt.pop %v117
  %v125 = vrsqrt.pop %v118
  %v126 = vrsqrt.pop %v119
  %v127 = vrsqrt.pop %v120
  %v128 = vmul.f32 %v72, %v121
  %v129 = vmul.f32 %v73, %v122
  %v130 = vmul.f32 %v74, %v123
  %v131 = vmul.f32 %v75, %v124
  %v132 = vmul.f32 %v76, %v125
  %v133 = vmul.f32 %v77, %v126
  %v134 = vmul.f32 %v78, %v127
  %v136 = vlaneseq
  %v137 = vshrl.u32 %v136, 7
  %v138 = vsub.s32 0, %v137
  %v139 = vrot.slane %v40, %v138
  %v141 = vmul.f32 %v128, %v139
  %v142 = vmul.f32 %v129, %v139
  %v143 = vmul.f32 %v130, %v139
  %v144 = vmul.f32 %v131, %v139
  %v145 = vmul.f32 %v132, %v139
  %v146 = vmul.f32 %v133, %v139
  %v147 = vmul.f32 %v134, %v139
  %v149 = vlaneseq
  %v150 = vshrl.u32 %v149, 7
  %v151 = vsub.s32 0, %v150
  %v152 = vrot.slane %v41, %v151
  %v154 = vadd.f32 %v141, %v152
  %v155 = vadd.f32 %v142, %v152
  %v156 = vadd.f32 %v143, %v152
  %v157 = vadd.f32 %v144, %v152
  %v158 = vadd.f32 %v145, %v152
  %v159 = vadd.f32 %v146, %v152
  %v160 = vadd.f32 %v147, %v152
  %v161 = vpack.c.bf16 %v155, %v154
  %v162 = vpack.c.bf16 %v157, %v156
  %v163 = vpack.c.bf16 %v159, %v158
  %v164 = vpack.c.bf16 %v160, %v160
  %v165 = vld [vmem:[%s3] sm:$0xf]
  %v166 = vld [vmem:[%s3 + $0x4] sm:$0xf]
  %v167 = vld [vmem:[%s3 + $0x8] sm:$0xf]
  %v168 = vld [vmem:[%s3 + $0xc] sm:$0xf]
  %v169 = vld [vmem:[%s4] sm:$0x1]
  %v171 = vlaneseq
  %v172 = vshrl.u32 %v171, 7
  %v173 = vsub.s32 0, %v172
  %v174 = vrot.slane %v169, %v173
  %v180 = vunpack.c.l.b16 %v165
  %v181 = vunpack.c.l.b16 %v166
  %v182 = vunpack.c.l.b16 %v167
  %v183 = vunpack.c.l.b16 %v168
  %v184 = vpack.c.b16 %v181, %v180
  %v185 = vpack.c.b16 %v183, %v182
  %v189 = vsel %vm42, %v161, 0
  %v192 = vsel %vm42, %v162, 0
  %v195 = vsel %vm42, %v163, 0
  %v198 = vsel %vm42, %v164, 0
  %200 = vmatprep.subr.bf16.mxu0 0
  %201 = vmatpush1.bf16.msra.mxu0 %v184
  %202 = vmatprep.subr.bf16.mxu0 0
  %203 = vmatpush1.bf16.msra.mxu0 %v185
  %204 = vmatprep.subr.bf16.mxu0 0
  %205 = vmatpush1.bf16.msra.mxu0 0
  %206 = vmatprep.subr.bf16.mxu0 0
  %207 = vmatpush1.bf16.msra.mxu0 0
  %208 = vmatprep.subr.bf16.mxu0 0
  %209 = vmatpush1.bf16.msra.mxu0 0
  %210 = vmatprep.subr.bf16.mxu0 0
  %211 = vmatpush1.bf16.msra.mxu0 0
  %212 = vmatprep.subr.bf16.mxu0 0
  %213 = vmatpush1.bf16.msra.mxu0 0
  %214 = vmatprep.subr.bf16.mxu0 0
  %215 = vmatpush1.bf16.msra.mxu0 0
  %216 = vmatprep.subr.bf16.mxu0 0
  %217 = vmatpush1.bf16.msra.mxu0 0
  %218 = vmatprep.subr.bf16.mxu0 0
  %219 = vmatpush1.bf16.msra.mxu0 0
  %220 = vmatprep.subr.bf16.mxu0 0
  %221 = vmatpush1.bf16.msra.mxu0 0
  %222 = vmatprep.subr.bf16.mxu0 0
  %223 = vmatpush1.bf16.msra.mxu0 0
  %224 = vmatprep.subr.bf16.mxu0 0
  %225 = vmatpush1.bf16.msra.mxu0 0
  %226 = vmatprep.subr.bf16.mxu0 0
  %227 = vmatpush1.bf16.msra.mxu0 0
  %228 = vmatprep.subr.bf16.mxu0 0
  %229 = vmatpush1.bf16.msra.mxu0 0
  %230 = vmatprep.subr.bf16.mxu0 0
  %231 = vmatpush1.bf16.msra.mxu0 0
  %232 = vmatprep.mubr.bf16.mxu0 0
  %233 = vmatmul.mubr.bf16.gmra.mrb[0].mxu0 %v189
  %v234 = vpop.f32.mrb[0].mxu0
  %v235 = vadd.f32 %v174, %v234
  %v236 = vpop.f32.mrb[0].mxu0
  %v237 = vpop.f32.mrb[0].mxu0
  %v238 = vadd.f32 %v174, %v237
  %v239 = vpop.f32.mrb[0].mxu0
  %240 = vmatprep.mubr.bf16.mxu0 0
  %241 = vmatmul.mubr.bf16.gmra.mrb[0].mxu0 %v192
  %v242 = vpop.f32.mrb[0].mxu0
  %v243 = vadd.f32 %v174, %v242
  %v244 = vpop.f32.mrb[0].mxu0
  %v245 = vpop.f32.mrb[0].mxu0
  %v246 = vadd.f32 %v174, %v245
  %v247 = vpop.f32.mrb[0].mxu0
  %248 = vmatprep.mubr.bf16.mxu0 0
  %249 = vmatmul.mubr.bf16.gmra.mrb[0].mxu0 %v195
  %v250 = vpop.f32.mrb[0].mxu0
  %v251 = vadd.f32 %v174, %v250
  %v252 = vpop.f32.mrb[0].mxu0
  %v253 = vpop.f32.mrb[0].mxu0
  %v254 = vadd.f32 %v174, %v253
  %v255 = vpop.f32.mrb[0].mxu0
  %256 = vmatprep.mubr.bf16.mxu0 0
  %257 = vmatmul.mubr.bf16.gmra.mrb[0].mxu0 %v198
  %v258 = vpop.f32.mrb[0].mxu0
  %v259 = vadd.f32 %v174, %v258
  %v260 = vpop.f32.mrb[0].mxu0
  %v261 = vpop.f32.mrb[0].mxu0
  %v262 = vpop.f32.mrb[0].mxu0
  %263 = vdwg.mxu0
  %v264 = vsub.f32 0.0, %v235
  %v265 = vsub.f32 0.0, %v238
  %v266 = vsub.f32 0.0, %v243
  %v267 = vsub.f32 0.0, %v246
  %v268 = vsub.f32 0.0, %v251
  %v269 = vsub.f32 0.0, %v254
  %v270 = vsub.f32 0.0, %v259
  %v271 = vmul.f32 %v264, 1.442695
  %v272 = vpow.pop %v271
  %v273 = vmul.f32 %v265, 1.442695
  %v274 = vpow.pop %v273
  %v275 = vmul.f32 %v266, 1.442695
  %v276 = vpow.pop %v275
  %v277 = vmul.f32 %v267, 1.442695
  %v278 = vpow.pop %v277
  %v279 = vmul.f32 %v268, 1.442695
  %v280 = vpow.pop %v279
  %v281 = vmul.f32 %v269, 1.442695
  %v282 = vpow.pop %v281
  %v283 = vmul.f32 %v270, 1.442695
  %v284 = vpow.pop %v283
  %v285 = vadd.f32 %v272, 1.0
  %v286 = vadd.f32 %v274, 1.0
  %v287 = vadd.f32 %v276, 1.0
  %v288 = vadd.f32 %v278, 1.0
  %v289 = vadd.f32 %v280, 1.0
  %v290 = vadd.f32 %v282, 1.0
  %v291 = vadd.f32 %v284, 1.0
  %v292 = vrcp.pop %v285
  %v293 = vmul.f32 1.0, %v292
  %v294 = vrcp.pop %v286
  %v295 = vmul.f32 1.0, %v294
  %v296 = vrcp.pop %v287
  %v297 = vmul.f32 1.0, %v296
  %v298 = vrcp.pop %v288
  %v299 = vmul.f32 1.0, %v298
  %v300 = vrcp.pop %v289
  %v301 = vmul.f32 1.0, %v300
  %v302 = vrcp.pop %v290
  %v303 = vmul.f32 1.0, %v302
  %v304 = vrcp.pop %v291
  %v305 = vmul.f32 1.0, %v304
  %v306 = vmul.f32 %v235, %v293
  %v307 = vmul.f32 %v238, %v295
  %v308 = vmul.f32 %v243, %v297
  %v309 = vmul.f32 %v246, %v299
  %v310 = vmul.f32 %v251, %v301
  %v311 = vmul.f32 %v254, %v303
  %v312 = vmul.f32 %v259, %v305
  %v313 = vpack.c.bf16 %v307, %v306
  %v314 = vpack.c.bf16 %v309, %v308
  %v315 = vpack.c.bf16 %v311, %v310
  %v316 = vpack.c.bf16 %v312, %v312
  %v317 = vld [vmem:[%s5] sm:$0xf]
  %v318 = vld [vmem:[%s5 + $0x4] sm:$0xf]
  %v319 = vld [vmem:[%s5 + $0x8] sm:$0xf]
  %v320 = vld [vmem:[%s5 + $0xc] sm:$0xf]
  %v321 = vld [vmem:[%s5 + $0x10] sm:$0xf]
  %v322 = vld [vmem:[%s5 + $0x14] sm:$0xf]
  %v323 = vld [vmem:[%s5 + $0x18] sm:$0xf]
  %v324 = vld [vmem:[%s5 + $0x1c] sm:$0xf]
  %v325 = vld [vmem:[%s6] sm:$0x1]
  %v327 = vlaneseq
  %v328 = vshrl.u32 %v327, 7
  %v329 = vsub.s32 0, %v328
  %v330 = vrot.slane %v325, %v329
  %v340 = vunpack.c.l.b16 %v317
  %v341 = vunpack.c.l.b16 %v318
  %v342 = vunpack.c.l.b16 %v319
  %v343 = vunpack.c.l.b16 %v320
  %v344 = vunpack.c.l.b16 %v321
  %v345 = vunpack.c.l.b16 %v322
  %v346 = vunpack.c.l.b16 %v323
  %v347 = vunpack.c.l.b16 %v324
  %v348 = vpack.c.b16 %v341, %v340
  %v349 = vpack.c.b16 %v343, %v342
  %v350 = vpack.c.b16 %v345, %v344
  %v351 = vpack.c.b16 %v347, %v346
  %vm356 = vcmask 523264
  %v358 = vsel %vm356, %v313, 0
  %v361 = vsel %vm356, %v314, 0
  %v364 = vsel %vm356, %v315, 0
  %v367 = vsel %vm356, %v316, 0
  %369 = vmatprep.subr.bf16.mxu0 0
  %370 = vmatpush1.bf16.msra.mxu0 %v348
  %371 = vmatprep.subr.bf16.mxu0 0
  %372 = vmatpush1.bf16.msra.mxu0 %v349
  %373 = vmatprep.subr.bf16.mxu0 0
  %374 = vmatpush1.bf16.msra.mxu0 %v350
  %375 = vmatprep.subr.bf16.mxu0 0
  %376 = vmatpush1.bf16.msra.mxu0 %v351
  %377 = vmatprep.subr.bf16.mxu0 0
  %378 = vmatpush1.bf16.msra.mxu0 0
  %379 = vmatprep.subr.bf16.mxu0 0
  %380 = vmatpush1.bf16.msra.mxu0 0
  %381 = vmatprep.subr.bf16.mxu0 0
  %382 = vmatpush1.bf16.msra.mxu0 0
  %383 = vmatprep.subr.bf16.mxu0 0
  %384 = vmatpush1.bf16.msra.mxu0 0
  %385 = vmatprep.subr.bf16.mxu0 0
  %386 = vmatpush1.bf16.msra.mxu0 0
  %387 = vmatprep.subr.bf16.mxu0 0
  %388 = vmatpush1.bf16.msra.mxu0 0
  %389 = vmatprep.subr.bf16.mxu0 0
  %390 = vmatpush1.bf16.msra.mxu0 0
  %391 = vmatprep.subr.bf16.mxu0 0
  %392 = vmatpush1.bf16.msra.mxu0 0
  %393 = vmatprep.subr.bf16.mxu0 0
  %394 = vmatpush1.bf16.msra.mxu0 0
  %395 = vmatprep.subr.bf16.mxu0 0
  %396 = vmatpush1.bf16.msra.mxu0 0
  %397 = vmatprep.subr.bf16.mxu0 0
  %398 = vmatpush1.bf16.msra.mxu0 0
  %399 = vmatprep.subr.bf16.mxu0 0
  %400 = vmatpush1.bf16.msra.mxu0 0
  %401 = vmatprep.mubr.bf16.mxu0 0
  %402 = vmatmul.mubr.bf16.gmra.mrb[0].mxu0 %v358
  %v403 = vpop.f32.mrb[0].mxu0
  %v404 = vadd.f32 %v330, %v403
  %v405 = vpop.f32.mrb[0].mxu0
  %v406 = vpop.f32.mrb[0].mxu0
  %v407 = vadd.f32 %v330, %v406
  %v408 = vpop.f32.mrb[0].mxu0
  %409 = vmatprep.mubr.bf16.mxu0 0
  %410 = vmatmul.mubr.bf16.gmra.mrb[0].mxu0 %v361
  %v411 = vpop.f32.mrb[0].mxu0
  %v412 = vadd.f32 %v330, %v411
  %v413 = vpop.f32.mrb[0].mxu0
  %v414 = vpop.f32.mrb[0].mxu0
  %v415 = vadd.f32 %v330, %v414
  %v416 = vpop.f32.mrb[0].mxu0
  %417 = vmatprep.mubr.bf16.mxu0 0
  %418 = vmatmul.mubr.bf16.gmra.mrb[0].mxu0 %v364
  %v419 = vpop.f32.mrb[0].mxu0
  %v420 = vadd.f32 %v330, %v419
  %v421 = vpop.f32.mrb[0].mxu0
  %v422 = vpop.f32.mrb[0].mxu0
  %v423 = vadd.f32 %v330, %v422
  %v424 = vpop.f32.mrb[0].mxu0
  %425 = vmatprep.mubr.bf16.mxu0 0
  %426 = vmatmul.mubr.bf16.gmra.mrb[0].mxu0 %v367
  %v427 = vpop.f32.mrb[0].mxu0
  %v428 = vadd.f32 %v330, %v427
  %v429 = vpop.f32.mrb[0].mxu0
  %v430 = vpop.f32.mrb[0].mxu0
  %v431 = vpop.f32.mrb[0].mxu0
  %432 = vdwg.mxu0
  %v433 = vmul.f32 %v404, 0.5
  %v434 = vmul.f32 %v407, 0.5
  %v435 = vmul.f32 %v412, 0.5
  %v436 = vmul.f32 %v415, 0.5
  %v437 = vmul.f32 %v420, 0.5
  %v438 = vmul.f32 %v423, 0.5
  %v439 = vmul.f32 %v428, 0.5
  %v440 = vadd.f32 %v33, %v433
  %v441 = vadd.f32 %v34, %v434
  %v442 = vadd.f32 %v35, %v435
  %v443 = vadd.f32 %v36, %v436
  %v444 = vadd.f32 %v37, %v437
  %v445 = vadd.f32 %v38, %v438
  %v446 = vadd.f32 %v39, %v439
  %v447 = vld [vmem:[%s7] sm:$0x1]
  %v448 = vld [vmem:[%s8] sm:$0x1]
  %v449 = vsel %vm42, %v440, 0.0
  %450 = vadd.xlane.f32.xlu0 %v449
  %v451 = vpop.xlane.xlu0 %450
  %v452 = vsel %vm42, %v441, 0.0
  %453 = vadd.xlane.f32.xlu0 %v452
  %v454 = vpop.xlane.xlu0 %453
  %v455 = vsel %vm42, %v442, 0.0
  %456 = vadd.xlane.f32.xlu0 %v455
  %v457 = vpop.xlane.xlu0 %456
  %v458 = vsel %vm42, %v443, 0.0
  %459 = vadd.xlane.f32.xlu0 %v458
  %v460 = vpop.xlane.xlu0 %459
  %v461 = vsel %vm42, %v444, 0.0
  %462 = vadd.xlane.f32.xlu0 %v461
  %v463 = vpop.xlane.xlu0 %462
  %v464 = vsel %vm42, %v445, 0.0
  %465 = vadd.xlane.f32.xlu0 %v464
  %v466 = vpop.xlane.xlu0 %465
  %v467 = vsel %vm42, %v446, 0.0
  %468 = vadd.xlane.f32.xlu0 %v467
  %v469 = vpop.xlane.xlu0 %468
  %v470 = vmul.f32 %v451, %v64
  %v471 = vmul.f32 %v454, %v64
  %v472 = vmul.f32 %v457, %v64
  %v473 = vmul.f32 %v460, %v64
  %v474 = vmul.f32 %v463, %v64
  %v475 = vmul.f32 %v466, %v64
  %v476 = vmul.f32 %v469, %v64
  %v477 = vsub.f32 %v440, %v470
  %v478 = vsub.f32 %v441, %v471
  %v479 = vsub.f32 %v442, %v472
  %v480 = vsub.f32 %v443, %v473
  %v481 = vsub.f32 %v444, %v474
  %v482 = vsub.f32 %v445, %v475
  %v483 = vsub.f32 %v446, %v476
  %v484 = vmul.f32 %v477, %v477
  %v485 = vmul.f32 %v478, %v478
  %v486 = vmul.f32 %v479, %v479
  %v487 = vmul.f32 %v480, %v480
  %v488 = vmul.f32 %v481, %v481
  %v489 = vmul.f32 %v482, %v482
  %v490 = vmul.f32 %v483, %v483
  %v491 = vsel %vm42, %v484, 0.0
  %492 = vadd.xlane.f32.xlu0 %v491
  %v493 = vpop.xlane.xlu0 %492
  %v494 = vsel %vm42, %v485, 0.0
  %495 = vadd.xlane.f32.xlu0 %v494
  %v496 = vpop.xlane.xlu0 %495
  %v497 = vsel %vm42, %v486, 0.0
  %498 = vadd.xlane.f32.xlu0 %v497
  %v499 = vpop.xlane.xlu0 %498
  %v500 = vsel %vm42, %v487, 0.0
  %501 = vadd.xlane.f32.xlu0 %v500
  %v502 = vpop.xlane.xlu0 %501
  %v503 = vsel %vm42, %v488, 0.0
  %504 = vadd.xlane.f32.xlu0 %v503
  %v505 = vpop.xlane.xlu0 %504
  %v506 = vsel %vm42, %v489, 0.0
  %507 = vadd.xlane.f32.xlu0 %v506
  %v508 = vpop.xlane.xlu0 %507
  %v509 = vsel %vm42, %v490, 0.0
  %510 = vadd.xlane.f32.xlu0 %v509
  %v511 = vpop.xlane.xlu0 %510
  %v512 = vmul.f32 %v493, %v64
  %v513 = vmul.f32 %v496, %v64
  %v514 = vmul.f32 %v499, %v64
  %v515 = vmul.f32 %v502, %v64
  %v516 = vmul.f32 %v505, %v64
  %v517 = vmul.f32 %v508, %v64
  %v518 = vmul.f32 %v511, %v64
  %v519 = vadd.f32 %v512, 1e-05
  %v520 = vadd.f32 %v513, 1e-05
  %v521 = vadd.f32 %v514, 1e-05
  %v522 = vadd.f32 %v515, 1e-05
  %v523 = vadd.f32 %v516, 1e-05
  %v524 = vadd.f32 %v517, 1e-05
  %v525 = vadd.f32 %v518, 1e-05
  %v526 = vrsqrt.pop %v519
  %v527 = vrsqrt.pop %v520
  %v528 = vrsqrt.pop %v521
  %v529 = vrsqrt.pop %v522
  %v530 = vrsqrt.pop %v523
  %v531 = vrsqrt.pop %v524
  %v532 = vrsqrt.pop %v525
  %v533 = vmul.f32 %v477, %v526
  %v534 = vmul.f32 %v478, %v527
  %v535 = vmul.f32 %v479, %v528
  %v536 = vmul.f32 %v480, %v529
  %v537 = vmul.f32 %v481, %v530
  %v538 = vmul.f32 %v482, %v531
  %v539 = vmul.f32 %v483, %v532
  %v541 = vlaneseq
  %v542 = vshrl.u32 %v541, 7
  %v543 = vsub.s32 0, %v542
  %v544 = vrot.slane %v447, %v543
  %v546 = vmul.f32 %v533, %v544
  %v547 = vmul.f32 %v534, %v544
  %v548 = vmul.f32 %v535, %v544
  %v549 = vmul.f32 %v536, %v544
  %v550 = vmul.f32 %v537, %v544
  %v551 = vmul.f32 %v538, %v544
  %v552 = vmul.f32 %v539, %v544
  %v554 = vlaneseq
  %v555 = vshrl.u32 %v554, 7
  %v556 = vsub.s32 0, %v555
  %v557 = vrot.slane %v448, %v556
  %v559 = vadd.f32 %v546, %v557
  %v560 = vadd.f32 %v547, %v557
  %v561 = vadd.f32 %v548, %v557
  %v562 = vadd.f32 %v549, %v557
  %v563 = vadd.f32 %v550, %v557
  %v564 = vadd.f32 %v551, %v557
  %v565 = vadd.f32 %v552, %v557
  %566 = vst.msk [vmem:[%s9] sm:$0xff] %vm42, %v559
  %567 = vst.msk [vmem:[%s9 + $0x8] sm:$0xff] %vm42, %v560
  %568 = vst.msk [vmem:[%s9 + $0x10] sm:$0xff] %vm42, %v561
  %569 = vst.msk [vmem:[%s9 + $0x18] sm:$0xff] %vm42, %v562
  %570 = vst.msk [vmem:[%s9 + $0x20] sm:$0xff] %vm42, %v563
  %571 = vst.msk [vmem:[%s9 + $0x28] sm:$0xff] %vm42, %v564
  %572 = vst.msk [vmem:[%s9 + $0x30] sm:$0xff] %vm42, %v565
  // Predicated region
  $region38: #{model_forward.19} parent=0 // pred_check
    _
  $region39: #{model_forward.19} parent=0 // pred_check_branch
    %574 = sbr.rel (0) target = $region41
  $region40: #{model_forward.19} parent=0 // pred_region
    _
  $region41: #{model_forward.19} parent=0 // pred_fallthru
    _
  // Predicated region
  $region42: #{model_forward.19} parent=0 // pred_check
    _
  $region43: #{model_forward.19} parent=0 // pred_check_branch
    %576 = sbr.rel (0) target = $region45
  $region44: #{model_forward.19} parent=0 // pred_region
    _
  $region45: #{model_forward.19} parent=0 // pred_fallthru
    _

// kernel: model_forward.25
$region0: #{model_forward.25}
  #allocation0 [shape = 'u32[]', space=smem, size = 0x4, offset = 0x4, fixed_abs, tag = 'smem constant byte address 0x4 - core index']
  #allocation1 [shape = 'u32[144,128]{1,0:T(1,128)}', space=vmem, size = 0x12000, scoped, tag = 'internal scratch']
  %s0 = inlined_call_operand.vmem [shape: f32[40,32], index: 0, kind: input, shape index: {}]
  %s1 = inlined_call_operand.vmem [shape: bf16[32,128], index: 1, kind: input, shape index: {}]
  %s2 = inlined_call_operand.vmem [shape: f32[1,128], index: 2, kind: input, shape index: {}]
  %s3 = inlined_call_operand.vmem [shape: f32[40,128], index: 3, kind: output, shape index: {}]
  %s4 = sld [smem:[#allocation0]]
  $region22: #{model_forward.25} parent=0
    _
  %s6 = ssub.s32 1, %s4
  %s7 = scalar_select 0, %s6, %s4
  // Predicated region
  $region2: #{model_forward.25} parent=0 // pred_check
    _
  $region3: #{model_forward.25} parent=0 // pred_check_branch
    %9 = sbr.rel (0) target = $region5
  $region4: #{model_forward.25} parent=0 // pred_region
    _
  $region5: #{model_forward.25} parent=0 // pred_fallthru
    _
  // Predicated region
  $region6: #{model_forward.25} parent=0 // pred_check
    _
  $region7: #{model_forward.25} parent=0 // pred_check_branch
    %11 = sbr.rel (0) target = $region9
  $region8: #{model_forward.25} parent=0 // pred_region
    _
  $region9: #{model_forward.25} parent=0 // pred_fallthru
    _
  // Predicated region
  $region10: #{model_forward.25} parent=0 // pred_check
    _
  $region11: #{model_forward.25} parent=0 // pred_check_branch
    %13 = sbr.rel (0) target = $region13
  $region12: #{model_forward.25} parent=0 // pred_region
    _
  $region13: #{model_forward.25} parent=0 // pred_fallthru
    _
  %v15 = vld [vmem:[%s0] sm:$0xff]
  %v16 = vld [vmem:[%s0 + $0x8] sm:$0xff]
  %v17 = vld [vmem:[%s0 + $0x10] sm:$0xff]
  %v18 = vld [vmem:[%s0 + $0x18] sm:$0xff]
  %v19 = vld [vmem:[%s0 + $0x20] sm:$0xff]
  %v20 = vpack.c.bf16 %v16, %v15
  %v21 = vpack.c.bf16 %v18, %v17
  %v22 = vpack.c.bf16 %v19, %v19
  %v23 = vld [vmem:[%s1] sm:$0xf]
  %v24 = vld [vmem:[%s1 + $0x4] sm:$0xf]
  %v25 = vld [vmem:[%s1 + $0x8] sm:$0xf]
  %v26 = vld [vmem:[%s1 + $0xc] sm:$0xf]
  %v27 = vld [vmem:[%s2] sm:$0x1]
  %v29 = vlaneseq
  %v30 = vshrl.u32 %v29, 7
  %v31 = vsub.s32 0, %v30
  %v32 = vrot.slane %v27, %v31
  %v38 = vunpack.c.l.b16 %v23
  %v39 = vunpack.c.l.b16 %v24
  %v40 = vunpack.c.l.b16 %v25
  %v41 = vunpack.c.l.b16 %v26
  %v42 = vpack.c.b16 %v39, %v38
  %v43 = vpack.c.b16 %v41, %v40
  %vm46 = vcmask 261120
  %v48 = vsel %vm46, %v20, 0
  %v51 = vsel %vm46, %v21, 0
  %v54 = vsel %vm46, %v22, 0
  %56 = vmatprep.subr.bf16.mxu0 0
  %57 = vmatpush1.bf16.msra.mxu0 %v42
  %58 = vmatprep.subr.bf16.mxu0 0
  %59 = vmatpush1.bf16.msra.mxu0 %v43
  %60 = vmatprep.subr.bf16.mxu0 0
  %61 = vmatpush1.bf16.msra.mxu0 0
  %62 = vmatprep.subr.bf16.mxu0 0
  %63 = vmatpush1.bf16.msra.mxu0 0
  %64 = vmatprep.subr.bf16.mxu0 0
  %65 = vmatpush1.bf16.msra.mxu0 0
  %66 = vmatprep.subr.bf16.mxu0 0
  %67 = vmatpush1.bf16.msra.mxu0 0
  %68 = vmatprep.subr.bf16.mxu0 0
  %69 = vmatpush1.bf16.msra.mxu0 0
  %70 = vmatprep.subr.bf16.mxu0 0
  %71 = vmatpush1.bf16.msra.mxu0 0
  %72 = vmatprep.subr.bf16.mxu0 0
  %73 = vmatpush1.bf16.msra.mxu0 0
  %74 = vmatprep.subr.bf16.mxu0 0
  %75 = vmatpush1.bf16.msra.mxu0 0
  %76 = vmatprep.subr.bf16.mxu0 0
  %77 = vmatpush1.bf16.msra.mxu0 0
  %78 = vmatprep.subr.bf16.mxu0 0
  %79 = vmatpush1.bf16.msra.mxu0 0
  %80 = vmatprep.subr.bf16.mxu0 0
  %81 = vmatpush1.bf16.msra.mxu0 0
  %82 = vmatprep.subr.bf16.mxu0 0
  %83 = vmatpush1.bf16.msra.mxu0 0
  %84 = vmatprep.subr.bf16.mxu0 0
  %85 = vmatpush1.bf16.msra.mxu0 0
  %86 = vmatprep.subr.bf16.mxu0 0
  %87 = vmatpush1.bf16.msra.mxu0 0
  %88 = vmatprep.mubr.bf16.mxu0 0
  %89 = vmatmul.mubr.bf16.gmra.mrb[0].mxu0 %v48
  %v90 = vpop.f32.mrb[0].mxu0
  %v91 = vadd.f32 %v32, %v90
  %v92 = vpop.f32.mrb[0].mxu0
  %v93 = vpop.f32.mrb[0].mxu0
  %v94 = vadd.f32 %v32, %v93
  %v95 = vpop.f32.mrb[0].mxu0
  %96 = vmatprep.mubr.bf16.mxu0 0
  %97 = vmatmul.mubr.bf16.gmra.mrb[0].mxu0 %v51
  %v98 = vpop.f32.mrb[0].mxu0
  %v99 = vadd.f32 %v32, %v98
  %v100 = vpop.f32.mrb[0].mxu0
  %v101 = vpop.f32.mrb[0].mxu0
  %v102 = vadd.f32 %v32, %v101
  %v103 = vpop.f32.mrb[0].mxu0
  %104 = vmatprep.mubr.bf16.mxu0 0
  %105 = vmatmul.mubr.bf16.gmra.mrb[0].mxu0 %v54
  %v106 = vpop.f32.mrb[0].mxu0
  %v107 = vadd.f32 %v32, %v106
  %v108 = vpop.f32.mrb[0].mxu0
  %v109 = vpop.f32.mrb[0].mxu0
  %v110 = vpop.f32.mrb[0].mxu0
  %111 = vdwg.mxu0
  %112 = vmax.xlane.f32.xlu0 %v91
  %v113 = vpop.xlane.xlu0 %112
  %114 = vmax.xlane.f32.xlu0 %v94
  %v115 = vpop.xlane.xlu0 %114
  %116 = vmax.xlane.f32.xlu0 %v99
  %v117 = vpop.xlane.xlu0 %116
  %118 = vmax.xlane.f32.xlu0 %v102
  %v119 = vpop.xlane.xlu0 %118
  %120 = vmax.xlane.f32.xlu0 %v107
  %v121 = vpop.xlane.xlu0 %120
  %v122 = vsub.f32 %v91, %v113
  %v123 = vsub.f32 %v94, %v115
  %v124 = vsub.f32 %v99, %v117
  %v125 = vsub.f32 %v102, %v119
  %v126 = vsub.f32 %v107, %v121
  %v127 = vmul.f32 %v122, 1.442695
  %v128 = vpow.pop %v127
  %v129 = vmul.f32 %v123, 1.442695
  %v130 = vpow.pop %v129
  %v131 = vmul.f32 %v124, 1.442695
  %v132 = vpow.pop %v131
  %v133 = vmul.f32 %v125, 1.442695
  %v134 = vpow.pop %v133
  %v135 = vmul.f32 %v126, 1.442695
  %v136 = vpow.pop %v135
  %137 = vadd.xlane.f32.xlu0 %v128
  %v138 = vpop.xlane.xlu0 %137
  %139 = vadd.xlane.f32.xlu0 %v130
  %v140 = vpop.xlane.xlu0 %139
  %141 = vadd.xlane.f32.xlu0 %v132
  %v142 = vpop.xlane.xlu0 %141
  %143 = vadd.xlane.f32.xlu0 %v134
  %v144 = vpop.xlane.xlu0 %143
  %145 = vadd.xlane.f32.xlu0 %v136
  %v146 = vpop.xlane.xlu0 %145
  %v147 = vlog2.pop %v138
  %v148 = vmul.f32 %v147, 0.6931472
  %v149 = vlog2.pop %v140
  %v150 = vmul.f32 %v149, 0.6931472
  %v151 = vlog2.pop %v142
  %v152 = vmul.f32 %v151, 0.6931472
  %v153 = vlog2.pop %v144
  %v154 = vmul.f32 %v153, 0.6931472
  %v155 = vlog2.pop %v146
  %v156 = vmul.f32 %v155, 0.6931472
  %v157 = vsub.f32 %v122, %v148
  %v158 = vsub.f32 %v123, %v150
  %v159 = vsub.f32 %v124, %v152
  %v160 = vsub.f32 %v125, %v154
  %v161 = vsub.f32 %v126, %v156
  %162 = vst [vmem:[%s3] sm:$0xff] %v157
  %163 = vst [vmem:[%s3 + $0x8] sm:$0xff] %v158
  %164 = vst [vmem:[%s3 + $0x10] sm:$0xff] %v159
  %165 = vst [vmem:[%s3 + $0x18] sm:$0xff] %v160
  %166 = vst [vmem:[%s3 + $0x20] sm:$0xff] %v161
  // Predicated region
  $region14: #{model_forward.25} parent=0 // pred_check
    _
  $region15: #{model_forward.25} parent=0 // pred_check_branch
    %168 = sbr.rel (0) target = $region17
  $region16: #{model_forward.25} parent=0 // pred_region
    _
  $region17: #{model_forward.25} parent=0 // pred_fallthru
    _
  // Predicated region
  $region18: #{model_forward.25} parent=0 // pred_check
    _
  $region19: #{model_forward.25} parent=0 // pred_check_branch
    %170 = sbr.rel (0) target = $region21
  $region20: #{model_forward.25} parent=0 // pred_region
    _
  $region21: #{model_forward.25} parent=0 // pred_fallthru
    _

</llo_original>
